<compile_context>
chip_gen: v6e
topology: v6e:2x2x1
jax: 0.10.0
libtpu: 0.0.40
codegen_flags: <defaults>
</compile_context>

<pallas_src>
import numpy as np
import jax
import jax.numpy as jnp
from jax.experimental import pallas as pl
from jax.experimental.pallas import tpu as pltpu

NEG_SLOPE = 0.2


# ---------------------------------------------------------------------------
# Host-side weight packing: 3x3 "same" conv -> KH block-Toeplitz matrices with
# the horizontal zero padding baked in (rows = W*Cin, cols = W*Cout).
# ---------------------------------------------------------------------------

def _toeplitz(w, W, pad):
    """w: (KH, KW, Cin, Cout) HWIO.  Returns (KH, W*Cin, W*Cout)."""
    KH, KW, Cin, Cout = w.shape
    assert KH == KW == 2 * pad + 1, "only kernel = 2*pad + 1, stride 1 supported"
    T = np.zeros((KH, W * Cin, W * Cout), np.float32)
    for kh in range(KH):
        for kw in range(KW):
            blk = w[kh, kw]                                   # (Cin, Cout)
            for wo in range(W):
                wi = wo + kw - pad
                if 0 <= wi < W:                               # horizontal zero-pad baked in
                    T[kh, wi * Cin:(wi + 1) * Cin, wo * Cout:(wo + 1) * Cout] += blk
    return T


def _bias_row(b, W):
    return np.tile(np.asarray(b, np.float32), W)[None, :]     # (1, W*Cout)


def pack_weights(params, W, pad, chans):
    """Per layer: [t_ds, b_ds, t_gx, t_gh, b_g, t_ox, t_oh, b_o] (Toeplitz bf16, bias f32)."""
    out = []
    for i, (c_in, c_ds, c_g) in enumerate(chans):
        lp = params["layers"][i]

        w_ds = np.asarray(lp["down"]["w"], np.float32)        # (3,3,cin_raw,c_ds)
        if w_ds.shape[2] < c_in:                              # layer-0 channel pad (lane align)
            w_p = np.zeros(w_ds.shape[:2] + (c_in, c_ds), np.float32)
            w_p[:, :, :w_ds.shape[2], :] = w_ds
            w_ds = w_p
        t_ds = _toeplitz(w_ds, W, pad)
        b_ds = _bias_row(lp["down"]["b"], W)

        wu = np.asarray(lp["gru"]["update"]["w"], np.float32)  # (3,3,c_ds+c_g,c_g)
        wr = np.asarray(lp["gru"]["reset"]["w"], np.float32)
        t_gx = np.concatenate([_toeplitz(wu[:, :, :c_ds, :], W, pad),
                               _toeplitz(wr[:, :, :c_ds, :], W, pad)], axis=2)
        t_gh = np.concatenate([_toeplitz(wu[:, :, c_ds:, :], W, pad),
                               _toeplitz(wr[:, :, c_ds:, :], W, pad)], axis=2)
        b_g = np.concatenate([_bias_row(lp["gru"]["update"]["b"], W),
                              _bias_row(lp["gru"]["reset"]["b"], W)], axis=1)

        wo = np.asarray(lp["gru"]["out"]["w"], np.float32)
        t_ox = _toeplitz(wo[:, :, :c_ds, :], W, pad)
        t_oh = _toeplitz(wo[:, :, c_ds:, :], W, pad)
        b_o = _bias_row(lp["gru"]["out"]["b"], W)

        out += [jnp.asarray(t_ds, jnp.bfloat16), jnp.asarray(b_ds),
                jnp.asarray(t_gx, jnp.bfloat16), jnp.asarray(t_gh, jnp.bfloat16),
                jnp.asarray(b_g),
                jnp.asarray(t_ox, jnp.bfloat16), jnp.asarray(t_oh, jnp.bfloat16),
                jnp.asarray(b_o)]
    return out


# ---------------------------------------------------------------------------
# Fused Encoder kernel (one grid step = one batch slab, M = Bt*(H+2*pad))
# ---------------------------------------------------------------------------

def _make_encoder_kernel(n_cells, M, W, pad, chans, KH):

    def leaky(v):
        return jnp.where(v >= 0.0, v, NEG_SLOPE * v)

    def kernel(*refs):
        x_ref = refs[0]
        h_refs = refs[1:1 + n_cells]
        mask_ref = refs[1 + n_cells]
        w_refs = refs[2 + n_cells:2 + n_cells + 8 * n_cells]
        out_refs = refs[2 + 9 * n_cells:]

        mask = mask_ref[...]                                  # (M, 1) f32, 1 on valid rows

        def pad_rows(v):
            # Only the 1-row top/bottom sublane pad needed for the kh shifts;
            # horizontal padding lives in the Toeplitz weights.
            z = jnp.zeros((pad, v.shape[1]), v.dtype)
            return jnp.concatenate([z, v, z], axis=0)         # (M+2p, K)

        def conv(xe, t_ref):
            # 'same' conv as KH accumulated MXU matmuls over row-shifted slices.
            acc = jnp.dot(xe[0:M, :], t_ref[0], preferred_element_type=jnp.float32)
            for kh in range(1, KH):
                acc += jnp.dot(xe[kh:kh + M, :], t_ref[kh],
                               preferred_element_type=jnp.float32)
            return acc

        x_cur = x_ref[0]                                      # (M, W*Cin) f32
        for i in range(n_cells):
            _, _, c_g = chans[i]
            (t_ds, b_ds, t_gx, t_gh, b_g, t_ox, t_oh, b_o) = w_refs[8 * i:8 * (i + 1)]

            # Downsample CNN2D_cell: conv + bias + LeakyReLU(0.2); mask restores
            # exact zero rows at the per-batch vertical padding.
            xe = pad_rows(x_cur.astype(jnp.bfloat16))
            x_ds = leaky(conv(xe, t_ds) + b_ds[...]) * mask   # (M, W*c_ds) f32

            # ConvGRU cell — fused [update|reset] gates, no operand concats.
            h_prev = h_refs[i][0]                             # (M, W*c_g) f32
            xg = pad_rows(x_ds.astype(jnp.bfloat16))
            hg = pad_rows(h_prev.astype(jnp.bfloat16))

            zg = leaky(conv(xg, t_gx) + conv(hg, t_gh) + b_g[...])
            gates = pl.reciprocal(1.0 + jnp.exp(-zg), approx=True)   # sigmoid via EUP
            upd = gates[:, :W * c_g]
            rst = gates[:, W * c_g:]

            hr = pad_rows((h_prev * rst).astype(jnp.bfloat16))
            zo = conv(xg, t_ox) + conv(hr, t_oh) + b_o[...]
            # leaky(0.2) in CNN2D_cell + leaky(0.2) in GRU forward == slope 0.04
            out_inp = jnp.where(zo >= 0.0, zo, (NEG_SLOPE * NEG_SLOPE) * zo)

            h_new = (h_prev * upd + out_inp * (1.0 - upd)) * mask
            out_refs[i][0] = h_new
            x_cur = out_refs[i][0]    # reload from VMEM block: breaks live ranges

    return kernel


# ---------------------------------------------------------------------------
# Wrapper (torch-like NCHW interface)
# ---------------------------------------------------------------------------

def encoder_forward(params, x, hidden=None):
    """convGRU_old.Encoder.forward: x (B, C, H, W) -> list of hidden states (B, Cg_i, H, W)."""
    cfg = params["cfg"]
    n = cfg["n_cells"]
    pad = cfg["padding"]
    c_gru = cfg["channel_gru"]
    c_dsl = cfg["channel_downsample"]
    B, c_in0, H, W = x.shape
    assert c_in0 == cfg["channel_input"]
    Hp = H + 2 * pad

    # Pad input channels so the first-layer lane width is a multiple of 128.
    lane0 = W * c_in0
    cin_pad = c_in0
    if lane0 % 128 != 0:
        tgt = ((lane0 + 127) // 128) * 128
        if tgt % W == 0:
            cin_pad = tgt // W

    chans = [(cin_pad if i == 0 else c_gru[i - 1], c_dsl[i], c_gru[i]) for i in range(n)]
    w_arrays = pack_weights(params, W, pad, chans)

    # Batch slabs: keep >=2 grid steps when possible (v7x dual TensorCore),
    # fold the rest of the batch into the matmul M dimension.
    G = 2 if B >= 2 else 1
    Bt = -(-B // G)
    Bp = G * Bt
    M = Bt * Hp

    def to_padded_rows(a_nhwc, c):
        # (nb, H, W, c) -> (G, Bt*Hp, W*c) with zero pad rows / padded batches.
        nb = a_nhwc.shape[0]
        buf = jnp.zeros((Bp, Hp, W * c), jnp.float32)
        buf = buf.at[:nb, pad:pad + H].set(a_nhwc.reshape(nb, H, W * c))
        return buf.reshape(G, M, W * c)

    x_nhwc = jnp.transpose(x, (0, 2, 3, 1)).astype(jnp.float32)
    if cin_pad != c_in0:
        x_nhwc = jnp.pad(x_nhwc, ((0, 0), (0, 0), (0, 0), (0, cin_pad - c_in0)))
    x3 = to_padded_rows(x_nhwc, cin_pad)

    if hidden is None:
        hidden = [None] * n
    h_in = []
    for i in range(n):
        if hidden[i] is None:
            h_in.append(jnp.zeros((G, M, W * c_gru[i]), jnp.float32))
        else:
            h_in.append(to_padded_rows(jnp.transpose(hidden[i], (0, 2, 3, 1)), c_gru[i]))

    # Row-validity mask: 1 on the H real rows of every batch slab, 0 on pad rows.
    r = np.arange(M) % Hp
    mask = jnp.asarray(((r >= pad) & (r < pad + H)).astype(np.float32)[:, None])

    in_specs = [pl.BlockSpec((1, M, W * cin_pad), lambda g: (g, 0, 0))]
    in_specs += [pl.BlockSpec((1, M, W * c_gru[i]), lambda g: (g, 0, 0)) for i in range(n)]
    in_specs += [pl.BlockSpec((M, 1), lambda g: (0, 0))]
    for wa in w_arrays:
        if wa.ndim == 3:
            in_specs.append(pl.BlockSpec(wa.shape, lambda g: (0, 0, 0)))
        else:
            in_specs.append(pl.BlockSpec(wa.shape, lambda g: (0, 0)))
    out_specs = [pl.BlockSpec((1, M, W * c_gru[i]), lambda g: (g, 0, 0)) for i in range(n)]
    out_shape = tuple(jax.ShapeDtypeStruct((G, M, W * c_gru[i]), jnp.float32)
                      for i in range(n))

    outs = pl.pallas_call(
        _make_encoder_kernel(n, M, W, pad, chans, cfg["kernel"]),
        out_shape=out_shape,
        grid=(G,),
        in_specs=in_specs,
        out_specs=out_specs,
        compiler_params=pltpu.CompilerParams(dimension_semantics=("parallel",)),
    )(x3, *h_in, mask, *w_arrays)

    if not isinstance(outs, (tuple, list)):
        outs = (outs,)
    res = []
    for i, o in enumerate(outs):
        o = o.reshape(Bp, Hp, W, c_gru[i])[:B, pad:pad + H]
        res.append(jnp.transpose(o, (0, 3, 1, 2)))
    return res


# ---------------------------------------------------------------------------
# Pure-JAX reference (same semantics) for a tolerance check
# ---------------------------------------------------------------------------

def _conv_ref(x_nhwc, w_hwio, b, pad):
    y = jax.lax.conv_general_dilated(
        x_nhwc, w_hwio, window_strides=(1, 1),
        padding=[(pad, pad), (pad, pad)],
        dimension_numbers=("NHWC", "HWIO", "NHWC"))
    return y + b


def encoder_forward_ref(params, x, hidden=None):
    cfg = params["cfg"]
    n = cfg["n_cells"]
    pad = cfg["padding"]
    leaky = lambda v: jnp.where(v >= 0.0, v, NEG_SLOPE * v)
    xh = jnp.transpose(x, (0, 2, 3, 1)).astype(jnp.float32)
    B, H, W, _ = xh.shape
    if hidden is None:
        hidden = [None] * n
    outs, inp = [], xh
    for i in range(n):
        lp = params["layers"][i]
        c_g = cfg["channel_gru"][i]
        x_ds = leaky(_conv_ref(inp, lp["down"]["w"], lp["down"]["b"], pad))
        h_prev = (jnp.zeros((B, H, W, c_g), jnp.float32) if hidden[i] is None
                  else jnp.transpose(hidden[i], (0, 2, 3, 1)))
        stacked = jnp.concatenate([x_ds, h_prev], axis=-1)
        upd = jax.nn.sigmoid(leaky(_conv_ref(stacked, lp["gru"]["update"]["w"],
                                             lp["gru"]["update"]["b"], pad)))
        rst = jax.nn.sigmoid(leaky(_conv_ref(stacked, lp["gru"]["reset"]["w"],
                                             lp["gru"]["reset"]["b"], pad)))
        stacked2 = jnp.concatenate([x_ds, h_prev * rst], axis=-1)
        out_inp = leaky(leaky(_conv_ref(stacked2, lp["gru"]["out"]["w"],
                                        lp["gru"]["out"]["b"], pad)))
        h_new = h_prev * upd + out_inp * (1.0 - upd)
        outs.append(jnp.transpose(h_new, (0, 3, 1, 2)))
        inp = h_new
    return outs


# ---------------------------------------------------------------------------
# Parameter construction
# ---------------------------------------------------------------------------

def _conv_init(key, k, cin, cout):
    k1, k2 = jax.random.split(key)
    return {"w": jax.random.normal(k1, (k, k, cin, cout), jnp.float32) * 0.1,
            "b": jax.random.normal(k2, (cout,), jnp.float32) * 0.01}


def build_params(key, channel_input=4, channel_downsample=(8, 16),
                 channel_gru=(8, 16), kernel=3, padding=1):
    n = len(channel_downsample)
    layers = []
    lkeys = jax.random.split(key, n)
    for i in range(n):
        cin = channel_input if i == 0 else channel_gru[i - 1]
        cds, cg = channel_downsample[i], channel_gru[i]
        kd, ku, kr, ko = jax.random.split(lkeys[i], 4)
        layers.append({
            "down": _conv_init(kd, kernel, cin, cds),
            "gru": {"update": _conv_init(ku, kernel, cds + cg, cg),
                    "reset": _conv_init(kr, kernel, cds + cg, cg),
                    "out": _conv_init(ko, kernel, cds + cg, cg)},
        })
    cfg = dict(n_cells=n, channel_input=channel_input,
               channel_downsample=list(channel_downsample),
               channel_gru=list(channel_gru), kernel=kernel, padding=padding)
    return {"cfg": cfg, "layers": layers}


# ---------------------------------------------------------------------------

if __name__ == "__main__":
    key = jax.random.PRNGKey(0)
    kp, kx = jax.random.split(key)
    params = build_params(kp)
    # Encoder input frame: (batch=2, channels=4, H=16, W=16), NCHW like torch.
    x = jax.random.normal(kx, (2, 4, 16, 16), jnp.float32)

    hidden = encoder_forward(params, x)
    hidden = jax.block_until_ready(hidden)
    assert hidden[0].shape == (2, 8, 16, 16), hidden[0].shape
    assert hidden[1].shape == (2, 16, 16, 16), hidden[1].shape

    ref = jax.block_until_ready(encoder_forward_ref(params, x))
    for h, r in zip(hidden, ref):
        assert bool(jnp.all(jnp.isfinite(h)))
        err = float(jnp.max(jnp.abs(h - r)))
        assert err < 5e-2, f"mismatch vs reference: max abs err = {err}"

    # Second (recurrent) step: exercises the provided-hidden path.
    hidden2 = jax.block_until_ready(encoder_forward(params, x, hidden))
    ref2 = jax.block_until_ready(encoder_forward_ref(params, x, ref))
    for h, r in zip(hidden2, ref2):
        assert bool(jnp.all(jnp.isfinite(h)))
        err = float(jnp.max(jnp.abs(h - r)))
        assert err < 1e-1, f"recurrent-step mismatch: max abs err = {err}"

    print("KERNEL_OK")
</pallas_src>

<mosaic_0001>
module attributes {stable_mosaic.version = 11 : i64} {
  func.func @kernel(%arg0: i32, %arg1: memref<1x18x128xf32, #tpu.memory_space<vmem>>, %arg2: memref<1x18x128xf32, #tpu.memory_space<vmem>>, %arg3: memref<1x18x256xf32, #tpu.memory_space<vmem>>, %arg4: memref<18x1xf32, #tpu.memory_space<vmem>>, %arg5: memref<3x128x128xbf16, #tpu.memory_space<vmem>>, %arg6: memref<1x128xf32, #tpu.memory_space<vmem>>, %arg7: memref<3x128x256xbf16, #tpu.memory_space<vmem>>, %arg8: memref<3x128x256xbf16, #tpu.memory_space<vmem>>, %arg9: memref<1x256xf32, #tpu.memory_space<vmem>>, %arg10: memref<3x128x128xbf16, #tpu.memory_space<vmem>>, %arg11: memref<3x128x128xbf16, #tpu.memory_space<vmem>>, %arg12: memref<1x128xf32, #tpu.memory_space<vmem>>, %arg13: memref<3x128x256xbf16, #tpu.memory_space<vmem>>, %arg14: memref<1x256xf32, #tpu.memory_space<vmem>>, %arg15: memref<3x256x512xbf16, #tpu.memory_space<vmem>>, %arg16: memref<3x256x512xbf16, #tpu.memory_space<vmem>>, %arg17: memref<1x512xf32, #tpu.memory_space<vmem>>, %arg18: memref<3x256x256xbf16, #tpu.memory_space<vmem>>, %arg19: memref<3x256x256xbf16, #tpu.memory_space<vmem>>, %arg20: memref<1x256xf32, #tpu.memory_space<vmem>>, %arg21: memref<1x18x128xf32, #tpu.memory_space<vmem>>, %arg22: memref<1x18x256xf32, #tpu.memory_space<vmem>>) attributes {dimension_semantics = [#tpu.dimension_semantics<parallel>], iteration_bounds = array<i64: 2>, scalar_prefetch = 0 : i64, scratch_operands = 0 : i64, tpu.core_type = #tpu.core_type<tc>, window_params = [{transform_indices = @transform_0, window_bounds = array<i64: 1, 18, 128>}, {transform_indices = @transform_1, window_bounds = array<i64: 1, 18, 128>}, {transform_indices = @transform_2, window_bounds = array<i64: 1, 18, 256>}, {pipeline_mode = #tpu.pipeline_mode<synchronous>, transform_indices = @transform_3, window_bounds = array<i64: 18, 1>}, {pipeline_mode = #tpu.pipeline_mode<synchronous>, transform_indices = @transform_4, window_bounds = array<i64: 3, 128, 128>}, {pipeline_mode = #tpu.pipeline_mode<synchronous>, transform_indices = @transform_5, window_bounds = array<i64: 1, 128>}, {pipeline_mode = #tpu.pipeline_mode<synchronous>, transform_indices = @transform_6, window_bounds = array<i64: 3, 128, 256>}, {pipeline_mode = #tpu.pipeline_mode<synchronous>, transform_indices = @transform_7, window_bounds = array<i64: 3, 128, 256>}, {pipeline_mode = #tpu.pipeline_mode<synchronous>, transform_indices = @transform_8, window_bounds = array<i64: 1, 256>}, {pipeline_mode = #tpu.pipeline_mode<synchronous>, transform_indices = @transform_9, window_bounds = array<i64: 3, 128, 128>}, {pipeline_mode = #tpu.pipeline_mode<synchronous>, transform_indices = @transform_10, window_bounds = array<i64: 3, 128, 128>}, {pipeline_mode = #tpu.pipeline_mode<synchronous>, transform_indices = @transform_11, window_bounds = array<i64: 1, 128>}, {pipeline_mode = #tpu.pipeline_mode<synchronous>, transform_indices = @transform_12, window_bounds = array<i64: 3, 128, 256>}, {pipeline_mode = #tpu.pipeline_mode<synchronous>, transform_indices = @transform_13, window_bounds = array<i64: 1, 256>}, {pipeline_mode = #tpu.pipeline_mode<synchronous>, transform_indices = @transform_14, window_bounds = array<i64: 3, 256, 512>}, {pipeline_mode = #tpu.pipeline_mode<synchronous>, transform_indices = @transform_15, window_bounds = array<i64: 3, 256, 512>}, {pipeline_mode = #tpu.pipeline_mode<synchronous>, transform_indices = @transform_16, window_bounds = array<i64: 1, 512>}, {pipeline_mode = #tpu.pipeline_mode<synchronous>, transform_indices = @transform_17, window_bounds = array<i64: 3, 256, 256>}, {pipeline_mode = #tpu.pipeline_mode<synchronous>, transform_indices = @transform_18, window_bounds = array<i64: 3, 256, 256>}, {pipeline_mode = #tpu.pipeline_mode<synchronous>, transform_indices = @transform_19, window_bounds = array<i64: 1, 256>}, {transform_indices = @transform_20, window_bounds = array<i64: 1, 18, 128>}, {transform_indices = @transform_21, window_bounds = array<i64: 1, 18, 256>}]} {
    %c0 = arith.constant 0 : index
    %c0_0 = arith.constant 0 : index
    %0 = vector.load %arg4[%c0, %c0_0] : memref<18x1xf32, #tpu.memory_space<vmem>>, vector<18x1xf32>
    %c0_1 = arith.constant 0 : index
    %c0_2 = arith.constant 0 : index
    %c0_3 = arith.constant 0 : index
    %1 = vector.load %arg1[%c0_1, %c0_2, %c0_3] : memref<1x18x128xf32, #tpu.memory_space<vmem>>, vector<1x18x128xf32>
    %2 = vector.shape_cast %1 : vector<1x18x128xf32> to vector<18x128xf32>
    %3 = arith.truncf %2 : vector<18x128xf32> to vector<18x128xbf16>
    %cst = arith.constant 0.000000e+00 : bf16
    %4 = vector.broadcast %cst : bf16 to vector<1x128xbf16>
    %5 = tpu.concatenate %4, %3, %4 in 0 : vector<1x128xbf16>, vector<18x128xbf16>, vector<1x128xbf16> -> vector<20x128xbf16>
    %6 = vector.extract_strided_slice %5 {offsets = [0, 0], sizes = [18, 128], strides = [1, 1]} : vector<20x128xbf16> to vector<18x128xbf16>
    %c0_4 = arith.constant 0 : index
    %c0_5 = arith.constant 0 : index
    %c0_6 = arith.constant 0 : index
    %7 = vector.load %arg5[%c0_4, %c0_5, %c0_6] : memref<3x128x128xbf16, #tpu.memory_space<vmem>>, vector<1x128x128xbf16>
    %8 = vector.shape_cast %7 : vector<1x128x128xbf16> to vector<128x128xbf16>
    %cst_7 = arith.constant dense<0.000000e+00> : vector<18x128xf32>
    %9 = tpu.matmul %6, %8, %cst_7 {dimension_numbers = #tpu.dot_dimension_numbers<[1], [0], [0], [1], [0, 0, 1, 1], [], []>} : vector<18x128xbf16>, vector<128x128xbf16>, vector<18x128xf32> -> vector<18x128xf32>
    %10 = vector.extract_strided_slice %5 {offsets = [1, 0], sizes = [18, 128], strides = [1, 1]} : vector<20x128xbf16> to vector<18x128xbf16>
    %c1 = arith.constant 1 : index
    %c0_8 = arith.constant 0 : index
    %c0_9 = arith.constant 0 : index
    %11 = vector.load %arg5[%c1, %c0_8, %c0_9] : memref<3x128x128xbf16, #tpu.memory_space<vmem>>, vector<1x128x128xbf16>
    %12 = vector.shape_cast %11 : vector<1x128x128xbf16> to vector<128x128xbf16>
    %cst_10 = arith.constant dense<0.000000e+00> : vector<18x128xf32>
    %13 = tpu.matmul %10, %12, %cst_10 {dimension_numbers = #tpu.dot_dimension_numbers<[1], [0], [0], [1], [0, 0, 1, 1], [], []>} : vector<18x128xbf16>, vector<128x128xbf16>, vector<18x128xf32> -> vector<18x128xf32>
    %14 = arith.addf %9, %13 : vector<18x128xf32>
    %15 = vector.extract_strided_slice %5 {offsets = [2, 0], sizes = [18, 128], strides = [1, 1]} : vector<20x128xbf16> to vector<18x128xbf16>
    %c2 = arith.constant 2 : index
    %c0_11 = arith.constant 0 : index
    %c0_12 = arith.constant 0 : index
    %16 = vector.load %arg5[%c2, %c0_11, %c0_12] : memref<3x128x128xbf16, #tpu.memory_space<vmem>>, vector<1x128x128xbf16>
    %17 = vector.shape_cast %16 : vector<1x128x128xbf16> to vector<128x128xbf16>
    %cst_13 = arith.constant dense<0.000000e+00> : vector<18x128xf32>
    %18 = tpu.matmul %15, %17, %cst_13 {dimension_numbers = #tpu.dot_dimension_numbers<[1], [0], [0], [1], [0, 0, 1, 1], [], []>} : vector<18x128xbf16>, vector<128x128xbf16>, vector<18x128xf32> -> vector<18x128xf32>
    %19 = arith.addf %14, %18 : vector<18x128xf32>
    %c0_14 = arith.constant 0 : index
    %c0_15 = arith.constant 0 : index
    %20 = vector.load %arg6[%c0_14, %c0_15] : memref<1x128xf32, #tpu.memory_space<vmem>>, vector<1x128xf32>
    %21 = vector.broadcast %20 : vector<1x128xf32> to vector<18x128xf32>
    %22 = arith.addf %19, %21 : vector<18x128xf32>
    %cst_16 = arith.constant 0.000000e+00 : f32
    %23 = vector.broadcast %cst_16 : f32 to vector<18x128xf32>
    %24 = arith.cmpf oge, %22, %23 : vector<18x128xf32>
    %cst_17 = arith.constant 2.000000e-01 : f32
    %25 = vector.broadcast %cst_17 : f32 to vector<18x128xf32>
    %26 = arith.mulf %25, %22 : vector<18x128xf32>
    %27 = arith.select %24, %22, %26 : vector<18x128xi1>, vector<18x128xf32>
    %28 = vector.broadcast %0 : vector<18x1xf32> to vector<18x128xf32>
    %29 = arith.mulf %27, %28 : vector<18x128xf32>
    %c0_18 = arith.constant 0 : index
    %c0_19 = arith.constant 0 : index
    %c0_20 = arith.constant 0 : index
    %30 = vector.load %arg2[%c0_18, %c0_19, %c0_20] : memref<1x18x128xf32, #tpu.memory_space<vmem>>, vector<1x18x128xf32>
    %31 = vector.shape_cast %30 : vector<1x18x128xf32> to vector<18x128xf32>
    %32 = arith.truncf %29 : vector<18x128xf32> to vector<18x128xbf16>
    %cst_21 = arith.constant 0.000000e+00 : bf16
    %33 = vector.broadcast %cst_21 : bf16 to vector<1x128xbf16>
    %34 = tpu.concatenate %33, %32, %33 in 0 : vector<1x128xbf16>, vector<18x128xbf16>, vector<1x128xbf16> -> vector<20x128xbf16>
    %35 = arith.truncf %31 : vector<18x128xf32> to vector<18x128xbf16>
    %cst_22 = arith.constant 0.000000e+00 : bf16
    %36 = vector.broadcast %cst_22 : bf16 to vector<1x128xbf16>
    %37 = tpu.concatenate %36, %35, %36 in 0 : vector<1x128xbf16>, vector<18x128xbf16>, vector<1x128xbf16> -> vector<20x128xbf16>
    %38 = vector.extract_strided_slice %34 {offsets = [0, 0], sizes = [18, 128], strides = [1, 1]} : vector<20x128xbf16> to vector<18x128xbf16>
    %c0_23 = arith.constant 0 : index
    %c0_24 = arith.constant 0 : index
    %c0_25 = arith.constant 0 : index
    %39 = vector.load %arg7[%c0_23, %c0_24, %c0_25] : memref<3x128x256xbf16, #tpu.memory_space<vmem>>, vector<1x128x256xbf16>
    %40 = vector.shape_cast %39 : vector<1x128x256xbf16> to vector<128x256xbf16>
    %cst_26 = arith.constant dense<0.000000e+00> : vector<18x256xf32>
    %41 = tpu.matmul %38, %40, %cst_26 {dimension_numbers = #tpu.dot_dimension_numbers<[1], [0], [0], [1], [0, 0, 1, 1], [], []>} : vector<18x128xbf16>, vector<128x256xbf16>, vector<18x256xf32> -> vector<18x256xf32>
    %42 = vector.extract_strided_slice %34 {offsets = [1, 0], sizes = [18, 128], strides = [1, 1]} : vector<20x128xbf16> to vector<18x128xbf16>
    %c1_27 = arith.constant 1 : index
    %c0_28 = arith.constant 0 : index
    %c0_29 = arith.constant 0 : index
    %43 = vector.load %arg7[%c1_27, %c0_28, %c0_29] : memref<3x128x256xbf16, #tpu.memory_space<vmem>>, vector<1x128x256xbf16>
    %44 = vector.shape_cast %43 : vector<1x128x256xbf16> to vector<128x256xbf16>
    %cst_30 = arith.constant dense<0.000000e+00> : vector<18x256xf32>
    %45 = tpu.matmul %42, %44, %cst_30 {dimension_numbers = #tpu.dot_dimension_numbers<[1], [0], [0], [1], [0, 0, 1, 1], [], []>} : vector<18x128xbf16>, vector<128x256xbf16>, vector<18x256xf32> -> vector<18x256xf32>
    %46 = arith.addf %41, %45 : vector<18x256xf32>
    %47 = vector.extract_strided_slice %34 {offsets = [2, 0], sizes = [18, 128], strides = [1, 1]} : vector<20x128xbf16> to vector<18x128xbf16>
    %c2_31 = arith.constant 2 : index
    %c0_32 = arith.constant 0 : index
    %c0_33 = arith.constant 0 : index
    %48 = vector.load %arg7[%c2_31, %c0_32, %c0_33] : memref<3x128x256xbf16, #tpu.memory_space<vmem>>, vector<1x128x256xbf16>
    %49 = vector.shape_cast %48 : vector<1x128x256xbf16> to vector<128x256xbf16>
    %cst_34 = arith.constant dense<0.000000e+00> : vector<18x256xf32>
    %50 = tpu.matmul %47, %49, %cst_34 {dimension_numbers = #tpu.dot_dimension_numbers<[1], [0], [0], [1], [0, 0, 1, 1], [], []>} : vector<18x128xbf16>, vector<128x256xbf16>, vector<18x256xf32> -> vector<18x256xf32>
    %51 = arith.addf %46, %50 : vector<18x256xf32>
    %52 = vector.extract_strided_slice %37 {offsets = [0, 0], sizes = [18, 128], strides = [1, 1]} : vector<20x128xbf16> to vector<18x128xbf16>
    %c0_35 = arith.constant 0 : index
    %c0_36 = arith.constant 0 : index
    %c0_37 = arith.constant 0 : index
    %53 = vector.load %arg8[%c0_35, %c0_36, %c0_37] : memref<3x128x256xbf16, #tpu.memory_space<vmem>>, vector<1x128x256xbf16>
    %54 = vector.shape_cast %53 : vector<1x128x256xbf16> to vector<128x256xbf16>
    %cst_38 = arith.constant dense<0.000000e+00> : vector<18x256xf32>
    %55 = tpu.matmul %52, %54, %cst_38 {dimension_numbers = #tpu.dot_dimension_numbers<[1], [0], [0], [1], [0, 0, 1, 1], [], []>} : vector<18x128xbf16>, vector<128x256xbf16>, vector<18x256xf32> -> vector<18x256xf32>
    %56 = vector.extract_strided_slice %37 {offsets = [1, 0], sizes = [18, 128], strides = [1, 1]} : vector<20x128xbf16> to vector<18x128xbf16>
    %c1_39 = arith.constant 1 : index
    %c0_40 = arith.constant 0 : index
    %c0_41 = arith.constant 0 : index
    %57 = vector.load %arg8[%c1_39, %c0_40, %c0_41] : memref<3x128x256xbf16, #tpu.memory_space<vmem>>, vector<1x128x256xbf16>
    %58 = vector.shape_cast %57 : vector<1x128x256xbf16> to vector<128x256xbf16>
    %cst_42 = arith.constant dense<0.000000e+00> : vector<18x256xf32>
    %59 = tpu.matmul %56, %58, %cst_42 {dimension_numbers = #tpu.dot_dimension_numbers<[1], [0], [0], [1], [0, 0, 1, 1], [], []>} : vector<18x128xbf16>, vector<128x256xbf16>, vector<18x256xf32> -> vector<18x256xf32>
    %60 = arith.addf %55, %59 : vector<18x256xf32>
    %61 = vector.extract_strided_slice %37 {offsets = [2, 0], sizes = [18, 128], strides = [1, 1]} : vector<20x128xbf16> to vector<18x128xbf16>
    %c2_43 = arith.constant 2 : index
    %c0_44 = arith.constant 0 : index
    %c0_45 = arith.constant 0 : index
    %62 = vector.load %arg8[%c2_43, %c0_44, %c0_45] : memref<3x128x256xbf16, #tpu.memory_space<vmem>>, vector<1x128x256xbf16>
    %63 = vector.shape_cast %62 : vector<1x128x256xbf16> to vector<128x256xbf16>
    %cst_46 = arith.constant dense<0.000000e+00> : vector<18x256xf32>
    %64 = tpu.matmul %61, %63, %cst_46 {dimension_numbers = #tpu.dot_dimension_numbers<[1], [0], [0], [1], [0, 0, 1, 1], [], []>} : vector<18x128xbf16>, vector<128x256xbf16>, vector<18x256xf32> -> vector<18x256xf32>
    %65 = arith.addf %60, %64 : vector<18x256xf32>
    %66 = arith.addf %51, %65 : vector<18x256xf32>
    %c0_47 = arith.constant 0 : index
    %c0_48 = arith.constant 0 : index
    %67 = vector.load %arg9[%c0_47, %c0_48] : memref<1x256xf32, #tpu.memory_space<vmem>>, vector<1x256xf32>
    %68 = vector.broadcast %67 : vector<1x256xf32> to vector<18x256xf32>
    %69 = arith.addf %66, %68 : vector<18x256xf32>
    %cst_49 = arith.constant 0.000000e+00 : f32
    %70 = vector.broadcast %cst_49 : f32 to vector<18x256xf32>
    %71 = arith.cmpf oge, %69, %70 : vector<18x256xf32>
    %cst_50 = arith.constant 2.000000e-01 : f32
    %72 = vector.broadcast %cst_50 : f32 to vector<18x256xf32>
    %73 = arith.mulf %72, %69 : vector<18x256xf32>
    %74 = arith.select %71, %69, %73 : vector<18x256xi1>, vector<18x256xf32>
    %cst_51 = arith.constant 0.000000e+00 : f32
    %75 = vector.broadcast %cst_51 : f32 to vector<18x256xf32>
    %76 = arith.subf %75, %74 : vector<18x256xf32>
    %77 = math.exp %76 : vector<18x256xf32>
    %cst_52 = arith.constant 1.000000e+00 : f32
    %78 = vector.broadcast %cst_52 : f32 to vector<18x256xf32>
    %79 = arith.addf %78, %77 : vector<18x256xf32>
    %80 = tpu.reciprocal %79 {approx = true} : vector<18x256xf32> -> vector<18x256xf32>
    %81 = vector.extract_strided_slice %80 {offsets = [0, 0], sizes = [18, 128], strides = [1, 1]} : vector<18x256xf32> to vector<18x128xf32>
    %82 = vector.extract_strided_slice %80 {offsets = [0, 128], sizes = [18, 128], strides = [1, 1]} : vector<18x256xf32> to vector<18x128xf32>
    %83 = arith.mulf %31, %82 : vector<18x128xf32>
    %84 = arith.truncf %83 : vector<18x128xf32> to vector<18x128xbf16>
    %cst_53 = arith.constant 0.000000e+00 : bf16
    %85 = vector.broadcast %cst_53 : bf16 to vector<1x128xbf16>
    %86 = tpu.concatenate %85, %84, %85 in 0 : vector<1x128xbf16>, vector<18x128xbf16>, vector<1x128xbf16> -> vector<20x128xbf16>
    %87 = vector.extract_strided_slice %34 {offsets = [0, 0], sizes = [18, 128], strides = [1, 1]} : vector<20x128xbf16> to vector<18x128xbf16>
    %c0_54 = arith.constant 0 : index
    %c0_55 = arith.constant 0 : index
    %c0_56 = arith.constant 0 : index
    %88 = vector.load %arg10[%c0_54, %c0_55, %c0_56] : memref<3x128x128xbf16, #tpu.memory_space<vmem>>, vector<1x128x128xbf16>
    %89 = vector.shape_cast %88 : vector<1x128x128xbf16> to vector<128x128xbf16>
    %cst_57 = arith.constant dense<0.000000e+00> : vector<18x128xf32>
    %90 = tpu.matmul %87, %89, %cst_57 {dimension_numbers = #tpu.dot_dimension_numbers<[1], [0], [0], [1], [0, 0, 1, 1], [], []>} : vector<18x128xbf16>, vector<128x128xbf16>, vector<18x128xf32> -> vector<18x128xf32>
    %91 = vector.extract_strided_slice %34 {offsets = [1, 0], sizes = [18, 128], strides = [1, 1]} : vector<20x128xbf16> to vector<18x128xbf16>
    %c1_58 = arith.constant 1 : index
    %c0_59 = arith.constant 0 : index
    %c0_60 = arith.constant 0 : index
    %92 = vector.load %arg10[%c1_58, %c0_59, %c0_60] : memref<3x128x128xbf16, #tpu.memory_space<vmem>>, vector<1x128x128xbf16>
    %93 = vector.shape_cast %92 : vector<1x128x128xbf16> to vector<128x128xbf16>
    %cst_61 = arith.constant dense<0.000000e+00> : vector<18x128xf32>
    %94 = tpu.matmul %91, %93, %cst_61 {dimension_numbers = #tpu.dot_dimension_numbers<[1], [0], [0], [1], [0, 0, 1, 1], [], []>} : vector<18x128xbf16>, vector<128x128xbf16>, vector<18x128xf32> -> vector<18x128xf32>
    %95 = arith.addf %90, %94 : vector<18x128xf32>
    %96 = vector.extract_strided_slice %34 {offsets = [2, 0], sizes = [18, 128], strides = [1, 1]} : vector<20x128xbf16> to vector<18x128xbf16>
    %c2_62 = arith.constant 2 : index
    %c0_63 = arith.constant 0 : index
    %c0_64 = arith.constant 0 : index
    %97 = vector.load %arg10[%c2_62, %c0_63, %c0_64] : memref<3x128x128xbf16, #tpu.memory_space<vmem>>, vector<1x128x128xbf16>
    %98 = vector.shape_cast %97 : vector<1x128x128xbf16> to vector<128x128xbf16>
    %cst_65 = arith.constant dense<0.000000e+00> : vector<18x128xf32>
    %99 = tpu.matmul %96, %98, %cst_65 {dimension_numbers = #tpu.dot_dimension_numbers<[1], [0], [0], [1], [0, 0, 1, 1], [], []>} : vector<18x128xbf16>, vector<128x128xbf16>, vector<18x128xf32> -> vector<18x128xf32>
    %100 = arith.addf %95, %99 : vector<18x128xf32>
    %101 = vector.extract_strided_slice %86 {offsets = [0, 0], sizes = [18, 128], strides = [1, 1]} : vector<20x128xbf16> to vector<18x128xbf16>
    %c0_66 = arith.constant 0 : index
    %c0_67 = arith.constant 0 : index
    %c0_68 = arith.constant 0 : index
    %102 = vector.load %arg11[%c0_66, %c0_67, %c0_68] : memref<3x128x128xbf16, #tpu.memory_space<vmem>>, vector<1x128x128xbf16>
    %103 = vector.shape_cast %102 : vector<1x128x128xbf16> to vector<128x128xbf16>
    %cst_69 = arith.constant dense<0.000000e+00> : vector<18x128xf32>
    %104 = tpu.matmul %101, %103, %cst_69 {dimension_numbers = #tpu.dot_dimension_numbers<[1], [0], [0], [1], [0, 0, 1, 1], [], []>} : vector<18x128xbf16>, vector<128x128xbf16>, vector<18x128xf32> -> vector<18x128xf32>
    %105 = vector.extract_strided_slice %86 {offsets = [1, 0], sizes = [18, 128], strides = [1, 1]} : vector<20x128xbf16> to vector<18x128xbf16>
    %c1_70 = arith.constant 1 : index
    %c0_71 = arith.constant 0 : index
    %c0_72 = arith.constant 0 : index
    %106 = vector.load %arg11[%c1_70, %c0_71, %c0_72] : memref<3x128x128xbf16, #tpu.memory_space<vmem>>, vector<1x128x128xbf16>
    %107 = vector.shape_cast %106 : vector<1x128x128xbf16> to vector<128x128xbf16>
    %cst_73 = arith.constant dense<0.000000e+00> : vector<18x128xf32>
    %108 = tpu.matmul %105, %107, %cst_73 {dimension_numbers = #tpu.dot_dimension_numbers<[1], [0], [0], [1], [0, 0, 1, 1], [], []>} : vector<18x128xbf16>, vector<128x128xbf16>, vector<18x128xf32> -> vector<18x128xf32>
    %109 = arith.addf %104, %108 : vector<18x128xf32>
    %110 = vector.extract_strided_slice %86 {offsets = [2, 0], sizes = [18, 128], strides = [1, 1]} : vector<20x128xbf16> to vector<18x128xbf16>
    %c2_74 = arith.constant 2 : index
    %c0_75 = arith.constant 0 : index
    %c0_76 = arith.constant 0 : index
    %111 = vector.load %arg11[%c2_74, %c0_75, %c0_76] : memref<3x128x128xbf16, #tpu.memory_space<vmem>>, vector<1x128x128xbf16>
    %112 = vector.shape_cast %111 : vector<1x128x128xbf16> to vector<128x128xbf16>
    %cst_77 = arith.constant dense<0.000000e+00> : vector<18x128xf32>
    %113 = tpu.matmul %110, %112, %cst_77 {dimension_numbers = #tpu.dot_dimension_numbers<[1], [0], [0], [1], [0, 0, 1, 1], [], []>} : vector<18x128xbf16>, vector<128x128xbf16>, vector<18x128xf32> -> vector<18x128xf32>
    %114 = arith.addf %109, %113 : vector<18x128xf32>
    %115 = arith.addf %100, %114 : vector<18x128xf32>
    %c0_78 = arith.constant 0 : index
    %c0_79 = arith.constant 0 : index
    %116 = vector.load %arg12[%c0_78, %c0_79] : memref<1x128xf32, #tpu.memory_space<vmem>>, vector<1x128xf32>
    %117 = vector.broadcast %116 : vector<1x128xf32> to vector<18x128xf32>
    %118 = arith.addf %115, %117 : vector<18x128xf32>
    %cst_80 = arith.constant 0.000000e+00 : f32
    %119 = vector.broadcast %cst_80 : f32 to vector<18x128xf32>
    %120 = arith.cmpf oge, %118, %119 : vector<18x128xf32>
    %cst_81 = arith.constant 4.000000e-02 : f32
    %121 = vector.broadcast %cst_81 : f32 to vector<18x128xf32>
    %122 = arith.mulf %121, %118 : vector<18x128xf32>
    %123 = arith.select %120, %118, %122 : vector<18x128xi1>, vector<18x128xf32>
    %124 = arith.mulf %31, %81 : vector<18x128xf32>
    %cst_82 = arith.constant 1.000000e+00 : f32
    %125 = vector.broadcast %cst_82 : f32 to vector<18x128xf32>
    %126 = arith.subf %125, %81 : vector<18x128xf32>
    %127 = arith.mulf %123, %126 : vector<18x128xf32>
    %128 = arith.addf %124, %127 : vector<18x128xf32>
    %129 = vector.broadcast %0 : vector<18x1xf32> to vector<18x128xf32>
    %130 = arith.mulf %128, %129 : vector<18x128xf32>
    %c0_83 = arith.constant 0 : index
    %c0_84 = arith.constant 0 : index
    %c0_85 = arith.constant 0 : index
    %131 = vector.load %arg21[%c0_83, %c0_84, %c0_85] : memref<1x18x128xf32, #tpu.memory_space<vmem>>, vector<1x18x128xf32>
    %132 = vector.shape_cast %131 : vector<1x18x128xf32> to vector<18x128xf32>
    %133 = vector.shape_cast %130 : vector<18x128xf32> to vector<1x18x128xf32>
    tpu.vector_store %arg21[%c0_83, %c0_84, %c0_85], %133 {strides = array<i32>} : memref<1x18x128xf32, #tpu.memory_space<vmem>>, vector<1x18x128xf32>,
    %c0_86 = arith.constant 0 : index
    %c0_87 = arith.constant 0 : index
    %c0_88 = arith.constant 0 : index
    %134 = vector.load %arg21[%c0_86, %c0_87, %c0_88] : memref<1x18x128xf32, #tpu.memory_space<vmem>>, vector<1x18x128xf32>
    %135 = vector.shape_cast %134 : vector<1x18x128xf32> to vector<18x128xf32>
    %136 = arith.truncf %135 : vector<18x128xf32> to vector<18x128xbf16>
    %cst_89 = arith.constant 0.000000e+00 : bf16
    %137 = vector.broadcast %cst_89 : bf16 to vector<1x128xbf16>
    %138 = tpu.concatenate %137, %136, %137 in 0 : vector<1x128xbf16>, vector<18x128xbf16>, vector<1x128xbf16> -> vector<20x128xbf16>
    %139 = vector.extract_strided_slice %138 {offsets = [0, 0], sizes = [18, 128], strides = [1, 1]} : vector<20x128xbf16> to vector<18x128xbf16>
    %c0_90 = arith.constant 0 : index
    %c0_91 = arith.constant 0 : index
    %c0_92 = arith.constant 0 : index
    %140 = vector.load %arg13[%c0_90, %c0_91, %c0_92] : memref<3x128x256xbf16, #tpu.memory_space<vmem>>, vector<1x128x256xbf16>
    %141 = vector.shape_cast %140 : vector<1x128x256xbf16> to vector<128x256xbf16>
    %cst_93 = arith.constant dense<0.000000e+00> : vector<18x256xf32>
    %142 = tpu.matmul %139, %141, %cst_93 {dimension_numbers = #tpu.dot_dimension_numbers<[1], [0], [0], [1], [0, 0, 1, 1], [], []>} : vector<18x128xbf16>, vector<128x256xbf16>, vector<18x256xf32> -> vector<18x256xf32>
    %143 = vector.extract_strided_slice %138 {offsets = [1, 0], sizes = [18, 128], strides = [1, 1]} : vector<20x128xbf16> to vector<18x128xbf16>
    %c1_94 = arith.constant 1 : index
    %c0_95 = arith.constant 0 : index
    %c0_96 = arith.constant 0 : index
    %144 = vector.load %arg13[%c1_94, %c0_95, %c0_96] : memref<3x128x256xbf16, #tpu.memory_space<vmem>>, vector<1x128x256xbf16>
    %145 = vector.shape_cast %144 : vector<1x128x256xbf16> to vector<128x256xbf16>
    %cst_97 = arith.constant dense<0.000000e+00> : vector<18x256xf32>
    %146 = tpu.matmul %143, %145, %cst_97 {dimension_numbers = #tpu.dot_dimension_numbers<[1], [0], [0], [1], [0, 0, 1, 1], [], []>} : vector<18x128xbf16>, vector<128x256xbf16>, vector<18x256xf32> -> vector<18x256xf32>
    %147 = arith.addf %142, %146 : vector<18x256xf32>
    %148 = vector.extract_strided_slice %138 {offsets = [2, 0], sizes = [18, 128], strides = [1, 1]} : vector<20x128xbf16> to vector<18x128xbf16>
    %c2_98 = arith.constant 2 : index
    %c0_99 = arith.constant 0 : index
    %c0_100 = arith.constant 0 : index
    %149 = vector.load %arg13[%c2_98, %c0_99, %c0_100] : memref<3x128x256xbf16, #tpu.memory_space<vmem>>, vector<1x128x256xbf16>
    %150 = vector.shape_cast %149 : vector<1x128x256xbf16> to vector<128x256xbf16>
    %cst_101 = arith.constant dense<0.000000e+00> : vector<18x256xf32>
    %151 = tpu.matmul %148, %150, %cst_101 {dimension_numbers = #tpu.dot_dimension_numbers<[1], [0], [0], [1], [0, 0, 1, 1], [], []>} : vector<18x128xbf16>, vector<128x256xbf16>, vector<18x256xf32> -> vector<18x256xf32>
    %152 = arith.addf %147, %151 : vector<18x256xf32>
    %c0_102 = arith.constant 0 : index
    %c0_103 = arith.constant 0 : index
    %153 = vector.load %arg14[%c0_102, %c0_103] : memref<1x256xf32, #tpu.memory_space<vmem>>, vector<1x256xf32>
    %154 = vector.broadcast %153 : vector<1x256xf32> to vector<18x256xf32>
    %155 = arith.addf %152, %154 : vector<18x256xf32>
    %cst_104 = arith.constant 0.000000e+00 : f32
    %156 = vector.broadcast %cst_104 : f32 to vector<18x256xf32>
    %157 = arith.cmpf oge, %155, %156 : vector<18x256xf32>
    %cst_105 = arith.constant 2.000000e-01 : f32
    %158 = vector.broadcast %cst_105 : f32 to vector<18x256xf32>
    %159 = arith.mulf %158, %155 : vector<18x256xf32>
    %160 = arith.select %157, %155, %159 : vector<18x256xi1>, vector<18x256xf32>
    %161 = vector.broadcast %0 : vector<18x1xf32> to vector<18x256xf32>
    %162 = arith.mulf %160, %161 : vector<18x256xf32>
    %c0_106 = arith.constant 0 : index
    %c0_107 = arith.constant 0 : index
    %c0_108 = arith.constant 0 : index
    %163 = vector.load %arg3[%c0_106, %c0_107, %c0_108] : memref<1x18x256xf32, #tpu.memory_space<vmem>>, vector<1x18x256xf32>
    %164 = vector.shape_cast %163 : vector<1x18x256xf32> to vector<18x256xf32>
    %165 = arith.truncf %162 : vector<18x256xf32> to vector<18x256xbf16>
    %cst_109 = arith.constant 0.000000e+00 : bf16
    %166 = vector.broadcast %cst_109 : bf16 to vector<1x256xbf16>
    %167 = tpu.concatenate %166, %165, %166 in 0 : vector<1x256xbf16>, vector<18x256xbf16>, vector<1x256xbf16> -> vector<20x256xbf16>
    %168 = arith.truncf %164 : vector<18x256xf32> to vector<18x256xbf16>
    %cst_110 = arith.constant 0.000000e+00 : bf16
    %169 = vector.broadcast %cst_110 : bf16 to vector<1x256xbf16>
    %170 = tpu.concatenate %169, %168, %169 in 0 : vector<1x256xbf16>, vector<18x256xbf16>, vector<1x256xbf16> -> vector<20x256xbf16>
    %171 = vector.extract_strided_slice %167 {offsets = [0, 0], sizes = [18, 256], strides = [1, 1]} : vector<20x256xbf16> to vector<18x256xbf16>
    %c0_111 = arith.constant 0 : index
    %c0_112 = arith.constant 0 : index
    %c0_113 = arith.constant 0 : index
    %172 = vector.load %arg15[%c0_111, %c0_112, %c0_113] : memref<3x256x512xbf16, #tpu.memory_space<vmem>>, vector<1x256x512xbf16>
    %173 = vector.shape_cast %172 : vector<1x256x512xbf16> to vector<256x512xbf16>
    %cst_114 = arith.constant dense<0.000000e+00> : vector<18x512xf32>
    %174 = tpu.matmul %171, %173, %cst_114 {dimension_numbers = #tpu.dot_dimension_numbers<[1], [0], [0], [1], [0, 0, 1, 1], [], []>} : vector<18x256xbf16>, vector<256x512xbf16>, vector<18x512xf32> -> vector<18x512xf32>
    %175 = vector.extract_strided_slice %167 {offsets = [1, 0], sizes = [18, 256], strides = [1, 1]} : vector<20x256xbf16> to vector<18x256xbf16>
    %c1_115 = arith.constant 1 : index
    %c0_116 = arith.constant 0 : index
    %c0_117 = arith.constant 0 : index
    %176 = vector.load %arg15[%c1_115, %c0_116, %c0_117] : memref<3x256x512xbf16, #tpu.memory_space<vmem>>, vector<1x256x512xbf16>
    %177 = vector.shape_cast %176 : vector<1x256x512xbf16> to vector<256x512xbf16>
    %cst_118 = arith.constant dense<0.000000e+00> : vector<18x512xf32>
    %178 = tpu.matmul %175, %177, %cst_118 {dimension_numbers = #tpu.dot_dimension_numbers<[1], [0], [0], [1], [0, 0, 1, 1], [], []>} : vector<18x256xbf16>, vector<256x512xbf16>, vector<18x512xf32> -> vector<18x512xf32>
    %179 = arith.addf %174, %178 : vector<18x512xf32>
    %180 = vector.extract_strided_slice %167 {offsets = [2, 0], sizes = [18, 256], strides = [1, 1]} : vector<20x256xbf16> to vector<18x256xbf16>
    %c2_119 = arith.constant 2 : index
    %c0_120 = arith.constant 0 : index
    %c0_121 = arith.constant 0 : index
    %181 = vector.load %arg15[%c2_119, %c0_120, %c0_121] : memref<3x256x512xbf16, #tpu.memory_space<vmem>>, vector<1x256x512xbf16>
    %182 = vector.shape_cast %181 : vector<1x256x512xbf16> to vector<256x512xbf16>
    %cst_122 = arith.constant dense<0.000000e+00> : vector<18x512xf32>
    %183 = tpu.matmul %180, %182, %cst_122 {dimension_numbers = #tpu.dot_dimension_numbers<[1], [0], [0], [1], [0, 0, 1, 1], [], []>} : vector<18x256xbf16>, vector<256x512xbf16>, vector<18x512xf32> -> vector<18x512xf32>
    %184 = arith.addf %179, %183 : vector<18x512xf32>
    %185 = vector.extract_strided_slice %170 {offsets = [0, 0], sizes = [18, 256], strides = [1, 1]} : vector<20x256xbf16> to vector<18x256xbf16>
    %c0_123 = arith.constant 0 : index
    %c0_124 = arith.constant 0 : index
    %c0_125 = arith.constant 0 : index
    %186 = vector.load %arg16[%c0_123, %c0_124, %c0_125] : memref<3x256x512xbf16, #tpu.memory_space<vmem>>, vector<1x256x512xbf16>
    %187 = vector.shape_cast %186 : vector<1x256x512xbf16> to vector<256x512xbf16>
    %cst_126 = arith.constant dense<0.000000e+00> : vector<18x512xf32>
    %188 = tpu.matmul %185, %187, %cst_126 {dimension_numbers = #tpu.dot_dimension_numbers<[1], [0], [0], [1], [0, 0, 1, 1], [], []>} : vector<18x256xbf16>, vector<256x512xbf16>, vector<18x512xf32> -> vector<18x512xf32>
    %189 = vector.extract_strided_slice %170 {offsets = [1, 0], sizes = [18, 256], strides = [1, 1]} : vector<20x256xbf16> to vector<18x256xbf16>
    %c1_127 = arith.constant 1 : index
    %c0_128 = arith.constant 0 : index
    %c0_129 = arith.constant 0 : index
    %190 = vector.load %arg16[%c1_127, %c0_128, %c0_129] : memref<3x256x512xbf16, #tpu.memory_space<vmem>>, vector<1x256x512xbf16>
    %191 = vector.shape_cast %190 : vector<1x256x512xbf16> to vector<256x512xbf16>
    %cst_130 = arith.constant dense<0.000000e+00> : vector<18x512xf32>
    %192 = tpu.matmul %189, %191, %cst_130 {dimension_numbers = #tpu.dot_dimension_numbers<[1], [0], [0], [1], [0, 0, 1, 1], [], []>} : vector<18x256xbf16>, vector<256x512xbf16>, vector<18x512xf32> -> vector<18x512xf32>
    %193 = arith.addf %188, %192 : vector<18x512xf32>
    %194 = vector.extract_strided_slice %170 {offsets = [2, 0], sizes = [18, 256], strides = [1, 1]} : vector<20x256xbf16> to vector<18x256xbf16>
    %c2_131 = arith.constant 2 : index
    %c0_132 = arith.constant 0 : index
    %c0_133 = arith.constant 0 : index
    %195 = vector.load %arg16[%c2_131, %c0_132, %c0_133] : memref<3x256x512xbf16, #tpu.memory_space<vmem>>, vector<1x256x512xbf16>
    %196 = vector.shape_cast %195 : vector<1x256x512xbf16> to vector<256x512xbf16>
    %cst_134 = arith.constant dense<0.000000e+00> : vector<18x512xf32>
    %197 = tpu.matmul %194, %196, %cst_134 {dimension_numbers = #tpu.dot_dimension_numbers<[1], [0], [0], [1], [0, 0, 1, 1], [], []>} : vector<18x256xbf16>, vector<256x512xbf16>, vector<18x512xf32> -> vector<18x512xf32>
    %198 = arith.addf %193, %197 : vector<18x512xf32>
    %199 = arith.addf %184, %198 : vector<18x512xf32>
    %c0_135 = arith.constant 0 : index
    %c0_136 = arith.constant 0 : index
    %200 = vector.load %arg17[%c0_135, %c0_136] : memref<1x512xf32, #tpu.memory_space<vmem>>, vector<1x512xf32>
    %201 = vector.broadcast %200 : vector<1x512xf32> to vector<18x512xf32>
    %202 = arith.addf %199, %201 : vector<18x512xf32>
    %cst_137 = arith.constant 0.000000e+00 : f32
    %203 = vector.broadcast %cst_137 : f32 to vector<18x512xf32>
    %204 = arith.cmpf oge, %202, %203 : vector<18x512xf32>
    %cst_138 = arith.constant 2.000000e-01 : f32
    %205 = vector.broadcast %cst_138 : f32 to vector<18x512xf32>
    %206 = arith.mulf %205, %202 : vector<18x512xf32>
    %207 = arith.select %204, %202, %206 : vector<18x512xi1>, vector<18x512xf32>
    %cst_139 = arith.constant 0.000000e+00 : f32
    %208 = vector.broadcast %cst_139 : f32 to vector<18x512xf32>
    %209 = arith.subf %208, %207 : vector<18x512xf32>
    %210 = math.exp %209 : vector<18x512xf32>
    %cst_140 = arith.constant 1.000000e+00 : f32
    %211 = vector.broadcast %cst_140 : f32 to vector<18x512xf32>
    %212 = arith.addf %211, %210 : vector<18x512xf32>
    %213 = tpu.reciprocal %212 {approx = true} : vector<18x512xf32> -> vector<18x512xf32>
    %214 = vector.extract_strided_slice %213 {offsets = [0, 0], sizes = [18, 256], strides = [1, 1]} : vector<18x512xf32> to vector<18x256xf32>
    %215 = vector.extract_strided_slice %213 {offsets = [0, 256], sizes = [18, 256], strides = [1, 1]} : vector<18x512xf32> to vector<18x256xf32>
    %216 = arith.mulf %164, %215 : vector<18x256xf32>
    %217 = arith.truncf %216 : vector<18x256xf32> to vector<18x256xbf16>
    %cst_141 = arith.constant 0.000000e+00 : bf16
    %218 = vector.broadcast %cst_141 : bf16 to vector<1x256xbf16>
    %219 = tpu.concatenate %218, %217, %218 in 0 : vector<1x256xbf16>, vector<18x256xbf16>, vector<1x256xbf16> -> vector<20x256xbf16>
    %220 = vector.extract_strided_slice %167 {offsets = [0, 0], sizes = [18, 256], strides = [1, 1]} : vector<20x256xbf16> to vector<18x256xbf16>
    %c0_142 = arith.constant 0 : index
    %c0_143 = arith.constant 0 : index
    %c0_144 = arith.constant 0 : index
    %221 = vector.load %arg18[%c0_142, %c0_143, %c0_144] : memref<3x256x256xbf16, #tpu.memory_space<vmem>>, vector<1x256x256xbf16>
    %222 = vector.shape_cast %221 : vector<1x256x256xbf16> to vector<256x256xbf16>
    %cst_145 = arith.constant dense<0.000000e+00> : vector<18x256xf32>
    %223 = tpu.matmul %220, %222, %cst_145 {dimension_numbers = #tpu.dot_dimension_numbers<[1], [0], [0], [1], [0, 0, 1, 1], [], []>} : vector<18x256xbf16>, vector<256x256xbf16>, vector<18x256xf32> -> vector<18x256xf32>
    %224 = vector.extract_strided_slice %167 {offsets = [1, 0], sizes = [18, 256], strides = [1, 1]} : vector<20x256xbf16> to vector<18x256xbf16>
    %c1_146 = arith.constant 1 : index
    %c0_147 = arith.constant 0 : index
    %c0_148 = arith.constant 0 : index
    %225 = vector.load %arg18[%c1_146, %c0_147, %c0_148] : memref<3x256x256xbf16, #tpu.memory_space<vmem>>, vector<1x256x256xbf16>
    %226 = vector.shape_cast %225 : vector<1x256x256xbf16> to vector<256x256xbf16>
    %cst_149 = arith.constant dense<0.000000e+00> : vector<18x256xf32>
    %227 = tpu.matmul %224, %226, %cst_149 {dimension_numbers = #tpu.dot_dimension_numbers<[1], [0], [0], [1], [0, 0, 1, 1], [], []>} : vector<18x256xbf16>, vector<256x256xbf16>, vector<18x256xf32> -> vector<18x256xf32>
    %228 = arith.addf %223, %227 : vector<18x256xf32>
    %229 = vector.extract_strided_slice %167 {offsets = [2, 0], sizes = [18, 256], strides = [1, 1]} : vector<20x256xbf16> to vector<18x256xbf16>
    %c2_150 = arith.constant 2 : index
    %c0_151 = arith.constant 0 : index
    %c0_152 = arith.constant 0 : index
    %230 = vector.load %arg18[%c2_150, %c0_151, %c0_152] : memref<3x256x256xbf16, #tpu.memory_space<vmem>>, vector<1x256x256xbf16>
    %231 = vector.shape_cast %230 : vector<1x256x256xbf16> to vector<256x256xbf16>
    %cst_153 = arith.constant dense<0.000000e+00> : vector<18x256xf32>
    %232 = tpu.matmul %229, %231, %cst_153 {dimension_numbers = #tpu.dot_dimension_numbers<[1], [0], [0], [1], [0, 0, 1, 1], [], []>} : vector<18x256xbf16>, vector<256x256xbf16>, vector<18x256xf32> -> vector<18x256xf32>
    %233 = arith.addf %228, %232 : vector<18x256xf32>
    %234 = vector.extract_strided_slice %219 {offsets = [0, 0], sizes = [18, 256], strides = [1, 1]} : vector<20x256xbf16> to vector<18x256xbf16>
    %c0_154 = arith.constant 0 : index
    %c0_155 = arith.constant 0 : index
    %c0_156 = arith.constant 0 : index
    %235 = vector.load %arg19[%c0_154, %c0_155, %c0_156] : memref<3x256x256xbf16, #tpu.memory_space<vmem>>, vector<1x256x256xbf16>
    %236 = vector.shape_cast %235 : vector<1x256x256xbf16> to vector<256x256xbf16>
    %cst_157 = arith.constant dense<0.000000e+00> : vector<18x256xf32>
    %237 = tpu.matmul %234, %236, %cst_157 {dimension_numbers = #tpu.dot_dimension_numbers<[1], [0], [0], [1], [0, 0, 1, 1], [], []>} : vector<18x256xbf16>, vector<256x256xbf16>, vector<18x256xf32> -> vector<18x256xf32>
    %238 = vector.extract_strided_slice %219 {offsets = [1, 0], sizes = [18, 256], strides = [1, 1]} : vector<20x256xbf16> to vector<18x256xbf16>
    %c1_158 = arith.constant 1 : index
    %c0_159 = arith.constant 0 : index
    %c0_160 = arith.constant 0 : index
    %239 = vector.load %arg19[%c1_158, %c0_159, %c0_160] : memref<3x256x256xbf16, #tpu.memory_space<vmem>>, vector<1x256x256xbf16>
    %240 = vector.shape_cast %239 : vector<1x256x256xbf16> to vector<256x256xbf16>
    %cst_161 = arith.constant dense<0.000000e+00> : vector<18x256xf32>
    %241 = tpu.matmul %238, %240, %cst_161 {dimension_numbers = #tpu.dot_dimension_numbers<[1], [0], [0], [1], [0, 0, 1, 1], [], []>} : vector<18x256xbf16>, vector<256x256xbf16>, vector<18x256xf32> -> vector<18x256xf32>
    %242 = arith.addf %237, %241 : vector<18x256xf32>
    %243 = vector.extract_strided_slice %219 {offsets = [2, 0], sizes = [18, 256], strides = [1, 1]} : vector<20x256xbf16> to vector<18x256xbf16>
    %c2_162 = arith.constant 2 : index
    %c0_163 = arith.constant 0 : index
    %c0_164 = arith.constant 0 : index
    %244 = vector.load %arg19[%c2_162, %c0_163, %c0_164] : memref<3x256x256xbf16, #tpu.memory_space<vmem>>, vector<1x256x256xbf16>
    %245 = vector.shape_cast %244 : vector<1x256x256xbf16> to vector<256x256xbf16>
    %cst_165 = arith.constant dense<0.000000e+00> : vector<18x256xf32>
    %246 = tpu.matmul %243, %245, %cst_165 {dimension_numbers = #tpu.dot_dimension_numbers<[1], [0], [0], [1], [0, 0, 1, 1], [], []>} : vector<18x256xbf16>, vector<256x256xbf16>, vector<18x256xf32> -> vector<18x256xf32>
    %247 = arith.addf %242, %246 : vector<18x256xf32>
    %248 = arith.addf %233, %247 : vector<18x256xf32>
    %c0_166 = arith.constant 0 : index
    %c0_167 = arith.constant 0 : index
    %249 = vector.load %arg20[%c0_166, %c0_167] : memref<1x256xf32, #tpu.memory_space<vmem>>, vector<1x256xf32>
    %250 = vector.broadcast %249 : vector<1x256xf32> to vector<18x256xf32>
    %251 = arith.addf %248, %250 : vector<18x256xf32>
    %cst_168 = arith.constant 0.000000e+00 : f32
    %252 = vector.broadcast %cst_168 : f32 to vector<18x256xf32>
    %253 = arith.cmpf oge, %251, %252 : vector<18x256xf32>
    %cst_169 = arith.constant 4.000000e-02 : f32
    %254 = vector.broadcast %cst_169 : f32 to vector<18x256xf32>
    %255 = arith.mulf %254, %251 : vector<18x256xf32>
    %256 = arith.select %253, %251, %255 : vector<18x256xi1>, vector<18x256xf32>
    %257 = arith.mulf %164, %214 : vector<18x256xf32>
    %cst_170 = arith.constant 1.000000e+00 : f32
    %258 = vector.broadcast %cst_170 : f32 to vector<18x256xf32>
    %259 = arith.subf %258, %214 : vector<18x256xf32>
    %260 = arith.mulf %256, %259 : vector<18x256xf32>
    %261 = arith.addf %257, %260 : vector<18x256xf32>
    %262 = vector.broadcast %0 : vector<18x1xf32> to vector<18x256xf32>
    %263 = arith.mulf %261, %262 : vector<18x256xf32>
    %c0_171 = arith.constant 0 : index
    %c0_172 = arith.constant 0 : index
    %c0_173 = arith.constant 0 : index
    %264 = vector.load %arg22[%c0_171, %c0_172, %c0_173] : memref<1x18x256xf32, #tpu.memory_space<vmem>>, vector<1x18x256xf32>
    %265 = vector.shape_cast %264 : vector<1x18x256xf32> to vector<18x256xf32>
    %266 = vector.shape_cast %263 : vector<18x256xf32> to vector<1x18x256xf32>
    tpu.vector_store %arg22[%c0_171, %c0_172, %c0_173], %266 {strides = array<i32>} : memref<1x18x256xf32, #tpu.memory_space<vmem>>, vector<1x18x256xf32>,
    return
  }
  func.func @transform_0(%arg0: i32) -> (i32, i32, i32) {
    %c0_i32 = arith.constant 0 : i32
    %c0_i32_0 = arith.constant 0 : i32
    %c0_i32_1 = arith.constant 0 : i32
    return %arg0, %c0_i32, %c0_i32_0 : i32, i32, i32
  }
  func.func @transform_1(%arg0: i32) -> (i32, i32, i32) {
    %c0_i32 = arith.constant 0 : i32
    %c0_i32_0 = arith.constant 0 : i32
    %c0_i32_1 = arith.constant 0 : i32
    return %arg0, %c0_i32, %c0_i32_0 : i32, i32, i32
  }
  func.func @transform_2(%arg0: i32) -> (i32, i32, i32) {
    %c0_i32 = arith.constant 0 : i32
    %c0_i32_0 = arith.constant 0 : i32
    %c0_i32_1 = arith.constant 0 : i32
    return %arg0, %c0_i32, %c0_i32_0 : i32, i32, i32
  }
  func.func @transform_3(%arg0: i32) -> (i32, i32) {
    %c0_i32 = arith.constant 0 : i32
    %c0_i32_0 = arith.constant 0 : i32
    %c0_i32_1 = arith.constant 0 : i32
    return %c0_i32, %c0_i32_0 : i32, i32
  }
  func.func @transform_4(%arg0: i32) -> (i32, i32, i32) {
    %c0_i32 = arith.constant 0 : i32
    %c0_i32_0 = arith.constant 0 : i32
    %c0_i32_1 = arith.constant 0 : i32
    %c0_i32_2 = arith.constant 0 : i32
    return %c0_i32, %c0_i32_0, %c0_i32_1 : i32, i32, i32
  }
  func.func @transform_5(%arg0: i32) -> (i32, i32) {
    %c0_i32 = arith.constant 0 : i32
    %c0_i32_0 = arith.constant 0 : i32
    %c0_i32_1 = arith.constant 0 : i32
    return %c0_i32, %c0_i32_0 : i32, i32
  }
  func.func @transform_6(%arg0: i32) -> (i32, i32, i32) {
    %c0_i32 = arith.constant 0 : i32
    %c0_i32_0 = arith.constant 0 : i32
    %c0_i32_1 = arith.constant 0 : i32
    %c0_i32_2 = arith.constant 0 : i32
    return %c0_i32, %c0_i32_0, %c0_i32_1 : i32, i32, i32
  }
  func.func @transform_7(%arg0: i32) -> (i32, i32, i32) {
    %c0_i32 = arith.constant 0 : i32
    %c0_i32_0 = arith.constant 0 : i32
    %c0_i32_1 = arith.constant 0 : i32
    %c0_i32_2 = arith.constant 0 : i32
    return %c0_i32, %c0_i32_0, %c0_i32_1 : i32, i32, i32
  }
  func.func @transform_8(%arg0: i32) -> (i32, i32) {
    %c0_i32 = arith.constant 0 : i32
    %c0_i32_0 = arith.constant 0 : i32
    %c0_i32_1 = arith.constant 0 : i32
    return %c0_i32, %c0_i32_0 : i32, i32
  }
  func.func @transform_9(%arg0: i32) -> (i32, i32, i32) {
    %c0_i32 = arith.constant 0 : i32
    %c0_i32_0 = arith.constant 0 : i32
    %c0_i32_1 = arith.constant 0 : i32
    %c0_i32_2 = arith.constant 0 : i32
    return %c0_i32, %c0_i32_0, %c0_i32_1 : i32, i32, i32
  }
  func.func @transform_10(%arg0: i32) -> (i32, i32, i32) {
    %c0_i32 = arith.constant 0 : i32
    %c0_i32_0 = arith.constant 0 : i32
    %c0_i32_1 = arith.constant 0 : i32
    %c0_i32_2 = arith.constant 0 : i32
    return %c0_i32, %c0_i32_0, %c0_i32_1 : i32, i32, i32
  }
  func.func @transform_11(%arg0: i32) -> (i32, i32) {
    %c0_i32 = arith.constant 0 : i32
    %c0_i32_0 = arith.constant 0 : i32
    %c0_i32_1 = arith.constant 0 : i32
    return %c0_i32, %c0_i32_0 : i32, i32
  }
  func.func @transform_12(%arg0: i32) -> (i32, i32, i32) {
    %c0_i32 = arith.constant 0 : i32
    %c0_i32_0 = arith.constant 0 : i32
    %c0_i32_1 = arith.constant 0 : i32
    %c0_i32_2 = arith.constant 0 : i32
    return %c0_i32, %c0_i32_0, %c0_i32_1 : i32, i32, i32
  }
  func.func @transform_13(%arg0: i32) -> (i32, i32) {
    %c0_i32 = arith.constant 0 : i32
    %c0_i32_0 = arith.constant 0 : i32
    %c0_i32_1 = arith.constant 0 : i32
    return %c0_i32, %c0_i32_0 : i32, i32
  }
  func.func @transform_14(%arg0: i32) -> (i32, i32, i32) {
    %c0_i32 = arith.constant 0 : i32
    %c0_i32_0 = arith.constant 0 : i32
    %c0_i32_1 = arith.constant 0 : i32
    %c0_i32_2 = arith.constant 0 : i32
    return %c0_i32, %c0_i32_0, %c0_i32_1 : i32, i32, i32
  }
  func.func @transform_15(%arg0: i32) -> (i32, i32, i32) {
    %c0_i32 = arith.constant 0 : i32
    %c0_i32_0 = arith.constant 0 : i32
    %c0_i32_1 = arith.constant 0 : i32
    %c0_i32_2 = arith.constant 0 : i32
    return %c0_i32, %c0_i32_0, %c0_i32_1 : i32, i32, i32
  }
  func.func @transform_16(%arg0: i32) -> (i32, i32) {
    %c0_i32 = arith.constant 0 : i32
    %c0_i32_0 = arith.constant 0 : i32
    %c0_i32_1 = arith.constant 0 : i32
    return %c0_i32, %c0_i32_0 : i32, i32
  }
  func.func @transform_17(%arg0: i32) -> (i32, i32, i32) {
    %c0_i32 = arith.constant 0 : i32
    %c0_i32_0 = arith.constant 0 : i32
    %c0_i32_1 = arith.constant 0 : i32
    %c0_i32_2 = arith.constant 0 : i32
    return %c0_i32, %c0_i32_0, %c0_i32_1 : i32, i32, i32
  }
  func.func @transform_18(%arg0: i32) -> (i32, i32, i32) {
    %c0_i32 = arith.constant 0 : i32
    %c0_i32_0 = arith.constant 0 : i32
    %c0_i32_1 = arith.constant 0 : i32
    %c0_i32_2 = arith.constant 0 : i32
    return %c0_i32, %c0_i32_0, %c0_i32_1 : i32, i32, i32
  }
  func.func @transform_19(%arg0: i32) -> (i32, i32) {
    %c0_i32 = arith.constant 0 : i32
    %c0_i32_0 = arith.constant 0 : i32
    %c0_i32_1 = arith.constant 0 : i32
    return %c0_i32, %c0_i32_0 : i32, i32
  }
  func.func @transform_20(%arg0: i32) -> (i32, i32, i32) {
    %c0_i32 = arith.constant 0 : i32
    %c0_i32_0 = arith.constant 0 : i32
    %c0_i32_1 = arith.constant 0 : i32
    return %arg0, %c0_i32, %c0_i32_0 : i32, i32, i32
  }
  func.func @transform_21(%arg0: i32) -> (i32, i32, i32) {
    %c0_i32 = arith.constant 0 : i32
    %c0_i32_0 = arith.constant 0 : i32
    %c0_i32_1 = arith.constant 0 : i32
    return %arg0, %c0_i32, %c0_i32_0 : i32, i32, i32
  }
}

</mosaic_0001>

<llo_original>
// kernel: tpu_custom_call.1
$region0: #{tpu_custom_call.1}
  #allocation0 [shape = 'u32[]', space=smem, size = 0x4, offset = 0x4, fixed_abs, tag = 'smem constant byte address 0x4 - core index']
  #allocation1 [shape = 'u32[144,128]{1,0:T(1,128)}', space=vmem, size = 0x12000, scoped, tag = 'internal scratch']
  %s0 = inlined_call_operand.vmem [shape: f32[2,18,128], index: 0, kind: input, shape index: {}]
  %s1 = inlined_call_operand.vmem [shape: f32[2,18,128], index: 1, kind: input, shape index: {}]
  %s2 = inlined_call_operand.vmem [shape: f32[2,18,256], index: 2, kind: input, shape index: {}]
  %s3 = inlined_call_operand.vmem [shape: f32[18,1], index: 3, kind: input, shape index: {}]
  %s4 = inlined_call_operand.vmem [shape: bf16[3,128,128], index: 4, kind: input, shape index: {}]
  %s5 = inlined_call_operand.vmem [shape: f32[1,128], index: 5, kind: input, shape index: {}]
  %s6 = inlined_call_operand.hbm [shape: bf16[3,128,256], index: 6, kind: input, shape index: {}]
  %s7 = inlined_call_operand.hbm [shape: bf16[3,128,256], index: 7, kind: input, shape index: {}]
  %s8 = inlined_call_operand.vmem [shape: f32[1,256], index: 8, kind: input, shape index: {}]
  %s9 = inlined_call_operand.hbm [shape: bf16[3,128,128], index: 9, kind: input, shape index: {}]
  %s10 = inlined_call_operand.hbm [shape: bf16[3,128,128], index: 10, kind: input, shape index: {}]
  %s11 = inlined_call_operand.vmem [shape: f32[1,128], index: 11, kind: input, shape index: {}]
  %s12 = inlined_call_operand.hbm [shape: bf16[3,128,256], index: 12, kind: input, shape index: {}]
  %s13 = inlined_call_operand.vmem [shape: f32[1,256], index: 13, kind: input, shape index: {}]
  %s14 = inlined_call_operand.hbm [shape: bf16[3,256,512], index: 14, kind: input, shape index: {}]
  %s15 = inlined_call_operand.hbm [shape: bf16[3,256,512], index: 15, kind: input, shape index: {}]
  %s16 = inlined_call_operand.vmem [shape: f32[1,512], index: 16, kind: input, shape index: {}]
  %s17 = inlined_call_operand.hbm [shape: bf16[3,256,256], index: 17, kind: input, shape index: {}]
  %s18 = inlined_call_operand.hbm [shape: bf16[3,256,256], index: 18, kind: input, shape index: {}]
  %s19 = inlined_call_operand.vmem [shape: f32[1,256], index: 19, kind: input, shape index: {}]
  %s20 = inlined_call_operand.vmem [shape: f32[2,18,128], index: 20, kind: output, shape index: {0}]
  %s21 = inlined_call_operand.vmem [shape: f32[2,18,256], index: 21, kind: output, shape index: {1}]
  %22 = xla_tuple %s20, %s21
  %s23 = sld [smem:[#allocation0]]
  $region157: #{tpu_custom_call.1} parent=0
    _
  %s25 = ssub.s32 1, %s23
  %s26 = scalar_select 0, %s25, %s23
  $region1: #{tpu_custom_call.1} parent=0
    #allocation2 [shape = 'u8[196608]{0}', space=vmem, size = 0x30000, scoped, tag = 'input window, operand 6, single buffered']
    #allocation3 [shape = 's32[2]{0}', space=sflag, size = 0x8, scoped, tag = 'scoped memory for tpu_custom_call.1']
    #allocation4 [shape = 'u8[196608]{0}', space=vmem, size = 0x30000, scoped, tag = 'input window, operand 7, single buffered']
    #allocation5 [shape = 's32[1]{0}', space=sflag, size = 0x4, scoped, tag = 'scoped memory for tpu_custom_call.1']
    #allocation6 [shape = 'u8[98304]{0}', space=vmem, size = 0x18000, scoped, tag = 'input window, operand 9, single buffered']
    #allocation7 [shape = 'u8[98304]{0}', space=vmem, size = 0x18000, scoped, tag = 'input window, operand 10, single buffered']
    #allocation8 [shape = 's32[1]{0}', space=sflag, size = 0x4, scoped, tag = 'scoped memory for tpu_custom_call.1']
    #allocation9 [shape = 'u8[196608]{0}', space=vmem, size = 0x30000, scoped, tag = 'input window, operand 12, single buffered']
    #allocation10 [shape = 'u8[786432]{0}', space=vmem, size = 0xc0000, scoped, tag = 'input window, operand 14, single buffered']
    #allocation11 [shape = 's32[1]{0}', space=sflag, size = 0x4, scoped, tag = 'scoped memory for tpu_custom_call.1']
    #allocation12 [shape = 'u8[786432]{0}', space=vmem, size = 0xc0000, scoped, tag = 'input window, operand 15, single buffered']
    #allocation13 [shape = 'u8[393216]{0}', space=vmem, size = 0x60000, scoped, tag = 'input window, operand 17, single buffered']
    #allocation14 [shape = 's32[1]{0}', space=sflag, size = 0x4, scoped, tag = 'scoped memory for tpu_custom_call.1']
    #allocation15 [shape = 'u8[393216]{0}', space=vmem, size = 0x60000, scoped, tag = 'input window, operand 18, single buffered']
    %27 = vsyncpa [#allocation3], 0
    %28 = vsyncpa [#allocation5], 0
    %29 = vsyncpa [#allocation8], 0
    %30 = vsyncpa [#allocation11], 0
    %31 = vsyncpa [#allocation14], 0
    loop: start=0, step=1, limit=4
    $region2: #{tpu_custom_call.1} parent=1 // loop_pre_header
      _
    $region3: #{tpu_custom_call.1} parent=1 // loop_header
      %s33 = sphi 0, %s37
      %p34 = scmp.ge.s32.totalorder %s33, 4
      %s43 = sphi 0, %s45
      %s46 = sphi 0, %s43
      %s47 = sphi 0, %s46
      %s63 = sphi 0, %s47
      %s69 = sphi 0, %s71
      %s72 = sphi 0, %s69
      %s73 = sphi 0, %s72
      %s89 = sphi 0, %s73
      %s95 = sphi 0, %s97
      %s98 = sphi 0, %s95
      %s99 = sphi 0, %s98
      %s115 = sphi 0, %s99
      %s119 = sphi 0, %s119
      %s121 = sphi 0, %s119
      %s122 = sphi 0, %s121
      %s136 = sphi 0, %s122
      %s140 = sphi 0, %s140
      %s142 = sphi 0, %s140
      %s143 = sphi 0, %s142
      %s157 = sphi 0, %s143
      %s161 = sphi 0, %s161
      %s163 = sphi 0, %s161
      %s164 = sphi 0, %s163
      %s178 = sphi 0, %s164
      %s182 = sphi 0, %s182
      %s184 = sphi 0, %s182
      %s185 = sphi 0, %s184
      %s199 = sphi 0, %s185
      %s203 = sphi 0, %s203
      %s205 = sphi 0, %s203
      %s206 = sphi 0, %s205
      %s220 = sphi 0, %s206
      %s224 = sphi 0, %s224
      %s226 = sphi 0, %s224
      %s227 = sphi 0, %s226
      %s241 = sphi 0, %s227
      %s245 = sphi 0, %s245
      %s247 = sphi 0, %s245
      %s248 = sphi 0, %s247
      %s262 = sphi 0, %s248
      %s266 = sphi 0, %s266
      %s268 = sphi 0, %s266
      %s269 = sphi 0, %s268
      %s283 = sphi 0, %s269
      %s287 = sphi 0, %s287
      %s289 = sphi 0, %s287
      %s290 = sphi 0, %s289
      %s304 = sphi 0, %s290
      %s308 = sphi 0, %s308
      %s310 = sphi 0, %s308
      %s311 = sphi 0, %s310
      %s325 = sphi 0, %s311
      %s329 = sphi 0, %s329
      %s331 = sphi 0, %s329
      %s332 = sphi 0, %s331
      %s346 = sphi 0, %s332
      %s350 = sphi 0, %s350
      %s352 = sphi 0, %s350
      %s353 = sphi 0, %s352
      %s367 = sphi 0, %s353
      %s371 = sphi 0, %s371
      %s373 = sphi 0, %s371
      %s374 = sphi 0, %s373
      %s388 = sphi 0, %s374
      %s392 = sphi 0, %s392
      %s394 = sphi 0, %s392
      %s395 = sphi 0, %s394
      %s409 = sphi 0, %s395
      %s413 = sphi 0, %s413
      %s415 = sphi 0, %s413
      %s416 = sphi 0, %s415
      %s430 = sphi 0, %s416
      %s434 = sphi 0, %s434
      %s436 = sphi 0, %s434
      %s437 = sphi 0, %s436
      %s451 = sphi 0, %s437
      %s455 = sphi 0, %s455
      %s457 = sphi 0, %s455
      %s458 = sphi 0, %s457
      %s472 = sphi 0, %s458
      %s478 = sphi 0, %s480
      %s481 = sphi 0, %s478
      %s482 = sphi 0, %s481
      %s498 = sphi 0, %s482
      %s504 = sphi 0, %s506
      %s507 = sphi 0, %s504
      %s508 = sphi 0, %s507
      %s524 = sphi 0, %s508
    $region4: #{tpu_custom_call.1} parent=1 // loop_header_branch
      %36 = sbr.rel (%p34) target = $region8
    $region5: #{tpu_custom_call.1} parent=1 // loop_body
      %s38 = ssub.s32 %s33, 1
      %s39 = ssub.s32 %s33, 2
      %s40 = sadd.s32 %s33, 1
      %s41 = ssub.s32 %s33, %s40
      %p42 = scmp.eq.s32.totalorder %s41, 0
      %s44 = sadd.s32 %s43, 1
      %s45 = scalar_select %p42, %s43, %s44
      %p48 = pneg %p42
      %p49 = scmp.eq.s32.totalorder %s33, 1
      %p50 = por %p48, %p49
      %p51 = scmp.ne.s32.totalorder %s43, %s46
      %p52 = scmp.eq.s32.totalorder %s33, 0
      %p53 = por %p51, %p52
      %p54 = scmp.ne.s32.totalorder %s43, %s46
      %p55 = scmp.eq.s32.totalorder %s38, 1
      %p56 = por %p54, %p55
      %p57 = scmp.ne.s32.totalorder %s46, %s47
      %p58 = scmp.eq.s32.totalorder %s38, 0
      %p59 = por %p57, %p58
      %p60 = scmp.ne.s32.totalorder %s46, %s47
      %p61 = scmp.eq.s32.totalorder %s39, 1
      %p62 = por %p60, %p61
      %p64 = scmp.ne.s32.totalorder %s47, %s63
      %p65 = scmp.eq.s32.totalorder %s39, 0
      %p66 = por %p64, %p65
      %s67 = ssub.s32 %s33, %s40
      %p68 = scmp.eq.s32.totalorder %s67, 0
      %s70 = sadd.s32 %s69, 1
      %s71 = scalar_select %p68, %s69, %s70
      %p74 = pneg %p68
      %p75 = scmp.eq.s32.totalorder %s33, 1
      %p76 = por %p74, %p75
      %p77 = scmp.ne.s32.totalorder %s69, %s72
      %p78 = scmp.eq.s32.totalorder %s33, 0
      %p79 = por %p77, %p78
      %p80 = scmp.ne.s32.totalorder %s69, %s72
      %p81 = scmp.eq.s32.totalorder %s38, 1
      %p82 = por %p80, %p81
      %p83 = scmp.ne.s32.totalorder %s72, %s73
      %p84 = scmp.eq.s32.totalorder %s38, 0
      %p85 = por %p83, %p84
      %p86 = scmp.ne.s32.totalorder %s72, %s73
      %p87 = scmp.eq.s32.totalorder %s39, 1
      %p88 = por %p86, %p87
      %p90 = scmp.ne.s32.totalorder %s73, %s89
      %p91 = scmp.eq.s32.totalorder %s39, 0
      %p92 = por %p90, %p91
      %s93 = ssub.s32 %s33, %s40
      %p94 = scmp.eq.s32.totalorder %s93, 0
      %s96 = sadd.s32 %s95, 1
      %s97 = scalar_select %p94, %s95, %s96
      %p100 = pneg %p94
      %p101 = scmp.eq.s32.totalorder %s33, 1
      %p102 = por %p100, %p101
      %p103 = scmp.ne.s32.totalorder %s95, %s98
      %p104 = scmp.eq.s32.totalorder %s33, 0
      %p105 = por %p103, %p104
      %p106 = scmp.ne.s32.totalorder %s95, %s98
      %p107 = scmp.eq.s32.totalorder %s38, 1
      %p108 = por %p106, %p107
      %p109 = scmp.ne.s32.totalorder %s98, %s99
      %p110 = scmp.eq.s32.totalorder %s38, 0
      %p111 = por %p109, %p110
      %p112 = scmp.ne.s32.totalorder %s98, %s99
      %p113 = scmp.eq.s32.totalorder %s39, 1
      %p114 = por %p112, %p113
      %p116 = scmp.ne.s32.totalorder %s99, %s115
      %p117 = scmp.eq.s32.totalorder %s39, 0
      %p118 = por %p116, %p117
      %s120 = sadd.s32 %s119, 1
      %p123 = scmp.eq.s32.totalorder %s33, 1
      %p124 = scmp.ne.s32.totalorder %s119, %s121
      %p125 = scmp.eq.s32.totalorder %s33, 0
      %p126 = por %p124, %p125
      %p127 = scmp.ne.s32.totalorder %s119, %s121
      %p128 = scmp.eq.s32.totalorder %s38, 1
      %p129 = por %p127, %p128
      %p130 = scmp.ne.s32.totalorder %s121, %s122
      %p131 = scmp.eq.s32.totalorder %s38, 0
      %p132 = por %p130, %p131
      %p133 = scmp.ne.s32.totalorder %s121, %s122
      %p134 = scmp.eq.s32.totalorder %s39, 1
      %p135 = por %p133, %p134
      %p137 = scmp.ne.s32.totalorder %s122, %s136
      %p138 = scmp.eq.s32.totalorder %s39, 0
      %p139 = por %p137, %p138
      %s141 = sadd.s32 %s140, 1
      %p144 = scmp.eq.s32.totalorder %s33, 1
      %p145 = scmp.ne.s32.totalorder %s140, %s142
      %p146 = scmp.eq.s32.totalorder %s33, 0
      %p147 = por %p145, %p146
      %p148 = scmp.ne.s32.totalorder %s140, %s142
      %p149 = scmp.eq.s32.totalorder %s38, 1
      %p150 = por %p148, %p149
      %p151 = scmp.ne.s32.totalorder %s142, %s143
      %p152 = scmp.eq.s32.totalorder %s38, 0
      %p153 = por %p151, %p152
      %p154 = scmp.ne.s32.totalorder %s142, %s143
      %p155 = scmp.eq.s32.totalorder %s39, 1
      %p156 = por %p154, %p155
      %p158 = scmp.ne.s32.totalorder %s143, %s157
      %p159 = scmp.eq.s32.totalorder %s39, 0
      %p160 = por %p158, %p159
      %s162 = sadd.s32 %s161, 1
      %p165 = scmp.eq.s32.totalorder %s33, 1
      %p166 = scmp.ne.s32.totalorder %s161, %s163
      %p167 = scmp.eq.s32.totalorder %s33, 0
      %p168 = por %p166, %p167
      %p169 = scmp.ne.s32.totalorder %s161, %s163
      %p170 = scmp.eq.s32.totalorder %s38, 1
      %p171 = por %p169, %p170
      %p172 = scmp.ne.s32.totalorder %s163, %s164
      %p173 = scmp.eq.s32.totalorder %s38, 0
      %p174 = por %p172, %p173
      %p175 = scmp.ne.s32.totalorder %s163, %s164
      %p176 = scmp.eq.s32.totalorder %s39, 1
      %p177 = por %p175, %p176
      %p179 = scmp.ne.s32.totalorder %s164, %s178
      %p180 = scmp.eq.s32.totalorder %s39, 0
      %p181 = por %p179, %p180
      %s183 = sadd.s32 %s182, 1
      %p186 = scmp.eq.s32.totalorder %s33, 1
      %p187 = scmp.ne.s32.totalorder %s182, %s184
      %p188 = scmp.eq.s32.totalorder %s33, 0
      %p189 = por %p187, %p188
      %p190 = scmp.ne.s32.totalorder %s182, %s184
      %p191 = scmp.eq.s32.totalorder %s38, 1
      %p192 = por %p190, %p191
      %p193 = scmp.ne.s32.totalorder %s184, %s185
      %p194 = scmp.eq.s32.totalorder %s38, 0
      %p195 = por %p193, %p194
      %p196 = scmp.ne.s32.totalorder %s184, %s185
      %p197 = scmp.eq.s32.totalorder %s39, 1
      %p198 = por %p196, %p197
      %p200 = scmp.ne.s32.totalorder %s185, %s199
      %p201 = scmp.eq.s32.totalorder %s39, 0
      %p202 = por %p200, %p201
      %s204 = sadd.s32 %s203, 1
      %p207 = scmp.eq.s32.totalorder %s33, 1
      %p208 = scmp.ne.s32.totalorder %s203, %s205
      %p209 = scmp.eq.s32.totalorder %s33, 0
      %p210 = por %p208, %p209
      %p211 = scmp.ne.s32.totalorder %s203, %s205
      %p212 = scmp.eq.s32.totalorder %s38, 1
      %p213 = por %p211, %p212
      %p214 = scmp.ne.s32.totalorder %s205, %s206
      %p215 = scmp.eq.s32.totalorder %s38, 0
      %p216 = por %p214, %p215
      %p217 = scmp.ne.s32.totalorder %s205, %s206
      %p218 = scmp.eq.s32.totalorder %s39, 1
      %p219 = por %p217, %p218
      %p221 = scmp.ne.s32.totalorder %s206, %s220
      %p222 = scmp.eq.s32.totalorder %s39, 0
      %p223 = por %p221, %p222
      %s225 = sadd.s32 %s224, 1
      %p228 = scmp.eq.s32.totalorder %s33, 1
      %p229 = scmp.ne.s32.totalorder %s224, %s226
      %p230 = scmp.eq.s32.totalorder %s33, 0
      %p231 = por %p229, %p230
      %p232 = scmp.ne.s32.totalorder %s224, %s226
      %p233 = scmp.eq.s32.totalorder %s38, 1
      %p234 = por %p232, %p233
      %p235 = scmp.ne.s32.totalorder %s226, %s227
      %p236 = scmp.eq.s32.totalorder %s38, 0
      %p237 = por %p235, %p236
      %p238 = scmp.ne.s32.totalorder %s226, %s227
      %p239 = scmp.eq.s32.totalorder %s39, 1
      %p240 = por %p238, %p239
      %p242 = scmp.ne.s32.totalorder %s227, %s241
      %p243 = scmp.eq.s32.totalorder %s39, 0
      %p244 = por %p242, %p243
      %s246 = sadd.s32 %s245, 1
      %p249 = scmp.eq.s32.totalorder %s33, 1
      %p250 = scmp.ne.s32.totalorder %s245, %s247
      %p251 = scmp.eq.s32.totalorder %s33, 0
      %p252 = por %p250, %p251
      %p253 = scmp.ne.s32.totalorder %s245, %s247
      %p254 = scmp.eq.s32.totalorder %s38, 1
      %p255 = por %p253, %p254
      %p256 = scmp.ne.s32.totalorder %s247, %s248
      %p257 = scmp.eq.s32.totalorder %s38, 0
      %p258 = por %p256, %p257
      %p259 = scmp.ne.s32.totalorder %s247, %s248
      %p260 = scmp.eq.s32.totalorder %s39, 1
      %p261 = por %p259, %p260
      %p263 = scmp.ne.s32.totalorder %s248, %s262
      %p264 = scmp.eq.s32.totalorder %s39, 0
      %p265 = por %p263, %p264
      %s267 = sadd.s32 %s266, 1
      %p270 = scmp.eq.s32.totalorder %s33, 1
      %p271 = scmp.ne.s32.totalorder %s266, %s268
      %p272 = scmp.eq.s32.totalorder %s33, 0
      %p273 = por %p271, %p272
      %p274 = scmp.ne.s32.totalorder %s266, %s268
      %p275 = scmp.eq.s32.totalorder %s38, 1
      %p276 = por %p274, %p275
      %p277 = scmp.ne.s32.totalorder %s268, %s269
      %p278 = scmp.eq.s32.totalorder %s38, 0
      %p279 = por %p277, %p278
      %p280 = scmp.ne.s32.totalorder %s268, %s269
      %p281 = scmp.eq.s32.totalorder %s39, 1
      %p282 = por %p280, %p281
      %p284 = scmp.ne.s32.totalorder %s269, %s283
      %p285 = scmp.eq.s32.totalorder %s39, 0
      %p286 = por %p284, %p285
      %s288 = sadd.s32 %s287, 1
      %p291 = scmp.eq.s32.totalorder %s33, 1
      %p292 = scmp.ne.s32.totalorder %s287, %s289
      %p293 = scmp.eq.s32.totalorder %s33, 0
      %p294 = por %p292, %p293
      %p295 = scmp.ne.s32.totalorder %s287, %s289
      %p296 = scmp.eq.s32.totalorder %s38, 1
      %p297 = por %p295, %p296
      %p298 = scmp.ne.s32.totalorder %s289, %s290
      %p299 = scmp.eq.s32.totalorder %s38, 0
      %p300 = por %p298, %p299
      %p301 = scmp.ne.s32.totalorder %s289, %s290
      %p302 = scmp.eq.s32.totalorder %s39, 1
      %p303 = por %p301, %p302
      %p305 = scmp.ne.s32.totalorder %s290, %s304
      %p306 = scmp.eq.s32.totalorder %s39, 0
      %p307 = por %p305, %p306
      %s309 = sadd.s32 %s308, 1
      %p312 = scmp.eq.s32.totalorder %s33, 1
      %p313 = scmp.ne.s32.totalorder %s308, %s310
      %p314 = scmp.eq.s32.totalorder %s33, 0
      %p315 = por %p313, %p314
      %p316 = scmp.ne.s32.totalorder %s308, %s310
      %p317 = scmp.eq.s32.totalorder %s38, 1
      %p318 = por %p316, %p317
      %p319 = scmp.ne.s32.totalorder %s310, %s311
      %p320 = scmp.eq.s32.totalorder %s38, 0
      %p321 = por %p319, %p320
      %p322 = scmp.ne.s32.totalorder %s310, %s311
      %p323 = scmp.eq.s32.totalorder %s39, 1
      %p324 = por %p322, %p323
      %p326 = scmp.ne.s32.totalorder %s311, %s325
      %p327 = scmp.eq.s32.totalorder %s39, 0
      %p328 = por %p326, %p327
      %s330 = sadd.s32 %s329, 1
      %p333 = scmp.eq.s32.totalorder %s33, 1
      %p334 = scmp.ne.s32.totalorder %s329, %s331
      %p335 = scmp.eq.s32.totalorder %s33, 0
      %p336 = por %p334, %p335
      %p337 = scmp.ne.s32.totalorder %s329, %s331
      %p338 = scmp.eq.s32.totalorder %s38, 1
      %p339 = por %p337, %p338
      %p340 = scmp.ne.s32.totalorder %s331, %s332
      %p341 = scmp.eq.s32.totalorder %s38, 0
      %p342 = por %p340, %p341
      %p343 = scmp.ne.s32.totalorder %s331, %s332
      %p344 = scmp.eq.s32.totalorder %s39, 1
      %p345 = por %p343, %p344
      %p347 = scmp.ne.s32.totalorder %s332, %s346
      %p348 = scmp.eq.s32.totalorder %s39, 0
      %p349 = por %p347, %p348
      %s351 = sadd.s32 %s350, 1
      %p354 = scmp.eq.s32.totalorder %s33, 1
      %p355 = scmp.ne.s32.totalorder %s350, %s352
      %p356 = scmp.eq.s32.totalorder %s33, 0
      %p357 = por %p355, %p356
      %p358 = scmp.ne.s32.totalorder %s350, %s352
      %p359 = scmp.eq.s32.totalorder %s38, 1
      %p360 = por %p358, %p359
      %p361 = scmp.ne.s32.totalorder %s352, %s353
      %p362 = scmp.eq.s32.totalorder %s38, 0
      %p363 = por %p361, %p362
      %p364 = scmp.ne.s32.totalorder %s352, %s353
      %p365 = scmp.eq.s32.totalorder %s39, 1
      %p366 = por %p364, %p365
      %p368 = scmp.ne.s32.totalorder %s353, %s367
      %p369 = scmp.eq.s32.totalorder %s39, 0
      %p370 = por %p368, %p369
      %s372 = sadd.s32 %s371, 1
      %p375 = scmp.eq.s32.totalorder %s33, 1
      %p376 = scmp.ne.s32.totalorder %s371, %s373
      %p377 = scmp.eq.s32.totalorder %s33, 0
      %p378 = por %p376, %p377
      %p379 = scmp.ne.s32.totalorder %s371, %s373
      %p380 = scmp.eq.s32.totalorder %s38, 1
      %p381 = por %p379, %p380
      %p382 = scmp.ne.s32.totalorder %s373, %s374
      %p383 = scmp.eq.s32.totalorder %s38, 0
      %p384 = por %p382, %p383
      %p385 = scmp.ne.s32.totalorder %s373, %s374
      %p386 = scmp.eq.s32.totalorder %s39, 1
      %p387 = por %p385, %p386
      %p389 = scmp.ne.s32.totalorder %s374, %s388
      %p390 = scmp.eq.s32.totalorder %s39, 0
      %p391 = por %p389, %p390
      %s393 = sadd.s32 %s392, 1
      %p396 = scmp.eq.s32.totalorder %s33, 1
      %p397 = scmp.ne.s32.totalorder %s392, %s394
      %p398 = scmp.eq.s32.totalorder %s33, 0
      %p399 = por %p397, %p398
      %p400 = scmp.ne.s32.totalorder %s392, %s394
      %p401 = scmp.eq.s32.totalorder %s38, 1
      %p402 = por %p400, %p401
      %p403 = scmp.ne.s32.totalorder %s394, %s395
      %p404 = scmp.eq.s32.totalorder %s38, 0
      %p405 = por %p403, %p404
      %p406 = scmp.ne.s32.totalorder %s394, %s395
      %p407 = scmp.eq.s32.totalorder %s39, 1
      %p408 = por %p406, %p407
      %p410 = scmp.ne.s32.totalorder %s395, %s409
      %p411 = scmp.eq.s32.totalorder %s39, 0
      %p412 = por %p410, %p411
      %s414 = sadd.s32 %s413, 1
      %p417 = scmp.eq.s32.totalorder %s33, 1
      %p418 = scmp.ne.s32.totalorder %s413, %s415
      %p419 = scmp.eq.s32.totalorder %s33, 0
      %p420 = por %p418, %p419
      %p421 = scmp.ne.s32.totalorder %s413, %s415
      %p422 = scmp.eq.s32.totalorder %s38, 1
      %p423 = por %p421, %p422
      %p424 = scmp.ne.s32.totalorder %s415, %s416
      %p425 = scmp.eq.s32.totalorder %s38, 0
      %p426 = por %p424, %p425
      %p427 = scmp.ne.s32.totalorder %s415, %s416
      %p428 = scmp.eq.s32.totalorder %s39, 1
      %p429 = por %p427, %p428
      %p431 = scmp.ne.s32.totalorder %s416, %s430
      %p432 = scmp.eq.s32.totalorder %s39, 0
      %p433 = por %p431, %p432
      %s435 = sadd.s32 %s434, 1
      %p438 = scmp.eq.s32.totalorder %s33, 1
      %p439 = scmp.ne.s32.totalorder %s434, %s436
      %p440 = scmp.eq.s32.totalorder %s33, 0
      %p441 = por %p439, %p440
      %p442 = scmp.ne.s32.totalorder %s434, %s436
      %p443 = scmp.eq.s32.totalorder %s38, 1
      %p444 = por %p442, %p443
      %p445 = scmp.ne.s32.totalorder %s436, %s437
      %p446 = scmp.eq.s32.totalorder %s38, 0
      %p447 = por %p445, %p446
      %p448 = scmp.ne.s32.totalorder %s436, %s437
      %p449 = scmp.eq.s32.totalorder %s39, 1
      %p450 = por %p448, %p449
      %p452 = scmp.ne.s32.totalorder %s437, %s451
      %p453 = scmp.eq.s32.totalorder %s39, 0
      %p454 = por %p452, %p453
      %s456 = sadd.s32 %s455, 1
      %p459 = scmp.eq.s32.totalorder %s33, 1
      %p460 = scmp.ne.s32.totalorder %s455, %s457
      %p461 = scmp.eq.s32.totalorder %s33, 0
      %p462 = por %p460, %p461
      %p463 = scmp.ne.s32.totalorder %s455, %s457
      %p464 = scmp.eq.s32.totalorder %s38, 1
      %p465 = por %p463, %p464
      %p466 = scmp.ne.s32.totalorder %s457, %s458
      %p467 = scmp.eq.s32.totalorder %s38, 0
      %p468 = por %p466, %p467
      %p469 = scmp.ne.s32.totalorder %s457, %s458
      %p470 = scmp.eq.s32.totalorder %s39, 1
      %p471 = por %p469, %p470
      %p473 = scmp.ne.s32.totalorder %s458, %s472
      %p474 = scmp.eq.s32.totalorder %s39, 0
      %p475 = por %p473, %p474
      %s476 = ssub.s32 %s33, %s40
      %p477 = scmp.eq.s32.totalorder %s476, 0
      %s479 = sadd.s32 %s478, 1
      %s480 = scalar_select %p477, %s478, %s479
      %p483 = pneg %p477
      %p484 = scmp.eq.s32.totalorder %s33, 1
      %p485 = por %p483, %p484
      %p486 = scmp.ne.s32.totalorder %s478, %s481
      %p487 = scmp.eq.s32.totalorder %s33, 0
      %p488 = por %p486, %p487
      %p489 = scmp.ne.s32.totalorder %s478, %s481
      %p490 = scmp.eq.s32.totalorder %s38, 1
      %p491 = por %p489, %p490
      %p492 = scmp.ne.s32.totalorder %s481, %s482
      %p493 = scmp.eq.s32.totalorder %s38, 0
      %p494 = por %p492, %p493
      %p495 = scmp.ne.s32.totalorder %s481, %s482
      %p496 = scmp.eq.s32.totalorder %s39, 1
      %p497 = por %p495, %p496
      %p499 = scmp.ne.s32.totalorder %s482, %s498
      %p500 = scmp.eq.s32.totalorder %s39, 0
      %p501 = por %p499, %p500
      %s502 = ssub.s32 %s33, %s40
      %p503 = scmp.eq.s32.totalorder %s502, 0
      %s505 = sadd.s32 %s504, 1
      %s506 = scalar_select %p503, %s504, %s505
      %p509 = pneg %p503
      %p510 = scmp.eq.s32.totalorder %s33, 1
      %p511 = por %p509, %p510
      %p512 = scmp.ne.s32.totalorder %s504, %s507
      %p513 = scmp.eq.s32.totalorder %s33, 0
      %p514 = por %p512, %p513
      %p515 = scmp.ne.s32.totalorder %s504, %s507
      %p516 = scmp.eq.s32.totalorder %s38, 1
      %p517 = por %p515, %p516
      %p518 = scmp.ne.s32.totalorder %s507, %s508
      %p519 = scmp.eq.s32.totalorder %s38, 0
      %p520 = por %p518, %p519
      %p521 = scmp.ne.s32.totalorder %s507, %s508
      %p522 = scmp.eq.s32.totalorder %s39, 1
      %p523 = por %p521, %p522
      %p525 = scmp.ne.s32.totalorder %s508, %s524
      %p526 = scmp.eq.s32.totalorder %s39, 0
      %p527 = por %p525, %p526
      %p528 = scmp.le.s32.totalorder 1, %s33
      %p529 = scmp.lt.s32.totalorder %s33, 3
      %p530 = pnand %p528, %p529
      %p531 = pneg %p530
      // Predicated region
      $region9: #{tpu_custom_call.1} parent=5 // pred_check
        _
      $region10: #{tpu_custom_call.1} parent=5 // pred_check_branch
        %533 = sbr.rel (%p530) target = $region12
      $region11: #{tpu_custom_call.1} parent=5 // pred_region
        %s534 = ssub.s32 %s33, 1
        // Predicated region
        $region13: #{tpu_custom_call.1} parent=11 // pred_check
          %p535 = pneg %p132
        $region14: #{tpu_custom_call.1} parent=11 // pred_check_branch
          %537 = sbr.rel (%p535) target = $region16
        $region15: #{tpu_custom_call.1} parent=11 // pred_region
          _
        $region16: #{tpu_custom_call.1} parent=11 // pred_fallthru
          _
        // Predicated region
        $region17: #{tpu_custom_call.1} parent=11 // pred_check
          %p538 = pneg %p153
        $region18: #{tpu_custom_call.1} parent=11 // pred_check_branch
          %540 = sbr.rel (%p538) target = $region20
        $region19: #{tpu_custom_call.1} parent=11 // pred_region
          _
        $region20: #{tpu_custom_call.1} parent=11 // pred_fallthru
          _
        // Predicated region
        $region21: #{tpu_custom_call.1} parent=11 // pred_check
          %p541 = pneg %p174
        $region22: #{tpu_custom_call.1} parent=11 // pred_check_branch
          %543 = sbr.rel (%p541) target = $region24
        $region23: #{tpu_custom_call.1} parent=11 // pred_region
          _
        $region24: #{tpu_custom_call.1} parent=11 // pred_fallthru
          _
        // Predicated region
        $region25: #{tpu_custom_call.1} parent=11 // pred_check
          %p544 = pneg %p195
        $region26: #{tpu_custom_call.1} parent=11 // pred_check_branch
          %546 = sbr.rel (%p544) target = $region28
        $region27: #{tpu_custom_call.1} parent=11 // pred_region
          %s548 = ssub.s32 6144, 6144
          %549 = vsyncadd [#allocation3], %s548
          %s550 = sshll.u32 [#allocation2], 4
          %s551 = int_to_ptr.vmem [resolvable:$true] %s550
          %556 = dma.hbm_to_vmem [thread:$0]  %s6, 6144, %s551, [#allocation3], 128, 128, 8
        $region28: #{tpu_custom_call.1} parent=11 // pred_fallthru
          _
        // Predicated region
        $region29: #{tpu_custom_call.1} parent=11 // pred_check
          %p557 = pneg %p216
        $region30: #{tpu_custom_call.1} parent=11 // pred_check_branch
          %559 = sbr.rel (%p557) target = $region32
        $region31: #{tpu_custom_call.1} parent=11 // pred_region
          %s561 = ssub.s32 6144, 6144
          %562 = vsyncadd [#allocation5], %s561
          %s563 = sshll.u32 [#allocation4], 4
          %s564 = int_to_ptr.vmem [resolvable:$true] %s563
          %569 = dma.hbm_to_vmem [thread:$0]  %s7, 6144, %s564, [#allocation5], 128, 128, 8
        $region32: #{tpu_custom_call.1} parent=11 // pred_fallthru
          _
        // Predicated region
        $region33: #{tpu_custom_call.1} parent=11 // pred_check
          %p570 = pneg %p237
        $region34: #{tpu_custom_call.1} parent=11 // pred_check_branch
          %572 = sbr.rel (%p570) target = $region36
        $region35: #{tpu_custom_call.1} parent=11 // pred_region
          _
        $region36: #{tpu_custom_call.1} parent=11 // pred_fallthru
          _
        // Predicated region
        $region37: #{tpu_custom_call.1} parent=11 // pred_check
          %p573 = pneg %p258
        $region38: #{tpu_custom_call.1} parent=11 // pred_check_branch
          %575 = sbr.rel (%p573) target = $region40
        $region39: #{tpu_custom_call.1} parent=11 // pred_region
          %s577 = ssub.s32 3072, 3072
          %578 = vsyncadd [#allocation5], %s577
          %s579 = sshll.u32 [#allocation6], 4
          %s580 = int_to_ptr.vmem [resolvable:$true] %s579
          %585 = dma.hbm_to_vmem [thread:$0]  %s9, 3072, %s580, [#allocation5], 64, 64, 4
        $region40: #{tpu_custom_call.1} parent=11 // pred_fallthru
          _
        // Predicated region
        $region41: #{tpu_custom_call.1} parent=11 // pred_check
          %p586 = pneg %p279
        $region42: #{tpu_custom_call.1} parent=11 // pred_check_branch
          %588 = sbr.rel (%p586) target = $region44
        $region43: #{tpu_custom_call.1} parent=11 // pred_region
          %s590 = ssub.s32 3072, 3072
          %591 = vsyncadd [#allocation8], %s590
          %s592 = sshll.u32 [#allocation7], 4
          %s593 = int_to_ptr.vmem [resolvable:$true] %s592
          %598 = dma.hbm_to_vmem [thread:$0]  %s10, 3072, %s593, [#allocation8], 64, 64, 4
        $region44: #{tpu_custom_call.1} parent=11 // pred_fallthru
          _
        // Predicated region
        $region45: #{tpu_custom_call.1} parent=11 // pred_check
          %p599 = pneg %p300
        $region46: #{tpu_custom_call.1} parent=11 // pred_check_branch
          %601 = sbr.rel (%p599) target = $region48
        $region47: #{tpu_custom_call.1} parent=11 // pred_region
          _
        $region48: #{tpu_custom_call.1} parent=11 // pred_fallthru
          _
        // Predicated region
        $region49: #{tpu_custom_call.1} parent=11 // pred_check
          %p602 = pneg %p321
        $region50: #{tpu_custom_call.1} parent=11 // pred_check_branch
          %604 = sbr.rel (%p602) target = $region52
        $region51: #{tpu_custom_call.1} parent=11 // pred_region
          %s606 = ssub.s32 6144, 6144
          %607 = vsyncadd [#allocation8], %s606
          %s608 = sshll.u32 [#allocation9], 4
          %s609 = int_to_ptr.vmem [resolvable:$true] %s608
          %614 = dma.hbm_to_vmem [thread:$0]  %s12, 6144, %s609, [#allocation8], 128, 128, 8
        $region52: #{tpu_custom_call.1} parent=11 // pred_fallthru
          _
        // Predicated region
        $region53: #{tpu_custom_call.1} parent=11 // pred_check
          %p615 = pneg %p342
        $region54: #{tpu_custom_call.1} parent=11 // pred_check_branch
          %617 = sbr.rel (%p615) target = $region56
        $region55: #{tpu_custom_call.1} parent=11 // pred_region
          _
        $region56: #{tpu_custom_call.1} parent=11 // pred_fallthru
          _
        // Predicated region
        $region57: #{tpu_custom_call.1} parent=11 // pred_check
          %p618 = pneg %p363
        $region58: #{tpu_custom_call.1} parent=11 // pred_check_branch
          %620 = sbr.rel (%p618) target = $region60
        $region59: #{tpu_custom_call.1} parent=11 // pred_region
          %s622 = ssub.s32 24576, 24576
          %623 = vsyncadd [#allocation11], %s622
          %s624 = sshll.u32 [#allocation10], 4
          %s625 = int_to_ptr.vmem [resolvable:$true] %s624
          %630 = dma.hbm_to_vmem [thread:$0]  %s14, 24576, %s625, [#allocation11], 256, 256, 16
        $region60: #{tpu_custom_call.1} parent=11 // pred_fallthru
          _
        // Predicated region
        $region61: #{tpu_custom_call.1} parent=11 // pred_check
          %p631 = pneg %p384
        $region62: #{tpu_custom_call.1} parent=11 // pred_check_branch
          %633 = sbr.rel (%p631) target = $region64
        $region63: #{tpu_custom_call.1} parent=11 // pred_region
          %s635 = ssub.s32 24576, 24576
          %636 = vsyncadd [#allocation11], %s635
          %s637 = sshll.u32 [#allocation12], 4
          %s638 = int_to_ptr.vmem [resolvable:$true] %s637
          %643 = dma.hbm_to_vmem [thread:$0]  %s15, 24576, %s638, [#allocation11], 256, 256, 16
        $region64: #{tpu_custom_call.1} parent=11 // pred_fallthru
          _
        // Predicated region
        $region65: #{tpu_custom_call.1} parent=11 // pred_check
          %p644 = pneg %p405
        $region66: #{tpu_custom_call.1} parent=11 // pred_check_branch
          %646 = sbr.rel (%p644) target = $region68
        $region67: #{tpu_custom_call.1} parent=11 // pred_region
          _
        $region68: #{tpu_custom_call.1} parent=11 // pred_fallthru
          _
        // Predicated region
        $region69: #{tpu_custom_call.1} parent=11 // pred_check
          %p647 = pneg %p426
        $region70: #{tpu_custom_call.1} parent=11 // pred_check_branch
          %649 = sbr.rel (%p647) target = $region72
        $region71: #{tpu_custom_call.1} parent=11 // pred_region
          %s651 = ssub.s32 12288, 12288
          %652 = vsyncadd [#allocation14], %s651
          %s653 = sshll.u32 [#allocation13], 4
          %s654 = int_to_ptr.vmem [resolvable:$true] %s653
          %659 = dma.hbm_to_vmem [thread:$0]  %s17, 12288, %s654, [#allocation14], 128, 128, 8
        $region72: #{tpu_custom_call.1} parent=11 // pred_fallthru
          _
        // Predicated region
        $region73: #{tpu_custom_call.1} parent=11 // pred_check
          %p660 = pneg %p447
        $region74: #{tpu_custom_call.1} parent=11 // pred_check_branch
          %662 = sbr.rel (%p660) target = $region76
        $region75: #{tpu_custom_call.1} parent=11 // pred_region
          %s664 = ssub.s32 12288, 12288
          %665 = vsyncadd [#allocation14], %s664
          %s666 = sshll.u32 [#allocation15], 4
          %s667 = int_to_ptr.vmem [resolvable:$true] %s666
          %672 = dma.hbm_to_vmem [thread:$0]  %s18, 12288, %s667, [#allocation14], 128, 128, 8
        $region76: #{tpu_custom_call.1} parent=11 // pred_fallthru
          _
        // Predicated region
        $region77: #{tpu_custom_call.1} parent=11 // pred_check
          %p673 = pneg %p468
        $region78: #{tpu_custom_call.1} parent=11 // pred_check_branch
          %675 = sbr.rel (%p673) target = $region80
        $region79: #{tpu_custom_call.1} parent=11 // pred_region
          _
        $region80: #{tpu_custom_call.1} parent=11 // pred_fallthru
          _
      $region12: #{tpu_custom_call.1} parent=5 // pred_fallthru
        _
      %p676 = scmp.lt.s32.totalorder %s33, 2
      // Predicated region
      $region81: #{tpu_custom_call.1} parent=5 // pred_check
        %p677 = pneg %p676
      $region82: #{tpu_custom_call.1} parent=5 // pred_check_branch
        %679 = sbr.rel (%p677) target = $region84
      $region83: #{tpu_custom_call.1} parent=5 // pred_region
        // Predicated region
        $region85: #{tpu_custom_call.1} parent=83 // pred_check
          %p680 = pneg %p53
        $region86: #{tpu_custom_call.1} parent=83 // pred_check_branch
          %682 = sbr.rel (%p680) target = $region88
        $region87: #{tpu_custom_call.1} parent=83 // pred_region
          %p683 = scmp.lt.s32.totalorder %s33, 1
          %s684 = scalar_select %p683, %s33, 1
          %s685 = smul.addr %s684, 3
          %s686 = smul.addr %s685, 8
          %s687 = scalar_lea.vmem %s0, %s686
        $region88: #{tpu_custom_call.1} parent=83 // pred_fallthru
          _
        // Predicated region
        $region89: #{tpu_custom_call.1} parent=83 // pred_check
          %p688 = pneg %p79
        $region90: #{tpu_custom_call.1} parent=83 // pred_check_branch
          %690 = sbr.rel (%p688) target = $region92
        $region91: #{tpu_custom_call.1} parent=83 // pred_region
          %p691 = scmp.lt.s32.totalorder %s33, 1
          %s692 = scalar_select %p691, %s33, 1
          %s693 = smul.addr %s692, 3
          %s694 = smul.addr %s693, 8
          %s695 = scalar_lea.vmem %s1, %s694
        $region92: #{tpu_custom_call.1} parent=83 // pred_fallthru
          _
        // Predicated region
        $region93: #{tpu_custom_call.1} parent=83 // pred_check
          %p696 = pneg %p105
        $region94: #{tpu_custom_call.1} parent=83 // pred_check_branch
          %698 = sbr.rel (%p696) target = $region96
        $region95: #{tpu_custom_call.1} parent=83 // pred_region
          %p699 = scmp.lt.s32.totalorder %s33, 1
          %s700 = scalar_select %p699, %s33, 1
          %s701 = smul.addr %s700, 6
          %s702 = smul.addr %s701, 8
          %s703 = scalar_lea.vmem %s2, %s702
        $region96: #{tpu_custom_call.1} parent=83 // pred_fallthru
          _
      $region84: #{tpu_custom_call.1} parent=5 // pred_fallthru
        _
      %p704 = scmp.le.s32.totalorder 1, %s33
      %p705 = scmp.lt.s32.totalorder %s33, 3
      %p706 = pnand %p704, %p705
      %p707 = pneg %p706
      // Predicated region
      $region97: #{tpu_custom_call.1} parent=5 // pred_check
        _
      $region98: #{tpu_custom_call.1} parent=5 // pred_check_branch
        %709 = sbr.rel (%p706) target = $region100
      $region99: #{tpu_custom_call.1} parent=5 // pred_region
        %s710 = ssub.s32 %s33, 1
        // Predicated region
        $region101: #{tpu_custom_call.1} parent=99 // pred_check
          %p711 = pneg %p195
        $region102: #{tpu_custom_call.1} parent=99 // pred_check_branch
          %713 = sbr.rel (%p711) target = $region104
        $region103: #{tpu_custom_call.1} parent=99 // pred_region
          %714 = dma.done [#allocation3], 6144
        $region104: #{tpu_custom_call.1} parent=99 // pred_fallthru
          _
        // Predicated region
        $region105: #{tpu_custom_call.1} parent=99 // pred_check
          %p715 = pneg %p216
        $region106: #{tpu_custom_call.1} parent=99 // pred_check_branch
          %717 = sbr.rel (%p715) target = $region108
        $region107: #{tpu_custom_call.1} parent=99 // pred_region
          %718 = dma.done [#allocation5], 6144
        $region108: #{tpu_custom_call.1} parent=99 // pred_fallthru
          _
        // Predicated region
        $region109: #{tpu_custom_call.1} parent=99 // pred_check
          %p719 = pneg %p258
        $region110: #{tpu_custom_call.1} parent=99 // pred_check_branch
          %721 = sbr.rel (%p719) target = $region112
        $region111: #{tpu_custom_call.1} parent=99 // pred_region
          %722 = dma.done [#allocation5], 3072
        $region112: #{tpu_custom_call.1} parent=99 // pred_fallthru
          _
        // Predicated region
        $region113: #{tpu_custom_call.1} parent=99 // pred_check
          %p723 = pneg %p279
        $region114: #{tpu_custom_call.1} parent=99 // pred_check_branch
          %725 = sbr.rel (%p723) target = $region116
        $region115: #{tpu_custom_call.1} parent=99 // pred_region
          %726 = dma.done [#allocation8], 3072
        $region116: #{tpu_custom_call.1} parent=99 // pred_fallthru
          _
        // Predicated region
        $region117: #{tpu_custom_call.1} parent=99 // pred_check
          %p727 = pneg %p321
        $region118: #{tpu_custom_call.1} parent=99 // pred_check_branch
          %729 = sbr.rel (%p727) target = $region120
        $region119: #{tpu_custom_call.1} parent=99 // pred_region
          %730 = dma.done [#allocation8], 6144
        $region120: #{tpu_custom_call.1} parent=99 // pred_fallthru
          _
        // Predicated region
        $region121: #{tpu_custom_call.1} parent=99 // pred_check
          %p731 = pneg %p363
        $region122: #{tpu_custom_call.1} parent=99 // pred_check_branch
          %733 = sbr.rel (%p731) target = $region124
        $region123: #{tpu_custom_call.1} parent=99 // pred_region
          %734 = dma.done [#allocation11], 24576
        $region124: #{tpu_custom_call.1} parent=99 // pred_fallthru
          _
        // Predicated region
        $region125: #{tpu_custom_call.1} parent=99 // pred_check
          %p735 = pneg %p384
        $region126: #{tpu_custom_call.1} parent=99 // pred_check_branch
          %737 = sbr.rel (%p735) target = $region128
        $region127: #{tpu_custom_call.1} parent=99 // pred_region
          %738 = dma.done [#allocation11], 24576
        $region128: #{tpu_custom_call.1} parent=99 // pred_fallthru
          _
        // Predicated region
        $region129: #{tpu_custom_call.1} parent=99 // pred_check
          %p739 = pneg %p426
        $region130: #{tpu_custom_call.1} parent=99 // pred_check_branch
          %741 = sbr.rel (%p739) target = $region132
        $region131: #{tpu_custom_call.1} parent=99 // pred_region
          %742 = dma.done [#allocation14], 12288
        $region132: #{tpu_custom_call.1} parent=99 // pred_fallthru
          _
        // Predicated region
        $region133: #{tpu_custom_call.1} parent=99 // pred_check
          %p743 = pneg %p447
        $region134: #{tpu_custom_call.1} parent=99 // pred_check_branch
          %745 = sbr.rel (%p743) target = $region136
        $region135: #{tpu_custom_call.1} parent=99 // pred_region
          %746 = dma.done [#allocation14], 12288
        $region136: #{tpu_custom_call.1} parent=99 // pred_fallthru
          _
        %p747 = scmp.lt.s32.totalorder %s38, 1
        %s748 = scalar_select %p747, %s38, 1
        %s749 = smul.addr %s748, 3
        %s750 = smul.addr %s749, 8
        %s751 = scalar_lea.vmem %s0, %s750
        %p752 = pneg %p59
        %p753 = pneg %p56
        %p754 = scmp.lt.s32.totalorder %s38, 1
        %s755 = scalar_select %p754, %s38, 1
        %s756 = smul.addr %s755, 3
        %s757 = smul.addr %s756, 8
        %s758 = scalar_lea.vmem %s1, %s757
        %p759 = pneg %p85
        %p760 = pneg %p82
        %p761 = scmp.lt.s32.totalorder %s38, 1
        %s762 = scalar_select %p761, %s38, 1
        %s763 = smul.addr %s762, 6
        %s764 = smul.addr %s763, 8
        %s765 = scalar_lea.vmem %s2, %s764
        %p766 = pneg %p111
        %p767 = pneg %p108
        %p768 = pneg %p132
        %p769 = pneg %p129
        %p770 = pneg %p153
        %p771 = pneg %p150
        %p772 = pneg %p174
        %p773 = pneg %p171
        %p774 = pneg %p195
        %p775 = pneg %p192
        %p776 = pneg %p216
        %p777 = pneg %p213
        %p778 = pneg %p237
        %p779 = pneg %p234
        %p780 = pneg %p258
        %p781 = pneg %p255
        %p782 = pneg %p279
        %p783 = pneg %p276
        %p784 = pneg %p300
        %p785 = pneg %p297
        %p786 = pneg %p321
        %p787 = pneg %p318
        %p788 = pneg %p342
        %p789 = pneg %p339
        %p790 = pneg %p363
        %p791 = pneg %p360
        %p792 = pneg %p384
        %p793 = pneg %p381
        %p794 = pneg %p405
        %p795 = pneg %p402
        %p796 = pneg %p426
        %p797 = pneg %p423
        %p798 = pneg %p447
        %p799 = pneg %p444
        %p800 = pneg %p468
        %p801 = pneg %p465
        %p802 = pneg %p494
        %p803 = pneg %p491
        %p804 = scmp.lt.s32.totalorder %s38, 1
        %s805 = scalar_select %p804, %s38, 1
        %s806 = smul.addr %s805, 3
        %s807 = smul.addr %s806, 8
        %s808 = scalar_lea.vmem %s20, %s807
        %p809 = pneg %p520
        %p810 = pneg %p517
        %p811 = scmp.lt.s32.totalorder %s38, 1
        %s812 = scalar_select %p811, %s38, 1
        %s813 = smul.addr %s812, 6
        %s814 = smul.addr %s813, 8
        %s815 = scalar_lea.vmem %s21, %s814
        %p816 = scmp.lt.s32.totalorder %s38, 1
        %s817 = scalar_select %p816, %s38, 1
        %s818 = smul.addr %s817, 3
        %s819 = smul.addr %s818, 8
        %s820 = scalar_lea.vmem %s0, %s819
        %p821 = scmp.lt.s32.totalorder %s38, 1
        %s822 = scalar_select %p821, %s38, 1
        %s823 = smul.addr %s822, 3
        %s824 = smul.addr %s823, 8
        %s825 = scalar_lea.vmem %s1, %s824
        %p826 = scmp.lt.s32.totalorder %s38, 1
        %s827 = scalar_select %p826, %s38, 1
        %s828 = smul.addr %s827, 6
        %s829 = smul.addr %s828, 8
        %s830 = scalar_lea.vmem %s2, %s829
        %p831 = scmp.lt.s32.totalorder %s38, 1
        %s832 = scalar_select %p831, %s38, 1
        %s833 = smul.addr %s832, 3
        %s834 = smul.addr %s833, 8
        %s835 = scalar_lea.vmem %s20, %s834
        %p836 = scmp.lt.s32.totalorder %s38, 1
        %s837 = scalar_select %p836, %s38, 1
        %s838 = smul.addr %s837, 6
        %s839 = smul.addr %s838, 8
        %s840 = scalar_lea.vmem %s21, %s839
        %v842 = vld [vmem:[%s3] sm:$0xff]
        %v843 = vld [vmem:[%s3 + $0x8] sm:$0xff]
        %v844 = vld [vmem:[%s3 + $0x10] sm:$0x3]
        %v845 = vld [vmem:[%s820] sm:$0xff]
        %v846 = vld [vmem:[%s820 + $0x8] sm:$0xff]
        %v847 = vld [vmem:[%s820 + $0x10] sm:$0x3]
        %v848 = vpack.c.bf16 %v846, %v845
        %v849 = vpack.c.bf16 %v847, %v847
        %vm850 = vsmask.f32 256
        %v852 = vshrl.u32 %v848, 16
        %v854 = vrot.slane %v852, 7
        %v855 = vshll.u32 %v848, 16
        %v857 = vor.u32 %v854, %v855
        %v859 = vshrl.u32 %v849, 16
        %v861 = vrot.slane %v859, 7
        %v862 = vshll.u32 %v849, 16
        %v864 = vor.u32 %v861, %v862
        %v865 = vsel %vm850, %v854, %v864
        %vm868 = vcmask 1040384
        %vm869 = vmand %vm868, %vm850
        %v870 = vsel %vm869, 0, %v857
        %vm871 = vcmask 1041408
        %vm872 = vsmask.f32 1280
        %vm873 = vmand %vm871, %vm872
        %v874 = vsel %vm873, %v865, 0
        %v875 = vld [vmem:[%s4] sm:$0xf]
        %v876 = vld [vmem:[%s4 + $0x4] sm:$0xf]
        %v877 = vld [vmem:[%s4 + $0x8] sm:$0xf]
        %v878 = vld [vmem:[%s4 + $0xc] sm:$0xf]
        %v879 = vld [vmem:[%s4 + $0x10] sm:$0xf]
        %v880 = vld [vmem:[%s4 + $0x14] sm:$0xf]
        %v881 = vld [vmem:[%s4 + $0x18] sm:$0xf]
        %v882 = vld [vmem:[%s4 + $0x1c] sm:$0xf]
        %v883 = vld [vmem:[%s4 + $0x20] sm:$0xf]
        %v884 = vld [vmem:[%s4 + $0x24] sm:$0xf]
        %v885 = vld [vmem:[%s4 + $0x28] sm:$0xf]
        %v886 = vld [vmem:[%s4 + $0x2c] sm:$0xf]
        %v887 = vld [vmem:[%s4 + $0x30] sm:$0xf]
        %v888 = vld [vmem:[%s4 + $0x34] sm:$0xf]
        %v889 = vld [vmem:[%s4 + $0x38] sm:$0xf]
        %v890 = vld [vmem:[%s4 + $0x3c] sm:$0xf]
        %s891 = scalar_lea.vmem %s4, 64
        %v892 = vld [vmem:[%s891] sm:$0xf]
        %v893 = vld [vmem:[%s891 + $0x4] sm:$0xf]
        %v894 = vld [vmem:[%s891 + $0x8] sm:$0xf]
        %v895 = vld [vmem:[%s891 + $0xc] sm:$0xf]
        %v896 = vld [vmem:[%s891 + $0x10] sm:$0xf]
        %v897 = vld [vmem:[%s891 + $0x14] sm:$0xf]
        %v898 = vld [vmem:[%s891 + $0x18] sm:$0xf]
        %v899 = vld [vmem:[%s891 + $0x1c] sm:$0xf]
        %v900 = vld [vmem:[%s891 + $0x20] sm:$0xf]
        %v901 = vld [vmem:[%s891 + $0x24] sm:$0xf]
        %v902 = vld [vmem:[%s891 + $0x28] sm:$0xf]
        %v903 = vld [vmem:[%s891 + $0x2c] sm:$0xf]
        %v904 = vld [vmem:[%s891 + $0x30] sm:$0xf]
        %v905 = vld [vmem:[%s891 + $0x34] sm:$0xf]
        %v906 = vld [vmem:[%s891 + $0x38] sm:$0xf]
        %v907 = vld [vmem:[%s891 + $0x3c] sm:$0xf]
        %vm908 = vsmask.f32 7424
        %v910 = vshrl.u32 %v870, 16
        %v912 = vshll.u32 %v870, 16
        %v914 = vrot.slane %v912, 1
        %v915 = vor.u32 %v910, %v914
        %v917 = vshll.u32 %v874, 16
        %v919 = vrot.slane %v917, 1
        %v920 = vsel %vm908, %v915, %v919
        %v921 = vshrl.u32 %v874, 16
        %v923 = vor.u32 %v921, %v919
        %v942 = vunpack.c.l.b16 %v892
        %v943 = vunpack.c.l.b16 %v893
        %v944 = vunpack.c.l.b16 %v894
        %v945 = vunpack.c.l.b16 %v895
        %v946 = vunpack.c.l.b16 %v896
        %v947 = vunpack.c.l.b16 %v897
        %v948 = vunpack.c.l.b16 %v898
        %v949 = vunpack.c.l.b16 %v899
        %v950 = vunpack.c.l.b16 %v900
        %v951 = vunpack.c.l.b16 %v901
        %v952 = vunpack.c.l.b16 %v902
        %v953 = vunpack.c.l.b16 %v903
        %v954 = vunpack.c.l.b16 %v904
        %v955 = vunpack.c.l.b16 %v905
        %v956 = vunpack.c.l.b16 %v906
        %v957 = vunpack.c.l.b16 %v907
        %v958 = vpack.c.b16 %v943, %v942
        %v959 = vpack.c.b16 %v945, %v944
        %v960 = vpack.c.b16 %v947, %v946
        %v961 = vpack.c.b16 %v949, %v948
        %v962 = vpack.c.b16 %v951, %v950
        %v963 = vpack.c.b16 %v953, %v952
        %v964 = vpack.c.b16 %v955, %v954
        %v965 = vpack.c.b16 %v957, %v956
        %974 = vmatprep.subr.bf16.mxu0 0
        %975 = vmatpush1.bf16.msra.mxu0 %v965
        %976 = vmatprep.subr.bf16.mxu0 0
        %977 = vmatpush1.bf16.msra.mxu0 %v964
        %978 = vmatprep.subr.bf16.mxu0 0
        %979 = vmatpush1.bf16.msra.mxu0 %v963
        %980 = vmatprep.subr.bf16.mxu0 0
        %981 = vmatpush1.bf16.msra.mxu0 %v962
        %982 = vmatprep.subr.bf16.mxu0 0
        %983 = vmatpush1.bf16.msra.mxu0 %v961
        %984 = vmatprep.subr.bf16.mxu0 0
        %985 = vmatpush1.bf16.msra.mxu0 %v960
        %986 = vmatprep.subr.bf16.mxu0 0
        %987 = vmatpush1.bf16.msra.mxu0 %v959
        %988 = vmatprep.subr.bf16.mxu0 0
        %989 = vmatpush1.bf16.msra.mxu0 %v958
        %990 = vmatprep.subr.bf16.mxu0 0
        %991 = vmatpush2.bf16.msra.mxu0 0
        %992 = vmatprep.subr.bf16.mxu0 0
        %993 = vmatpush2.bf16.msra.mxu0 0
        %994 = vmatprep.subr.bf16.mxu0 0
        %995 = vmatpush2.bf16.msra.mxu0 0
        %996 = vmatprep.subr.bf16.mxu0 0
        %997 = vmatpush2.bf16.msra.mxu0 0
        %998 = vmatprep.subr.bf16.mxu0 0
        %999 = vmatpush2.bf16.msra.mxu0 0
        %1000 = vmatprep.subr.bf16.mxu0 0
        %1001 = vmatpush2.bf16.msra.mxu0 0
        %1002 = vmatprep.subr.bf16.mxu0 0
        %1003 = vmatpush2.bf16.msra.mxu0 0
        %1004 = vmatprep.subr.bf16.mxu0 0
        %1005 = vmatpush2.bf16.msra.mxu0 0
        %1006 = vmatprep.mubr.bf16.mxu0 0
        %1007 = vmatmul.mubr.bf16.gmra.mxu0 %v920
        %v1008 = vpop.f32.mrf.mxu0
        %v1009 = vadd.f32 0.0, %v1008
        %v1010 = vpop.f32.mrf.mxu0
        %v1011 = vpop.f32.mrf.mxu0
        %v1012 = vadd.f32 0.0, %v1011
        %v1013 = vpop.f32.mrf.mxu0
        %1014 = vmatprep.mubr.bf16.mxu0 0
        %1015 = vmatmul.mubr.bf16.gmra.mxu0 %v923
        %v1016 = vpop.f32.mrf.mxu0
        %v1017 = vadd.f32 0.0, %v1016
        %v1018 = vpop.f32.mrf.mxu0
        %v1019 = vpop.f32.mrf.mxu0
        %v1020 = vpop.f32.mrf.mxu0
        %1021 = vdwg.mxu0
        %v1038 = vunpack.c.l.b16 %v875
        %v1039 = vunpack.c.l.b16 %v876
        %v1040 = vunpack.c.l.b16 %v877
        %v1041 = vunpack.c.l.b16 %v878
        %v1042 = vunpack.c.l.b16 %v879
        %v1043 = vunpack.c.l.b16 %v880
        %v1044 = vunpack.c.l.b16 %v881
        %v1045 = vunpack.c.l.b16 %v882
        %v1046 = vunpack.c.l.b16 %v883
        %v1047 = vunpack.c.l.b16 %v884
        %v1048 = vunpack.c.l.b16 %v885
        %v1049 = vunpack.c.l.b16 %v886
        %v1050 = vunpack.c.l.b16 %v887
        %v1051 = vunpack.c.l.b16 %v888
        %v1052 = vunpack.c.l.b16 %v889
        %v1053 = vunpack.c.l.b16 %v890
        %v1054 = vpack.c.b16 %v1039, %v1038
        %v1055 = vpack.c.b16 %v1041, %v1040
        %v1056 = vpack.c.b16 %v1043, %v1042
        %v1057 = vpack.c.b16 %v1045, %v1044
        %v1058 = vpack.c.b16 %v1047, %v1046
        %v1059 = vpack.c.b16 %v1049, %v1048
        %v1060 = vpack.c.b16 %v1051, %v1050
        %v1061 = vpack.c.b16 %v1053, %v1052
        %1070 = vmatprep.subr.bf16.mxu0 0
        %1071 = vmatpush1.bf16.msra.mxu0 %v1061
        %1072 = vmatprep.subr.bf16.mxu0 0
        %1073 = vmatpush1.bf16.msra.mxu0 %v1060
        %1074 = vmatprep.subr.bf16.mxu0 0
        %1075 = vmatpush1.bf16.msra.mxu0 %v1059
        %1076 = vmatprep.subr.bf16.mxu0 0
        %1077 = vmatpush1.bf16.msra.mxu0 %v1058
        %1078 = vmatprep.subr.bf16.mxu0 0
        %1079 = vmatpush1.bf16.msra.mxu0 %v1057
        %1080 = vmatprep.subr.bf16.mxu0 0
        %1081 = vmatpush1.bf16.msra.mxu0 %v1056
        %1082 = vmatprep.subr.bf16.mxu0 0
        %1083 = vmatpush1.bf16.msra.mxu0 %v1055
        %1084 = vmatprep.subr.bf16.mxu0 0
        %1085 = vmatpush1.bf16.msra.mxu0 %v1054
        %1086 = vmatprep.subr.bf16.mxu0 0
        %1087 = vmatpush2.bf16.msra.mxu0 0
        %1088 = vmatprep.subr.bf16.mxu0 0
        %1089 = vmatpush2.bf16.msra.mxu0 0
        %1090 = vmatprep.subr.bf16.mxu0 0
        %1091 = vmatpush2.bf16.msra.mxu0 0
        %1092 = vmatprep.subr.bf16.mxu0 0
        %1093 = vmatpush2.bf16.msra.mxu0 0
        %1094 = vmatprep.subr.bf16.mxu0 0
        %1095 = vmatpush2.bf16.msra.mxu0 0
        %1096 = vmatprep.subr.bf16.mxu0 0
        %1097 = vmatpush2.bf16.msra.mxu0 0
        %1098 = vmatprep.subr.bf16.mxu0 0
        %1099 = vmatpush2.bf16.msra.mxu0 0
        %1100 = vmatprep.subr.bf16.mxu0 0
        %1101 = vmatpush2.bf16.msra.mxu0 0
        %1102 = vmatprep.mubr.bf16.mxu0 0
        %1103 = vmatmul.mubr.bf16.gmra.mxu0 %v870
        %v1104 = vpop.f32.mrf.mxu0
        %v1105 = vadd.f32 %v1009, %v1104
        %v1106 = vpop.f32.mrf.mxu0
        %v1107 = vpop.f32.mrf.mxu0
        %v1108 = vadd.f32 %v1012, %v1107
        %v1109 = vpop.f32.mrf.mxu0
        %1110 = vmatprep.mubr.bf16.mxu0 0
        %1111 = vmatmul.mubr.bf16.gmra.mxu0 %v874
        %v1112 = vpop.f32.mrf.mxu0
        %v1113 = vadd.f32 %v1017, %v1112
        %v1114 = vpop.f32.mrf.mxu0
        %v1115 = vpop.f32.mrf.mxu0
        %v1116 = vpop.f32.mrf.mxu0
        %1117 = vdwg.mxu0
        %s1118 = scalar_lea.vmem %s4, 128
        %v1119 = vld [vmem:[%s1118] sm:$0xf]
        %v1120 = vld [vmem:[%s1118 + $0x4] sm:$0xf]
        %v1121 = vld [vmem:[%s1118 + $0x8] sm:$0xf]
        %v1122 = vld [vmem:[%s1118 + $0xc] sm:$0xf]
        %v1123 = vld [vmem:[%s1118 + $0x10] sm:$0xf]
        %v1124 = vld [vmem:[%s1118 + $0x14] sm:$0xf]
        %v1125 = vld [vmem:[%s1118 + $0x18] sm:$0xf]
        %v1126 = vld [vmem:[%s1118 + $0x1c] sm:$0xf]
        %v1127 = vld [vmem:[%s1118 + $0x20] sm:$0xf]
        %v1128 = vld [vmem:[%s1118 + $0x24] sm:$0xf]
        %v1129 = vld [vmem:[%s1118 + $0x28] sm:$0xf]
        %v1130 = vld [vmem:[%s1118 + $0x2c] sm:$0xf]
        %v1131 = vld [vmem:[%s1118 + $0x30] sm:$0xf]
        %v1132 = vld [vmem:[%s1118 + $0x34] sm:$0xf]
        %v1133 = vld [vmem:[%s1118 + $0x38] sm:$0xf]
        %v1134 = vld [vmem:[%s1118 + $0x3c] sm:$0xf]
        %vm1137 = vcmask 1046528
        %v1138 = vrot.slane %v870, 1
        %v1139 = vrot.slane %v874, 1
        %v1140 = vsel %vm1137, %v1138, %v1139
        %v1159 = vunpack.c.l.b16 %v1119
        %v1160 = vunpack.c.l.b16 %v1120
        %v1161 = vunpack.c.l.b16 %v1121
        %v1162 = vunpack.c.l.b16 %v1122
        %v1163 = vunpack.c.l.b16 %v1123
        %v1164 = vunpack.c.l.b16 %v1124
        %v1165 = vunpack.c.l.b16 %v1125
        %v1166 = vunpack.c.l.b16 %v1126
        %v1167 = vunpack.c.l.b16 %v1127
        %v1168 = vunpack.c.l.b16 %v1128
        %v1169 = vunpack.c.l.b16 %v1129
        %v1170 = vunpack.c.l.b16 %v1130
        %v1171 = vunpack.c.l.b16 %v1131
        %v1172 = vunpack.c.l.b16 %v1132
        %v1173 = vunpack.c.l.b16 %v1133
        %v1174 = vunpack.c.l.b16 %v1134
        %v1175 = vpack.c.b16 %v1160, %v1159
        %v1176 = vpack.c.b16 %v1162, %v1161
        %v1177 = vpack.c.b16 %v1164, %v1163
        %v1178 = vpack.c.b16 %v1166, %v1165
        %v1179 = vpack.c.b16 %v1168, %v1167
        %v1180 = vpack.c.b16 %v1170, %v1169
        %v1181 = vpack.c.b16 %v1172, %v1171
        %v1182 = vpack.c.b16 %v1174, %v1173
        %1191 = vmatprep.subr.bf16.mxu0 0
        %1192 = vmatpush1.bf16.msra.mxu0 %v1182
        %1193 = vmatprep.subr.bf16.mxu0 0
        %1194 = vmatpush1.bf16.msra.mxu0 %v1181
        %1195 = vmatprep.subr.bf16.mxu0 0
        %1196 = vmatpush1.bf16.msra.mxu0 %v1180
        %1197 = vmatprep.subr.bf16.mxu0 0
        %1198 = vmatpush1.bf16.msra.mxu0 %v1179
        %1199 = vmatprep.subr.bf16.mxu0 0
        %1200 = vmatpush1.bf16.msra.mxu0 %v1178
        %1201 = vmatprep.subr.bf16.mxu0 0
        %1202 = vmatpush1.bf16.msra.mxu0 %v1177
        %1203 = vmatprep.subr.bf16.mxu0 0
        %1204 = vmatpush1.bf16.msra.mxu0 %v1176
        %1205 = vmatprep.subr.bf16.mxu0 0
        %1206 = vmatpush1.bf16.msra.mxu0 %v1175
        %1207 = vmatprep.subr.bf16.mxu0 0
        %1208 = vmatpush2.bf16.msra.mxu0 0
        %1209 = vmatprep.subr.bf16.mxu0 0
        %1210 = vmatpush2.bf16.msra.mxu0 0
        %1211 = vmatprep.subr.bf16.mxu0 0
        %1212 = vmatpush2.bf16.msra.mxu0 0
        %1213 = vmatprep.subr.bf16.mxu0 0
        %1214 = vmatpush2.bf16.msra.mxu0 0
        %1215 = vmatprep.subr.bf16.mxu0 0
        %1216 = vmatpush2.bf16.msra.mxu0 0
        %1217 = vmatprep.subr.bf16.mxu0 0
        %1218 = vmatpush2.bf16.msra.mxu0 0
        %1219 = vmatprep.subr.bf16.mxu0 0
        %1220 = vmatpush2.bf16.msra.mxu0 0
        %1221 = vmatprep.subr.bf16.mxu0 0
        %1222 = vmatpush2.bf16.msra.mxu0 0
        %1223 = vmatprep.mubr.bf16.mxu0 0
        %1224 = vmatmul.mubr.bf16.gmra.mxu0 %v1140
        %v1225 = vpop.f32.mrf.mxu0
        %v1226 = vadd.f32 0.0, %v1225
        %v1227 = vpop.f32.mrf.mxu0
        %v1228 = vpop.f32.mrf.mxu0
        %v1229 = vadd.f32 0.0, %v1228
        %v1230 = vpop.f32.mrf.mxu0
        %1231 = vmatprep.mubr.bf16.mxu0 0
        %1232 = vmatmul.mubr.bf16.gmra.mxu0 %v1139
        %v1233 = vpop.f32.mrf.mxu0
        %v1234 = vadd.f32 0.0, %v1233
        %v1235 = vpop.f32.mrf.mxu0
        %v1236 = vpop.f32.mrf.mxu0
        %v1237 = vpop.f32.mrf.mxu0
        %1238 = vdwg.mxu0
        %v1239 = vadd.f32 %v1105, %v1226
        %v1240 = vadd.f32 %v1108, %v1229
        %v1241 = vadd.f32 %v1113, %v1234
        %v1242 = vld [vmem:[%s5] sm:$0x1]
        %v1244 = vlaneseq
        %v1245 = vshrl.u32 %v1244, 7
        %v1246 = vsub.s32 0, %v1245
        %v1247 = vrot.slane %v1242, %v1246
        %v1249 = vadd.f32 %v1239, %v1247
        %v1250 = vadd.f32 %v1240, %v1247
        %v1251 = vadd.f32 %v1241, %v1247
        %vm1252 = vcmp.ge.f32.partialorder %v1249, 0.0
        %vm1253 = vcmp.ge.f32.partialorder %v1250, 0.0
        %vm1254 = vcmp.ge.f32.partialorder %v1251, 0.0
        %v1255 = vmul.f32 %v1249, 0.2
        %v1256 = vmul.f32 %v1250, 0.2
        %v1257 = vmul.f32 %v1251, 0.2
        %v1258 = vsel %vm1252, %v1249, %v1255
        %v1259 = vsel %vm1253, %v1250, %v1256
        %v1260 = vsel %vm1254, %v1251, %v1257
        %1262 = vset.pattern.permute.xlu0 0
        %1263 = vperm.xlu0 %1262, %v842
        %v1264 = vpop.permute.xlu0 %1263
        %1267 = vset.pattern.permute.xlu0 0
        %1268 = vperm.xlu0 %1267, %v843
        %v1269 = vpop.permute.xlu0 %1268
        %1272 = vset.pattern.permute.xlu0 0
        %1273 = vperm.xlu0 %1272, %v844
        %v1274 = vpop.permute.xlu0 %1273
        %v1276 = vmul.f32 %v1258, %v1264
        %v1277 = vmul.f32 %v1259, %v1269
        %v1278 = vmul.f32 %v1260, %v1274
        %v1279 = vld [vmem:[%s825] sm:$0xff]
        %v1280 = vld [vmem:[%s825 + $0x8] sm:$0xff]
        %v1281 = vld [vmem:[%s825 + $0x10] sm:$0x3]
        %v1282 = vpack.c.bf16 %v1277, %v1276
        %v1283 = vpack.c.bf16 %v1278, %v1278
        %v1285 = vshrl.u32 %v1282, 16
        %v1287 = vrot.slane %v1285, 7
        %v1288 = vshll.u32 %v1282, 16
        %v1290 = vor.u32 %v1287, %v1288
        %v1292 = vshrl.u32 %v1283, 16
        %v1294 = vrot.slane %v1292, 7
        %v1295 = vshll.u32 %v1283, 16
        %v1297 = vor.u32 %v1294, %v1295
        %v1298 = vsel %vm850, %v1287, %v1297
        %v1301 = vsel %vm869, 0, %v1290
        %v1302 = vsel %vm873, %v1298, 0
        %v1303 = vpack.c.bf16 %v1280, %v1279
        %v1304 = vpack.c.bf16 %v1281, %v1281
        %v1306 = vshrl.u32 %v1303, 16
        %v1308 = vrot.slane %v1306, 7
        %v1309 = vshll.u32 %v1303, 16
        %v1311 = vor.u32 %v1308, %v1309
        %v1313 = vshrl.u32 %v1304, 16
        %v1315 = vrot.slane %v1313, 7
        %v1316 = vshll.u32 %v1304, 16
        %v1318 = vor.u32 %v1315, %v1316
        %v1319 = vsel %vm850, %v1308, %v1318
        %v1322 = vsel %vm869, 0, %v1311
        %v1323 = vsel %vm873, %v1319, 0
        %v1324 = vld [vmem:[#allocation2] sm:$0xff]
        %v1325 = vld [vmem:[#allocation2 + $0x8] sm:$0xff]
        %v1326 = vld [vmem:[#allocation2 + $0x10] sm:$0xff]
        %v1327 = vld [vmem:[#allocation2 + $0x18] sm:$0xff]
        %v1328 = vld [vmem:[#allocation2 + $0x20] sm:$0xff]
        %v1329 = vld [vmem:[#allocation2 + $0x28] sm:$0xff]
        %v1330 = vld [vmem:[#allocation2 + $0x30] sm:$0xff]
        %v1331 = vld [vmem:[#allocation2 + $0x38] sm:$0xff]
        %v1332 = vld [vmem:[#allocation2 + $0x40] sm:$0xff]
        %v1333 = vld [vmem:[#allocation2 + $0x48] sm:$0xff]
        %v1334 = vld [vmem:[#allocation2 + $0x50] sm:$0xff]
        %v1335 = vld [vmem:[#allocation2 + $0x58] sm:$0xff]
        %v1336 = vld [vmem:[#allocation2 + $0x60] sm:$0xff]
        %v1337 = vld [vmem:[#allocation2 + $0x68] sm:$0xff]
        %v1338 = vld [vmem:[#allocation2 + $0x70] sm:$0xff]
        %v1339 = vld [vmem:[#allocation2 + $0x78] sm:$0xff]
        %s1340 = scalar_lea.vmem [#allocation2], 128
        %v1341 = vld [vmem:[%s1340] sm:$0xff]
        %v1342 = vld [vmem:[%s1340 + $0x8] sm:$0xff]
        %v1343 = vld [vmem:[%s1340 + $0x10] sm:$0xff]
        %v1344 = vld [vmem:[%s1340 + $0x18] sm:$0xff]
        %v1345 = vld [vmem:[%s1340 + $0x20] sm:$0xff]
        %v1346 = vld [vmem:[%s1340 + $0x28] sm:$0xff]
        %v1347 = vld [vmem:[%s1340 + $0x30] sm:$0xff]
        %v1348 = vld [vmem:[%s1340 + $0x38] sm:$0xff]
        %v1349 = vld [vmem:[%s1340 + $0x40] sm:$0xff]
        %v1350 = vld [vmem:[%s1340 + $0x48] sm:$0xff]
        %v1351 = vld [vmem:[%s1340 + $0x50] sm:$0xff]
        %v1352 = vld [vmem:[%s1340 + $0x58] sm:$0xff]
        %v1353 = vld [vmem:[%s1340 + $0x60] sm:$0xff]
        %v1354 = vld [vmem:[%s1340 + $0x68] sm:$0xff]
        %v1355 = vld [vmem:[%s1340 + $0x70] sm:$0xff]
        %v1356 = vld [vmem:[%s1340 + $0x78] sm:$0xff]
        %v1358 = vshrl.u32 %v1301, 16
        %v1360 = vshll.u32 %v1301, 16
        %v1362 = vrot.slane %v1360, 1
        %v1363 = vor.u32 %v1358, %v1362
        %v1365 = vshll.u32 %v1302, 16
        %v1367 = vrot.slane %v1365, 1
        %v1368 = vsel %vm908, %v1363, %v1367
        %v1369 = vshrl.u32 %v1302, 16
        %v1371 = vor.u32 %v1369, %v1367
        %v1390 = vunpack.c.l.b16 %v1341
        %v1391 = vunpack.c.h.b16 %v1341
        %v1392 = vunpack.c.l.b16 %v1342
        %v1393 = vunpack.c.h.b16 %v1342
        %v1394 = vunpack.c.l.b16 %v1343
        %v1395 = vunpack.c.h.b16 %v1343
        %v1396 = vunpack.c.l.b16 %v1344
        %v1397 = vunpack.c.h.b16 %v1344
        %v1398 = vunpack.c.l.b16 %v1345
        %v1399 = vunpack.c.h.b16 %v1345
        %v1400 = vunpack.c.l.b16 %v1346
        %v1401 = vunpack.c.h.b16 %v1346
        %v1402 = vunpack.c.l.b16 %v1347
        %v1403 = vunpack.c.h.b16 %v1347
        %v1404 = vunpack.c.l.b16 %v1348
        %v1405 = vunpack.c.h.b16 %v1348
        %v1406 = vunpack.c.l.b16 %v1349
        %v1407 = vunpack.c.h.b16 %v1349
        %v1408 = vunpack.c.l.b16 %v1350
        %v1409 = vunpack.c.h.b16 %v1350
        %v1410 = vunpack.c.l.b16 %v1351
        %v1411 = vunpack.c.h.b16 %v1351
        %v1412 = vunpack.c.l.b16 %v1352
        %v1413 = vunpack.c.h.b16 %v1352
        %v1414 = vunpack.c.l.b16 %v1353
        %v1415 = vunpack.c.h.b16 %v1353
        %v1416 = vunpack.c.l.b16 %v1354
        %v1417 = vunpack.c.h.b16 %v1354
        %v1418 = vunpack.c.l.b16 %v1355
        %v1419 = vunpack.c.h.b16 %v1355
        %v1420 = vunpack.c.l.b16 %v1356
        %v1421 = vunpack.c.h.b16 %v1356
        %v1422 = vpack.c.b16 %v1392, %v1390
        %v1423 = vpack.c.b16 %v1393, %v1391
        %v1424 = vpack.c.b16 %v1396, %v1394
        %v1425 = vpack.c.b16 %v1397, %v1395
        %v1426 = vpack.c.b16 %v1400, %v1398
        %v1427 = vpack.c.b16 %v1401, %v1399
        %v1428 = vpack.c.b16 %v1404, %v1402
        %v1429 = vpack.c.b16 %v1405, %v1403
        %v1430 = vpack.c.b16 %v1408, %v1406
        %v1431 = vpack.c.b16 %v1409, %v1407
        %v1432 = vpack.c.b16 %v1412, %v1410
        %v1433 = vpack.c.b16 %v1413, %v1411
        %v1434 = vpack.c.b16 %v1416, %v1414
        %v1435 = vpack.c.b16 %v1417, %v1415
        %v1436 = vpack.c.b16 %v1420, %v1418
        %v1437 = vpack.c.b16 %v1421, %v1419
        %1454 = vmatprep.subr.bf16.mxu0 %v1437
        %1455 = vmatpush1.bf16.msra.mxu0 %v1436
        %1456 = vmatprep.subr.bf16.mxu0 %v1435
        %1457 = vmatpush1.bf16.msra.mxu0 %v1434
        %1458 = vmatprep.subr.bf16.mxu0 %v1433
        %1459 = vmatpush1.bf16.msra.mxu0 %v1432
        %1460 = vmatprep.subr.bf16.mxu0 %v1431
        %1461 = vmatpush1.bf16.msra.mxu0 %v1430
        %1462 = vmatprep.subr.bf16.mxu0 %v1429
        %1463 = vmatpush1.bf16.msra.mxu0 %v1428
        %1464 = vmatprep.subr.bf16.mxu0 %v1427
        %1465 = vmatpush1.bf16.msra.mxu0 %v1426
        %1466 = vmatprep.subr.bf16.mxu0 %v1425
        %1467 = vmatpush1.bf16.msra.mxu0 %v1424
        %1468 = vmatprep.subr.bf16.mxu0 %v1423
        %1469 = vmatpush1.bf16.msra.mxu0 %v1422
        %1470 = vmatprep.subr.bf16.mxu0 0
        %1471 = vmatpush2.bf16.msra.mxu0 0
        %1472 = vmatprep.subr.bf16.mxu0 0
        %1473 = vmatpush2.bf16.msra.mxu0 0
        %1474 = vmatprep.subr.bf16.mxu0 0
        %1475 = vmatpush2.bf16.msra.mxu0 0
        %1476 = vmatprep.subr.bf16.mxu0 0
        %1477 = vmatpush2.bf16.msra.mxu0 0
        %1478 = vmatprep.subr.bf16.mxu0 0
        %1479 = vmatpush2.bf16.msra.mxu0 0
        %1480 = vmatprep.subr.bf16.mxu0 0
        %1481 = vmatpush2.bf16.msra.mxu0 0
        %1482 = vmatprep.subr.bf16.mxu0 0
        %1483 = vmatpush2.bf16.msra.mxu0 0
        %1484 = vmatprep.subr.bf16.mxu0 0
        %1485 = vmatpush2.bf16.msra.mxu0 0
        %1486 = vmatprep.mubr.bf16.mxu0 0
        %1487 = vmatmul.mubr.bf16.gmra.mxu0 %v1368
        %v1488 = vpop.f32.mrf.mxu0
        %v1489 = vadd.f32 0.0, %v1488
        %v1490 = vpop.f32.mrf.mxu0
        %v1491 = vadd.f32 0.0, %v1490
        %v1492 = vpop.f32.mrf.mxu0
        %v1493 = vadd.f32 0.0, %v1492
        %v1494 = vpop.f32.mrf.mxu0
        %v1495 = vadd.f32 0.0, %v1494
        %1496 = vmatprep.mubr.bf16.mxu0 0
        %1497 = vmatmul.mubr.bf16.gmra.mxu0 %v1371
        %v1498 = vpop.f32.mrf.mxu0
        %v1499 = vadd.f32 0.0, %v1498
        %v1500 = vpop.f32.mrf.mxu0
        %v1501 = vadd.f32 0.0, %v1500
        %v1502 = vpop.f32.mrf.mxu0
        %v1503 = vpop.f32.mrf.mxu0
        %1504 = vdwg.mxu0
        %v1521 = vunpack.c.l.b16 %v1324
        %v1522 = vunpack.c.h.b16 %v1324
        %v1523 = vunpack.c.l.b16 %v1325
        %v1524 = vunpack.c.h.b16 %v1325
        %v1525 = vunpack.c.l.b16 %v1326
        %v1526 = vunpack.c.h.b16 %v1326
        %v1527 = vunpack.c.l.b16 %v1327
        %v1528 = vunpack.c.h.b16 %v1327
        %v1529 = vunpack.c.l.b16 %v1328
        %v1530 = vunpack.c.h.b16 %v1328
        %v1531 = vunpack.c.l.b16 %v1329
        %v1532 = vunpack.c.h.b16 %v1329
        %v1533 = vunpack.c.l.b16 %v1330
        %v1534 = vunpack.c.h.b16 %v1330
        %v1535 = vunpack.c.l.b16 %v1331
        %v1536 = vunpack.c.h.b16 %v1331
        %v1537 = vunpack.c.l.b16 %v1332
        %v1538 = vunpack.c.h.b16 %v1332
        %v1539 = vunpack.c.l.b16 %v1333
        %v1540 = vunpack.c.h.b16 %v1333
        %v1541 = vunpack.c.l.b16 %v1334
        %v1542 = vunpack.c.h.b16 %v1334
        %v1543 = vunpack.c.l.b16 %v1335
        %v1544 = vunpack.c.h.b16 %v1335
        %v1545 = vunpack.c.l.b16 %v1336
        %v1546 = vunpack.c.h.b16 %v1336
        %v1547 = vunpack.c.l.b16 %v1337
        %v1548 = vunpack.c.h.b16 %v1337
        %v1549 = vunpack.c.l.b16 %v1338
        %v1550 = vunpack.c.h.b16 %v1338
        %v1551 = vunpack.c.l.b16 %v1339
        %v1552 = vunpack.c.h.b16 %v1339
        %v1553 = vpack.c.b16 %v1523, %v1521
        %v1554 = vpack.c.b16 %v1524, %v1522
        %v1555 = vpack.c.b16 %v1527, %v1525
        %v1556 = vpack.c.b16 %v1528, %v1526
        %v1557 = vpack.c.b16 %v1531, %v1529
        %v1558 = vpack.c.b16 %v1532, %v1530
        %v1559 = vpack.c.b16 %v1535, %v1533
        %v1560 = vpack.c.b16 %v1536, %v1534
        %v1561 = vpack.c.b16 %v1539, %v1537
        %v1562 = vpack.c.b16 %v1540, %v1538
        %v1563 = vpack.c.b16 %v1543, %v1541
        %v1564 = vpack.c.b16 %v1544, %v1542
        %v1565 = vpack.c.b16 %v1547, %v1545
        %v1566 = vpack.c.b16 %v1548, %v1546
        %v1567 = vpack.c.b16 %v1551, %v1549
        %v1568 = vpack.c.b16 %v1552, %v1550
        %1585 = vmatprep.subr.bf16.mxu0 %v1568
        %1586 = vmatpush1.bf16.msra.mxu0 %v1567
        %1587 = vmatprep.subr.bf16.mxu0 %v1566
        %1588 = vmatpush1.bf16.msra.mxu0 %v1565
        %1589 = vmatprep.subr.bf16.mxu0 %v1564
        %1590 = vmatpush1.bf16.msra.mxu0 %v1563
        %1591 = vmatprep.subr.bf16.mxu0 %v1562
        %1592 = vmatpush1.bf16.msra.mxu0 %v1561
        %1593 = vmatprep.subr.bf16.mxu0 %v1560
        %1594 = vmatpush1.bf16.msra.mxu0 %v1559
        %1595 = vmatprep.subr.bf16.mxu0 %v1558
        %1596 = vmatpush1.bf16.msra.mxu0 %v1557
        %1597 = vmatprep.subr.bf16.mxu0 %v1556
        %1598 = vmatpush1.bf16.msra.mxu0 %v1555
        %1599 = vmatprep.subr.bf16.mxu0 %v1554
        %1600 = vmatpush1.bf16.msra.mxu0 %v1553
        %1601 = vmatprep.subr.bf16.mxu0 0
        %1602 = vmatpush2.bf16.msra.mxu0 0
        %1603 = vmatprep.subr.bf16.mxu0 0
        %1604 = vmatpush2.bf16.msra.mxu0 0
        %1605 = vmatprep.subr.bf16.mxu0 0
        %1606 = vmatpush2.bf16.msra.mxu0 0
        %1607 = vmatprep.subr.bf16.mxu0 0
        %1608 = vmatpush2.bf16.msra.mxu0 0
        %1609 = vmatprep.subr.bf16.mxu0 0
        %1610 = vmatpush2.bf16.msra.mxu0 0
        %1611 = vmatprep.subr.bf16.mxu0 0
        %1612 = vmatpush2.bf16.msra.mxu0 0
        %1613 = vmatprep.subr.bf16.mxu0 0
        %1614 = vmatpush2.bf16.msra.mxu0 0
        %1615 = vmatprep.subr.bf16.mxu0 0
        %1616 = vmatpush2.bf16.msra.mxu0 0
        %1617 = vmatprep.mubr.bf16.mxu0 0
        %1618 = vmatmul.mubr.bf16.gmra.mxu0 %v1301
        %v1619 = vpop.f32.mrf.mxu0
        %v1620 = vadd.f32 %v1489, %v1619
        %v1621 = vpop.f32.mrf.mxu0
        %v1622 = vadd.f32 %v1491, %v1621
        %v1623 = vpop.f32.mrf.mxu0
        %v1624 = vadd.f32 %v1493, %v1623
        %v1625 = vpop.f32.mrf.mxu0
        %v1626 = vadd.f32 %v1495, %v1625
        %1627 = vmatprep.mubr.bf16.mxu0 0
        %1628 = vmatmul.mubr.bf16.gmra.mxu0 %v1302
        %v1629 = vpop.f32.mrf.mxu0
        %v1630 = vadd.f32 %v1499, %v1629
        %v1631 = vpop.f32.mrf.mxu0
        %v1632 = vadd.f32 %v1501, %v1631
        %v1633 = vpop.f32.mrf.mxu0
        %v1634 = vpop.f32.mrf.mxu0
        %1635 = vdwg.mxu0
        %s1636 = scalar_lea.vmem [#allocation2], 256
        %v1637 = vld [vmem:[%s1636] sm:$0xff]
        %v1638 = vld [vmem:[%s1636 + $0x8] sm:$0xff]
        %v1639 = vld [vmem:[%s1636 + $0x10] sm:$0xff]
        %v1640 = vld [vmem:[%s1636 + $0x18] sm:$0xff]
        %v1641 = vld [vmem:[%s1636 + $0x20] sm:$0xff]
        %v1642 = vld [vmem:[%s1636 + $0x28] sm:$0xff]
        %v1643 = vld [vmem:[%s1636 + $0x30] sm:$0xff]
        %v1644 = vld [vmem:[%s1636 + $0x38] sm:$0xff]
        %v1645 = vld [vmem:[%s1636 + $0x40] sm:$0xff]
        %v1646 = vld [vmem:[%s1636 + $0x48] sm:$0xff]
        %v1647 = vld [vmem:[%s1636 + $0x50] sm:$0xff]
        %v1648 = vld [vmem:[%s1636 + $0x58] sm:$0xff]
        %v1649 = vld [vmem:[%s1636 + $0x60] sm:$0xff]
        %v1650 = vld [vmem:[%s1636 + $0x68] sm:$0xff]
        %v1651 = vld [vmem:[%s1636 + $0x70] sm:$0xff]
        %v1652 = vld [vmem:[%s1636 + $0x78] sm:$0xff]
        %v1655 = vrot.slane %v1301, 1
        %v1656 = vrot.slane %v1302, 1
        %v1657 = vsel %vm1137, %v1655, %v1656
        %v1676 = vunpack.c.l.b16 %v1637
        %v1677 = vunpack.c.h.b16 %v1637
        %v1678 = vunpack.c.l.b16 %v1638
        %v1679 = vunpack.c.h.b16 %v1638
        %v1680 = vunpack.c.l.b16 %v1639
        %v1681 = vunpack.c.h.b16 %v1639
        %v1682 = vunpack.c.l.b16 %v1640
        %v1683 = vunpack.c.h.b16 %v1640
        %v1684 = vunpack.c.l.b16 %v1641
        %v1685 = vunpack.c.h.b16 %v1641
        %v1686 = vunpack.c.l.b16 %v1642
        %v1687 = vunpack.c.h.b16 %v1642
        %v1688 = vunpack.c.l.b16 %v1643
        %v1689 = vunpack.c.h.b16 %v1643
        %v1690 = vunpack.c.l.b16 %v1644
        %v1691 = vunpack.c.h.b16 %v1644
        %v1692 = vunpack.c.l.b16 %v1645
        %v1693 = vunpack.c.h.b16 %v1645
        %v1694 = vunpack.c.l.b16 %v1646
        %v1695 = vunpack.c.h.b16 %v1646
        %v1696 = vunpack.c.l.b16 %v1647
        %v1697 = vunpack.c.h.b16 %v1647
        %v1698 = vunpack.c.l.b16 %v1648
        %v1699 = vunpack.c.h.b16 %v1648
        %v1700 = vunpack.c.l.b16 %v1649
        %v1701 = vunpack.c.h.b16 %v1649
        %v1702 = vunpack.c.l.b16 %v1650
        %v1703 = vunpack.c.h.b16 %v1650
        %v1704 = vunpack.c.l.b16 %v1651
        %v1705 = vunpack.c.h.b16 %v1651
        %v1706 = vunpack.c.l.b16 %v1652
        %v1707 = vunpack.c.h.b16 %v1652
        %v1708 = vpack.c.b16 %v1678, %v1676
        %v1709 = vpack.c.b16 %v1679, %v1677
        %v1710 = vpack.c.b16 %v1682, %v1680
        %v1711 = vpack.c.b16 %v1683, %v1681
        %v1712 = vpack.c.b16 %v1686, %v1684
        %v1713 = vpack.c.b16 %v1687, %v1685
        %v1714 = vpack.c.b16 %v1690, %v1688
        %v1715 = vpack.c.b16 %v1691, %v1689
        %v1716 = vpack.c.b16 %v1694, %v1692
        %v1717 = vpack.c.b16 %v1695, %v1693
        %v1718 = vpack.c.b16 %v1698, %v1696
        %v1719 = vpack.c.b16 %v1699, %v1697
        %v1720 = vpack.c.b16 %v1702, %v1700
        %v1721 = vpack.c.b16 %v1703, %v1701
        %v1722 = vpack.c.b16 %v1706, %v1704
        %v1723 = vpack.c.b16 %v1707, %v1705
        %1740 = vmatprep.subr.bf16.mxu0 %v1723
        %1741 = vmatpush1.bf16.msra.mxu0 %v1722
        %1742 = vmatprep.subr.bf16.mxu0 %v1721
        %1743 = vmatpush1.bf16.msra.mxu0 %v1720
        %1744 = vmatprep.subr.bf16.mxu0 %v1719
        %1745 = vmatpush1.bf16.msra.mxu0 %v1718
        %1746 = vmatprep.subr.bf16.mxu0 %v1717
        %1747 = vmatpush1.bf16.msra.mxu0 %v1716
        %1748 = vmatprep.subr.bf16.mxu0 %v1715
        %1749 = vmatpush1.bf16.msra.mxu0 %v1714
        %1750 = vmatprep.subr.bf16.mxu0 %v1713
        %1751 = vmatpush1.bf16.msra.mxu0 %v1712
        %1752 = vmatprep.subr.bf16.mxu0 %v1711
        %1753 = vmatpush1.bf16.msra.mxu0 %v1710
        %1754 = vmatprep.subr.bf16.mxu0 %v1709
        %1755 = vmatpush1.bf16.msra.mxu0 %v1708
        %1756 = vmatprep.subr.bf16.mxu0 0
        %1757 = vmatpush2.bf16.msra.mxu0 0
        %1758 = vmatprep.subr.bf16.mxu0 0
        %1759 = vmatpush2.bf16.msra.mxu0 0
        %1760 = vmatprep.subr.bf16.mxu0 0
        %1761 = vmatpush2.bf16.msra.mxu0 0
        %1762 = vmatprep.subr.bf16.mxu0 0
        %1763 = vmatpush2.bf16.msra.mxu0 0
        %1764 = vmatprep.subr.bf16.mxu0 0
        %1765 = vmatpush2.bf16.msra.mxu0 0
        %1766 = vmatprep.subr.bf16.mxu0 0
        %1767 = vmatpush2.bf16.msra.mxu0 0
        %1768 = vmatprep.subr.bf16.mxu0 0
        %1769 = vmatpush2.bf16.msra.mxu0 0
        %1770 = vmatprep.subr.bf16.mxu0 0
        %1771 = vmatpush2.bf16.msra.mxu0 0
        %1772 = vmatprep.mubr.bf16.mxu0 0
        %1773 = vmatmul.mubr.bf16.gmra.mxu0 %v1657
        %v1774 = vpop.f32.mrf.mxu0
        %v1775 = vadd.f32 0.0, %v1774
        %v1776 = vpop.f32.mrf.mxu0
        %v1777 = vadd.f32 0.0, %v1776
        %v1778 = vpop.f32.mrf.mxu0
        %v1779 = vadd.f32 0.0, %v1778
        %v1780 = vpop.f32.mrf.mxu0
        %v1781 = vadd.f32 0.0, %v1780
        %1782 = vmatprep.mubr.bf16.mxu0 0
        %1783 = vmatmul.mubr.bf16.gmra.mxu0 %v1656
        %v1784 = vpop.f32.mrf.mxu0
        %v1785 = vadd.f32 0.0, %v1784
        %v1786 = vpop.f32.mrf.mxu0
        %v1787 = vadd.f32 0.0, %v1786
        %v1788 = vpop.f32.mrf.mxu0
        %v1789 = vpop.f32.mrf.mxu0
        %1790 = vdwg.mxu0
        %v1791 = vadd.f32 %v1620, %v1775
        %v1792 = vadd.f32 %v1622, %v1777
        %v1793 = vadd.f32 %v1624, %v1779
        %v1794 = vadd.f32 %v1626, %v1781
        %v1795 = vadd.f32 %v1630, %v1785
        %v1796 = vadd.f32 %v1632, %v1787
        %v1797 = vld [vmem:[#allocation4] sm:$0xff]
        %v1798 = vld [vmem:[#allocation4 + $0x8] sm:$0xff]
        %v1799 = vld [vmem:[#allocation4 + $0x10] sm:$0xff]
        %v1800 = vld [vmem:[#allocation4 + $0x18] sm:$0xff]
        %v1801 = vld [vmem:[#allocation4 + $0x20] sm:$0xff]
        %v1802 = vld [vmem:[#allocation4 + $0x28] sm:$0xff]
        %v1803 = vld [vmem:[#allocation4 + $0x30] sm:$0xff]
        %v1804 = vld [vmem:[#allocation4 + $0x38] sm:$0xff]
        %v1805 = vld [vmem:[#allocation4 + $0x40] sm:$0xff]
        %v1806 = vld [vmem:[#allocation4 + $0x48] sm:$0xff]
        %v1807 = vld [vmem:[#allocation4 + $0x50] sm:$0xff]
        %v1808 = vld [vmem:[#allocation4 + $0x58] sm:$0xff]
        %v1809 = vld [vmem:[#allocation4 + $0x60] sm:$0xff]
        %v1810 = vld [vmem:[#allocation4 + $0x68] sm:$0xff]
        %v1811 = vld [vmem:[#allocation4 + $0x70] sm:$0xff]
        %v1812 = vld [vmem:[#allocation4 + $0x78] sm:$0xff]
        %s1813 = scalar_lea.vmem [#allocation4], 128
        %v1814 = vld [vmem:[%s1813] sm:$0xff]
        %v1815 = vld [vmem:[%s1813 + $0x8] sm:$0xff]
        %v1816 = vld [vmem:[%s1813 + $0x10] sm:$0xff]
        %v1817 = vld [vmem:[%s1813 + $0x18] sm:$0xff]
        %v1818 = vld [vmem:[%s1813 + $0x20] sm:$0xff]
        %v1819 = vld [vmem:[%s1813 + $0x28] sm:$0xff]
        %v1820 = vld [vmem:[%s1813 + $0x30] sm:$0xff]
        %v1821 = vld [vmem:[%s1813 + $0x38] sm:$0xff]
        %v1822 = vld [vmem:[%s1813 + $0x40] sm:$0xff]
        %v1823 = vld [vmem:[%s1813 + $0x48] sm:$0xff]
        %v1824 = vld [vmem:[%s1813 + $0x50] sm:$0xff]
        %v1825 = vld [vmem:[%s1813 + $0x58] sm:$0xff]
        %v1826 = vld [vmem:[%s1813 + $0x60] sm:$0xff]
        %v1827 = vld [vmem:[%s1813 + $0x68] sm:$0xff]
        %v1828 = vld [vmem:[%s1813 + $0x70] sm:$0xff]
        %v1829 = vld [vmem:[%s1813 + $0x78] sm:$0xff]
        %v1831 = vshrl.u32 %v1322, 16
        %v1833 = vshll.u32 %v1322, 16
        %v1835 = vrot.slane %v1833, 1
        %v1836 = vor.u32 %v1831, %v1835
        %v1838 = vshll.u32 %v1323, 16
        %v1840 = vrot.slane %v1838, 1
        %v1841 = vsel %vm908, %v1836, %v1840
        %v1842 = vshrl.u32 %v1323, 16
        %v1844 = vor.u32 %v1842, %v1840
        %v1863 = vunpack.c.l.b16 %v1814
        %v1864 = vunpack.c.h.b16 %v1814
        %v1865 = vunpack.c.l.b16 %v1815
        %v1866 = vunpack.c.h.b16 %v1815
        %v1867 = vunpack.c.l.b16 %v1816
        %v1868 = vunpack.c.h.b16 %v1816
        %v1869 = vunpack.c.l.b16 %v1817
        %v1870 = vunpack.c.h.b16 %v1817
        %v1871 = vunpack.c.l.b16 %v1818
        %v1872 = vunpack.c.h.b16 %v1818
        %v1873 = vunpack.c.l.b16 %v1819
        %v1874 = vunpack.c.h.b16 %v1819
        %v1875 = vunpack.c.l.b16 %v1820
        %v1876 = vunpack.c.h.b16 %v1820
        %v1877 = vunpack.c.l.b16 %v1821
        %v1878 = vunpack.c.h.b16 %v1821
        %v1879 = vunpack.c.l.b16 %v1822
        %v1880 = vunpack.c.h.b16 %v1822
        %v1881 = vunpack.c.l.b16 %v1823
        %v1882 = vunpack.c.h.b16 %v1823
        %v1883 = vunpack.c.l.b16 %v1824
        %v1884 = vunpack.c.h.b16 %v1824
        %v1885 = vunpack.c.l.b16 %v1825
        %v1886 = vunpack.c.h.b16 %v1825
        %v1887 = vunpack.c.l.b16 %v1826
        %v1888 = vunpack.c.h.b16 %v1826
        %v1889 = vunpack.c.l.b16 %v1827
        %v1890 = vunpack.c.h.b16 %v1827
        %v1891 = vunpack.c.l.b16 %v1828
        %v1892 = vunpack.c.h.b16 %v1828
        %v1893 = vunpack.c.l.b16 %v1829
        %v1894 = vunpack.c.h.b16 %v1829
        %v1895 = vpack.c.b16 %v1865, %v1863
        %v1896 = vpack.c.b16 %v1866, %v1864
        %v1897 = vpack.c.b16 %v1869, %v1867
        %v1898 = vpack.c.b16 %v1870, %v1868
        %v1899 = vpack.c.b16 %v1873, %v1871
        %v1900 = vpack.c.b16 %v1874, %v1872
        %v1901 = vpack.c.b16 %v1877, %v1875
        %v1902 = vpack.c.b16 %v1878, %v1876
        %v1903 = vpack.c.b16 %v1881, %v1879
        %v1904 = vpack.c.b16 %v1882, %v1880
        %v1905 = vpack.c.b16 %v1885, %v1883
        %v1906 = vpack.c.b16 %v1886, %v1884
        %v1907 = vpack.c.b16 %v1889, %v1887
        %v1908 = vpack.c.b16 %v1890, %v1888
        %v1909 = vpack.c.b16 %v1893, %v1891
        %v1910 = vpack.c.b16 %v1894, %v1892
        %1927 = vmatprep.subr.bf16.mxu0 %v1910
        %1928 = vmatpush1.bf16.msra.mxu0 %v1909
        %1929 = vmatprep.subr.bf16.mxu0 %v1908
        %1930 = vmatpush1.bf16.msra.mxu0 %v1907
        %1931 = vmatprep.subr.bf16.mxu0 %v1906
        %1932 = vmatpush1.bf16.msra.mxu0 %v1905
        %1933 = vmatprep.subr.bf16.mxu0 %v1904
        %1934 = vmatpush1.bf16.msra.mxu0 %v1903
        %1935 = vmatprep.subr.bf16.mxu0 %v1902
        %1936 = vmatpush1.bf16.msra.mxu0 %v1901
        %1937 = vmatprep.subr.bf16.mxu0 %v1900
        %1938 = vmatpush1.bf16.msra.mxu0 %v1899
        %1939 = vmatprep.subr.bf16.mxu0 %v1898
        %1940 = vmatpush1.bf16.msra.mxu0 %v1897
        %1941 = vmatprep.subr.bf16.mxu0 %v1896
        %1942 = vmatpush1.bf16.msra.mxu0 %v1895
        %1943 = vmatprep.subr.bf16.mxu0 0
        %1944 = vmatpush2.bf16.msra.mxu0 0
        %1945 = vmatprep.subr.bf16.mxu0 0
        %1946 = vmatpush2.bf16.msra.mxu0 0
        %1947 = vmatprep.subr.bf16.mxu0 0
        %1948 = vmatpush2.bf16.msra.mxu0 0
        %1949 = vmatprep.subr.bf16.mxu0 0
        %1950 = vmatpush2.bf16.msra.mxu0 0
        %1951 = vmatprep.subr.bf16.mxu0 0
        %1952 = vmatpush2.bf16.msra.mxu0 0
        %1953 = vmatprep.subr.bf16.mxu0 0
        %1954 = vmatpush2.bf16.msra.mxu0 0
        %1955 = vmatprep.subr.bf16.mxu0 0
        %1956 = vmatpush2.bf16.msra.mxu0 0
        %1957 = vmatprep.subr.bf16.mxu0 0
        %1958 = vmatpush2.bf16.msra.mxu0 0
        %1959 = vmatprep.mubr.bf16.mxu0 0
        %1960 = vmatmul.mubr.bf16.gmra.mxu0 %v1841
        %v1961 = vpop.f32.mrf.mxu0
        %v1962 = vadd.f32 0.0, %v1961
        %v1963 = vpop.f32.mrf.mxu0
        %v1964 = vadd.f32 0.0, %v1963
        %v1965 = vpop.f32.mrf.mxu0
        %v1966 = vadd.f32 0.0, %v1965
        %v1967 = vpop.f32.mrf.mxu0
        %v1968 = vadd.f32 0.0, %v1967
        %1969 = vmatprep.mubr.bf16.mxu0 0
        %1970 = vmatmul.mubr.bf16.gmra.mxu0 %v1844
        %v1971 = vpop.f32.mrf.mxu0
        %v1972 = vadd.f32 0.0, %v1971
        %v1973 = vpop.f32.mrf.mxu0
        %v1974 = vadd.f32 0.0, %v1973
        %v1975 = vpop.f32.mrf.mxu0
        %v1976 = vpop.f32.mrf.mxu0
        %1977 = vdwg.mxu0
        %v1994 = vunpack.c.l.b16 %v1797
        %v1995 = vunpack.c.h.b16 %v1797
        %v1996 = vunpack.c.l.b16 %v1798
        %v1997 = vunpack.c.h.b16 %v1798
        %v1998 = vunpack.c.l.b16 %v1799
        %v1999 = vunpack.c.h.b16 %v1799
        %v2000 = vunpack.c.l.b16 %v1800
        %v2001 = vunpack.c.h.b16 %v1800
        %v2002 = vunpack.c.l.b16 %v1801
        %v2003 = vunpack.c.h.b16 %v1801
        %v2004 = vunpack.c.l.b16 %v1802
        %v2005 = vunpack.c.h.b16 %v1802
        %v2006 = vunpack.c.l.b16 %v1803
        %v2007 = vunpack.c.h.b16 %v1803
        %v2008 = vunpack.c.l.b16 %v1804
        %v2009 = vunpack.c.h.b16 %v1804
        %v2010 = vunpack.c.l.b16 %v1805
        %v2011 = vunpack.c.h.b16 %v1805
        %v2012 = vunpack.c.l.b16 %v1806
        %v2013 = vunpack.c.h.b16 %v1806
        %v2014 = vunpack.c.l.b16 %v1807
        %v2015 = vunpack.c.h.b16 %v1807
        %v2016 = vunpack.c.l.b16 %v1808
        %v2017 = vunpack.c.h.b16 %v1808
        %v2018 = vunpack.c.l.b16 %v1809
        %v2019 = vunpack.c.h.b16 %v1809
        %v2020 = vunpack.c.l.b16 %v1810
        %v2021 = vunpack.c.h.b16 %v1810
        %v2022 = vunpack.c.l.b16 %v1811
        %v2023 = vunpack.c.h.b16 %v1811
        %v2024 = vunpack.c.l.b16 %v1812
        %v2025 = vunpack.c.h.b16 %v1812
        %v2026 = vpack.c.b16 %v1996, %v1994
        %v2027 = vpack.c.b16 %v1997, %v1995
        %v2028 = vpack.c.b16 %v2000, %v1998
        %v2029 = vpack.c.b16 %v2001, %v1999
        %v2030 = vpack.c.b16 %v2004, %v2002
        %v2031 = vpack.c.b16 %v2005, %v2003
        %v2032 = vpack.c.b16 %v2008, %v2006
        %v2033 = vpack.c.b16 %v2009, %v2007
        %v2034 = vpack.c.b16 %v2012, %v2010
        %v2035 = vpack.c.b16 %v2013, %v2011
        %v2036 = vpack.c.b16 %v2016, %v2014
        %v2037 = vpack.c.b16 %v2017, %v2015
        %v2038 = vpack.c.b16 %v2020, %v2018
        %v2039 = vpack.c.b16 %v2021, %v2019
        %v2040 = vpack.c.b16 %v2024, %v2022
        %v2041 = vpack.c.b16 %v2025, %v2023
        %2058 = vmatprep.subr.bf16.mxu0 %v2041
        %2059 = vmatpush1.bf16.msra.mxu0 %v2040
        %2060 = vmatprep.subr.bf16.mxu0 %v2039
        %2061 = vmatpush1.bf16.msra.mxu0 %v2038
        %2062 = vmatprep.subr.bf16.mxu0 %v2037
        %2063 = vmatpush1.bf16.msra.mxu0 %v2036
        %2064 = vmatprep.subr.bf16.mxu0 %v2035
        %2065 = vmatpush1.bf16.msra.mxu0 %v2034
        %2066 = vmatprep.subr.bf16.mxu0 %v2033
        %2067 = vmatpush1.bf16.msra.mxu0 %v2032
        %2068 = vmatprep.subr.bf16.mxu0 %v2031
        %2069 = vmatpush1.bf16.msra.mxu0 %v2030
        %2070 = vmatprep.subr.bf16.mxu0 %v2029
        %2071 = vmatpush1.bf16.msra.mxu0 %v2028
        %2072 = vmatprep.subr.bf16.mxu0 %v2027
        %2073 = vmatpush1.bf16.msra.mxu0 %v2026
        %2074 = vmatprep.subr.bf16.mxu0 0
        %2075 = vmatpush2.bf16.msra.mxu0 0
        %2076 = vmatprep.subr.bf16.mxu0 0
        %2077 = vmatpush2.bf16.msra.mxu0 0
        %2078 = vmatprep.subr.bf16.mxu0 0
        %2079 = vmatpush2.bf16.msra.mxu0 0
        %2080 = vmatprep.subr.bf16.mxu0 0
        %2081 = vmatpush2.bf16.msra.mxu0 0
        %2082 = vmatprep.subr.bf16.mxu0 0
        %2083 = vmatpush2.bf16.msra.mxu0 0
        %2084 = vmatprep.subr.bf16.mxu0 0
        %2085 = vmatpush2.bf16.msra.mxu0 0
        %2086 = vmatprep.subr.bf16.mxu0 0
        %2087 = vmatpush2.bf16.msra.mxu0 0
        %2088 = vmatprep.subr.bf16.mxu0 0
        %2089 = vmatpush2.bf16.msra.mxu0 0
        %2090 = vmatprep.mubr.bf16.mxu0 0
        %2091 = vmatmul.mubr.bf16.gmra.mxu0 %v1322
        %v2092 = vpop.f32.mrf.mxu0
        %v2093 = vadd.f32 %v1962, %v2092
        %v2094 = vpop.f32.mrf.mxu0
        %v2095 = vadd.f32 %v1964, %v2094
        %v2096 = vpop.f32.mrf.mxu0
        %v2097 = vadd.f32 %v1966, %v2096
        %v2098 = vpop.f32.mrf.mxu0
        %v2099 = vadd.f32 %v1968, %v2098
        %2100 = vmatprep.mubr.bf16.mxu0 0
        %2101 = vmatmul.mubr.bf16.gmra.mxu0 %v1323
        %v2102 = vpop.f32.mrf.mxu0
        %v2103 = vadd.f32 %v1972, %v2102
        %v2104 = vpop.f32.mrf.mxu0
        %v2105 = vadd.f32 %v1974, %v2104
        %v2106 = vpop.f32.mrf.mxu0
        %v2107 = vpop.f32.mrf.mxu0
        %2108 = vdwg.mxu0
        %s2109 = scalar_lea.vmem [#allocation4], 256
        %v2110 = vld [vmem:[%s2109] sm:$0xff]
        %v2111 = vld [vmem:[%s2109 + $0x8] sm:$0xff]
        %v2112 = vld [vmem:[%s2109 + $0x10] sm:$0xff]
        %v2113 = vld [vmem:[%s2109 + $0x18] sm:$0xff]
        %v2114 = vld [vmem:[%s2109 + $0x20] sm:$0xff]
        %v2115 = vld [vmem:[%s2109 + $0x28] sm:$0xff]
        %v2116 = vld [vmem:[%s2109 + $0x30] sm:$0xff]
        %v2117 = vld [vmem:[%s2109 + $0x38] sm:$0xff]
        %v2118 = vld [vmem:[%s2109 + $0x40] sm:$0xff]
        %v2119 = vld [vmem:[%s2109 + $0x48] sm:$0xff]
        %v2120 = vld [vmem:[%s2109 + $0x50] sm:$0xff]
        %v2121 = vld [vmem:[%s2109 + $0x58] sm:$0xff]
        %v2122 = vld [vmem:[%s2109 + $0x60] sm:$0xff]
        %v2123 = vld [vmem:[%s2109 + $0x68] sm:$0xff]
        %v2124 = vld [vmem:[%s2109 + $0x70] sm:$0xff]
        %v2125 = vld [vmem:[%s2109 + $0x78] sm:$0xff]
        %v2128 = vrot.slane %v1322, 1
        %v2129 = vrot.slane %v1323, 1
        %v2130 = vsel %vm1137, %v2128, %v2129
        %v2149 = vunpack.c.l.b16 %v2110
        %v2150 = vunpack.c.h.b16 %v2110
        %v2151 = vunpack.c.l.b16 %v2111
        %v2152 = vunpack.c.h.b16 %v2111
        %v2153 = vunpack.c.l.b16 %v2112
        %v2154 = vunpack.c.h.b16 %v2112
        %v2155 = vunpack.c.l.b16 %v2113
        %v2156 = vunpack.c.h.b16 %v2113
        %v2157 = vunpack.c.l.b16 %v2114
        %v2158 = vunpack.c.h.b16 %v2114
        %v2159 = vunpack.c.l.b16 %v2115
        %v2160 = vunpack.c.h.b16 %v2115
        %v2161 = vunpack.c.l.b16 %v2116
        %v2162 = vunpack.c.h.b16 %v2116
        %v2163 = vunpack.c.l.b16 %v2117
        %v2164 = vunpack.c.h.b16 %v2117
        %v2165 = vunpack.c.l.b16 %v2118
        %v2166 = vunpack.c.h.b16 %v2118
        %v2167 = vunpack.c.l.b16 %v2119
        %v2168 = vunpack.c.h.b16 %v2119
        %v2169 = vunpack.c.l.b16 %v2120
        %v2170 = vunpack.c.h.b16 %v2120
        %v2171 = vunpack.c.l.b16 %v2121
        %v2172 = vunpack.c.h.b16 %v2121
        %v2173 = vunpack.c.l.b16 %v2122
        %v2174 = vunpack.c.h.b16 %v2122
        %v2175 = vunpack.c.l.b16 %v2123
        %v2176 = vunpack.c.h.b16 %v2123
        %v2177 = vunpack.c.l.b16 %v2124
        %v2178 = vunpack.c.h.b16 %v2124
        %v2179 = vunpack.c.l.b16 %v2125
        %v2180 = vunpack.c.h.b16 %v2125
        %v2181 = vpack.c.b16 %v2151, %v2149
        %v2182 = vpack.c.b16 %v2152, %v2150
        %v2183 = vpack.c.b16 %v2155, %v2153
        %v2184 = vpack.c.b16 %v2156, %v2154
        %v2185 = vpack.c.b16 %v2159, %v2157
        %v2186 = vpack.c.b16 %v2160, %v2158
        %v2187 = vpack.c.b16 %v2163, %v2161
        %v2188 = vpack.c.b16 %v2164, %v2162
        %v2189 = vpack.c.b16 %v2167, %v2165
        %v2190 = vpack.c.b16 %v2168, %v2166
        %v2191 = vpack.c.b16 %v2171, %v2169
        %v2192 = vpack.c.b16 %v2172, %v2170
        %v2193 = vpack.c.b16 %v2175, %v2173
        %v2194 = vpack.c.b16 %v2176, %v2174
        %v2195 = vpack.c.b16 %v2179, %v2177
        %v2196 = vpack.c.b16 %v2180, %v2178
        %2213 = vmatprep.subr.bf16.mxu0 %v2196
        %2214 = vmatpush1.bf16.msra.mxu0 %v2195
        %2215 = vmatprep.subr.bf16.mxu0 %v2194
        %2216 = vmatpush1.bf16.msra.mxu0 %v2193
        %2217 = vmatprep.subr.bf16.mxu0 %v2192
        %2218 = vmatpush1.bf16.msra.mxu0 %v2191
        %2219 = vmatprep.subr.bf16.mxu0 %v2190
        %2220 = vmatpush1.bf16.msra.mxu0 %v2189
        %2221 = vmatprep.subr.bf16.mxu0 %v2188
        %2222 = vmatpush1.bf16.msra.mxu0 %v2187
        %2223 = vmatprep.subr.bf16.mxu0 %v2186
        %2224 = vmatpush1.bf16.msra.mxu0 %v2185
        %2225 = vmatprep.subr.bf16.mxu0 %v2184
        %2226 = vmatpush1.bf16.msra.mxu0 %v2183
        %2227 = vmatprep.subr.bf16.mxu0 %v2182
        %2228 = vmatpush1.bf16.msra.mxu0 %v2181
        %2229 = vmatprep.subr.bf16.mxu0 0
        %2230 = vmatpush2.bf16.msra.mxu0 0
        %2231 = vmatprep.subr.bf16.mxu0 0
        %2232 = vmatpush2.bf16.msra.mxu0 0
        %2233 = vmatprep.subr.bf16.mxu0 0
        %2234 = vmatpush2.bf16.msra.mxu0 0
        %2235 = vmatprep.subr.bf16.mxu0 0
        %2236 = vmatpush2.bf16.msra.mxu0 0
        %2237 = vmatprep.subr.bf16.mxu0 0
        %2238 = vmatpush2.bf16.msra.mxu0 0
        %2239 = vmatprep.subr.bf16.mxu0 0
        %2240 = vmatpush2.bf16.msra.mxu0 0
        %2241 = vmatprep.subr.bf16.mxu0 0
        %2242 = vmatpush2.bf16.msra.mxu0 0
        %2243 = vmatprep.subr.bf16.mxu0 0
        %2244 = vmatpush2.bf16.msra.mxu0 0
        %2245 = vmatprep.mubr.bf16.mxu0 0
        %2246 = vmatmul.mubr.bf16.gmra.mxu0 %v2130
        %v2247 = vpop.f32.mrf.mxu0
        %v2248 = vadd.f32 0.0, %v2247
        %v2249 = vpop.f32.mrf.mxu0
        %v2250 = vadd.f32 0.0, %v2249
        %v2251 = vpop.f32.mrf.mxu0
        %v2252 = vadd.f32 0.0, %v2251
        %v2253 = vpop.f32.mrf.mxu0
        %v2254 = vadd.f32 0.0, %v2253
        %2255 = vmatprep.mubr.bf16.mxu0 0
        %2256 = vmatmul.mubr.bf16.gmra.mxu0 %v2129
        %v2257 = vpop.f32.mrf.mxu0
        %v2258 = vadd.f32 0.0, %v2257
        %v2259 = vpop.f32.mrf.mxu0
        %v2260 = vadd.f32 0.0, %v2259
        %v2261 = vpop.f32.mrf.mxu0
        %v2262 = vpop.f32.mrf.mxu0
        %2263 = vdwg.mxu0
        %v2264 = vadd.f32 %v2093, %v2248
        %v2265 = vadd.f32 %v2095, %v2250
        %v2266 = vadd.f32 %v2097, %v2252
        %v2267 = vadd.f32 %v2099, %v2254
        %v2268 = vadd.f32 %v2103, %v2258
        %v2269 = vadd.f32 %v2105, %v2260
        %v2270 = vadd.f32 %v1791, %v2264
        %v2271 = vadd.f32 %v1792, %v2265
        %v2272 = vadd.f32 %v1793, %v2266
        %v2273 = vadd.f32 %v1794, %v2267
        %v2274 = vadd.f32 %v1795, %v2268
        %v2275 = vadd.f32 %v1796, %v2269
        %v2276 = vld [vmem:[%s8] sm:$0x3]
        %v2278 = vlaneseq
        %v2279 = vshrl.u32 %v2278, 7
        %v2280 = vsub.s32 0, %v2279
        %v2281 = vrot.slane %v2276, %v2280
        %v2282 = vlaneseq
        %v2283 = vshrl.u32 %v2282, 7
        %v2284 = vsub.s32 1, %v2283
        %v2285 = vrot.slane %v2276, %v2284
        %v2288 = vadd.f32 %v2270, %v2281
        %v2289 = vadd.f32 %v2271, %v2285
        %v2290 = vadd.f32 %v2272, %v2281
        %v2291 = vadd.f32 %v2273, %v2285
        %v2292 = vadd.f32 %v2274, %v2281
        %v2293 = vadd.f32 %v2275, %v2285
        %vm2294 = vcmp.ge.f32.partialorder %v2288, 0.0
        %vm2295 = vcmp.ge.f32.partialorder %v2289, 0.0
        %vm2296 = vcmp.ge.f32.partialorder %v2290, 0.0
        %vm2297 = vcmp.ge.f32.partialorder %v2291, 0.0
        %vm2298 = vcmp.ge.f32.partialorder %v2292, 0.0
        %vm2299 = vcmp.ge.f32.partialorder %v2293, 0.0
        %v2300 = vmul.f32 %v2288, 0.2
        %v2301 = vmul.f32 %v2289, 0.2
        %v2302 = vmul.f32 %v2290, 0.2
        %v2303 = vmul.f32 %v2291, 0.2
        %v2304 = vmul.f32 %v2292, 0.2
        %v2305 = vmul.f32 %v2293, 0.2
        %v2306 = vsel %vm2294, %v2288, %v2300
        %v2307 = vsel %vm2295, %v2289, %v2301
        %v2308 = vsel %vm2296, %v2290, %v2302
        %v2309 = vsel %vm2297, %v2291, %v2303
        %v2310 = vsel %vm2298, %v2292, %v2304
        %v2311 = vsel %vm2299, %v2293, %v2305
        %v2312 = vsub.f32 0.0, %v2306
        %v2313 = vsub.f32 0.0, %v2307
        %v2314 = vsub.f32 0.0, %v2308
        %v2315 = vsub.f32 0.0, %v2309
        %v2316 = vsub.f32 0.0, %v2310
        %v2317 = vsub.f32 0.0, %v2311
        %v2318 = vmul.f32 %v2312, 1.442695
        %v2319 = vpow.pop %v2318
        %v2320 = vmul.f32 %v2313, 1.442695
        %v2321 = vpow.pop %v2320
        %v2322 = vmul.f32 %v2314, 1.442695
        %v2323 = vpow.pop %v2322
        %v2324 = vmul.f32 %v2315, 1.442695
        %v2325 = vpow.pop %v2324
        %v2326 = vmul.f32 %v2316, 1.442695
        %v2327 = vpow.pop %v2326
        %v2328 = vmul.f32 %v2317, 1.442695
        %v2329 = vpow.pop %v2328
        %v2330 = vadd.f32 %v2319, 1.0
        %v2331 = vadd.f32 %v2321, 1.0
        %v2332 = vadd.f32 %v2323, 1.0
        %v2333 = vadd.f32 %v2325, 1.0
        %v2334 = vadd.f32 %v2327, 1.0
        %v2335 = vadd.f32 %v2329, 1.0
        %v2336 = vrcp.pop %v2330
        %v2337 = vrcp.pop %v2331
        %v2338 = vrcp.pop %v2332
        %v2339 = vrcp.pop %v2333
        %v2340 = vrcp.pop %v2334
        %v2341 = vrcp.pop %v2335
        %v2342 = vmul.f32 %v1279, %v2337
        %v2343 = vmul.f32 %v1280, %v2339
        %v2344 = vmul.f32 %v1281, %v2341
        %v2345 = vpack.c.bf16 %v2343, %v2342
        %v2346 = vpack.c.bf16 %v2344, %v2344
        %v2348 = vshrl.u32 %v2345, 16
        %v2350 = vrot.slane %v2348, 7
        %v2351 = vshll.u32 %v2345, 16
        %v2353 = vor.u32 %v2350, %v2351
        %v2355 = vshrl.u32 %v2346, 16
        %v2357 = vrot.slane %v2355, 7
        %v2358 = vshll.u32 %v2346, 16
        %v2360 = vor.u32 %v2357, %v2358
        %v2361 = vsel %vm850, %v2350, %v2360
        %v2364 = vsel %vm869, 0, %v2353
        %v2365 = vsel %vm873, %v2361, 0
        %v2366 = vld [vmem:[#allocation6] sm:$0xf]
        %v2367 = vld [vmem:[#allocation6 + $0x4] sm:$0xf]
        %v2368 = vld [vmem:[#allocation6 + $0x8] sm:$0xf]
        %v2369 = vld [vmem:[#allocation6 + $0xc] sm:$0xf]
        %v2370 = vld [vmem:[#allocation6 + $0x10] sm:$0xf]
        %v2371 = vld [vmem:[#allocation6 + $0x14] sm:$0xf]
        %v2372 = vld [vmem:[#allocation6 + $0x18] sm:$0xf]
        %v2373 = vld [vmem:[#allocation6 + $0x1c] sm:$0xf]
        %v2374 = vld [vmem:[#allocation6 + $0x20] sm:$0xf]
        %v2375 = vld [vmem:[#allocation6 + $0x24] sm:$0xf]
        %v2376 = vld [vmem:[#allocation6 + $0x28] sm:$0xf]
        %v2377 = vld [vmem:[#allocation6 + $0x2c] sm:$0xf]
        %v2378 = vld [vmem:[#allocation6 + $0x30] sm:$0xf]
        %v2379 = vld [vmem:[#allocation6 + $0x34] sm:$0xf]
        %v2380 = vld [vmem:[#allocation6 + $0x38] sm:$0xf]
        %v2381 = vld [vmem:[#allocation6 + $0x3c] sm:$0xf]
        %s2382 = scalar_lea.vmem [#allocation6], 64
        %v2383 = vld [vmem:[%s2382] sm:$0xf]
        %v2384 = vld [vmem:[%s2382 + $0x4] sm:$0xf]
        %v2385 = vld [vmem:[%s2382 + $0x8] sm:$0xf]
        %v2386 = vld [vmem:[%s2382 + $0xc] sm:$0xf]
        %v2387 = vld [vmem:[%s2382 + $0x10] sm:$0xf]
        %v2388 = vld [vmem:[%s2382 + $0x14] sm:$0xf]
        %v2389 = vld [vmem:[%s2382 + $0x18] sm:$0xf]
        %v2390 = vld [vmem:[%s2382 + $0x1c] sm:$0xf]
        %v2391 = vld [vmem:[%s2382 + $0x20] sm:$0xf]
        %v2392 = vld [vmem:[%s2382 + $0x24] sm:$0xf]
        %v2393 = vld [vmem:[%s2382 + $0x28] sm:$0xf]
        %v2394 = vld [vmem:[%s2382 + $0x2c] sm:$0xf]
        %v2395 = vld [vmem:[%s2382 + $0x30] sm:$0xf]
        %v2396 = vld [vmem:[%s2382 + $0x34] sm:$0xf]
        %v2397 = vld [vmem:[%s2382 + $0x38] sm:$0xf]
        %v2398 = vld [vmem:[%s2382 + $0x3c] sm:$0xf]
        %v2415 = vunpack.c.l.b16 %v2383
        %v2416 = vunpack.c.l.b16 %v2384
        %v2417 = vunpack.c.l.b16 %v2385
        %v2418 = vunpack.c.l.b16 %v2386
        %v2419 = vunpack.c.l.b16 %v2387
        %v2420 = vunpack.c.l.b16 %v2388
        %v2421 = vunpack.c.l.b16 %v2389
        %v2422 = vunpack.c.l.b16 %v2390
        %v2423 = vunpack.c.l.b16 %v2391
        %v2424 = vunpack.c.l.b16 %v2392
        %v2425 = vunpack.c.l.b16 %v2393
        %v2426 = vunpack.c.l.b16 %v2394
        %v2427 = vunpack.c.l.b16 %v2395
        %v2428 = vunpack.c.l.b16 %v2396
        %v2429 = vunpack.c.l.b16 %v2397
        %v2430 = vunpack.c.l.b16 %v2398
        %v2431 = vpack.c.b16 %v2416, %v2415
        %v2432 = vpack.c.b16 %v2418, %v2417
        %v2433 = vpack.c.b16 %v2420, %v2419
        %v2434 = vpack.c.b16 %v2422, %v2421
        %v2435 = vpack.c.b16 %v2424, %v2423
        %v2436 = vpack.c.b16 %v2426, %v2425
        %v2437 = vpack.c.b16 %v2428, %v2427
        %v2438 = vpack.c.b16 %v2430, %v2429
        %2447 = vmatprep.subr.bf16.mxu0 0
        %2448 = vmatpush1.bf16.msra.mxu0 %v2438
        %2449 = vmatprep.subr.bf16.mxu0 0
        %2450 = vmatpush1.bf16.msra.mxu0 %v2437
        %2451 = vmatprep.subr.bf16.mxu0 0
        %2452 = vmatpush1.bf16.msra.mxu0 %v2436
        %2453 = vmatprep.subr.bf16.mxu0 0
        %2454 = vmatpush1.bf16.msra.mxu0 %v2435
        %2455 = vmatprep.subr.bf16.mxu0 0
        %2456 = vmatpush1.bf16.msra.mxu0 %v2434
        %2457 = vmatprep.subr.bf16.mxu0 0
        %2458 = vmatpush1.bf16.msra.mxu0 %v2433
        %2459 = vmatprep.subr.bf16.mxu0 0
        %2460 = vmatpush1.bf16.msra.mxu0 %v2432
        %2461 = vmatprep.subr.bf16.mxu0 0
        %2462 = vmatpush1.bf16.msra.mxu0 %v2431
        %2463 = vmatprep.subr.bf16.mxu0 0
        %2464 = vmatpush2.bf16.msra.mxu0 0
        %2465 = vmatprep.subr.bf16.mxu0 0
        %2466 = vmatpush2.bf16.msra.mxu0 0
        %2467 = vmatprep.subr.bf16.mxu0 0
        %2468 = vmatpush2.bf16.msra.mxu0 0
        %2469 = vmatprep.subr.bf16.mxu0 0
        %2470 = vmatpush2.bf16.msra.mxu0 0
        %2471 = vmatprep.subr.bf16.mxu0 0
        %2472 = vmatpush2.bf16.msra.mxu0 0
        %2473 = vmatprep.subr.bf16.mxu0 0
        %2474 = vmatpush2.bf16.msra.mxu0 0
        %2475 = vmatprep.subr.bf16.mxu0 0
        %2476 = vmatpush2.bf16.msra.mxu0 0
        %2477 = vmatprep.subr.bf16.mxu0 0
        %2478 = vmatpush2.bf16.msra.mxu0 0
        %2479 = vmatprep.mubr.bf16.mxu0 0
        %2480 = vmatmul.mubr.bf16.gmra.mxu0 %v1368
        %v2481 = vpop.f32.mrf.mxu0
        %v2482 = vadd.f32 0.0, %v2481
        %v2483 = vpop.f32.mrf.mxu0
        %v2484 = vpop.f32.mrf.mxu0
        %v2485 = vadd.f32 0.0, %v2484
        %v2486 = vpop.f32.mrf.mxu0
        %2487 = vmatprep.mubr.bf16.mxu0 0
        %2488 = vmatmul.mubr.bf16.gmra.mxu0 %v1371
        %v2489 = vpop.f32.mrf.mxu0
        %v2490 = vadd.f32 0.0, %v2489
        %v2491 = vpop.f32.mrf.mxu0
        %v2492 = vpop.f32.mrf.mxu0
        %v2493 = vpop.f32.mrf.mxu0
        %2494 = vdwg.mxu0
        %v2511 = vunpack.c.l.b16 %v2366
        %v2512 = vunpack.c.l.b16 %v2367
        %v2513 = vunpack.c.l.b16 %v2368
        %v2514 = vunpack.c.l.b16 %v2369
        %v2515 = vunpack.c.l.b16 %v2370
        %v2516 = vunpack.c.l.b16 %v2371
        %v2517 = vunpack.c.l.b16 %v2372
        %v2518 = vunpack.c.l.b16 %v2373
        %v2519 = vunpack.c.l.b16 %v2374
        %v2520 = vunpack.c.l.b16 %v2375
        %v2521 = vunpack.c.l.b16 %v2376
        %v2522 = vunpack.c.l.b16 %v2377
        %v2523 = vunpack.c.l.b16 %v2378
        %v2524 = vunpack.c.l.b16 %v2379
        %v2525 = vunpack.c.l.b16 %v2380
        %v2526 = vunpack.c.l.b16 %v2381
        %v2527 = vpack.c.b16 %v2512, %v2511
        %v2528 = vpack.c.b16 %v2514, %v2513
        %v2529 = vpack.c.b16 %v2516, %v2515
        %v2530 = vpack.c.b16 %v2518, %v2517
        %v2531 = vpack.c.b16 %v2520, %v2519
        %v2532 = vpack.c.b16 %v2522, %v2521
        %v2533 = vpack.c.b16 %v2524, %v2523
        %v2534 = vpack.c.b16 %v2526, %v2525
        %2543 = vmatprep.subr.bf16.mxu0 0
        %2544 = vmatpush1.bf16.msra.mxu0 %v2534
        %2545 = vmatprep.subr.bf16.mxu0 0
        %2546 = vmatpush1.bf16.msra.mxu0 %v2533
        %2547 = vmatprep.subr.bf16.mxu0 0
        %2548 = vmatpush1.bf16.msra.mxu0 %v2532
        %2549 = vmatprep.subr.bf16.mxu0 0
        %2550 = vmatpush1.bf16.msra.mxu0 %v2531
        %2551 = vmatprep.subr.bf16.mxu0 0
        %2552 = vmatpush1.bf16.msra.mxu0 %v2530
        %2553 = vmatprep.subr.bf16.mxu0 0
        %2554 = vmatpush1.bf16.msra.mxu0 %v2529
        %2555 = vmatprep.subr.bf16.mxu0 0
        %2556 = vmatpush1.bf16.msra.mxu0 %v2528
        %2557 = vmatprep.subr.bf16.mxu0 0
        %2558 = vmatpush1.bf16.msra.mxu0 %v2527
        %2559 = vmatprep.subr.bf16.mxu0 0
        %2560 = vmatpush2.bf16.msra.mxu0 0
        %2561 = vmatprep.subr.bf16.mxu0 0
        %2562 = vmatpush2.bf16.msra.mxu0 0
        %2563 = vmatprep.subr.bf16.mxu0 0
        %2564 = vmatpush2.bf16.msra.mxu0 0
        %2565 = vmatprep.subr.bf16.mxu0 0
        %2566 = vmatpush2.bf16.msra.mxu0 0
        %2567 = vmatprep.subr.bf16.mxu0 0
        %2568 = vmatpush2.bf16.msra.mxu0 0
        %2569 = vmatprep.subr.bf16.mxu0 0
        %2570 = vmatpush2.bf16.msra.mxu0 0
        %2571 = vmatprep.subr.bf16.mxu0 0
        %2572 = vmatpush2.bf16.msra.mxu0 0
        %2573 = vmatprep.subr.bf16.mxu0 0
        %2574 = vmatpush2.bf16.msra.mxu0 0
        %2575 = vmatprep.mubr.bf16.mxu0 0
        %2576 = vmatmul.mubr.bf16.gmra.mxu0 %v1301
        %v2577 = vpop.f32.mrf.mxu0
        %v2578 = vadd.f32 %v2482, %v2577
        %v2579 = vpop.f32.mrf.mxu0
        %v2580 = vpop.f32.mrf.mxu0
        %v2581 = vadd.f32 %v2485, %v2580
        %v2582 = vpop.f32.mrf.mxu0
        %2583 = vmatprep.mubr.bf16.mxu0 0
        %2584 = vmatmul.mubr.bf16.gmra.mxu0 %v1302
        %v2585 = vpop.f32.mrf.mxu0
        %v2586 = vadd.f32 %v2490, %v2585
        %v2587 = vpop.f32.mrf.mxu0
        %v2588 = vpop.f32.mrf.mxu0
        %v2589 = vpop.f32.mrf.mxu0
        %2590 = vdwg.mxu0
        %s2591 = scalar_lea.vmem [#allocation6], 128
        %v2592 = vld [vmem:[%s2591] sm:$0xf]
        %v2593 = vld [vmem:[%s2591 + $0x4] sm:$0xf]
        %v2594 = vld [vmem:[%s2591 + $0x8] sm:$0xf]
        %v2595 = vld [vmem:[%s2591 + $0xc] sm:$0xf]
        %v2596 = vld [vmem:[%s2591 + $0x10] sm:$0xf]
        %v2597 = vld [vmem:[%s2591 + $0x14] sm:$0xf]
        %v2598 = vld [vmem:[%s2591 + $0x18] sm:$0xf]
        %v2599 = vld [vmem:[%s2591 + $0x1c] sm:$0xf]
        %v2600 = vld [vmem:[%s2591 + $0x20] sm:$0xf]
        %v2601 = vld [vmem:[%s2591 + $0x24] sm:$0xf]
        %v2602 = vld [vmem:[%s2591 + $0x28] sm:$0xf]
        %v2603 = vld [vmem:[%s2591 + $0x2c] sm:$0xf]
        %v2604 = vld [vmem:[%s2591 + $0x30] sm:$0xf]
        %v2605 = vld [vmem:[%s2591 + $0x34] sm:$0xf]
        %v2606 = vld [vmem:[%s2591 + $0x38] sm:$0xf]
        %v2607 = vld [vmem:[%s2591 + $0x3c] sm:$0xf]
        %v2624 = vunpack.c.l.b16 %v2592
        %v2625 = vunpack.c.l.b16 %v2593
        %v2626 = vunpack.c.l.b16 %v2594
        %v2627 = vunpack.c.l.b16 %v2595
        %v2628 = vunpack.c.l.b16 %v2596
        %v2629 = vunpack.c.l.b16 %v2597
        %v2630 = vunpack.c.l.b16 %v2598
        %v2631 = vunpack.c.l.b16 %v2599
        %v2632 = vunpack.c.l.b16 %v2600
        %v2633 = vunpack.c.l.b16 %v2601
        %v2634 = vunpack.c.l.b16 %v2602
        %v2635 = vunpack.c.l.b16 %v2603
        %v2636 = vunpack.c.l.b16 %v2604
        %v2637 = vunpack.c.l.b16 %v2605
        %v2638 = vunpack.c.l.b16 %v2606
        %v2639 = vunpack.c.l.b16 %v2607
        %v2640 = vpack.c.b16 %v2625, %v2624
        %v2641 = vpack.c.b16 %v2627, %v2626
        %v2642 = vpack.c.b16 %v2629, %v2628
        %v2643 = vpack.c.b16 %v2631, %v2630
        %v2644 = vpack.c.b16 %v2633, %v2632
        %v2645 = vpack.c.b16 %v2635, %v2634
        %v2646 = vpack.c.b16 %v2637, %v2636
        %v2647 = vpack.c.b16 %v2639, %v2638
        %2656 = vmatprep.subr.bf16.mxu0 0
        %2657 = vmatpush1.bf16.msra.mxu0 %v2647
        %2658 = vmatprep.subr.bf16.mxu0 0
        %2659 = vmatpush1.bf16.msra.mxu0 %v2646
        %2660 = vmatprep.subr.bf16.mxu0 0
        %2661 = vmatpush1.bf16.msra.mxu0 %v2645
        %2662 = vmatprep.subr.bf16.mxu0 0
        %2663 = vmatpush1.bf16.msra.mxu0 %v2644
        %2664 = vmatprep.subr.bf16.mxu0 0
        %2665 = vmatpush1.bf16.msra.mxu0 %v2643
        %2666 = vmatprep.subr.bf16.mxu0 0
        %2667 = vmatpush1.bf16.msra.mxu0 %v2642
        %2668 = vmatprep.subr.bf16.mxu0 0
        %2669 = vmatpush1.bf16.msra.mxu0 %v2641
        %2670 = vmatprep.subr.bf16.mxu0 0
        %2671 = vmatpush1.bf16.msra.mxu0 %v2640
        %2672 = vmatprep.subr.bf16.mxu0 0
        %2673 = vmatpush2.bf16.msra.mxu0 0
        %2674 = vmatprep.subr.bf16.mxu0 0
        %2675 = vmatpush2.bf16.msra.mxu0 0
        %2676 = vmatprep.subr.bf16.mxu0 0
        %2677 = vmatpush2.bf16.msra.mxu0 0
        %2678 = vmatprep.subr.bf16.mxu0 0
        %2679 = vmatpush2.bf16.msra.mxu0 0
        %2680 = vmatprep.subr.bf16.mxu0 0
        %2681 = vmatpush2.bf16.msra.mxu0 0
        %2682 = vmatprep.subr.bf16.mxu0 0
        %2683 = vmatpush2.bf16.msra.mxu0 0
        %2684 = vmatprep.subr.bf16.mxu0 0
        %2685 = vmatpush2.bf16.msra.mxu0 0
        %2686 = vmatprep.subr.bf16.mxu0 0
        %2687 = vmatpush2.bf16.msra.mxu0 0
        %2688 = vmatprep.mubr.bf16.mxu0 0
        %2689 = vmatmul.mubr.bf16.gmra.mxu0 %v1657
        %v2690 = vpop.f32.mrf.mxu0
        %v2691 = vadd.f32 0.0, %v2690
        %v2692 = vpop.f32.mrf.mxu0
        %v2693 = vpop.f32.mrf.mxu0
        %v2694 = vadd.f32 0.0, %v2693
        %v2695 = vpop.f32.mrf.mxu0
        %2696 = vmatprep.mubr.bf16.mxu0 0
        %2697 = vmatmul.mubr.bf16.gmra.mxu0 %v1656
        %v2698 = vpop.f32.mrf.mxu0
        %v2699 = vadd.f32 0.0, %v2698
        %v2700 = vpop.f32.mrf.mxu0
        %v2701 = vpop.f32.mrf.mxu0
        %v2702 = vpop.f32.mrf.mxu0
        %2703 = vdwg.mxu0
        %v2704 = vadd.f32 %v2578, %v2691
        %v2705 = vadd.f32 %v2581, %v2694
        %v2706 = vadd.f32 %v2586, %v2699
        %v2707 = vld [vmem:[#allocation7] sm:$0xf]
        %v2708 = vld [vmem:[#allocation7 + $0x4] sm:$0xf]
        %v2709 = vld [vmem:[#allocation7 + $0x8] sm:$0xf]
        %v2710 = vld [vmem:[#allocation7 + $0xc] sm:$0xf]
        %v2711 = vld [vmem:[#allocation7 + $0x10] sm:$0xf]
        %v2712 = vld [vmem:[#allocation7 + $0x14] sm:$0xf]
        %v2713 = vld [vmem:[#allocation7 + $0x18] sm:$0xf]
        %v2714 = vld [vmem:[#allocation7 + $0x1c] sm:$0xf]
        %v2715 = vld [vmem:[#allocation7 + $0x20] sm:$0xf]
        %v2716 = vld [vmem:[#allocation7 + $0x24] sm:$0xf]
        %v2717 = vld [vmem:[#allocation7 + $0x28] sm:$0xf]
        %v2718 = vld [vmem:[#allocation7 + $0x2c] sm:$0xf]
        %v2719 = vld [vmem:[#allocation7 + $0x30] sm:$0xf]
        %v2720 = vld [vmem:[#allocation7 + $0x34] sm:$0xf]
        %v2721 = vld [vmem:[#allocation7 + $0x38] sm:$0xf]
        %v2722 = vld [vmem:[#allocation7 + $0x3c] sm:$0xf]
        %s2723 = scalar_lea.vmem [#allocation7], 64
        %v2724 = vld [vmem:[%s2723] sm:$0xf]
        %v2725 = vld [vmem:[%s2723 + $0x4] sm:$0xf]
        %v2726 = vld [vmem:[%s2723 + $0x8] sm:$0xf]
        %v2727 = vld [vmem:[%s2723 + $0xc] sm:$0xf]
        %v2728 = vld [vmem:[%s2723 + $0x10] sm:$0xf]
        %v2729 = vld [vmem:[%s2723 + $0x14] sm:$0xf]
        %v2730 = vld [vmem:[%s2723 + $0x18] sm:$0xf]
        %v2731 = vld [vmem:[%s2723 + $0x1c] sm:$0xf]
        %v2732 = vld [vmem:[%s2723 + $0x20] sm:$0xf]
        %v2733 = vld [vmem:[%s2723 + $0x24] sm:$0xf]
        %v2734 = vld [vmem:[%s2723 + $0x28] sm:$0xf]
        %v2735 = vld [vmem:[%s2723 + $0x2c] sm:$0xf]
        %v2736 = vld [vmem:[%s2723 + $0x30] sm:$0xf]
        %v2737 = vld [vmem:[%s2723 + $0x34] sm:$0xf]
        %v2738 = vld [vmem:[%s2723 + $0x38] sm:$0xf]
        %v2739 = vld [vmem:[%s2723 + $0x3c] sm:$0xf]
        %v2741 = vshrl.u32 %v2364, 16
        %v2743 = vshll.u32 %v2364, 16
        %v2745 = vrot.slane %v2743, 1
        %v2746 = vor.u32 %v2741, %v2745
        %v2748 = vshll.u32 %v2365, 16
        %v2750 = vrot.slane %v2748, 1
        %v2751 = vsel %vm908, %v2746, %v2750
        %v2752 = vshrl.u32 %v2365, 16
        %v2754 = vor.u32 %v2752, %v2750
        %v2773 = vunpack.c.l.b16 %v2724
        %v2774 = vunpack.c.l.b16 %v2725
        %v2775 = vunpack.c.l.b16 %v2726
        %v2776 = vunpack.c.l.b16 %v2727
        %v2777 = vunpack.c.l.b16 %v2728
        %v2778 = vunpack.c.l.b16 %v2729
        %v2779 = vunpack.c.l.b16 %v2730
        %v2780 = vunpack.c.l.b16 %v2731
        %v2781 = vunpack.c.l.b16 %v2732
        %v2782 = vunpack.c.l.b16 %v2733
        %v2783 = vunpack.c.l.b16 %v2734
        %v2784 = vunpack.c.l.b16 %v2735
        %v2785 = vunpack.c.l.b16 %v2736
        %v2786 = vunpack.c.l.b16 %v2737
        %v2787 = vunpack.c.l.b16 %v2738
        %v2788 = vunpack.c.l.b16 %v2739
        %v2789 = vpack.c.b16 %v2774, %v2773
        %v2790 = vpack.c.b16 %v2776, %v2775
        %v2791 = vpack.c.b16 %v2778, %v2777
        %v2792 = vpack.c.b16 %v2780, %v2779
        %v2793 = vpack.c.b16 %v2782, %v2781
        %v2794 = vpack.c.b16 %v2784, %v2783
        %v2795 = vpack.c.b16 %v2786, %v2785
        %v2796 = vpack.c.b16 %v2788, %v2787
        %2805 = vmatprep.subr.bf16.mxu0 0
        %2806 = vmatpush1.bf16.msra.mxu0 %v2796
        %2807 = vmatprep.subr.bf16.mxu0 0
        %2808 = vmatpush1.bf16.msra.mxu0 %v2795
        %2809 = vmatprep.subr.bf16.mxu0 0
        %2810 = vmatpush1.bf16.msra.mxu0 %v2794
        %2811 = vmatprep.subr.bf16.mxu0 0
        %2812 = vmatpush1.bf16.msra.mxu0 %v2793
        %2813 = vmatprep.subr.bf16.mxu0 0
        %2814 = vmatpush1.bf16.msra.mxu0 %v2792
        %2815 = vmatprep.subr.bf16.mxu0 0
        %2816 = vmatpush1.bf16.msra.mxu0 %v2791
        %2817 = vmatprep.subr.bf16.mxu0 0
        %2818 = vmatpush1.bf16.msra.mxu0 %v2790
        %2819 = vmatprep.subr.bf16.mxu0 0
        %2820 = vmatpush1.bf16.msra.mxu0 %v2789
        %2821 = vmatprep.subr.bf16.mxu0 0
        %2822 = vmatpush2.bf16.msra.mxu0 0
        %2823 = vmatprep.subr.bf16.mxu0 0
        %2824 = vmatpush2.bf16.msra.mxu0 0
        %2825 = vmatprep.subr.bf16.mxu0 0
        %2826 = vmatpush2.bf16.msra.mxu0 0
        %2827 = vmatprep.subr.bf16.mxu0 0
        %2828 = vmatpush2.bf16.msra.mxu0 0
        %2829 = vmatprep.subr.bf16.mxu0 0
        %2830 = vmatpush2.bf16.msra.mxu0 0
        %2831 = vmatprep.subr.bf16.mxu0 0
        %2832 = vmatpush2.bf16.msra.mxu0 0
        %2833 = vmatprep.subr.bf16.mxu0 0
        %2834 = vmatpush2.bf16.msra.mxu0 0
        %2835 = vmatprep.subr.bf16.mxu0 0
        %2836 = vmatpush2.bf16.msra.mxu0 0
        %2837 = vmatprep.mubr.bf16.mxu0 0
        %2838 = vmatmul.mubr.bf16.gmra.mxu0 %v2751
        %v2839 = vpop.f32.mrf.mxu0
        %v2840 = vadd.f32 0.0, %v2839
        %v2841 = vpop.f32.mrf.mxu0
        %v2842 = vpop.f32.mrf.mxu0
        %v2843 = vadd.f32 0.0, %v2842
        %v2844 = vpop.f32.mrf.mxu0
        %2845 = vmatprep.mubr.bf16.mxu0 0
        %2846 = vmatmul.mubr.bf16.gmra.mxu0 %v2754
        %v2847 = vpop.f32.mrf.mxu0
        %v2848 = vadd.f32 0.0, %v2847
        %v2849 = vpop.f32.mrf.mxu0
        %v2850 = vpop.f32.mrf.mxu0
        %v2851 = vpop.f32.mrf.mxu0
        %2852 = vdwg.mxu0
        %v2869 = vunpack.c.l.b16 %v2707
        %v2870 = vunpack.c.l.b16 %v2708
        %v2871 = vunpack.c.l.b16 %v2709
        %v2872 = vunpack.c.l.b16 %v2710
        %v2873 = vunpack.c.l.b16 %v2711
        %v2874 = vunpack.c.l.b16 %v2712
        %v2875 = vunpack.c.l.b16 %v2713
        %v2876 = vunpack.c.l.b16 %v2714
        %v2877 = vunpack.c.l.b16 %v2715
        %v2878 = vunpack.c.l.b16 %v2716
        %v2879 = vunpack.c.l.b16 %v2717
        %v2880 = vunpack.c.l.b16 %v2718
        %v2881 = vunpack.c.l.b16 %v2719
        %v2882 = vunpack.c.l.b16 %v2720
        %v2883 = vunpack.c.l.b16 %v2721
        %v2884 = vunpack.c.l.b16 %v2722
        %v2885 = vpack.c.b16 %v2870, %v2869
        %v2886 = vpack.c.b16 %v2872, %v2871
        %v2887 = vpack.c.b16 %v2874, %v2873
        %v2888 = vpack.c.b16 %v2876, %v2875
        %v2889 = vpack.c.b16 %v2878, %v2877
        %v2890 = vpack.c.b16 %v2880, %v2879
        %v2891 = vpack.c.b16 %v2882, %v2881
        %v2892 = vpack.c.b16 %v2884, %v2883
        %2901 = vmatprep.subr.bf16.mxu0 0
        %2902 = vmatpush1.bf16.msra.mxu0 %v2892
        %2903 = vmatprep.subr.bf16.mxu0 0
        %2904 = vmatpush1.bf16.msra.mxu0 %v2891
        %2905 = vmatprep.subr.bf16.mxu0 0
        %2906 = vmatpush1.bf16.msra.mxu0 %v2890
        %2907 = vmatprep.subr.bf16.mxu0 0
        %2908 = vmatpush1.bf16.msra.mxu0 %v2889
        %2909 = vmatprep.subr.bf16.mxu0 0
        %2910 = vmatpush1.bf16.msra.mxu0 %v2888
        %2911 = vmatprep.subr.bf16.mxu0 0
        %2912 = vmatpush1.bf16.msra.mxu0 %v2887
        %2913 = vmatprep.subr.bf16.mxu0 0
        %2914 = vmatpush1.bf16.msra.mxu0 %v2886
        %2915 = vmatprep.subr.bf16.mxu0 0
        %2916 = vmatpush1.bf16.msra.mxu0 %v2885
        %2917 = vmatprep.subr.bf16.mxu0 0
        %2918 = vmatpush2.bf16.msra.mxu0 0
        %2919 = vmatprep.subr.bf16.mxu0 0
        %2920 = vmatpush2.bf16.msra.mxu0 0
        %2921 = vmatprep.subr.bf16.mxu0 0
        %2922 = vmatpush2.bf16.msra.mxu0 0
        %2923 = vmatprep.subr.bf16.mxu0 0
        %2924 = vmatpush2.bf16.msra.mxu0 0
        %2925 = vmatprep.subr.bf16.mxu0 0
        %2926 = vmatpush2.bf16.msra.mxu0 0
        %2927 = vmatprep.subr.bf16.mxu0 0
        %2928 = vmatpush2.bf16.msra.mxu0 0
        %2929 = vmatprep.subr.bf16.mxu0 0
        %2930 = vmatpush2.bf16.msra.mxu0 0
        %2931 = vmatprep.subr.bf16.mxu0 0
        %2932 = vmatpush2.bf16.msra.mxu0 0
        %2933 = vmatprep.mubr.bf16.mxu0 0
        %2934 = vmatmul.mubr.bf16.gmra.mxu0 %v2364
        %v2935 = vpop.f32.mrf.mxu0
        %v2936 = vadd.f32 %v2840, %v2935
        %v2937 = vpop.f32.mrf.mxu0
        %v2938 = vpop.f32.mrf.mxu0
        %v2939 = vadd.f32 %v2843, %v2938
        %v2940 = vpop.f32.mrf.mxu0
        %2941 = vmatprep.mubr.bf16.mxu0 0
        %2942 = vmatmul.mubr.bf16.gmra.mxu0 %v2365
        %v2943 = vpop.f32.mrf.mxu0
        %v2944 = vadd.f32 %v2848, %v2943
        %v2945 = vpop.f32.mrf.mxu0
        %v2946 = vpop.f32.mrf.mxu0
        %v2947 = vpop.f32.mrf.mxu0
        %2948 = vdwg.mxu0
        %s2949 = scalar_lea.vmem [#allocation7], 128
        %v2950 = vld [vmem:[%s2949] sm:$0xf]
        %v2951 = vld [vmem:[%s2949 + $0x4] sm:$0xf]
        %v2952 = vld [vmem:[%s2949 + $0x8] sm:$0xf]
        %v2953 = vld [vmem:[%s2949 + $0xc] sm:$0xf]
        %v2954 = vld [vmem:[%s2949 + $0x10] sm:$0xf]
        %v2955 = vld [vmem:[%s2949 + $0x14] sm:$0xf]
        %v2956 = vld [vmem:[%s2949 + $0x18] sm:$0xf]
        %v2957 = vld [vmem:[%s2949 + $0x1c] sm:$0xf]
        %v2958 = vld [vmem:[%s2949 + $0x20] sm:$0xf]
        %v2959 = vld [vmem:[%s2949 + $0x24] sm:$0xf]
        %v2960 = vld [vmem:[%s2949 + $0x28] sm:$0xf]
        %v2961 = vld [vmem:[%s2949 + $0x2c] sm:$0xf]
        %v2962 = vld [vmem:[%s2949 + $0x30] sm:$0xf]
        %v2963 = vld [vmem:[%s2949 + $0x34] sm:$0xf]
        %v2964 = vld [vmem:[%s2949 + $0x38] sm:$0xf]
        %v2965 = vld [vmem:[%s2949 + $0x3c] sm:$0xf]
        %v2968 = vrot.slane %v2364, 1
        %v2969 = vrot.slane %v2365, 1
        %v2970 = vsel %vm1137, %v2968, %v2969
        %v2989 = vunpack.c.l.b16 %v2950
        %v2990 = vunpack.c.l.b16 %v2951
        %v2991 = vunpack.c.l.b16 %v2952
        %v2992 = vunpack.c.l.b16 %v2953
        %v2993 = vunpack.c.l.b16 %v2954
        %v2994 = vunpack.c.l.b16 %v2955
        %v2995 = vunpack.c.l.b16 %v2956
        %v2996 = vunpack.c.l.b16 %v2957
        %v2997 = vunpack.c.l.b16 %v2958
        %v2998 = vunpack.c.l.b16 %v2959
        %v2999 = vunpack.c.l.b16 %v2960
        %v3000 = vunpack.c.l.b16 %v2961
        %v3001 = vunpack.c.l.b16 %v2962
        %v3002 = vunpack.c.l.b16 %v2963
        %v3003 = vunpack.c.l.b16 %v2964
        %v3004 = vunpack.c.l.b16 %v2965
        %v3005 = vpack.c.b16 %v2990, %v2989
        %v3006 = vpack.c.b16 %v2992, %v2991
        %v3007 = vpack.c.b16 %v2994, %v2993
        %v3008 = vpack.c.b16 %v2996, %v2995
        %v3009 = vpack.c.b16 %v2998, %v2997
        %v3010 = vpack.c.b16 %v3000, %v2999
        %v3011 = vpack.c.b16 %v3002, %v3001
        %v3012 = vpack.c.b16 %v3004, %v3003
        %3021 = vmatprep.subr.bf16.mxu0 0
        %3022 = vmatpush1.bf16.msra.mxu0 %v3012
        %3023 = vmatprep.subr.bf16.mxu0 0
        %3024 = vmatpush1.bf16.msra.mxu0 %v3011
        %3025 = vmatprep.subr.bf16.mxu0 0
        %3026 = vmatpush1.bf16.msra.mxu0 %v3010
        %3027 = vmatprep.subr.bf16.mxu0 0
        %3028 = vmatpush1.bf16.msra.mxu0 %v3009
        %3029 = vmatprep.subr.bf16.mxu0 0
        %3030 = vmatpush1.bf16.msra.mxu0 %v3008
        %3031 = vmatprep.subr.bf16.mxu0 0
        %3032 = vmatpush1.bf16.msra.mxu0 %v3007
        %3033 = vmatprep.subr.bf16.mxu0 0
        %3034 = vmatpush1.bf16.msra.mxu0 %v3006
        %3035 = vmatprep.subr.bf16.mxu0 0
        %3036 = vmatpush1.bf16.msra.mxu0 %v3005
        %3037 = vmatprep.subr.bf16.mxu0 0
        %3038 = vmatpush2.bf16.msra.mxu0 0
        %3039 = vmatprep.subr.bf16.mxu0 0
        %3040 = vmatpush2.bf16.msra.mxu0 0
        %3041 = vmatprep.subr.bf16.mxu0 0
        %3042 = vmatpush2.bf16.msra.mxu0 0
        %3043 = vmatprep.subr.bf16.mxu0 0
        %3044 = vmatpush2.bf16.msra.mxu0 0
        %3045 = vmatprep.subr.bf16.mxu0 0
        %3046 = vmatpush2.bf16.msra.mxu0 0
        %3047 = vmatprep.subr.bf16.mxu0 0
        %3048 = vmatpush2.bf16.msra.mxu0 0
        %3049 = vmatprep.subr.bf16.mxu0 0
        %3050 = vmatpush2.bf16.msra.mxu0 0
        %3051 = vmatprep.subr.bf16.mxu0 0
        %3052 = vmatpush2.bf16.msra.mxu0 0
        %3053 = vmatprep.mubr.bf16.mxu0 0
        %3054 = vmatmul.mubr.bf16.gmra.mxu0 %v2970
        %v3055 = vpop.f32.mrf.mxu0
        %v3056 = vadd.f32 0.0, %v3055
        %v3057 = vpop.f32.mrf.mxu0
        %v3058 = vpop.f32.mrf.mxu0
        %v3059 = vadd.f32 0.0, %v3058
        %v3060 = vpop.f32.mrf.mxu0
        %3061 = vmatprep.mubr.bf16.mxu0 0
        %3062 = vmatmul.mubr.bf16.gmra.mxu0 %v2969
        %v3063 = vpop.f32.mrf.mxu0
        %v3064 = vadd.f32 0.0, %v3063
        %v3065 = vpop.f32.mrf.mxu0
        %v3066 = vpop.f32.mrf.mxu0
        %v3067 = vpop.f32.mrf.mxu0
        %3068 = vdwg.mxu0
        %v3069 = vadd.f32 %v2936, %v3056
        %v3070 = vadd.f32 %v2939, %v3059
        %v3071 = vadd.f32 %v2944, %v3064
        %v3072 = vadd.f32 %v2704, %v3069
        %v3073 = vadd.f32 %v2705, %v3070
        %v3074 = vadd.f32 %v2706, %v3071
        %v3075 = vld [vmem:[%s11] sm:$0x1]
        %v3077 = vlaneseq
        %v3078 = vshrl.u32 %v3077, 7
        %v3079 = vsub.s32 0, %v3078
        %v3080 = vrot.slane %v3075, %v3079
        %v3082 = vadd.f32 %v3072, %v3080
        %v3083 = vadd.f32 %v3073, %v3080
        %v3084 = vadd.f32 %v3074, %v3080
        %vm3085 = vcmp.ge.f32.partialorder %v3082, 0.0
        %vm3086 = vcmp.ge.f32.partialorder %v3083, 0.0
        %vm3087 = vcmp.ge.f32.partialorder %v3084, 0.0
        %v3088 = vmul.f32 %v3082, 0.04
        %v3089 = vmul.f32 %v3083, 0.04
        %v3090 = vmul.f32 %v3084, 0.04
        %v3091 = vsel %vm3085, %v3082, %v3088
        %v3092 = vsel %vm3086, %v3083, %v3089
        %v3093 = vsel %vm3087, %v3084, %v3090
        %v3094 = vmul.f32 %v1279, %v2336
        %v3095 = vmul.f32 %v1280, %v2338
        %v3096 = vmul.f32 %v1281, %v2340
        %v3097 = vsub.f32 1.0, %v2336
        %v3098 = vsub.f32 1.0, %v2338
        %v3099 = vsub.f32 1.0, %v2340
        %v3100 = vmul.f32 %v3091, %v3097
        %v3101 = vmul.f32 %v3092, %v3098
        %v3102 = vmul.f32 %v3093, %v3099
        %v3103 = vadd.f32 %v3094, %v3100
        %v3104 = vadd.f32 %v3095, %v3101
        %v3105 = vadd.f32 %v3096, %v3102
        %v3106 = vmul.f32 %v3103, %v1264
        %v3107 = vmul.f32 %v3104, %v1269
        %v3108 = vmul.f32 %v3105, %v1274
        %3109 = vst [vmem:[%s835] sm:$0xff] %v3106
        %3110 = vst [vmem:[%s835 + $0x8] sm:$0xff] %v3107
        %3111 = vst [vmem:[%s835 + $0x10] sm:$0x3] %v3108
        %v3112 = vld [vmem:[%s835] sm:$0xff]
        %v3113 = vld [vmem:[%s835 + $0x8] sm:$0xff]
        %v3114 = vld [vmem:[%s835 + $0x10] sm:$0x3]
        %v3115 = vpack.c.bf16 %v3113, %v3112
        %v3116 = vpack.c.bf16 %v3114, %v3114
        %v3118 = vshrl.u32 %v3115, 16
        %v3120 = vrot.slane %v3118, 7
        %v3121 = vshll.u32 %v3115, 16
        %v3123 = vor.u32 %v3120, %v3121
        %v3125 = vshrl.u32 %v3116, 16
        %v3127 = vrot.slane %v3125, 7
        %v3128 = vshll.u32 %v3116, 16
        %v3130 = vor.u32 %v3127, %v3128
        %v3131 = vsel %vm850, %v3120, %v3130
        %v3134 = vsel %vm869, 0, %v3123
        %v3135 = vsel %vm873, %v3131, 0
        %v3136 = vld [vmem:[#allocation9] sm:$0xff]
        %v3137 = vld [vmem:[#allocation9 + $0x8] sm:$0xff]
        %v3138 = vld [vmem:[#allocation9 + $0x10] sm:$0xff]
        %v3139 = vld [vmem:[#allocation9 + $0x18] sm:$0xff]
        %v3140 = vld [vmem:[#allocation9 + $0x20] sm:$0xff]
        %v3141 = vld [vmem:[#allocation9 + $0x28] sm:$0xff]
        %v3142 = vld [vmem:[#allocation9 + $0x30] sm:$0xff]
        %v3143 = vld [vmem:[#allocation9 + $0x38] sm:$0xff]
        %v3144 = vld [vmem:[#allocation9 + $0x40] sm:$0xff]
        %v3145 = vld [vmem:[#allocation9 + $0x48] sm:$0xff]
        %v3146 = vld [vmem:[#allocation9 + $0x50] sm:$0xff]
        %v3147 = vld [vmem:[#allocation9 + $0x58] sm:$0xff]
        %v3148 = vld [vmem:[#allocation9 + $0x60] sm:$0xff]
        %v3149 = vld [vmem:[#allocation9 + $0x68] sm:$0xff]
        %v3150 = vld [vmem:[#allocation9 + $0x70] sm:$0xff]
        %v3151 = vld [vmem:[#allocation9 + $0x78] sm:$0xff]
        %s3152 = scalar_lea.vmem [#allocation9], 128
        %v3153 = vld [vmem:[%s3152] sm:$0xff]
        %v3154 = vld [vmem:[%s3152 + $0x8] sm:$0xff]
        %v3155 = vld [vmem:[%s3152 + $0x10] sm:$0xff]
        %v3156 = vld [vmem:[%s3152 + $0x18] sm:$0xff]
        %v3157 = vld [vmem:[%s3152 + $0x20] sm:$0xff]
        %v3158 = vld [vmem:[%s3152 + $0x28] sm:$0xff]
        %v3159 = vld [vmem:[%s3152 + $0x30] sm:$0xff]
        %v3160 = vld [vmem:[%s3152 + $0x38] sm:$0xff]
        %v3161 = vld [vmem:[%s3152 + $0x40] sm:$0xff]
        %v3162 = vld [vmem:[%s3152 + $0x48] sm:$0xff]
        %v3163 = vld [vmem:[%s3152 + $0x50] sm:$0xff]
        %v3164 = vld [vmem:[%s3152 + $0x58] sm:$0xff]
        %v3165 = vld [vmem:[%s3152 + $0x60] sm:$0xff]
        %v3166 = vld [vmem:[%s3152 + $0x68] sm:$0xff]
        %v3167 = vld [vmem:[%s3152 + $0x70] sm:$0xff]
        %v3168 = vld [vmem:[%s3152 + $0x78] sm:$0xff]
        %v3170 = vshrl.u32 %v3134, 16
        %v3172 = vshll.u32 %v3134, 16
        %v3174 = vrot.slane %v3172, 1
        %v3175 = vor.u32 %v3170, %v3174
        %v3177 = vshll.u32 %v3135, 16
        %v3179 = vrot.slane %v3177, 1
        %v3180 = vsel %vm908, %v3175, %v3179
        %v3181 = vshrl.u32 %v3135, 16
        %v3183 = vor.u32 %v3181, %v3179
        %v3202 = vunpack.c.l.b16 %v3153
        %v3203 = vunpack.c.h.b16 %v3153
        %v3204 = vunpack.c.l.b16 %v3154
        %v3205 = vunpack.c.h.b16 %v3154
        %v3206 = vunpack.c.l.b16 %v3155
        %v3207 = vunpack.c.h.b16 %v3155
        %v3208 = vunpack.c.l.b16 %v3156
        %v3209 = vunpack.c.h.b16 %v3156
        %v3210 = vunpack.c.l.b16 %v3157
        %v3211 = vunpack.c.h.b16 %v3157
        %v3212 = vunpack.c.l.b16 %v3158
        %v3213 = vunpack.c.h.b16 %v3158
        %v3214 = vunpack.c.l.b16 %v3159
        %v3215 = vunpack.c.h.b16 %v3159
        %v3216 = vunpack.c.l.b16 %v3160
        %v3217 = vunpack.c.h.b16 %v3160
        %v3218 = vunpack.c.l.b16 %v3161
        %v3219 = vunpack.c.h.b16 %v3161
        %v3220 = vunpack.c.l.b16 %v3162
        %v3221 = vunpack.c.h.b16 %v3162
        %v3222 = vunpack.c.l.b16 %v3163
        %v3223 = vunpack.c.h.b16 %v3163
        %v3224 = vunpack.c.l.b16 %v3164
        %v3225 = vunpack.c.h.b16 %v3164
        %v3226 = vunpack.c.l.b16 %v3165
        %v3227 = vunpack.c.h.b16 %v3165
        %v3228 = vunpack.c.l.b16 %v3166
        %v3229 = vunpack.c.h.b16 %v3166
        %v3230 = vunpack.c.l.b16 %v3167
        %v3231 = vunpack.c.h.b16 %v3167
        %v3232 = vunpack.c.l.b16 %v3168
        %v3233 = vunpack.c.h.b16 %v3168
        %v3234 = vpack.c.b16 %v3204, %v3202
        %v3235 = vpack.c.b16 %v3205, %v3203
        %v3236 = vpack.c.b16 %v3208, %v3206
        %v3237 = vpack.c.b16 %v3209, %v3207
        %v3238 = vpack.c.b16 %v3212, %v3210
        %v3239 = vpack.c.b16 %v3213, %v3211
        %v3240 = vpack.c.b16 %v3216, %v3214
        %v3241 = vpack.c.b16 %v3217, %v3215
        %v3242 = vpack.c.b16 %v3220, %v3218
        %v3243 = vpack.c.b16 %v3221, %v3219
        %v3244 = vpack.c.b16 %v3224, %v3222
        %v3245 = vpack.c.b16 %v3225, %v3223
        %v3246 = vpack.c.b16 %v3228, %v3226
        %v3247 = vpack.c.b16 %v3229, %v3227
        %v3248 = vpack.c.b16 %v3232, %v3230
        %v3249 = vpack.c.b16 %v3233, %v3231
        %3266 = vmatprep.subr.bf16.mxu0 %v3249
        %3267 = vmatpush1.bf16.msra.mxu0 %v3248
        %3268 = vmatprep.subr.bf16.mxu0 %v3247
        %3269 = vmatpush1.bf16.msra.mxu0 %v3246
        %3270 = vmatprep.subr.bf16.mxu0 %v3245
        %3271 = vmatpush1.bf16.msra.mxu0 %v3244
        %3272 = vmatprep.subr.bf16.mxu0 %v3243
        %3273 = vmatpush1.bf16.msra.mxu0 %v3242
        %3274 = vmatprep.subr.bf16.mxu0 %v3241
        %3275 = vmatpush1.bf16.msra.mxu0 %v3240
        %3276 = vmatprep.subr.bf16.mxu0 %v3239
        %3277 = vmatpush1.bf16.msra.mxu0 %v3238
        %3278 = vmatprep.subr.bf16.mxu0 %v3237
        %3279 = vmatpush1.bf16.msra.mxu0 %v3236
        %3280 = vmatprep.subr.bf16.mxu0 %v3235
        %3281 = vmatpush1.bf16.msra.mxu0 %v3234
        %3282 = vmatprep.subr.bf16.mxu0 0
        %3283 = vmatpush2.bf16.msra.mxu0 0
        %3284 = vmatprep.subr.bf16.mxu0 0
        %3285 = vmatpush2.bf16.msra.mxu0 0
        %3286 = vmatprep.subr.bf16.mxu0 0
        %3287 = vmatpush2.bf16.msra.mxu0 0
        %3288 = vmatprep.subr.bf16.mxu0 0
        %3289 = vmatpush2.bf16.msra.mxu0 0
        %3290 = vmatprep.subr.bf16.mxu0 0
        %3291 = vmatpush2.bf16.msra.mxu0 0
        %3292 = vmatprep.subr.bf16.mxu0 0
        %3293 = vmatpush2.bf16.msra.mxu0 0
        %3294 = vmatprep.subr.bf16.mxu0 0
        %3295 = vmatpush2.bf16.msra.mxu0 0
        %3296 = vmatprep.subr.bf16.mxu0 0
        %3297 = vmatpush2.bf16.msra.mxu0 0
        %3298 = vmatprep.mubr.bf16.mxu0 0
        %3299 = vmatmul.mubr.bf16.gmra.mxu0 %v3180
        %v3300 = vpop.f32.mrf.mxu0
        %v3301 = vadd.f32 0.0, %v3300
        %v3302 = vpop.f32.mrf.mxu0
        %v3303 = vadd.f32 0.0, %v3302
        %v3304 = vpop.f32.mrf.mxu0
        %v3305 = vadd.f32 0.0, %v3304
        %v3306 = vpop.f32.mrf.mxu0
        %v3307 = vadd.f32 0.0, %v3306
        %3308 = vmatprep.mubr.bf16.mxu0 0
        %3309 = vmatmul.mubr.bf16.gmra.mxu0 %v3183
        %v3310 = vpop.f32.mrf.mxu0
        %v3311 = vadd.f32 0.0, %v3310
        %v3312 = vpop.f32.mrf.mxu0
        %v3313 = vadd.f32 0.0, %v3312
        %v3314 = vpop.f32.mrf.mxu0
        %v3315 = vpop.f32.mrf.mxu0
        %3316 = vdwg.mxu0
        %v3333 = vunpack.c.l.b16 %v3136
        %v3334 = vunpack.c.h.b16 %v3136
        %v3335 = vunpack.c.l.b16 %v3137
        %v3336 = vunpack.c.h.b16 %v3137
        %v3337 = vunpack.c.l.b16 %v3138
        %v3338 = vunpack.c.h.b16 %v3138
        %v3339 = vunpack.c.l.b16 %v3139
        %v3340 = vunpack.c.h.b16 %v3139
        %v3341 = vunpack.c.l.b16 %v3140
        %v3342 = vunpack.c.h.b16 %v3140
        %v3343 = vunpack.c.l.b16 %v3141
        %v3344 = vunpack.c.h.b16 %v3141
        %v3345 = vunpack.c.l.b16 %v3142
        %v3346 = vunpack.c.h.b16 %v3142
        %v3347 = vunpack.c.l.b16 %v3143
        %v3348 = vunpack.c.h.b16 %v3143
        %v3349 = vunpack.c.l.b16 %v3144
        %v3350 = vunpack.c.h.b16 %v3144
        %v3351 = vunpack.c.l.b16 %v3145
        %v3352 = vunpack.c.h.b16 %v3145
        %v3353 = vunpack.c.l.b16 %v3146
        %v3354 = vunpack.c.h.b16 %v3146
        %v3355 = vunpack.c.l.b16 %v3147
        %v3356 = vunpack.c.h.b16 %v3147
        %v3357 = vunpack.c.l.b16 %v3148
        %v3358 = vunpack.c.h.b16 %v3148
        %v3359 = vunpack.c.l.b16 %v3149
        %v3360 = vunpack.c.h.b16 %v3149
        %v3361 = vunpack.c.l.b16 %v3150
        %v3362 = vunpack.c.h.b16 %v3150
        %v3363 = vunpack.c.l.b16 %v3151
        %v3364 = vunpack.c.h.b16 %v3151
        %v3365 = vpack.c.b16 %v3335, %v3333
        %v3366 = vpack.c.b16 %v3336, %v3334
        %v3367 = vpack.c.b16 %v3339, %v3337
        %v3368 = vpack.c.b16 %v3340, %v3338
        %v3369 = vpack.c.b16 %v3343, %v3341
        %v3370 = vpack.c.b16 %v3344, %v3342
        %v3371 = vpack.c.b16 %v3347, %v3345
        %v3372 = vpack.c.b16 %v3348, %v3346
        %v3373 = vpack.c.b16 %v3351, %v3349
        %v3374 = vpack.c.b16 %v3352, %v3350
        %v3375 = vpack.c.b16 %v3355, %v3353
        %v3376 = vpack.c.b16 %v3356, %v3354
        %v3377 = vpack.c.b16 %v3359, %v3357
        %v3378 = vpack.c.b16 %v3360, %v3358
        %v3379 = vpack.c.b16 %v3363, %v3361
        %v3380 = vpack.c.b16 %v3364, %v3362
        %3397 = vmatprep.subr.bf16.mxu0 %v3380
        %3398 = vmatpush1.bf16.msra.mxu0 %v3379
        %3399 = vmatprep.subr.bf16.mxu0 %v3378
        %3400 = vmatpush1.bf16.msra.mxu0 %v3377
        %3401 = vmatprep.subr.bf16.mxu0 %v3376
        %3402 = vmatpush1.bf16.msra.mxu0 %v3375
        %3403 = vmatprep.subr.bf16.mxu0 %v3374
        %3404 = vmatpush1.bf16.msra.mxu0 %v3373
        %3405 = vmatprep.subr.bf16.mxu0 %v3372
        %3406 = vmatpush1.bf16.msra.mxu0 %v3371
        %3407 = vmatprep.subr.bf16.mxu0 %v3370
        %3408 = vmatpush1.bf16.msra.mxu0 %v3369
        %3409 = vmatprep.subr.bf16.mxu0 %v3368
        %3410 = vmatpush1.bf16.msra.mxu0 %v3367
        %3411 = vmatprep.subr.bf16.mxu0 %v3366
        %3412 = vmatpush1.bf16.msra.mxu0 %v3365
        %3413 = vmatprep.subr.bf16.mxu0 0
        %3414 = vmatpush2.bf16.msra.mxu0 0
        %3415 = vmatprep.subr.bf16.mxu0 0
        %3416 = vmatpush2.bf16.msra.mxu0 0
        %3417 = vmatprep.subr.bf16.mxu0 0
        %3418 = vmatpush2.bf16.msra.mxu0 0
        %3419 = vmatprep.subr.bf16.mxu0 0
        %3420 = vmatpush2.bf16.msra.mxu0 0
        %3421 = vmatprep.subr.bf16.mxu0 0
        %3422 = vmatpush2.bf16.msra.mxu0 0
        %3423 = vmatprep.subr.bf16.mxu0 0
        %3424 = vmatpush2.bf16.msra.mxu0 0
        %3425 = vmatprep.subr.bf16.mxu0 0
        %3426 = vmatpush2.bf16.msra.mxu0 0
        %3427 = vmatprep.subr.bf16.mxu0 0
        %3428 = vmatpush2.bf16.msra.mxu0 0
        %3429 = vmatprep.mubr.bf16.mxu0 0
        %3430 = vmatmul.mubr.bf16.gmra.mxu0 %v3134
        %v3431 = vpop.f32.mrf.mxu0
        %v3432 = vadd.f32 %v3301, %v3431
        %v3433 = vpop.f32.mrf.mxu0
        %v3434 = vadd.f32 %v3303, %v3433
        %v3435 = vpop.f32.mrf.mxu0
        %v3436 = vadd.f32 %v3305, %v3435
        %v3437 = vpop.f32.mrf.mxu0
        %v3438 = vadd.f32 %v3307, %v3437
        %3439 = vmatprep.mubr.bf16.mxu0 0
        %3440 = vmatmul.mubr.bf16.gmra.mxu0 %v3135
        %v3441 = vpop.f32.mrf.mxu0
        %v3442 = vadd.f32 %v3311, %v3441
        %v3443 = vpop.f32.mrf.mxu0
        %v3444 = vadd.f32 %v3313, %v3443
        %v3445 = vpop.f32.mrf.mxu0
        %v3446 = vpop.f32.mrf.mxu0
        %3447 = vdwg.mxu0
        %s3448 = scalar_lea.vmem [#allocation9], 256
        %v3449 = vld [vmem:[%s3448] sm:$0xff]
        %v3450 = vld [vmem:[%s3448 + $0x8] sm:$0xff]
        %v3451 = vld [vmem:[%s3448 + $0x10] sm:$0xff]
        %v3452 = vld [vmem:[%s3448 + $0x18] sm:$0xff]
        %v3453 = vld [vmem:[%s3448 + $0x20] sm:$0xff]
        %v3454 = vld [vmem:[%s3448 + $0x28] sm:$0xff]
        %v3455 = vld [vmem:[%s3448 + $0x30] sm:$0xff]
        %v3456 = vld [vmem:[%s3448 + $0x38] sm:$0xff]
        %v3457 = vld [vmem:[%s3448 + $0x40] sm:$0xff]
        %v3458 = vld [vmem:[%s3448 + $0x48] sm:$0xff]
        %v3459 = vld [vmem:[%s3448 + $0x50] sm:$0xff]
        %v3460 = vld [vmem:[%s3448 + $0x58] sm:$0xff]
        %v3461 = vld [vmem:[%s3448 + $0x60] sm:$0xff]
        %v3462 = vld [vmem:[%s3448 + $0x68] sm:$0xff]
        %v3463 = vld [vmem:[%s3448 + $0x70] sm:$0xff]
        %v3464 = vld [vmem:[%s3448 + $0x78] sm:$0xff]
        %v3467 = vrot.slane %v3134, 1
        %v3468 = vrot.slane %v3135, 1
        %v3469 = vsel %vm1137, %v3467, %v3468
        %v3488 = vunpack.c.l.b16 %v3449
        %v3489 = vunpack.c.h.b16 %v3449
        %v3490 = vunpack.c.l.b16 %v3450
        %v3491 = vunpack.c.h.b16 %v3450
        %v3492 = vunpack.c.l.b16 %v3451
        %v3493 = vunpack.c.h.b16 %v3451
        %v3494 = vunpack.c.l.b16 %v3452
        %v3495 = vunpack.c.h.b16 %v3452
        %v3496 = vunpack.c.l.b16 %v3453
        %v3497 = vunpack.c.h.b16 %v3453
        %v3498 = vunpack.c.l.b16 %v3454
        %v3499 = vunpack.c.h.b16 %v3454
        %v3500 = vunpack.c.l.b16 %v3455
        %v3501 = vunpack.c.h.b16 %v3455
        %v3502 = vunpack.c.l.b16 %v3456
        %v3503 = vunpack.c.h.b16 %v3456
        %v3504 = vunpack.c.l.b16 %v3457
        %v3505 = vunpack.c.h.b16 %v3457
        %v3506 = vunpack.c.l.b16 %v3458
        %v3507 = vunpack.c.h.b16 %v3458
        %v3508 = vunpack.c.l.b16 %v3459
        %v3509 = vunpack.c.h.b16 %v3459
        %v3510 = vunpack.c.l.b16 %v3460
        %v3511 = vunpack.c.h.b16 %v3460
        %v3512 = vunpack.c.l.b16 %v3461
        %v3513 = vunpack.c.h.b16 %v3461
        %v3514 = vunpack.c.l.b16 %v3462
        %v3515 = vunpack.c.h.b16 %v3462
        %v3516 = vunpack.c.l.b16 %v3463
        %v3517 = vunpack.c.h.b16 %v3463
        %v3518 = vunpack.c.l.b16 %v3464
        %v3519 = vunpack.c.h.b16 %v3464
        %v3520 = vpack.c.b16 %v3490, %v3488
        %v3521 = vpack.c.b16 %v3491, %v3489
        %v3522 = vpack.c.b16 %v3494, %v3492
        %v3523 = vpack.c.b16 %v3495, %v3493
        %v3524 = vpack.c.b16 %v3498, %v3496
        %v3525 = vpack.c.b16 %v3499, %v3497
        %v3526 = vpack.c.b16 %v3502, %v3500
        %v3527 = vpack.c.b16 %v3503, %v3501
        %v3528 = vpack.c.b16 %v3506, %v3504
        %v3529 = vpack.c.b16 %v3507, %v3505
        %v3530 = vpack.c.b16 %v3510, %v3508
        %v3531 = vpack.c.b16 %v3511, %v3509
        %v3532 = vpack.c.b16 %v3514, %v3512
        %v3533 = vpack.c.b16 %v3515, %v3513
        %v3534 = vpack.c.b16 %v3518, %v3516
        %v3535 = vpack.c.b16 %v3519, %v3517
        %3552 = vmatprep.subr.bf16.mxu0 %v3535
        %3553 = vmatpush1.bf16.msra.mxu0 %v3534
        %3554 = vmatprep.subr.bf16.mxu0 %v3533
        %3555 = vmatpush1.bf16.msra.mxu0 %v3532
        %3556 = vmatprep.subr.bf16.mxu0 %v3531
        %3557 = vmatpush1.bf16.msra.mxu0 %v3530
        %3558 = vmatprep.subr.bf16.mxu0 %v3529
        %3559 = vmatpush1.bf16.msra.mxu0 %v3528
        %3560 = vmatprep.subr.bf16.mxu0 %v3527
        %3561 = vmatpush1.bf16.msra.mxu0 %v3526
        %3562 = vmatprep.subr.bf16.mxu0 %v3525
        %3563 = vmatpush1.bf16.msra.mxu0 %v3524
        %3564 = vmatprep.subr.bf16.mxu0 %v3523
        %3565 = vmatpush1.bf16.msra.mxu0 %v3522
        %3566 = vmatprep.subr.bf16.mxu0 %v3521
        %3567 = vmatpush1.bf16.msra.mxu0 %v3520
        %3568 = vmatprep.subr.bf16.mxu0 0
        %3569 = vmatpush2.bf16.msra.mxu0 0
        %3570 = vmatprep.subr.bf16.mxu0 0
        %3571 = vmatpush2.bf16.msra.mxu0 0
        %3572 = vmatprep.subr.bf16.mxu0 0
        %3573 = vmatpush2.bf16.msra.mxu0 0
        %3574 = vmatprep.subr.bf16.mxu0 0
        %3575 = vmatpush2.bf16.msra.mxu0 0
        %3576 = vmatprep.subr.bf16.mxu0 0
        %3577 = vmatpush2.bf16.msra.mxu0 0
        %3578 = vmatprep.subr.bf16.mxu0 0
        %3579 = vmatpush2.bf16.msra.mxu0 0
        %3580 = vmatprep.subr.bf16.mxu0 0
        %3581 = vmatpush2.bf16.msra.mxu0 0
        %3582 = vmatprep.subr.bf16.mxu0 0
        %3583 = vmatpush2.bf16.msra.mxu0 0
        %3584 = vmatprep.mubr.bf16.mxu0 0
        %3585 = vmatmul.mubr.bf16.gmra.mxu0 %v3469
        %v3586 = vpop.f32.mrf.mxu0
        %v3587 = vadd.f32 0.0, %v3586
        %v3588 = vpop.f32.mrf.mxu0
        %v3589 = vadd.f32 0.0, %v3588
        %v3590 = vpop.f32.mrf.mxu0
        %v3591 = vadd.f32 0.0, %v3590
        %v3592 = vpop.f32.mrf.mxu0
        %v3593 = vadd.f32 0.0, %v3592
        %3594 = vmatprep.mubr.bf16.mxu0 0
        %3595 = vmatmul.mubr.bf16.gmra.mxu0 %v3468
        %v3596 = vpop.f32.mrf.mxu0
        %v3597 = vadd.f32 0.0, %v3596
        %v3598 = vpop.f32.mrf.mxu0
        %v3599 = vadd.f32 0.0, %v3598
        %v3600 = vpop.f32.mrf.mxu0
        %v3601 = vpop.f32.mrf.mxu0
        %3602 = vdwg.mxu0
        %v3603 = vadd.f32 %v3432, %v3587
        %v3604 = vadd.f32 %v3434, %v3589
        %v3605 = vadd.f32 %v3436, %v3591
        %v3606 = vadd.f32 %v3438, %v3593
        %v3607 = vadd.f32 %v3442, %v3597
        %v3608 = vadd.f32 %v3444, %v3599
        %v3609 = vld [vmem:[%s13] sm:$0x3]
        %v3611 = vlaneseq
        %v3612 = vshrl.u32 %v3611, 7
        %v3613 = vsub.s32 0, %v3612
        %v3614 = vrot.slane %v3609, %v3613
        %v3615 = vlaneseq
        %v3616 = vshrl.u32 %v3615, 7
        %v3617 = vsub.s32 1, %v3616
        %v3618 = vrot.slane %v3609, %v3617
        %v3621 = vadd.f32 %v3603, %v3614
        %v3622 = vadd.f32 %v3604, %v3618
        %v3623 = vadd.f32 %v3605, %v3614
        %v3624 = vadd.f32 %v3606, %v3618
        %v3625 = vadd.f32 %v3607, %v3614
        %v3626 = vadd.f32 %v3608, %v3618
        %vm3627 = vcmp.ge.f32.partialorder %v3621, 0.0
        %vm3628 = vcmp.ge.f32.partialorder %v3622, 0.0
        %vm3629 = vcmp.ge.f32.partialorder %v3623, 0.0
        %vm3630 = vcmp.ge.f32.partialorder %v3624, 0.0
        %vm3631 = vcmp.ge.f32.partialorder %v3625, 0.0
        %vm3632 = vcmp.ge.f32.partialorder %v3626, 0.0
        %v3633 = vmul.f32 %v3621, 0.2
        %v3634 = vmul.f32 %v3622, 0.2
        %v3635 = vmul.f32 %v3623, 0.2
        %v3636 = vmul.f32 %v3624, 0.2
        %v3637 = vmul.f32 %v3625, 0.2
        %v3638 = vmul.f32 %v3626, 0.2
        %v3639 = vsel %vm3627, %v3621, %v3633
        %v3640 = vsel %vm3628, %v3622, %v3634
        %v3641 = vsel %vm3629, %v3623, %v3635
        %v3642 = vsel %vm3630, %v3624, %v3636
        %v3643 = vsel %vm3631, %v3625, %v3637
        %v3644 = vsel %vm3632, %v3626, %v3638
        %v3645 = vmul.f32 %v3639, %v1264
        %v3646 = vmul.f32 %v3640, %v1264
        %v3647 = vmul.f32 %v3641, %v1269
        %v3648 = vmul.f32 %v3642, %v1269
        %v3649 = vmul.f32 %v3643, %v1274
        %v3650 = vmul.f32 %v3644, %v1274
        %v3651 = vld [vmem:[%s830] sm:$0xff]
        %v3652 = vld [vmem:[%s830 + $0x8] sm:$0xff]
        %v3653 = vld [vmem:[%s830 + $0x10] sm:$0xff]
        %v3654 = vld [vmem:[%s830 + $0x18] sm:$0xff]
        %v3655 = vld [vmem:[%s830 + $0x20] sm:$0x3]
        %v3656 = vld [vmem:[%s830 + $0x28] sm:$0x3]
        %v3657 = vpack.c.bf16 %v3647, %v3645
        %v3658 = vpack.c.bf16 %v3648, %v3646
        %v3659 = vpack.c.bf16 %v3649, %v3649
        %v3660 = vpack.c.bf16 %v3650, %v3650
        %v3662 = vshrl.u32 %v3657, 16
        %v3664 = vrot.slane %v3662, 7
        %v3665 = vshll.u32 %v3657, 16
        %v3667 = vor.u32 %v3664, %v3665
        %v3669 = vshrl.u32 %v3658, 16
        %v3671 = vrot.slane %v3669, 7
        %v3672 = vshll.u32 %v3658, 16
        %v3674 = vor.u32 %v3671, %v3672
        %v3676 = vshrl.u32 %v3659, 16
        %v3678 = vrot.slane %v3676, 7
        %v3679 = vshll.u32 %v3659, 16
        %v3681 = vor.u32 %v3678, %v3679
        %v3682 = vsel %vm850, %v3664, %v3681
        %v3684 = vshrl.u32 %v3660, 16
        %v3686 = vrot.slane %v3684, 7
        %v3687 = vshll.u32 %v3660, 16
        %v3689 = vor.u32 %v3686, %v3687
        %v3690 = vsel %vm850, %v3671, %v3689
        %v3695 = vsel %vm869, 0, %v3667
        %v3696 = vsel %vm869, 0, %v3674
        %v3697 = vsel %vm873, %v3682, 0
        %v3698 = vsel %vm873, %v3690, 0
        %v3699 = vpack.c.bf16 %v3653, %v3651
        %v3700 = vpack.c.bf16 %v3654, %v3652
        %v3701 = vpack.c.bf16 %v3655, %v3655
        %v3702 = vpack.c.bf16 %v3656, %v3656
        %v3704 = vshrl.u32 %v3699, 16
        %v3706 = vrot.slane %v3704, 7
        %v3707 = vshll.u32 %v3699, 16
        %v3709 = vor.u32 %v3706, %v3707
        %v3711 = vshrl.u32 %v3700, 16
        %v3713 = vrot.slane %v3711, 7
        %v3714 = vshll.u32 %v3700, 16
        %v3716 = vor.u32 %v3713, %v3714
        %v3718 = vshrl.u32 %v3701, 16
        %v3720 = vrot.slane %v3718, 7
        %v3721 = vshll.u32 %v3701, 16
        %v3723 = vor.u32 %v3720, %v3721
        %v3724 = vsel %vm850, %v3706, %v3723
        %v3726 = vshrl.u32 %v3702, 16
        %v3728 = vrot.slane %v3726, 7
        %v3729 = vshll.u32 %v3702, 16
        %v3731 = vor.u32 %v3728, %v3729
        %v3732 = vsel %vm850, %v3713, %v3731
        %v3737 = vsel %vm869, 0, %v3709
        %v3738 = vsel %vm869, 0, %v3716
        %v3739 = vsel %vm873, %v3724, 0
        %v3740 = vsel %vm873, %v3732, 0
        %v3741 = vld [vmem:[#allocation10] sm:$0xff]
        %v3742 = vld [vmem:[#allocation10 + $0x8] sm:$0xff]
        %v3743 = vld [vmem:[#allocation10 + $0x10] sm:$0xff]
        %v3744 = vld [vmem:[#allocation10 + $0x18] sm:$0xff]
        %v3745 = vld [vmem:[#allocation10 + $0x20] sm:$0xff]
        %v3746 = vld [vmem:[#allocation10 + $0x28] sm:$0xff]
        %v3747 = vld [vmem:[#allocation10 + $0x30] sm:$0xff]
        %v3748 = vld [vmem:[#allocation10 + $0x38] sm:$0xff]
        %v3749 = vld [vmem:[#allocation10 + $0x40] sm:$0xff]
        %v3750 = vld [vmem:[#allocation10 + $0x48] sm:$0xff]
        %v3751 = vld [vmem:[#allocation10 + $0x50] sm:$0xff]
        %v3752 = vld [vmem:[#allocation10 + $0x58] sm:$0xff]
        %v3753 = vld [vmem:[#allocation10 + $0x60] sm:$0xff]
        %v3754 = vld [vmem:[#allocation10 + $0x68] sm:$0xff]
        %v3755 = vld [vmem:[#allocation10 + $0x70] sm:$0xff]
        %v3756 = vld [vmem:[#allocation10 + $0x78] sm:$0xff]
        %v3757 = vld [vmem:[#allocation10 + $0x80] sm:$0xff]
        %v3758 = vld [vmem:[#allocation10 + $0x88] sm:$0xff]
        %v3759 = vld [vmem:[#allocation10 + $0x90] sm:$0xff]
        %v3760 = vld [vmem:[#allocation10 + $0x98] sm:$0xff]
        %v3761 = vld [vmem:[#allocation10 + $0xa0] sm:$0xff]
        %v3762 = vld [vmem:[#allocation10 + $0xa8] sm:$0xff]
        %v3763 = vld [vmem:[#allocation10 + $0xb0] sm:$0xff]
        %v3764 = vld [vmem:[#allocation10 + $0xb8] sm:$0xff]
        %v3765 = vld [vmem:[#allocation10 + $0xc0] sm:$0xff]
        %v3766 = vld [vmem:[#allocation10 + $0xc8] sm:$0xff]
        %v3767 = vld [vmem:[#allocation10 + $0xd0] sm:$0xff]
        %v3768 = vld [vmem:[#allocation10 + $0xd8] sm:$0xff]
        %v3769 = vld [vmem:[#allocation10 + $0xe0] sm:$0xff]
        %v3770 = vld [vmem:[#allocation10 + $0xe8] sm:$0xff]
        %v3771 = vld [vmem:[#allocation10 + $0xf0] sm:$0xff]
        %v3772 = vld [vmem:[#allocation10 + $0xf8] sm:$0xff]
        %v3773 = vld [vmem:[#allocation10 + $0x100] sm:$0xff]
        %v3774 = vld [vmem:[#allocation10 + $0x108] sm:$0xff]
        %v3775 = vld [vmem:[#allocation10 + $0x110] sm:$0xff]
        %v3776 = vld [vmem:[#allocation10 + $0x118] sm:$0xff]
        %v3777 = vld [vmem:[#allocation10 + $0x120] sm:$0xff]
        %v3778 = vld [vmem:[#allocation10 + $0x128] sm:$0xff]
        %v3779 = vld [vmem:[#allocation10 + $0x130] sm:$0xff]
        %v3780 = vld [vmem:[#allocation10 + $0x138] sm:$0xff]
        %v3781 = vld [vmem:[#allocation10 + $0x140] sm:$0xff]
        %v3782 = vld [vmem:[#allocation10 + $0x148] sm:$0xff]
        %v3783 = vld [vmem:[#allocation10 + $0x150] sm:$0xff]
        %v3784 = vld [vmem:[#allocation10 + $0x158] sm:$0xff]
        %v3785 = vld [vmem:[#allocation10 + $0x160] sm:$0xff]
        %v3786 = vld [vmem:[#allocation10 + $0x168] sm:$0xff]
        %v3787 = vld [vmem:[#allocation10 + $0x170] sm:$0xff]
        %v3788 = vld [vmem:[#allocation10 + $0x178] sm:$0xff]
        %v3789 = vld [vmem:[#allocation10 + $0x180] sm:$0xff]
        %v3790 = vld [vmem:[#allocation10 + $0x188] sm:$0xff]
        %v3791 = vld [vmem:[#allocation10 + $0x190] sm:$0xff]
        %v3792 = vld [vmem:[#allocation10 + $0x198] sm:$0xff]
        %v3793 = vld [vmem:[#allocation10 + $0x1a0] sm:$0xff]
        %v3794 = vld [vmem:[#allocation10 + $0x1a8] sm:$0xff]
        %v3795 = vld [vmem:[#allocation10 + $0x1b0] sm:$0xff]
        %v3796 = vld [vmem:[#allocation10 + $0x1b8] sm:$0xff]
        %v3797 = vld [vmem:[#allocation10 + $0x1c0] sm:$0xff]
        %v3798 = vld [vmem:[#allocation10 + $0x1c8] sm:$0xff]
        %v3799 = vld [vmem:[#allocation10 + $0x1d0] sm:$0xff]
        %v3800 = vld [vmem:[#allocation10 + $0x1d8] sm:$0xff]
        %v3801 = vld [vmem:[#allocation10 + $0x1e0] sm:$0xff]
        %v3802 = vld [vmem:[#allocation10 + $0x1e8] sm:$0xff]
        %v3803 = vld [vmem:[#allocation10 + $0x1f0] sm:$0xff]
        %v3804 = vld [vmem:[#allocation10 + $0x1f8] sm:$0xff]
        %s3805 = scalar_lea.vmem [#allocation10], 512
        %v3806 = vld [vmem:[%s3805] sm:$0xff]
        %v3807 = vld [vmem:[%s3805 + $0x8] sm:$0xff]
        %v3808 = vld [vmem:[%s3805 + $0x10] sm:$0xff]
        %v3809 = vld [vmem:[%s3805 + $0x18] sm:$0xff]
        %v3810 = vld [vmem:[%s3805 + $0x20] sm:$0xff]
        %v3811 = vld [vmem:[%s3805 + $0x28] sm:$0xff]
        %v3812 = vld [vmem:[%s3805 + $0x30] sm:$0xff]
        %v3813 = vld [vmem:[%s3805 + $0x38] sm:$0xff]
        %v3814 = vld [vmem:[%s3805 + $0x40] sm:$0xff]
        %v3815 = vld [vmem:[%s3805 + $0x48] sm:$0xff]
        %v3816 = vld [vmem:[%s3805 + $0x50] sm:$0xff]
        %v3817 = vld [vmem:[%s3805 + $0x58] sm:$0xff]
        %v3818 = vld [vmem:[%s3805 + $0x60] sm:$0xff]
        %v3819 = vld [vmem:[%s3805 + $0x68] sm:$0xff]
        %v3820 = vld [vmem:[%s3805 + $0x70] sm:$0xff]
        %v3821 = vld [vmem:[%s3805 + $0x78] sm:$0xff]
        %v3822 = vld [vmem:[%s3805 + $0x80] sm:$0xff]
        %v3823 = vld [vmem:[%s3805 + $0x88] sm:$0xff]
        %v3824 = vld [vmem:[%s3805 + $0x90] sm:$0xff]
        %v3825 = vld [vmem:[%s3805 + $0x98] sm:$0xff]
        %v3826 = vld [vmem:[%s3805 + $0xa0] sm:$0xff]
        %v3827 = vld [vmem:[%s3805 + $0xa8] sm:$0xff]
        %v3828 = vld [vmem:[%s3805 + $0xb0] sm:$0xff]
        %v3829 = vld [vmem:[%s3805 + $0xb8] sm:$0xff]
        %v3830 = vld [vmem:[%s3805 + $0xc0] sm:$0xff]
        %v3831 = vld [vmem:[%s3805 + $0xc8] sm:$0xff]
        %v3832 = vld [vmem:[%s3805 + $0xd0] sm:$0xff]
        %v3833 = vld [vmem:[%s3805 + $0xd8] sm:$0xff]
        %v3834 = vld [vmem:[%s3805 + $0xe0] sm:$0xff]
        %v3835 = vld [vmem:[%s3805 + $0xe8] sm:$0xff]
        %v3836 = vld [vmem:[%s3805 + $0xf0] sm:$0xff]
        %v3837 = vld [vmem:[%s3805 + $0xf8] sm:$0xff]
        %v3838 = vld [vmem:[%s3805 + $0x100] sm:$0xff]
        %v3839 = vld [vmem:[%s3805 + $0x108] sm:$0xff]
        %v3840 = vld [vmem:[%s3805 + $0x110] sm:$0xff]
        %v3841 = vld [vmem:[%s3805 + $0x118] sm:$0xff]
        %v3842 = vld [vmem:[%s3805 + $0x120] sm:$0xff]
        %v3843 = vld [vmem:[%s3805 + $0x128] sm:$0xff]
        %v3844 = vld [vmem:[%s3805 + $0x130] sm:$0xff]
        %v3845 = vld [vmem:[%s3805 + $0x138] sm:$0xff]
        %v3846 = vld [vmem:[%s3805 + $0x140] sm:$0xff]
        %v3847 = vld [vmem:[%s3805 + $0x148] sm:$0xff]
        %v3848 = vld [vmem:[%s3805 + $0x150] sm:$0xff]
        %v3849 = vld [vmem:[%s3805 + $0x158] sm:$0xff]
        %v3850 = vld [vmem:[%s3805 + $0x160] sm:$0xff]
        %v3851 = vld [vmem:[%s3805 + $0x168] sm:$0xff]
        %v3852 = vld [vmem:[%s3805 + $0x170] sm:$0xff]
        %v3853 = vld [vmem:[%s3805 + $0x178] sm:$0xff]
        %v3854 = vld [vmem:[%s3805 + $0x180] sm:$0xff]
        %v3855 = vld [vmem:[%s3805 + $0x188] sm:$0xff]
        %v3856 = vld [vmem:[%s3805 + $0x190] sm:$0xff]
        %v3857 = vld [vmem:[%s3805 + $0x198] sm:$0xff]
        %v3858 = vld [vmem:[%s3805 + $0x1a0] sm:$0xff]
        %v3859 = vld [vmem:[%s3805 + $0x1a8] sm:$0xff]
        %v3860 = vld [vmem:[%s3805 + $0x1b0] sm:$0xff]
        %v3861 = vld [vmem:[%s3805 + $0x1b8] sm:$0xff]
        %v3862 = vld [vmem:[%s3805 + $0x1c0] sm:$0xff]
        %v3863 = vld [vmem:[%s3805 + $0x1c8] sm:$0xff]
        %v3864 = vld [vmem:[%s3805 + $0x1d0] sm:$0xff]
        %v3865 = vld [vmem:[%s3805 + $0x1d8] sm:$0xff]
        %v3866 = vld [vmem:[%s3805 + $0x1e0] sm:$0xff]
        %v3867 = vld [vmem:[%s3805 + $0x1e8] sm:$0xff]
        %v3868 = vld [vmem:[%s3805 + $0x1f0] sm:$0xff]
        %v3869 = vld [vmem:[%s3805 + $0x1f8] sm:$0xff]
        %v3871 = vshrl.u32 %v3695, 16
        %v3873 = vshll.u32 %v3695, 16
        %v3875 = vrot.slane %v3873, 1
        %v3876 = vor.u32 %v3871, %v3875
        %v3878 = vshll.u32 %v3697, 16
        %v3880 = vrot.slane %v3878, 1
        %v3881 = vsel %vm908, %v3876, %v3880
        %v3883 = vshrl.u32 %v3696, 16
        %v3885 = vshll.u32 %v3696, 16
        %v3887 = vrot.slane %v3885, 1
        %v3888 = vor.u32 %v3883, %v3887
        %v3890 = vshll.u32 %v3698, 16
        %v3892 = vrot.slane %v3890, 1
        %v3893 = vsel %vm908, %v3888, %v3892
        %v3894 = vshrl.u32 %v3697, 16
        %v3896 = vor.u32 %v3894, %v3880
        %v3897 = vshrl.u32 %v3698, 16
        %v3899 = vor.u32 %v3897, %v3892
        %v3968 = vunpack.c.l.b16 %v3806
        %v3969 = vunpack.c.h.b16 %v3806
        %v3970 = vunpack.c.l.b16 %v3807
        %v3971 = vunpack.c.h.b16 %v3807
        %v3972 = vunpack.c.l.b16 %v3808
        %v3973 = vunpack.c.h.b16 %v3808
        %v3974 = vunpack.c.l.b16 %v3809
        %v3975 = vunpack.c.h.b16 %v3809
        %v3976 = vunpack.c.l.b16 %v3810
        %v3977 = vunpack.c.h.b16 %v3810
        %v3978 = vunpack.c.l.b16 %v3811
        %v3979 = vunpack.c.h.b16 %v3811
        %v3980 = vunpack.c.l.b16 %v3812
        %v3981 = vunpack.c.h.b16 %v3812
        %v3982 = vunpack.c.l.b16 %v3813
        %v3983 = vunpack.c.h.b16 %v3813
        %v3984 = vunpack.c.l.b16 %v3814
        %v3985 = vunpack.c.h.b16 %v3814
        %v3986 = vunpack.c.l.b16 %v3815
        %v3987 = vunpack.c.h.b16 %v3815
        %v3988 = vunpack.c.l.b16 %v3816
        %v3989 = vunpack.c.h.b16 %v3816
        %v3990 = vunpack.c.l.b16 %v3817
        %v3991 = vunpack.c.h.b16 %v3817
        %v3992 = vunpack.c.l.b16 %v3818
        %v3993 = vunpack.c.h.b16 %v3818
        %v3994 = vunpack.c.l.b16 %v3819
        %v3995 = vunpack.c.h.b16 %v3819
        %v3996 = vunpack.c.l.b16 %v3820
        %v3997 = vunpack.c.h.b16 %v3820
        %v3998 = vunpack.c.l.b16 %v3821
        %v3999 = vunpack.c.h.b16 %v3821
        %v4000 = vunpack.c.l.b16 %v3822
        %v4001 = vunpack.c.h.b16 %v3822
        %v4002 = vunpack.c.l.b16 %v3823
        %v4003 = vunpack.c.h.b16 %v3823
        %v4004 = vunpack.c.l.b16 %v3824
        %v4005 = vunpack.c.h.b16 %v3824
        %v4006 = vunpack.c.l.b16 %v3825
        %v4007 = vunpack.c.h.b16 %v3825
        %v4008 = vunpack.c.l.b16 %v3826
        %v4009 = vunpack.c.h.b16 %v3826
        %v4010 = vunpack.c.l.b16 %v3827
        %v4011 = vunpack.c.h.b16 %v3827
        %v4012 = vunpack.c.l.b16 %v3828
        %v4013 = vunpack.c.h.b16 %v3828
        %v4014 = vunpack.c.l.b16 %v3829
        %v4015 = vunpack.c.h.b16 %v3829
        %v4016 = vunpack.c.l.b16 %v3830
        %v4017 = vunpack.c.h.b16 %v3830
        %v4018 = vunpack.c.l.b16 %v3831
        %v4019 = vunpack.c.h.b16 %v3831
        %v4020 = vunpack.c.l.b16 %v3832
        %v4021 = vunpack.c.h.b16 %v3832
        %v4022 = vunpack.c.l.b16 %v3833
        %v4023 = vunpack.c.h.b16 %v3833
        %v4024 = vunpack.c.l.b16 %v3834
        %v4025 = vunpack.c.h.b16 %v3834
        %v4026 = vunpack.c.l.b16 %v3835
        %v4027 = vunpack.c.h.b16 %v3835
        %v4028 = vunpack.c.l.b16 %v3836
        %v4029 = vunpack.c.h.b16 %v3836
        %v4030 = vunpack.c.l.b16 %v3837
        %v4031 = vunpack.c.h.b16 %v3837
        %v4032 = vunpack.c.l.b16 %v3838
        %v4033 = vunpack.c.h.b16 %v3838
        %v4034 = vunpack.c.l.b16 %v3839
        %v4035 = vunpack.c.h.b16 %v3839
        %v4036 = vunpack.c.l.b16 %v3840
        %v4037 = vunpack.c.h.b16 %v3840
        %v4038 = vunpack.c.l.b16 %v3841
        %v4039 = vunpack.c.h.b16 %v3841
        %v4040 = vunpack.c.l.b16 %v3842
        %v4041 = vunpack.c.h.b16 %v3842
        %v4042 = vunpack.c.l.b16 %v3843
        %v4043 = vunpack.c.h.b16 %v3843
        %v4044 = vunpack.c.l.b16 %v3844
        %v4045 = vunpack.c.h.b16 %v3844
        %v4046 = vunpack.c.l.b16 %v3845
        %v4047 = vunpack.c.h.b16 %v3845
        %v4048 = vunpack.c.l.b16 %v3846
        %v4049 = vunpack.c.h.b16 %v3846
        %v4050 = vunpack.c.l.b16 %v3847
        %v4051 = vunpack.c.h.b16 %v3847
        %v4052 = vunpack.c.l.b16 %v3848
        %v4053 = vunpack.c.h.b16 %v3848
        %v4054 = vunpack.c.l.b16 %v3849
        %v4055 = vunpack.c.h.b16 %v3849
        %v4056 = vunpack.c.l.b16 %v3850
        %v4057 = vunpack.c.h.b16 %v3850
        %v4058 = vunpack.c.l.b16 %v3851
        %v4059 = vunpack.c.h.b16 %v3851
        %v4060 = vunpack.c.l.b16 %v3852
        %v4061 = vunpack.c.h.b16 %v3852
        %v4062 = vunpack.c.l.b16 %v3853
        %v4063 = vunpack.c.h.b16 %v3853
        %v4064 = vunpack.c.l.b16 %v3854
        %v4065 = vunpack.c.h.b16 %v3854
        %v4066 = vunpack.c.l.b16 %v3855
        %v4067 = vunpack.c.h.b16 %v3855
        %v4068 = vunpack.c.l.b16 %v3856
        %v4069 = vunpack.c.h.b16 %v3856
        %v4070 = vunpack.c.l.b16 %v3857
        %v4071 = vunpack.c.h.b16 %v3857
        %v4072 = vunpack.c.l.b16 %v3858
        %v4073 = vunpack.c.h.b16 %v3858
        %v4074 = vunpack.c.l.b16 %v3859
        %v4075 = vunpack.c.h.b16 %v3859
        %v4076 = vunpack.c.l.b16 %v3860
        %v4077 = vunpack.c.h.b16 %v3860
        %v4078 = vunpack.c.l.b16 %v3861
        %v4079 = vunpack.c.h.b16 %v3861
        %v4080 = vunpack.c.l.b16 %v3862
        %v4081 = vunpack.c.h.b16 %v3862
        %v4082 = vunpack.c.l.b16 %v3863
        %v4083 = vunpack.c.h.b16 %v3863
        %v4084 = vunpack.c.l.b16 %v3864
        %v4085 = vunpack.c.h.b16 %v3864
        %v4086 = vunpack.c.l.b16 %v3865
        %v4087 = vunpack.c.h.b16 %v3865
        %v4088 = vunpack.c.l.b16 %v3866
        %v4089 = vunpack.c.h.b16 %v3866
        %v4090 = vunpack.c.l.b16 %v3867
        %v4091 = vunpack.c.h.b16 %v3867
        %v4092 = vunpack.c.l.b16 %v3868
        %v4093 = vunpack.c.h.b16 %v3868
        %v4094 = vunpack.c.l.b16 %v3869
        %v4095 = vunpack.c.h.b16 %v3869
        %v4096 = vpack.c.b16 %v3972, %v3968
        %v4097 = vpack.c.b16 %v3973, %v3969
        %v4098 = vpack.c.b16 %v3974, %v3970
        %v4099 = vpack.c.b16 %v3975, %v3971
        %v4100 = vpack.c.b16 %v3980, %v3976
        %v4101 = vpack.c.b16 %v3981, %v3977
        %v4102 = vpack.c.b16 %v3982, %v3978
        %v4103 = vpack.c.b16 %v3983, %v3979
        %v4104 = vpack.c.b16 %v3988, %v3984
        %v4105 = vpack.c.b16 %v3989, %v3985
        %v4106 = vpack.c.b16 %v3990, %v3986
        %v4107 = vpack.c.b16 %v3991, %v3987
        %v4108 = vpack.c.b16 %v3996, %v3992
        %v4109 = vpack.c.b16 %v3997, %v3993
        %v4110 = vpack.c.b16 %v3998, %v3994
        %v4111 = vpack.c.b16 %v3999, %v3995
        %v4112 = vpack.c.b16 %v4004, %v4000
        %v4113 = vpack.c.b16 %v4005, %v4001
        %v4114 = vpack.c.b16 %v4006, %v4002
        %v4115 = vpack.c.b16 %v4007, %v4003
        %v4116 = vpack.c.b16 %v4012, %v4008
        %v4117 = vpack.c.b16 %v4013, %v4009
        %v4118 = vpack.c.b16 %v4014, %v4010
        %v4119 = vpack.c.b16 %v4015, %v4011
        %v4120 = vpack.c.b16 %v4020, %v4016
        %v4121 = vpack.c.b16 %v4021, %v4017
        %v4122 = vpack.c.b16 %v4022, %v4018
        %v4123 = vpack.c.b16 %v4023, %v4019
        %v4124 = vpack.c.b16 %v4028, %v4024
        %v4125 = vpack.c.b16 %v4029, %v4025
        %v4126 = vpack.c.b16 %v4030, %v4026
        %v4127 = vpack.c.b16 %v4031, %v4027
        %v4128 = vpack.c.b16 %v4036, %v4032
        %v4129 = vpack.c.b16 %v4037, %v4033
        %v4130 = vpack.c.b16 %v4038, %v4034
        %v4131 = vpack.c.b16 %v4039, %v4035
        %v4132 = vpack.c.b16 %v4044, %v4040
        %v4133 = vpack.c.b16 %v4045, %v4041
        %v4134 = vpack.c.b16 %v4046, %v4042
        %v4135 = vpack.c.b16 %v4047, %v4043
        %v4136 = vpack.c.b16 %v4052, %v4048
        %v4137 = vpack.c.b16 %v4053, %v4049
        %v4138 = vpack.c.b16 %v4054, %v4050
        %v4139 = vpack.c.b16 %v4055, %v4051
        %v4140 = vpack.c.b16 %v4060, %v4056
        %v4141 = vpack.c.b16 %v4061, %v4057
        %v4142 = vpack.c.b16 %v4062, %v4058
        %v4143 = vpack.c.b16 %v4063, %v4059
        %v4144 = vpack.c.b16 %v4068, %v4064
        %v4145 = vpack.c.b16 %v4069, %v4065
        %v4146 = vpack.c.b16 %v4070, %v4066
        %v4147 = vpack.c.b16 %v4071, %v4067
        %v4148 = vpack.c.b16 %v4076, %v4072
        %v4149 = vpack.c.b16 %v4077, %v4073
        %v4150 = vpack.c.b16 %v4078, %v4074
        %v4151 = vpack.c.b16 %v4079, %v4075
        %v4152 = vpack.c.b16 %v4084, %v4080
        %v4153 = vpack.c.b16 %v4085, %v4081
        %v4154 = vpack.c.b16 %v4086, %v4082
        %v4155 = vpack.c.b16 %v4087, %v4083
        %v4156 = vpack.c.b16 %v4092, %v4088
        %v4157 = vpack.c.b16 %v4093, %v4089
        %v4158 = vpack.c.b16 %v4094, %v4090
        %v4159 = vpack.c.b16 %v4095, %v4091
        %4224 = vmatprep.subr.bf16.mxu0 %v4125
        %4225 = vmatpush1.bf16.msra.mxu0 %v4124
        %4226 = vmatprep.subr.bf16.mxu0 %v4121
        %4227 = vmatpush1.bf16.msra.mxu0 %v4120
        %4228 = vmatprep.subr.bf16.mxu0 %v4117
        %4229 = vmatpush1.bf16.msra.mxu0 %v4116
        %4230 = vmatprep.subr.bf16.mxu0 %v4113
        %4231 = vmatpush1.bf16.msra.mxu0 %v4112
        %4232 = vmatprep.subr.bf16.mxu0 %v4109
        %4233 = vmatpush1.bf16.msra.mxu0 %v4108
        %4234 = vmatprep.subr.bf16.mxu0 %v4105
        %4235 = vmatpush1.bf16.msra.mxu0 %v4104
        %4236 = vmatprep.subr.bf16.mxu0 %v4101
        %4237 = vmatpush1.bf16.msra.mxu0 %v4100
        %4238 = vmatprep.subr.bf16.mxu0 %v4097
        %4239 = vmatpush1.bf16.msra.mxu0 %v4096
        %4240 = vmatprep.subr.bf16.mxu0 %v4157
        %4241 = vmatpush2.bf16.msra.mxu0 %v4156
        %4242 = vmatprep.subr.bf16.mxu0 %v4153
        %4243 = vmatpush2.bf16.msra.mxu0 %v4152
        %4244 = vmatprep.subr.bf16.mxu0 %v4149
        %4245 = vmatpush2.bf16.msra.mxu0 %v4148
        %4246 = vmatprep.subr.bf16.mxu0 %v4145
        %4247 = vmatpush2.bf16.msra.mxu0 %v4144
        %4248 = vmatprep.subr.bf16.mxu0 %v4141
        %4249 = vmatpush2.bf16.msra.mxu0 %v4140
        %4250 = vmatprep.subr.bf16.mxu0 %v4137
        %4251 = vmatpush2.bf16.msra.mxu0 %v4136
        %4252 = vmatprep.subr.bf16.mxu0 %v4133
        %4253 = vmatpush2.bf16.msra.mxu0 %v4132
        %4254 = vmatprep.subr.bf16.mxu0 %v4129
        %4255 = vmatpush2.bf16.msra.mxu0 %v4128
        %4256 = vmatprep.mubr.bf16.mxu0 %v3893
        %4257 = vmatmul.mubr.bf16.gmra.mxu0 %v3881
        %v4258 = vpop.f32.mrf.mxu0
        %v4259 = vadd.f32 0.0, %v4258
        %v4260 = vpop.f32.mrf.mxu0
        %v4261 = vadd.f32 0.0, %v4260
        %v4262 = vpop.f32.mrf.mxu0
        %v4263 = vadd.f32 0.0, %v4262
        %v4264 = vpop.f32.mrf.mxu0
        %v4265 = vadd.f32 0.0, %v4264
        %4266 = vmatprep.mubr.bf16.mxu0 %v3899
        %4267 = vmatmul.mubr.bf16.gmra.mxu0 %v3896
        %v4268 = vpop.f32.mrf.mxu0
        %v4269 = vadd.f32 0.0, %v4268
        %v4270 = vpop.f32.mrf.mxu0
        %v4271 = vadd.f32 0.0, %v4270
        %v4272 = vpop.f32.mrf.mxu0
        %v4273 = vpop.f32.mrf.mxu0
        %4274 = vdwg.mxu0
        %4275 = vmatprep.subr.bf16.mxu0 %v4127
        %4276 = vmatpush1.bf16.msra.mxu0 %v4126
        %4277 = vmatprep.subr.bf16.mxu0 %v4123
        %4278 = vmatpush1.bf16.msra.mxu0 %v4122
        %4279 = vmatprep.subr.bf16.mxu0 %v4119
        %4280 = vmatpush1.bf16.msra.mxu0 %v4118
        %4281 = vmatprep.subr.bf16.mxu0 %v4115
        %4282 = vmatpush1.bf16.msra.mxu0 %v4114
        %4283 = vmatprep.subr.bf16.mxu0 %v4111
        %4284 = vmatpush1.bf16.msra.mxu0 %v4110
        %4285 = vmatprep.subr.bf16.mxu0 %v4107
        %4286 = vmatpush1.bf16.msra.mxu0 %v4106
        %4287 = vmatprep.subr.bf16.mxu0 %v4103
        %4288 = vmatpush1.bf16.msra.mxu0 %v4102
        %4289 = vmatprep.subr.bf16.mxu0 %v4099
        %4290 = vmatpush1.bf16.msra.mxu0 %v4098
        %4291 = vmatprep.subr.bf16.mxu0 %v4159
        %4292 = vmatpush2.bf16.msra.mxu0 %v4158
        %4293 = vmatprep.subr.bf16.mxu0 %v4155
        %4294 = vmatpush2.bf16.msra.mxu0 %v4154
        %4295 = vmatprep.subr.bf16.mxu0 %v4151
        %4296 = vmatpush2.bf16.msra.mxu0 %v4150
        %4297 = vmatprep.subr.bf16.mxu0 %v4147
        %4298 = vmatpush2.bf16.msra.mxu0 %v4146
        %4299 = vmatprep.subr.bf16.mxu0 %v4143
        %4300 = vmatpush2.bf16.msra.mxu0 %v4142
        %4301 = vmatprep.subr.bf16.mxu0 %v4139
        %4302 = vmatpush2.bf16.msra.mxu0 %v4138
        %4303 = vmatprep.subr.bf16.mxu0 %v4135
        %4304 = vmatpush2.bf16.msra.mxu0 %v4134
        %4305 = vmatprep.subr.bf16.mxu0 %v4131
        %4306 = vmatpush2.bf16.msra.mxu0 %v4130
        %4307 = vmatprep.mubr.bf16.mxu0 %v3893
        %4308 = vmatmul.mubr.bf16.gmra.mxu0 %v3881
        %v4309 = vpop.f32.mrf.mxu0
        %v4310 = vadd.f32 0.0, %v4309
        %v4311 = vpop.f32.mrf.mxu0
        %v4312 = vadd.f32 0.0, %v4311
        %v4313 = vpop.f32.mrf.mxu0
        %v4314 = vadd.f32 0.0, %v4313
        %v4315 = vpop.f32.mrf.mxu0
        %v4316 = vadd.f32 0.0, %v4315
        %4317 = vmatprep.mubr.bf16.mxu0 %v3899
        %4318 = vmatmul.mubr.bf16.gmra.mxu0 %v3896
        %v4319 = vpop.f32.mrf.mxu0
        %v4320 = vadd.f32 0.0, %v4319
        %v4321 = vpop.f32.mrf.mxu0
        %v4322 = vadd.f32 0.0, %v4321
        %v4323 = vpop.f32.mrf.mxu0
        %v4324 = vpop.f32.mrf.mxu0
        %4325 = vdwg.mxu0
        %v4390 = vunpack.c.l.b16 %v3741
        %v4391 = vunpack.c.h.b16 %v3741
        %v4392 = vunpack.c.l.b16 %v3742
        %v4393 = vunpack.c.h.b16 %v3742
        %v4394 = vunpack.c.l.b16 %v3743
        %v4395 = vunpack.c.h.b16 %v3743
        %v4396 = vunpack.c.l.b16 %v3744
        %v4397 = vunpack.c.h.b16 %v3744
        %v4398 = vunpack.c.l.b16 %v3745
        %v4399 = vunpack.c.h.b16 %v3745
        %v4400 = vunpack.c.l.b16 %v3746
        %v4401 = vunpack.c.h.b16 %v3746
        %v4402 = vunpack.c.l.b16 %v3747
        %v4403 = vunpack.c.h.b16 %v3747
        %v4404 = vunpack.c.l.b16 %v3748
        %v4405 = vunpack.c.h.b16 %v3748
        %v4406 = vunpack.c.l.b16 %v3749
        %v4407 = vunpack.c.h.b16 %v3749
        %v4408 = vunpack.c.l.b16 %v3750
        %v4409 = vunpack.c.h.b16 %v3750
        %v4410 = vunpack.c.l.b16 %v3751
        %v4411 = vunpack.c.h.b16 %v3751
        %v4412 = vunpack.c.l.b16 %v3752
        %v4413 = vunpack.c.h.b16 %v3752
        %v4414 = vunpack.c.l.b16 %v3753
        %v4415 = vunpack.c.h.b16 %v3753
        %v4416 = vunpack.c.l.b16 %v3754
        %v4417 = vunpack.c.h.b16 %v3754
        %v4418 = vunpack.c.l.b16 %v3755
        %v4419 = vunpack.c.h.b16 %v3755
        %v4420 = vunpack.c.l.b16 %v3756
        %v4421 = vunpack.c.h.b16 %v3756
        %v4422 = vunpack.c.l.b16 %v3757
        %v4423 = vunpack.c.h.b16 %v3757
        %v4424 = vunpack.c.l.b16 %v3758
        %v4425 = vunpack.c.h.b16 %v3758
        %v4426 = vunpack.c.l.b16 %v3759
        %v4427 = vunpack.c.h.b16 %v3759
        %v4428 = vunpack.c.l.b16 %v3760
        %v4429 = vunpack.c.h.b16 %v3760
        %v4430 = vunpack.c.l.b16 %v3761
        %v4431 = vunpack.c.h.b16 %v3761
        %v4432 = vunpack.c.l.b16 %v3762
        %v4433 = vunpack.c.h.b16 %v3762
        %v4434 = vunpack.c.l.b16 %v3763
        %v4435 = vunpack.c.h.b16 %v3763
        %v4436 = vunpack.c.l.b16 %v3764
        %v4437 = vunpack.c.h.b16 %v3764
        %v4438 = vunpack.c.l.b16 %v3765
        %v4439 = vunpack.c.h.b16 %v3765
        %v4440 = vunpack.c.l.b16 %v3766
        %v4441 = vunpack.c.h.b16 %v3766
        %v4442 = vunpack.c.l.b16 %v3767
        %v4443 = vunpack.c.h.b16 %v3767
        %v4444 = vunpack.c.l.b16 %v3768
        %v4445 = vunpack.c.h.b16 %v3768
        %v4446 = vunpack.c.l.b16 %v3769
        %v4447 = vunpack.c.h.b16 %v3769
        %v4448 = vunpack.c.l.b16 %v3770
        %v4449 = vunpack.c.h.b16 %v3770
        %v4450 = vunpack.c.l.b16 %v3771
        %v4451 = vunpack.c.h.b16 %v3771
        %v4452 = vunpack.c.l.b16 %v3772
        %v4453 = vunpack.c.h.b16 %v3772
        %v4454 = vunpack.c.l.b16 %v3773
        %v4455 = vunpack.c.h.b16 %v3773
        %v4456 = vunpack.c.l.b16 %v3774
        %v4457 = vunpack.c.h.b16 %v3774
        %v4458 = vunpack.c.l.b16 %v3775
        %v4459 = vunpack.c.h.b16 %v3775
        %v4460 = vunpack.c.l.b16 %v3776
        %v4461 = vunpack.c.h.b16 %v3776
        %v4462 = vunpack.c.l.b16 %v3777
        %v4463 = vunpack.c.h.b16 %v3777
        %v4464 = vunpack.c.l.b16 %v3778
        %v4465 = vunpack.c.h.b16 %v3778
        %v4466 = vunpack.c.l.b16 %v3779
        %v4467 = vunpack.c.h.b16 %v3779
        %v4468 = vunpack.c.l.b16 %v3780
        %v4469 = vunpack.c.h.b16 %v3780
        %v4470 = vunpack.c.l.b16 %v3781
        %v4471 = vunpack.c.h.b16 %v3781
        %v4472 = vunpack.c.l.b16 %v3782
        %v4473 = vunpack.c.h.b16 %v3782
        %v4474 = vunpack.c.l.b16 %v3783
        %v4475 = vunpack.c.h.b16 %v3783
        %v4476 = vunpack.c.l.b16 %v3784
        %v4477 = vunpack.c.h.b16 %v3784
        %v4478 = vunpack.c.l.b16 %v3785
        %v4479 = vunpack.c.h.b16 %v3785
        %v4480 = vunpack.c.l.b16 %v3786
        %v4481 = vunpack.c.h.b16 %v3786
        %v4482 = vunpack.c.l.b16 %v3787
        %v4483 = vunpack.c.h.b16 %v3787
        %v4484 = vunpack.c.l.b16 %v3788
        %v4485 = vunpack.c.h.b16 %v3788
        %v4486 = vunpack.c.l.b16 %v3789
        %v4487 = vunpack.c.h.b16 %v3789
        %v4488 = vunpack.c.l.b16 %v3790
        %v4489 = vunpack.c.h.b16 %v3790
        %v4490 = vunpack.c.l.b16 %v3791
        %v4491 = vunpack.c.h.b16 %v3791
        %v4492 = vunpack.c.l.b16 %v3792
        %v4493 = vunpack.c.h.b16 %v3792
        %v4494 = vunpack.c.l.b16 %v3793
        %v4495 = vunpack.c.h.b16 %v3793
        %v4496 = vunpack.c.l.b16 %v3794
        %v4497 = vunpack.c.h.b16 %v3794
        %v4498 = vunpack.c.l.b16 %v3795
        %v4499 = vunpack.c.h.b16 %v3795
        %v4500 = vunpack.c.l.b16 %v3796
        %v4501 = vunpack.c.h.b16 %v3796
        %v4502 = vunpack.c.l.b16 %v3797
        %v4503 = vunpack.c.h.b16 %v3797
        %v4504 = vunpack.c.l.b16 %v3798
        %v4505 = vunpack.c.h.b16 %v3798
        %v4506 = vunpack.c.l.b16 %v3799
        %v4507 = vunpack.c.h.b16 %v3799
        %v4508 = vunpack.c.l.b16 %v3800
        %v4509 = vunpack.c.h.b16 %v3800
        %v4510 = vunpack.c.l.b16 %v3801
        %v4511 = vunpack.c.h.b16 %v3801
        %v4512 = vunpack.c.l.b16 %v3802
        %v4513 = vunpack.c.h.b16 %v3802
        %v4514 = vunpack.c.l.b16 %v3803
        %v4515 = vunpack.c.h.b16 %v3803
        %v4516 = vunpack.c.l.b16 %v3804
        %v4517 = vunpack.c.h.b16 %v3804
        %v4518 = vpack.c.b16 %v4394, %v4390
        %v4519 = vpack.c.b16 %v4395, %v4391
        %v4520 = vpack.c.b16 %v4396, %v4392
        %v4521 = vpack.c.b16 %v4397, %v4393
        %v4522 = vpack.c.b16 %v4402, %v4398
        %v4523 = vpack.c.b16 %v4403, %v4399
        %v4524 = vpack.c.b16 %v4404, %v4400
        %v4525 = vpack.c.b16 %v4405, %v4401
        %v4526 = vpack.c.b16 %v4410, %v4406
        %v4527 = vpack.c.b16 %v4411, %v4407
        %v4528 = vpack.c.b16 %v4412, %v4408
        %v4529 = vpack.c.b16 %v4413, %v4409
        %v4530 = vpack.c.b16 %v4418, %v4414
        %v4531 = vpack.c.b16 %v4419, %v4415
        %v4532 = vpack.c.b16 %v4420, %v4416
        %v4533 = vpack.c.b16 %v4421, %v4417
        %v4534 = vpack.c.b16 %v4426, %v4422
        %v4535 = vpack.c.b16 %v4427, %v4423
        %v4536 = vpack.c.b16 %v4428, %v4424
        %v4537 = vpack.c.b16 %v4429, %v4425
        %v4538 = vpack.c.b16 %v4434, %v4430
        %v4539 = vpack.c.b16 %v4435, %v4431
        %v4540 = vpack.c.b16 %v4436, %v4432
        %v4541 = vpack.c.b16 %v4437, %v4433
        %v4542 = vpack.c.b16 %v4442, %v4438
        %v4543 = vpack.c.b16 %v4443, %v4439
        %v4544 = vpack.c.b16 %v4444, %v4440
        %v4545 = vpack.c.b16 %v4445, %v4441
        %v4546 = vpack.c.b16 %v4450, %v4446
        %v4547 = vpack.c.b16 %v4451, %v4447
        %v4548 = vpack.c.b16 %v4452, %v4448
        %v4549 = vpack.c.b16 %v4453, %v4449
        %v4550 = vpack.c.b16 %v4458, %v4454
        %v4551 = vpack.c.b16 %v4459, %v4455
        %v4552 = vpack.c.b16 %v4460, %v4456
        %v4553 = vpack.c.b16 %v4461, %v4457
        %v4554 = vpack.c.b16 %v4466, %v4462
        %v4555 = vpack.c.b16 %v4467, %v4463
        %v4556 = vpack.c.b16 %v4468, %v4464
        %v4557 = vpack.c.b16 %v4469, %v4465
        %v4558 = vpack.c.b16 %v4474, %v4470
        %v4559 = vpack.c.b16 %v4475, %v4471
        %v4560 = vpack.c.b16 %v4476, %v4472
        %v4561 = vpack.c.b16 %v4477, %v4473
        %v4562 = vpack.c.b16 %v4482, %v4478
        %v4563 = vpack.c.b16 %v4483, %v4479
        %v4564 = vpack.c.b16 %v4484, %v4480
        %v4565 = vpack.c.b16 %v4485, %v4481
        %v4566 = vpack.c.b16 %v4490, %v4486
        %v4567 = vpack.c.b16 %v4491, %v4487
        %v4568 = vpack.c.b16 %v4492, %v4488
        %v4569 = vpack.c.b16 %v4493, %v4489
        %v4570 = vpack.c.b16 %v4498, %v4494
        %v4571 = vpack.c.b16 %v4499, %v4495
        %v4572 = vpack.c.b16 %v4500, %v4496
        %v4573 = vpack.c.b16 %v4501, %v4497
        %v4574 = vpack.c.b16 %v4506, %v4502
        %v4575 = vpack.c.b16 %v4507, %v4503
        %v4576 = vpack.c.b16 %v4508, %v4504
        %v4577 = vpack.c.b16 %v4509, %v4505
        %v4578 = vpack.c.b16 %v4514, %v4510
        %v4579 = vpack.c.b16 %v4515, %v4511
        %v4580 = vpack.c.b16 %v4516, %v4512
        %v4581 = vpack.c.b16 %v4517, %v4513
        %4646 = vmatprep.subr.bf16.mxu0 %v4547
        %4647 = vmatpush1.bf16.msra.mxu0 %v4546
        %4648 = vmatprep.subr.bf16.mxu0 %v4543
        %4649 = vmatpush1.bf16.msra.mxu0 %v4542
        %4650 = vmatprep.subr.bf16.mxu0 %v4539
        %4651 = vmatpush1.bf16.msra.mxu0 %v4538
        %4652 = vmatprep.subr.bf16.mxu0 %v4535
        %4653 = vmatpush1.bf16.msra.mxu0 %v4534
        %4654 = vmatprep.subr.bf16.mxu0 %v4531
        %4655 = vmatpush1.bf16.msra.mxu0 %v4530
        %4656 = vmatprep.subr.bf16.mxu0 %v4527
        %4657 = vmatpush1.bf16.msra.mxu0 %v4526
        %4658 = vmatprep.subr.bf16.mxu0 %v4523
        %4659 = vmatpush1.bf16.msra.mxu0 %v4522
        %4660 = vmatprep.subr.bf16.mxu0 %v4519
        %4661 = vmatpush1.bf16.msra.mxu0 %v4518
        %4662 = vmatprep.subr.bf16.mxu0 %v4579
        %4663 = vmatpush2.bf16.msra.mxu0 %v4578
        %4664 = vmatprep.subr.bf16.mxu0 %v4575
        %4665 = vmatpush2.bf16.msra.mxu0 %v4574
        %4666 = vmatprep.subr.bf16.mxu0 %v4571
        %4667 = vmatpush2.bf16.msra.mxu0 %v4570
        %4668 = vmatprep.subr.bf16.mxu0 %v4567
        %4669 = vmatpush2.bf16.msra.mxu0 %v4566
        %4670 = vmatprep.subr.bf16.mxu0 %v4563
        %4671 = vmatpush2.bf16.msra.mxu0 %v4562
        %4672 = vmatprep.subr.bf16.mxu0 %v4559
        %4673 = vmatpush2.bf16.msra.mxu0 %v4558
        %4674 = vmatprep.subr.bf16.mxu0 %v4555
        %4675 = vmatpush2.bf16.msra.mxu0 %v4554
        %4676 = vmatprep.subr.bf16.mxu0 %v4551
        %4677 = vmatpush2.bf16.msra.mxu0 %v4550
        %4678 = vmatprep.mubr.bf16.mxu0 %v3696
        %4679 = vmatmul.mubr.bf16.gmra.mxu0 %v3695
        %v4680 = vpop.f32.mrf.mxu0
        %v4681 = vadd.f32 %v4259, %v4680
        %v4682 = vpop.f32.mrf.mxu0
        %v4683 = vadd.f32 %v4261, %v4682
        %v4684 = vpop.f32.mrf.mxu0
        %v4685 = vadd.f32 %v4263, %v4684
        %v4686 = vpop.f32.mrf.mxu0
        %v4687 = vadd.f32 %v4265, %v4686
        %4688 = vmatprep.mubr.bf16.mxu0 %v3698
        %4689 = vmatmul.mubr.bf16.gmra.mxu0 %v3697
        %v4690 = vpop.f32.mrf.mxu0
        %v4691 = vadd.f32 %v4269, %v4690
        %v4692 = vpop.f32.mrf.mxu0
        %v4693 = vadd.f32 %v4271, %v4692
        %v4694 = vpop.f32.mrf.mxu0
        %v4695 = vpop.f32.mrf.mxu0
        %4696 = vdwg.mxu0
        %4697 = vmatprep.subr.bf16.mxu0 %v4549
        %4698 = vmatpush1.bf16.msra.mxu0 %v4548
        %4699 = vmatprep.subr.bf16.mxu0 %v4545
        %4700 = vmatpush1.bf16.msra.mxu0 %v4544
        %4701 = vmatprep.subr.bf16.mxu0 %v4541
        %4702 = vmatpush1.bf16.msra.mxu0 %v4540
        %4703 = vmatprep.subr.bf16.mxu0 %v4537
        %4704 = vmatpush1.bf16.msra.mxu0 %v4536
        %4705 = vmatprep.subr.bf16.mxu0 %v4533
        %4706 = vmatpush1.bf16.msra.mxu0 %v4532
        %4707 = vmatprep.subr.bf16.mxu0 %v4529
        %4708 = vmatpush1.bf16.msra.mxu0 %v4528
        %4709 = vmatprep.subr.bf16.mxu0 %v4525
        %4710 = vmatpush1.bf16.msra.mxu0 %v4524
        %4711 = vmatprep.subr.bf16.mxu0 %v4521
        %4712 = vmatpush1.bf16.msra.mxu0 %v4520
        %4713 = vmatprep.subr.bf16.mxu0 %v4581
        %4714 = vmatpush2.bf16.msra.mxu0 %v4580
        %4715 = vmatprep.subr.bf16.mxu0 %v4577
        %4716 = vmatpush2.bf16.msra.mxu0 %v4576
        %4717 = vmatprep.subr.bf16.mxu0 %v4573
        %4718 = vmatpush2.bf16.msra.mxu0 %v4572
        %4719 = vmatprep.subr.bf16.mxu0 %v4569
        %4720 = vmatpush2.bf16.msra.mxu0 %v4568
        %4721 = vmatprep.subr.bf16.mxu0 %v4565
        %4722 = vmatpush2.bf16.msra.mxu0 %v4564
        %4723 = vmatprep.subr.bf16.mxu0 %v4561
        %4724 = vmatpush2.bf16.msra.mxu0 %v4560
        %4725 = vmatprep.subr.bf16.mxu0 %v4557
        %4726 = vmatpush2.bf16.msra.mxu0 %v4556
        %4727 = vmatprep.subr.bf16.mxu0 %v4553
        %4728 = vmatpush2.bf16.msra.mxu0 %v4552
        %4729 = vmatprep.mubr.bf16.mxu0 %v3696
        %4730 = vmatmul.mubr.bf16.gmra.mxu0 %v3695
        %v4731 = vpop.f32.mrf.mxu0
        %v4732 = vadd.f32 %v4310, %v4731
        %v4733 = vpop.f32.mrf.mxu0
        %v4734 = vadd.f32 %v4312, %v4733
        %v4735 = vpop.f32.mrf.mxu0
        %v4736 = vadd.f32 %v4314, %v4735
        %v4737 = vpop.f32.mrf.mxu0
        %v4738 = vadd.f32 %v4316, %v4737
        %4739 = vmatprep.mubr.bf16.mxu0 %v3698
        %4740 = vmatmul.mubr.bf16.gmra.mxu0 %v3697
        %v4741 = vpop.f32.mrf.mxu0
        %v4742 = vadd.f32 %v4320, %v4741
        %v4743 = vpop.f32.mrf.mxu0
        %v4744 = vadd.f32 %v4322, %v4743
        %v4745 = vpop.f32.mrf.mxu0
        %v4746 = vpop.f32.mrf.mxu0
        %4747 = vdwg.mxu0
        %s4748 = scalar_lea.vmem [#allocation10], 1024
        %v4749 = vld [vmem:[%s4748] sm:$0xff]
        %v4750 = vld [vmem:[%s4748 + $0x8] sm:$0xff]
        %v4751 = vld [vmem:[%s4748 + $0x10] sm:$0xff]
        %v4752 = vld [vmem:[%s4748 + $0x18] sm:$0xff]
        %v4753 = vld [vmem:[%s4748 + $0x20] sm:$0xff]
        %v4754 = vld [vmem:[%s4748 + $0x28] sm:$0xff]
        %v4755 = vld [vmem:[%s4748 + $0x30] sm:$0xff]
        %v4756 = vld [vmem:[%s4748 + $0x38] sm:$0xff]
        %v4757 = vld [vmem:[%s4748 + $0x40] sm:$0xff]
        %v4758 = vld [vmem:[%s4748 + $0x48] sm:$0xff]
        %v4759 = vld [vmem:[%s4748 + $0x50] sm:$0xff]
        %v4760 = vld [vmem:[%s4748 + $0x58] sm:$0xff]
        %v4761 = vld [vmem:[%s4748 + $0x60] sm:$0xff]
        %v4762 = vld [vmem:[%s4748 + $0x68] sm:$0xff]
        %v4763 = vld [vmem:[%s4748 + $0x70] sm:$0xff]
        %v4764 = vld [vmem:[%s4748 + $0x78] sm:$0xff]
        %v4765 = vld [vmem:[%s4748 + $0x80] sm:$0xff]
        %v4766 = vld [vmem:[%s4748 + $0x88] sm:$0xff]
        %v4767 = vld [vmem:[%s4748 + $0x90] sm:$0xff]
        %v4768 = vld [vmem:[%s4748 + $0x98] sm:$0xff]
        %v4769 = vld [vmem:[%s4748 + $0xa0] sm:$0xff]
        %v4770 = vld [vmem:[%s4748 + $0xa8] sm:$0xff]
        %v4771 = vld [vmem:[%s4748 + $0xb0] sm:$0xff]
        %v4772 = vld [vmem:[%s4748 + $0xb8] sm:$0xff]
        %v4773 = vld [vmem:[%s4748 + $0xc0] sm:$0xff]
        %v4774 = vld [vmem:[%s4748 + $0xc8] sm:$0xff]
        %v4775 = vld [vmem:[%s4748 + $0xd0] sm:$0xff]
        %v4776 = vld [vmem:[%s4748 + $0xd8] sm:$0xff]
        %v4777 = vld [vmem:[%s4748 + $0xe0] sm:$0xff]
        %v4778 = vld [vmem:[%s4748 + $0xe8] sm:$0xff]
        %v4779 = vld [vmem:[%s4748 + $0xf0] sm:$0xff]
        %v4780 = vld [vmem:[%s4748 + $0xf8] sm:$0xff]
        %v4781 = vld [vmem:[%s4748 + $0x100] sm:$0xff]
        %v4782 = vld [vmem:[%s4748 + $0x108] sm:$0xff]
        %v4783 = vld [vmem:[%s4748 + $0x110] sm:$0xff]
        %v4784 = vld [vmem:[%s4748 + $0x118] sm:$0xff]
        %v4785 = vld [vmem:[%s4748 + $0x120] sm:$0xff]
        %v4786 = vld [vmem:[%s4748 + $0x128] sm:$0xff]
        %v4787 = vld [vmem:[%s4748 + $0x130] sm:$0xff]
        %v4788 = vld [vmem:[%s4748 + $0x138] sm:$0xff]
        %v4789 = vld [vmem:[%s4748 + $0x140] sm:$0xff]
        %v4790 = vld [vmem:[%s4748 + $0x148] sm:$0xff]
        %v4791 = vld [vmem:[%s4748 + $0x150] sm:$0xff]
        %v4792 = vld [vmem:[%s4748 + $0x158] sm:$0xff]
        %v4793 = vld [vmem:[%s4748 + $0x160] sm:$0xff]
        %v4794 = vld [vmem:[%s4748 + $0x168] sm:$0xff]
        %v4795 = vld [vmem:[%s4748 + $0x170] sm:$0xff]
        %v4796 = vld [vmem:[%s4748 + $0x178] sm:$0xff]
        %v4797 = vld [vmem:[%s4748 + $0x180] sm:$0xff]
        %v4798 = vld [vmem:[%s4748 + $0x188] sm:$0xff]
        %v4799 = vld [vmem:[%s4748 + $0x190] sm:$0xff]
        %v4800 = vld [vmem:[%s4748 + $0x198] sm:$0xff]
        %v4801 = vld [vmem:[%s4748 + $0x1a0] sm:$0xff]
        %v4802 = vld [vmem:[%s4748 + $0x1a8] sm:$0xff]
        %v4803 = vld [vmem:[%s4748 + $0x1b0] sm:$0xff]
        %v4804 = vld [vmem:[%s4748 + $0x1b8] sm:$0xff]
        %v4805 = vld [vmem:[%s4748 + $0x1c0] sm:$0xff]
        %v4806 = vld [vmem:[%s4748 + $0x1c8] sm:$0xff]
        %v4807 = vld [vmem:[%s4748 + $0x1d0] sm:$0xff]
        %v4808 = vld [vmem:[%s4748 + $0x1d8] sm:$0xff]
        %v4809 = vld [vmem:[%s4748 + $0x1e0] sm:$0xff]
        %v4810 = vld [vmem:[%s4748 + $0x1e8] sm:$0xff]
        %v4811 = vld [vmem:[%s4748 + $0x1f0] sm:$0xff]
        %v4812 = vld [vmem:[%s4748 + $0x1f8] sm:$0xff]
        %v4817 = vrot.slane %v3695, 1
        %v4818 = vrot.slane %v3697, 1
        %v4819 = vsel %vm1137, %v4817, %v4818
        %v4820 = vrot.slane %v3696, 1
        %v4821 = vrot.slane %v3698, 1
        %v4822 = vsel %vm1137, %v4820, %v4821
        %v4891 = vunpack.c.l.b16 %v4749
        %v4892 = vunpack.c.h.b16 %v4749
        %v4893 = vunpack.c.l.b16 %v4750
        %v4894 = vunpack.c.h.b16 %v4750
        %v4895 = vunpack.c.l.b16 %v4751
        %v4896 = vunpack.c.h.b16 %v4751
        %v4897 = vunpack.c.l.b16 %v4752
        %v4898 = vunpack.c.h.b16 %v4752
        %v4899 = vunpack.c.l.b16 %v4753
        %v4900 = vunpack.c.h.b16 %v4753
        %v4901 = vunpack.c.l.b16 %v4754
        %v4902 = vunpack.c.h.b16 %v4754
        %v4903 = vunpack.c.l.b16 %v4755
        %v4904 = vunpack.c.h.b16 %v4755
        %v4905 = vunpack.c.l.b16 %v4756
        %v4906 = vunpack.c.h.b16 %v4756
        %v4907 = vunpack.c.l.b16 %v4757
        %v4908 = vunpack.c.h.b16 %v4757
        %v4909 = vunpack.c.l.b16 %v4758
        %v4910 = vunpack.c.h.b16 %v4758
        %v4911 = vunpack.c.l.b16 %v4759
        %v4912 = vunpack.c.h.b16 %v4759
        %v4913 = vunpack.c.l.b16 %v4760
        %v4914 = vunpack.c.h.b16 %v4760
        %v4915 = vunpack.c.l.b16 %v4761
        %v4916 = vunpack.c.h.b16 %v4761
        %v4917 = vunpack.c.l.b16 %v4762
        %v4918 = vunpack.c.h.b16 %v4762
        %v4919 = vunpack.c.l.b16 %v4763
        %v4920 = vunpack.c.h.b16 %v4763
        %v4921 = vunpack.c.l.b16 %v4764
        %v4922 = vunpack.c.h.b16 %v4764
        %v4923 = vunpack.c.l.b16 %v4765
        %v4924 = vunpack.c.h.b16 %v4765
        %v4925 = vunpack.c.l.b16 %v4766
        %v4926 = vunpack.c.h.b16 %v4766
        %v4927 = vunpack.c.l.b16 %v4767
        %v4928 = vunpack.c.h.b16 %v4767
        %v4929 = vunpack.c.l.b16 %v4768
        %v4930 = vunpack.c.h.b16 %v4768
        %v4931 = vunpack.c.l.b16 %v4769
        %v4932 = vunpack.c.h.b16 %v4769
        %v4933 = vunpack.c.l.b16 %v4770
        %v4934 = vunpack.c.h.b16 %v4770
        %v4935 = vunpack.c.l.b16 %v4771
        %v4936 = vunpack.c.h.b16 %v4771
        %v4937 = vunpack.c.l.b16 %v4772
        %v4938 = vunpack.c.h.b16 %v4772
        %v4939 = vunpack.c.l.b16 %v4773
        %v4940 = vunpack.c.h.b16 %v4773
        %v4941 = vunpack.c.l.b16 %v4774
        %v4942 = vunpack.c.h.b16 %v4774
        %v4943 = vunpack.c.l.b16 %v4775
        %v4944 = vunpack.c.h.b16 %v4775
        %v4945 = vunpack.c.l.b16 %v4776
        %v4946 = vunpack.c.h.b16 %v4776
        %v4947 = vunpack.c.l.b16 %v4777
        %v4948 = vunpack.c.h.b16 %v4777
        %v4949 = vunpack.c.l.b16 %v4778
        %v4950 = vunpack.c.h.b16 %v4778
        %v4951 = vunpack.c.l.b16 %v4779
        %v4952 = vunpack.c.h.b16 %v4779
        %v4953 = vunpack.c.l.b16 %v4780
        %v4954 = vunpack.c.h.b16 %v4780
        %v4955 = vunpack.c.l.b16 %v4781
        %v4956 = vunpack.c.h.b16 %v4781
        %v4957 = vunpack.c.l.b16 %v4782
        %v4958 = vunpack.c.h.b16 %v4782
        %v4959 = vunpack.c.l.b16 %v4783
        %v4960 = vunpack.c.h.b16 %v4783
        %v4961 = vunpack.c.l.b16 %v4784
        %v4962 = vunpack.c.h.b16 %v4784
        %v4963 = vunpack.c.l.b16 %v4785
        %v4964 = vunpack.c.h.b16 %v4785
        %v4965 = vunpack.c.l.b16 %v4786
        %v4966 = vunpack.c.h.b16 %v4786
        %v4967 = vunpack.c.l.b16 %v4787
        %v4968 = vunpack.c.h.b16 %v4787
        %v4969 = vunpack.c.l.b16 %v4788
        %v4970 = vunpack.c.h.b16 %v4788
        %v4971 = vunpack.c.l.b16 %v4789
        %v4972 = vunpack.c.h.b16 %v4789
        %v4973 = vunpack.c.l.b16 %v4790
        %v4974 = vunpack.c.h.b16 %v4790
        %v4975 = vunpack.c.l.b16 %v4791
        %v4976 = vunpack.c.h.b16 %v4791
        %v4977 = vunpack.c.l.b16 %v4792
        %v4978 = vunpack.c.h.b16 %v4792
        %v4979 = vunpack.c.l.b16 %v4793
        %v4980 = vunpack.c.h.b16 %v4793
        %v4981 = vunpack.c.l.b16 %v4794
        %v4982 = vunpack.c.h.b16 %v4794
        %v4983 = vunpack.c.l.b16 %v4795
        %v4984 = vunpack.c.h.b16 %v4795
        %v4985 = vunpack.c.l.b16 %v4796
        %v4986 = vunpack.c.h.b16 %v4796
        %v4987 = vunpack.c.l.b16 %v4797
        %v4988 = vunpack.c.h.b16 %v4797
        %v4989 = vunpack.c.l.b16 %v4798
        %v4990 = vunpack.c.h.b16 %v4798
        %v4991 = vunpack.c.l.b16 %v4799
        %v4992 = vunpack.c.h.b16 %v4799
        %v4993 = vunpack.c.l.b16 %v4800
        %v4994 = vunpack.c.h.b16 %v4800
        %v4995 = vunpack.c.l.b16 %v4801
        %v4996 = vunpack.c.h.b16 %v4801
        %v4997 = vunpack.c.l.b16 %v4802
        %v4998 = vunpack.c.h.b16 %v4802
        %v4999 = vunpack.c.l.b16 %v4803
        %v5000 = vunpack.c.h.b16 %v4803
        %v5001 = vunpack.c.l.b16 %v4804
        %v5002 = vunpack.c.h.b16 %v4804
        %v5003 = vunpack.c.l.b16 %v4805
        %v5004 = vunpack.c.h.b16 %v4805
        %v5005 = vunpack.c.l.b16 %v4806
        %v5006 = vunpack.c.h.b16 %v4806
        %v5007 = vunpack.c.l.b16 %v4807
        %v5008 = vunpack.c.h.b16 %v4807
        %v5009 = vunpack.c.l.b16 %v4808
        %v5010 = vunpack.c.h.b16 %v4808
        %v5011 = vunpack.c.l.b16 %v4809
        %v5012 = vunpack.c.h.b16 %v4809
        %v5013 = vunpack.c.l.b16 %v4810
        %v5014 = vunpack.c.h.b16 %v4810
        %v5015 = vunpack.c.l.b16 %v4811
        %v5016 = vunpack.c.h.b16 %v4811
        %v5017 = vunpack.c.l.b16 %v4812
        %v5018 = vunpack.c.h.b16 %v4812
        %v5019 = vpack.c.b16 %v4895, %v4891
        %v5020 = vpack.c.b16 %v4896, %v4892
        %v5021 = vpack.c.b16 %v4897, %v4893
        %v5022 = vpack.c.b16 %v4898, %v4894
        %v5023 = vpack.c.b16 %v4903, %v4899
        %v5024 = vpack.c.b16 %v4904, %v4900
        %v5025 = vpack.c.b16 %v4905, %v4901
        %v5026 = vpack.c.b16 %v4906, %v4902
        %v5027 = vpack.c.b16 %v4911, %v4907
        %v5028 = vpack.c.b16 %v4912, %v4908
        %v5029 = vpack.c.b16 %v4913, %v4909
        %v5030 = vpack.c.b16 %v4914, %v4910
        %v5031 = vpack.c.b16 %v4919, %v4915
        %v5032 = vpack.c.b16 %v4920, %v4916
        %v5033 = vpack.c.b16 %v4921, %v4917
        %v5034 = vpack.c.b16 %v4922, %v4918
        %v5035 = vpack.c.b16 %v4927, %v4923
        %v5036 = vpack.c.b16 %v4928, %v4924
        %v5037 = vpack.c.b16 %v4929, %v4925
        %v5038 = vpack.c.b16 %v4930, %v4926
        %v5039 = vpack.c.b16 %v4935, %v4931
        %v5040 = vpack.c.b16 %v4936, %v4932
        %v5041 = vpack.c.b16 %v4937, %v4933
        %v5042 = vpack.c.b16 %v4938, %v4934
        %v5043 = vpack.c.b16 %v4943, %v4939
        %v5044 = vpack.c.b16 %v4944, %v4940
        %v5045 = vpack.c.b16 %v4945, %v4941
        %v5046 = vpack.c.b16 %v4946, %v4942
        %v5047 = vpack.c.b16 %v4951, %v4947
        %v5048 = vpack.c.b16 %v4952, %v4948
        %v5049 = vpack.c.b16 %v4953, %v4949
        %v5050 = vpack.c.b16 %v4954, %v4950
        %v5051 = vpack.c.b16 %v4959, %v4955
        %v5052 = vpack.c.b16 %v4960, %v4956
        %v5053 = vpack.c.b16 %v4961, %v4957
        %v5054 = vpack.c.b16 %v4962, %v4958
        %v5055 = vpack.c.b16 %v4967, %v4963
        %v5056 = vpack.c.b16 %v4968, %v4964
        %v5057 = vpack.c.b16 %v4969, %v4965
        %v5058 = vpack.c.b16 %v4970, %v4966
        %v5059 = vpack.c.b16 %v4975, %v4971
        %v5060 = vpack.c.b16 %v4976, %v4972
        %v5061 = vpack.c.b16 %v4977, %v4973
        %v5062 = vpack.c.b16 %v4978, %v4974
        %v5063 = vpack.c.b16 %v4983, %v4979
        %v5064 = vpack.c.b16 %v4984, %v4980
        %v5065 = vpack.c.b16 %v4985, %v4981
        %v5066 = vpack.c.b16 %v4986, %v4982
        %v5067 = vpack.c.b16 %v4991, %v4987
        %v5068 = vpack.c.b16 %v4992, %v4988
        %v5069 = vpack.c.b16 %v4993, %v4989
        %v5070 = vpack.c.b16 %v4994, %v4990
        %v5071 = vpack.c.b16 %v4999, %v4995
        %v5072 = vpack.c.b16 %v5000, %v4996
        %v5073 = vpack.c.b16 %v5001, %v4997
        %v5074 = vpack.c.b16 %v5002, %v4998
        %v5075 = vpack.c.b16 %v5007, %v5003
        %v5076 = vpack.c.b16 %v5008, %v5004
        %v5077 = vpack.c.b16 %v5009, %v5005
        %v5078 = vpack.c.b16 %v5010, %v5006
        %v5079 = vpack.c.b16 %v5015, %v5011
        %v5080 = vpack.c.b16 %v5016, %v5012
        %v5081 = vpack.c.b16 %v5017, %v5013
        %v5082 = vpack.c.b16 %v5018, %v5014
        %5147 = vmatprep.subr.bf16.mxu0 %v5048
        %5148 = vmatpush1.bf16.msra.mxu0 %v5047
        %5149 = vmatprep.subr.bf16.mxu0 %v5044
        %5150 = vmatpush1.bf16.msra.mxu0 %v5043
        %5151 = vmatprep.subr.bf16.mxu0 %v5040
        %5152 = vmatpush1.bf16.msra.mxu0 %v5039
        %5153 = vmatprep.subr.bf16.mxu0 %v5036
        %5154 = vmatpush1.bf16.msra.mxu0 %v5035
        %5155 = vmatprep.subr.bf16.mxu0 %v5032
        %5156 = vmatpush1.bf16.msra.mxu0 %v5031
        %5157 = vmatprep.subr.bf16.mxu0 %v5028
        %5158 = vmatpush1.bf16.msra.mxu0 %v5027
        %5159 = vmatprep.subr.bf16.mxu0 %v5024
        %5160 = vmatpush1.bf16.msra.mxu0 %v5023
        %5161 = vmatprep.subr.bf16.mxu0 %v5020
        %5162 = vmatpush1.bf16.msra.mxu0 %v5019
        %5163 = vmatprep.subr.bf16.mxu0 %v5080
        %5164 = vmatpush2.bf16.msra.mxu0 %v5079
        %5165 = vmatprep.subr.bf16.mxu0 %v5076
        %5166 = vmatpush2.bf16.msra.mxu0 %v5075
        %5167 = vmatprep.subr.bf16.mxu0 %v5072
        %5168 = vmatpush2.bf16.msra.mxu0 %v5071
        %5169 = vmatprep.subr.bf16.mxu0 %v5068
        %5170 = vmatpush2.bf16.msra.mxu0 %v5067
        %5171 = vmatprep.subr.bf16.mxu0 %v5064
        %5172 = vmatpush2.bf16.msra.mxu0 %v5063
        %5173 = vmatprep.subr.bf16.mxu0 %v5060
        %5174 = vmatpush2.bf16.msra.mxu0 %v5059
        %5175 = vmatprep.subr.bf16.mxu0 %v5056
        %5176 = vmatpush2.bf16.msra.mxu0 %v5055
        %5177 = vmatprep.subr.bf16.mxu0 %v5052
        %5178 = vmatpush2.bf16.msra.mxu0 %v5051
        %5179 = vmatprep.mubr.bf16.mxu0 %v4822
        %5180 = vmatmul.mubr.bf16.gmra.mxu0 %v4819
        %v5181 = vpop.f32.mrf.mxu0
        %v5182 = vadd.f32 0.0, %v5181
        %v5183 = vpop.f32.mrf.mxu0
        %v5184 = vadd.f32 0.0, %v5183
        %v5185 = vpop.f32.mrf.mxu0
        %v5186 = vadd.f32 0.0, %v5185
        %v5187 = vpop.f32.mrf.mxu0
        %v5188 = vadd.f32 0.0, %v5187
        %5189 = vmatprep.mubr.bf16.mxu0 %v4821
        %5190 = vmatmul.mubr.bf16.gmra.mxu0 %v4818
        %v5191 = vpop.f32.mrf.mxu0
        %v5192 = vadd.f32 0.0, %v5191
        %v5193 = vpop.f32.mrf.mxu0
        %v5194 = vadd.f32 0.0, %v5193
        %v5195 = vpop.f32.mrf.mxu0
        %v5196 = vpop.f32.mrf.mxu0
        %5197 = vdwg.mxu0
        %5198 = vmatprep.subr.bf16.mxu0 %v5050
        %5199 = vmatpush1.bf16.msra.mxu0 %v5049
        %5200 = vmatprep.subr.bf16.mxu0 %v5046
        %5201 = vmatpush1.bf16.msra.mxu0 %v5045
        %5202 = vmatprep.subr.bf16.mxu0 %v5042
        %5203 = vmatpush1.bf16.msra.mxu0 %v5041
        %5204 = vmatprep.subr.bf16.mxu0 %v5038
        %5205 = vmatpush1.bf16.msra.mxu0 %v5037
        %5206 = vmatprep.subr.bf16.mxu0 %v5034
        %5207 = vmatpush1.bf16.msra.mxu0 %v5033
        %5208 = vmatprep.subr.bf16.mxu0 %v5030
        %5209 = vmatpush1.bf16.msra.mxu0 %v5029
        %5210 = vmatprep.subr.bf16.mxu0 %v5026
        %5211 = vmatpush1.bf16.msra.mxu0 %v5025
        %5212 = vmatprep.subr.bf16.mxu0 %v5022
        %5213 = vmatpush1.bf16.msra.mxu0 %v5021
        %5214 = vmatprep.subr.bf16.mxu0 %v5082
        %5215 = vmatpush2.bf16.msra.mxu0 %v5081
        %5216 = vmatprep.subr.bf16.mxu0 %v5078
        %5217 = vmatpush2.bf16.msra.mxu0 %v5077
        %5218 = vmatprep.subr.bf16.mxu0 %v5074
        %5219 = vmatpush2.bf16.msra.mxu0 %v5073
        %5220 = vmatprep.subr.bf16.mxu0 %v5070
        %5221 = vmatpush2.bf16.msra.mxu0 %v5069
        %5222 = vmatprep.subr.bf16.mxu0 %v5066
        %5223 = vmatpush2.bf16.msra.mxu0 %v5065
        %5224 = vmatprep.subr.bf16.mxu0 %v5062
        %5225 = vmatpush2.bf16.msra.mxu0 %v5061
        %5226 = vmatprep.subr.bf16.mxu0 %v5058
        %5227 = vmatpush2.bf16.msra.mxu0 %v5057
        %5228 = vmatprep.subr.bf16.mxu0 %v5054
        %5229 = vmatpush2.bf16.msra.mxu0 %v5053
        %5230 = vmatprep.mubr.bf16.mxu0 %v4822
        %5231 = vmatmul.mubr.bf16.gmra.mxu0 %v4819
        %v5232 = vpop.f32.mrf.mxu0
        %v5233 = vadd.f32 0.0, %v5232
        %v5234 = vpop.f32.mrf.mxu0
        %v5235 = vadd.f32 0.0, %v5234
        %v5236 = vpop.f32.mrf.mxu0
        %v5237 = vadd.f32 0.0, %v5236
        %v5238 = vpop.f32.mrf.mxu0
        %v5239 = vadd.f32 0.0, %v5238
        %5240 = vmatprep.mubr.bf16.mxu0 %v4821
        %5241 = vmatmul.mubr.bf16.gmra.mxu0 %v4818
        %v5242 = vpop.f32.mrf.mxu0
        %v5243 = vadd.f32 0.0, %v5242
        %v5244 = vpop.f32.mrf.mxu0
        %v5245 = vadd.f32 0.0, %v5244
        %v5246 = vpop.f32.mrf.mxu0
        %v5247 = vpop.f32.mrf.mxu0
        %5248 = vdwg.mxu0
        %v5249 = vadd.f32 %v4681, %v5182
        %v5250 = vadd.f32 %v4683, %v5184
        %v5251 = vadd.f32 %v4732, %v5233
        %v5252 = vadd.f32 %v4734, %v5235
        %v5253 = vadd.f32 %v4685, %v5186
        %v5254 = vadd.f32 %v4687, %v5188
        %v5255 = vadd.f32 %v4736, %v5237
        %v5256 = vadd.f32 %v4738, %v5239
        %v5257 = vadd.f32 %v4691, %v5192
        %v5258 = vadd.f32 %v4693, %v5194
        %v5259 = vadd.f32 %v4742, %v5243
        %v5260 = vadd.f32 %v4744, %v5245
        %v5261 = vld [vmem:[#allocation12] sm:$0xff]
        %v5262 = vld [vmem:[#allocation12 + $0x8] sm:$0xff]
        %v5263 = vld [vmem:[#allocation12 + $0x10] sm:$0xff]
        %v5264 = vld [vmem:[#allocation12 + $0x18] sm:$0xff]
        %v5265 = vld [vmem:[#allocation12 + $0x20] sm:$0xff]
        %v5266 = vld [vmem:[#allocation12 + $0x28] sm:$0xff]
        %v5267 = vld [vmem:[#allocation12 + $0x30] sm:$0xff]
        %v5268 = vld [vmem:[#allocation12 + $0x38] sm:$0xff]
        %v5269 = vld [vmem:[#allocation12 + $0x40] sm:$0xff]
        %v5270 = vld [vmem:[#allocation12 + $0x48] sm:$0xff]
        %v5271 = vld [vmem:[#allocation12 + $0x50] sm:$0xff]
        %v5272 = vld [vmem:[#allocation12 + $0x58] sm:$0xff]
        %v5273 = vld [vmem:[#allocation12 + $0x60] sm:$0xff]
        %v5274 = vld [vmem:[#allocation12 + $0x68] sm:$0xff]
        %v5275 = vld [vmem:[#allocation12 + $0x70] sm:$0xff]
        %v5276 = vld [vmem:[#allocation12 + $0x78] sm:$0xff]
        %v5277 = vld [vmem:[#allocation12 + $0x80] sm:$0xff]
        %v5278 = vld [vmem:[#allocation12 + $0x88] sm:$0xff]
        %v5279 = vld [vmem:[#allocation12 + $0x90] sm:$0xff]
        %v5280 = vld [vmem:[#allocation12 + $0x98] sm:$0xff]
        %v5281 = vld [vmem:[#allocation12 + $0xa0] sm:$0xff]
        %v5282 = vld [vmem:[#allocation12 + $0xa8] sm:$0xff]
        %v5283 = vld [vmem:[#allocation12 + $0xb0] sm:$0xff]
        %v5284 = vld [vmem:[#allocation12 + $0xb8] sm:$0xff]
        %v5285 = vld [vmem:[#allocation12 + $0xc0] sm:$0xff]
        %v5286 = vld [vmem:[#allocation12 + $0xc8] sm:$0xff]
        %v5287 = vld [vmem:[#allocation12 + $0xd0] sm:$0xff]
        %v5288 = vld [vmem:[#allocation12 + $0xd8] sm:$0xff]
        %v5289 = vld [vmem:[#allocation12 + $0xe0] sm:$0xff]
        %v5290 = vld [vmem:[#allocation12 + $0xe8] sm:$0xff]
        %v5291 = vld [vmem:[#allocation12 + $0xf0] sm:$0xff]
        %v5292 = vld [vmem:[#allocation12 + $0xf8] sm:$0xff]
        %v5293 = vld [vmem:[#allocation12 + $0x100] sm:$0xff]
        %v5294 = vld [vmem:[#allocation12 + $0x108] sm:$0xff]
        %v5295 = vld [vmem:[#allocation12 + $0x110] sm:$0xff]
        %v5296 = vld [vmem:[#allocation12 + $0x118] sm:$0xff]
        %v5297 = vld [vmem:[#allocation12 + $0x120] sm:$0xff]
        %v5298 = vld [vmem:[#allocation12 + $0x128] sm:$0xff]
        %v5299 = vld [vmem:[#allocation12 + $0x130] sm:$0xff]
        %v5300 = vld [vmem:[#allocation12 + $0x138] sm:$0xff]
        %v5301 = vld [vmem:[#allocation12 + $0x140] sm:$0xff]
        %v5302 = vld [vmem:[#allocation12 + $0x148] sm:$0xff]
        %v5303 = vld [vmem:[#allocation12 + $0x150] sm:$0xff]
        %v5304 = vld [vmem:[#allocation12 + $0x158] sm:$0xff]
        %v5305 = vld [vmem:[#allocation12 + $0x160] sm:$0xff]
        %v5306 = vld [vmem:[#allocation12 + $0x168] sm:$0xff]
        %v5307 = vld [vmem:[#allocation12 + $0x170] sm:$0xff]
        %v5308 = vld [vmem:[#allocation12 + $0x178] sm:$0xff]
        %v5309 = vld [vmem:[#allocation12 + $0x180] sm:$0xff]
        %v5310 = vld [vmem:[#allocation12 + $0x188] sm:$0xff]
        %v5311 = vld [vmem:[#allocation12 + $0x190] sm:$0xff]
        %v5312 = vld [vmem:[#allocation12 + $0x198] sm:$0xff]
        %v5313 = vld [vmem:[#allocation12 + $0x1a0] sm:$0xff]
        %v5314 = vld [vmem:[#allocation12 + $0x1a8] sm:$0xff]
        %v5315 = vld [vmem:[#allocation12 + $0x1b0] sm:$0xff]
        %v5316 = vld [vmem:[#allocation12 + $0x1b8] sm:$0xff]
        %v5317 = vld [vmem:[#allocation12 + $0x1c0] sm:$0xff]
        %v5318 = vld [vmem:[#allocation12 + $0x1c8] sm:$0xff]
        %v5319 = vld [vmem:[#allocation12 + $0x1d0] sm:$0xff]
        %v5320 = vld [vmem:[#allocation12 + $0x1d8] sm:$0xff]
        %v5321 = vld [vmem:[#allocation12 + $0x1e0] sm:$0xff]
        %v5322 = vld [vmem:[#allocation12 + $0x1e8] sm:$0xff]
        %v5323 = vld [vmem:[#allocation12 + $0x1f0] sm:$0xff]
        %v5324 = vld [vmem:[#allocation12 + $0x1f8] sm:$0xff]
        %s5325 = scalar_lea.vmem [#allocation12], 512
        %v5326 = vld [vmem:[%s5325] sm:$0xff]
        %v5327 = vld [vmem:[%s5325 + $0x8] sm:$0xff]
        %v5328 = vld [vmem:[%s5325 + $0x10] sm:$0xff]
        %v5329 = vld [vmem:[%s5325 + $0x18] sm:$0xff]
        %v5330 = vld [vmem:[%s5325 + $0x20] sm:$0xff]
        %v5331 = vld [vmem:[%s5325 + $0x28] sm:$0xff]
        %v5332 = vld [vmem:[%s5325 + $0x30] sm:$0xff]
        %v5333 = vld [vmem:[%s5325 + $0x38] sm:$0xff]
        %v5334 = vld [vmem:[%s5325 + $0x40] sm:$0xff]
        %v5335 = vld [vmem:[%s5325 + $0x48] sm:$0xff]
        %v5336 = vld [vmem:[%s5325 + $0x50] sm:$0xff]
        %v5337 = vld [vmem:[%s5325 + $0x58] sm:$0xff]
        %v5338 = vld [vmem:[%s5325 + $0x60] sm:$0xff]
        %v5339 = vld [vmem:[%s5325 + $0x68] sm:$0xff]
        %v5340 = vld [vmem:[%s5325 + $0x70] sm:$0xff]
        %v5341 = vld [vmem:[%s5325 + $0x78] sm:$0xff]
        %v5342 = vld [vmem:[%s5325 + $0x80] sm:$0xff]
        %v5343 = vld [vmem:[%s5325 + $0x88] sm:$0xff]
        %v5344 = vld [vmem:[%s5325 + $0x90] sm:$0xff]
        %v5345 = vld [vmem:[%s5325 + $0x98] sm:$0xff]
        %v5346 = vld [vmem:[%s5325 + $0xa0] sm:$0xff]
        %v5347 = vld [vmem:[%s5325 + $0xa8] sm:$0xff]
        %v5348 = vld [vmem:[%s5325 + $0xb0] sm:$0xff]
        %v5349 = vld [vmem:[%s5325 + $0xb8] sm:$0xff]
        %v5350 = vld [vmem:[%s5325 + $0xc0] sm:$0xff]
        %v5351 = vld [vmem:[%s5325 + $0xc8] sm:$0xff]
        %v5352 = vld [vmem:[%s5325 + $0xd0] sm:$0xff]
        %v5353 = vld [vmem:[%s5325 + $0xd8] sm:$0xff]
        %v5354 = vld [vmem:[%s5325 + $0xe0] sm:$0xff]
        %v5355 = vld [vmem:[%s5325 + $0xe8] sm:$0xff]
        %v5356 = vld [vmem:[%s5325 + $0xf0] sm:$0xff]
        %v5357 = vld [vmem:[%s5325 + $0xf8] sm:$0xff]
        %v5358 = vld [vmem:[%s5325 + $0x100] sm:$0xff]
        %v5359 = vld [vmem:[%s5325 + $0x108] sm:$0xff]
        %v5360 = vld [vmem:[%s5325 + $0x110] sm:$0xff]
        %v5361 = vld [vmem:[%s5325 + $0x118] sm:$0xff]
        %v5362 = vld [vmem:[%s5325 + $0x120] sm:$0xff]
        %v5363 = vld [vmem:[%s5325 + $0x128] sm:$0xff]
        %v5364 = vld [vmem:[%s5325 + $0x130] sm:$0xff]
        %v5365 = vld [vmem:[%s5325 + $0x138] sm:$0xff]
        %v5366 = vld [vmem:[%s5325 + $0x140] sm:$0xff]
        %v5367 = vld [vmem:[%s5325 + $0x148] sm:$0xff]
        %v5368 = vld [vmem:[%s5325 + $0x150] sm:$0xff]
        %v5369 = vld [vmem:[%s5325 + $0x158] sm:$0xff]
        %v5370 = vld [vmem:[%s5325 + $0x160] sm:$0xff]
        %v5371 = vld [vmem:[%s5325 + $0x168] sm:$0xff]
        %v5372 = vld [vmem:[%s5325 + $0x170] sm:$0xff]
        %v5373 = vld [vmem:[%s5325 + $0x178] sm:$0xff]
        %v5374 = vld [vmem:[%s5325 + $0x180] sm:$0xff]
        %v5375 = vld [vmem:[%s5325 + $0x188] sm:$0xff]
        %v5376 = vld [vmem:[%s5325 + $0x190] sm:$0xff]
        %v5377 = vld [vmem:[%s5325 + $0x198] sm:$0xff]
        %v5378 = vld [vmem:[%s5325 + $0x1a0] sm:$0xff]
        %v5379 = vld [vmem:[%s5325 + $0x1a8] sm:$0xff]
        %v5380 = vld [vmem:[%s5325 + $0x1b0] sm:$0xff]
        %v5381 = vld [vmem:[%s5325 + $0x1b8] sm:$0xff]
        %v5382 = vld [vmem:[%s5325 + $0x1c0] sm:$0xff]
        %v5383 = vld [vmem:[%s5325 + $0x1c8] sm:$0xff]
        %v5384 = vld [vmem:[%s5325 + $0x1d0] sm:$0xff]
        %v5385 = vld [vmem:[%s5325 + $0x1d8] sm:$0xff]
        %v5386 = vld [vmem:[%s5325 + $0x1e0] sm:$0xff]
        %v5387 = vld [vmem:[%s5325 + $0x1e8] sm:$0xff]
        %v5388 = vld [vmem:[%s5325 + $0x1f0] sm:$0xff]
        %v5389 = vld [vmem:[%s5325 + $0x1f8] sm:$0xff]
        %v5391 = vshrl.u32 %v3737, 16
        %v5393 = vshll.u32 %v3737, 16
        %v5395 = vrot.slane %v5393, 1
        %v5396 = vor.u32 %v5391, %v5395
        %v5398 = vshll.u32 %v3739, 16
        %v5400 = vrot.slane %v5398, 1
        %v5401 = vsel %vm908, %v5396, %v5400
        %v5403 = vshrl.u32 %v3738, 16
        %v5405 = vshll.u32 %v3738, 16
        %v5407 = vrot.slane %v5405, 1
        %v5408 = vor.u32 %v5403, %v5407
        %v5410 = vshll.u32 %v3740, 16
        %v5412 = vrot.slane %v5410, 1
        %v5413 = vsel %vm908, %v5408, %v5412
        %v5414 = vshrl.u32 %v3739, 16
        %v5416 = vor.u32 %v5414, %v5400
        %v5417 = vshrl.u32 %v3740, 16
        %v5419 = vor.u32 %v5417, %v5412
        %v5488 = vunpack.c.l.b16 %v5326
        %v5489 = vunpack.c.h.b16 %v5326
        %v5490 = vunpack.c.l.b16 %v5327
        %v5491 = vunpack.c.h.b16 %v5327
        %v5492 = vunpack.c.l.b16 %v5328
        %v5493 = vunpack.c.h.b16 %v5328
        %v5494 = vunpack.c.l.b16 %v5329
        %v5495 = vunpack.c.h.b16 %v5329
        %v5496 = vunpack.c.l.b16 %v5330
        %v5497 = vunpack.c.h.b16 %v5330
        %v5498 = vunpack.c.l.b16 %v5331
        %v5499 = vunpack.c.h.b16 %v5331
        %v5500 = vunpack.c.l.b16 %v5332
        %v5501 = vunpack.c.h.b16 %v5332
        %v5502 = vunpack.c.l.b16 %v5333
        %v5503 = vunpack.c.h.b16 %v5333
        %v5504 = vunpack.c.l.b16 %v5334
        %v5505 = vunpack.c.h.b16 %v5334
        %v5506 = vunpack.c.l.b16 %v5335
        %v5507 = vunpack.c.h.b16 %v5335
        %v5508 = vunpack.c.l.b16 %v5336
        %v5509 = vunpack.c.h.b16 %v5336
        %v5510 = vunpack.c.l.b16 %v5337
        %v5511 = vunpack.c.h.b16 %v5337
        %v5512 = vunpack.c.l.b16 %v5338
        %v5513 = vunpack.c.h.b16 %v5338
        %v5514 = vunpack.c.l.b16 %v5339
        %v5515 = vunpack.c.h.b16 %v5339
        %v5516 = vunpack.c.l.b16 %v5340
        %v5517 = vunpack.c.h.b16 %v5340
        %v5518 = vunpack.c.l.b16 %v5341
        %v5519 = vunpack.c.h.b16 %v5341
        %v5520 = vunpack.c.l.b16 %v5342
        %v5521 = vunpack.c.h.b16 %v5342
        %v5522 = vunpack.c.l.b16 %v5343
        %v5523 = vunpack.c.h.b16 %v5343
        %v5524 = vunpack.c.l.b16 %v5344
        %v5525 = vunpack.c.h.b16 %v5344
        %v5526 = vunpack.c.l.b16 %v5345
        %v5527 = vunpack.c.h.b16 %v5345
        %v5528 = vunpack.c.l.b16 %v5346
        %v5529 = vunpack.c.h.b16 %v5346
        %v5530 = vunpack.c.l.b16 %v5347
        %v5531 = vunpack.c.h.b16 %v5347
        %v5532 = vunpack.c.l.b16 %v5348
        %v5533 = vunpack.c.h.b16 %v5348
        %v5534 = vunpack.c.l.b16 %v5349
        %v5535 = vunpack.c.h.b16 %v5349
        %v5536 = vunpack.c.l.b16 %v5350
        %v5537 = vunpack.c.h.b16 %v5350
        %v5538 = vunpack.c.l.b16 %v5351
        %v5539 = vunpack.c.h.b16 %v5351
        %v5540 = vunpack.c.l.b16 %v5352
        %v5541 = vunpack.c.h.b16 %v5352
        %v5542 = vunpack.c.l.b16 %v5353
        %v5543 = vunpack.c.h.b16 %v5353
        %v5544 = vunpack.c.l.b16 %v5354
        %v5545 = vunpack.c.h.b16 %v5354
        %v5546 = vunpack.c.l.b16 %v5355
        %v5547 = vunpack.c.h.b16 %v5355
        %v5548 = vunpack.c.l.b16 %v5356
        %v5549 = vunpack.c.h.b16 %v5356
        %v5550 = vunpack.c.l.b16 %v5357
        %v5551 = vunpack.c.h.b16 %v5357
        %v5552 = vunpack.c.l.b16 %v5358
        %v5553 = vunpack.c.h.b16 %v5358
        %v5554 = vunpack.c.l.b16 %v5359
        %v5555 = vunpack.c.h.b16 %v5359
        %v5556 = vunpack.c.l.b16 %v5360
        %v5557 = vunpack.c.h.b16 %v5360
        %v5558 = vunpack.c.l.b16 %v5361
        %v5559 = vunpack.c.h.b16 %v5361
        %v5560 = vunpack.c.l.b16 %v5362
        %v5561 = vunpack.c.h.b16 %v5362
        %v5562 = vunpack.c.l.b16 %v5363
        %v5563 = vunpack.c.h.b16 %v5363
        %v5564 = vunpack.c.l.b16 %v5364
        %v5565 = vunpack.c.h.b16 %v5364
        %v5566 = vunpack.c.l.b16 %v5365
        %v5567 = vunpack.c.h.b16 %v5365
        %v5568 = vunpack.c.l.b16 %v5366
        %v5569 = vunpack.c.h.b16 %v5366
        %v5570 = vunpack.c.l.b16 %v5367
        %v5571 = vunpack.c.h.b16 %v5367
        %v5572 = vunpack.c.l.b16 %v5368
        %v5573 = vunpack.c.h.b16 %v5368
        %v5574 = vunpack.c.l.b16 %v5369
        %v5575 = vunpack.c.h.b16 %v5369
        %v5576 = vunpack.c.l.b16 %v5370
        %v5577 = vunpack.c.h.b16 %v5370
        %v5578 = vunpack.c.l.b16 %v5371
        %v5579 = vunpack.c.h.b16 %v5371
        %v5580 = vunpack.c.l.b16 %v5372
        %v5581 = vunpack.c.h.b16 %v5372
        %v5582 = vunpack.c.l.b16 %v5373
        %v5583 = vunpack.c.h.b16 %v5373
        %v5584 = vunpack.c.l.b16 %v5374
        %v5585 = vunpack.c.h.b16 %v5374
        %v5586 = vunpack.c.l.b16 %v5375
        %v5587 = vunpack.c.h.b16 %v5375
        %v5588 = vunpack.c.l.b16 %v5376
        %v5589 = vunpack.c.h.b16 %v5376
        %v5590 = vunpack.c.l.b16 %v5377
        %v5591 = vunpack.c.h.b16 %v5377
        %v5592 = vunpack.c.l.b16 %v5378
        %v5593 = vunpack.c.h.b16 %v5378
        %v5594 = vunpack.c.l.b16 %v5379
        %v5595 = vunpack.c.h.b16 %v5379
        %v5596 = vunpack.c.l.b16 %v5380
        %v5597 = vunpack.c.h.b16 %v5380
        %v5598 = vunpack.c.l.b16 %v5381
        %v5599 = vunpack.c.h.b16 %v5381
        %v5600 = vunpack.c.l.b16 %v5382
        %v5601 = vunpack.c.h.b16 %v5382
        %v5602 = vunpack.c.l.b16 %v5383
        %v5603 = vunpack.c.h.b16 %v5383
        %v5604 = vunpack.c.l.b16 %v5384
        %v5605 = vunpack.c.h.b16 %v5384
        %v5606 = vunpack.c.l.b16 %v5385
        %v5607 = vunpack.c.h.b16 %v5385
        %v5608 = vunpack.c.l.b16 %v5386
        %v5609 = vunpack.c.h.b16 %v5386
        %v5610 = vunpack.c.l.b16 %v5387
        %v5611 = vunpack.c.h.b16 %v5387
        %v5612 = vunpack.c.l.b16 %v5388
        %v5613 = vunpack.c.h.b16 %v5388
        %v5614 = vunpack.c.l.b16 %v5389
        %v5615 = vunpack.c.h.b16 %v5389
        %v5616 = vpack.c.b16 %v5492, %v5488
        %v5617 = vpack.c.b16 %v5493, %v5489
        %v5618 = vpack.c.b16 %v5494, %v5490
        %v5619 = vpack.c.b16 %v5495, %v5491
        %v5620 = vpack.c.b16 %v5500, %v5496
        %v5621 = vpack.c.b16 %v5501, %v5497
        %v5622 = vpack.c.b16 %v5502, %v5498
        %v5623 = vpack.c.b16 %v5503, %v5499
        %v5624 = vpack.c.b16 %v5508, %v5504
        %v5625 = vpack.c.b16 %v5509, %v5505
        %v5626 = vpack.c.b16 %v5510, %v5506
        %v5627 = vpack.c.b16 %v5511, %v5507
        %v5628 = vpack.c.b16 %v5516, %v5512
        %v5629 = vpack.c.b16 %v5517, %v5513
        %v5630 = vpack.c.b16 %v5518, %v5514
        %v5631 = vpack.c.b16 %v5519, %v5515
        %v5632 = vpack.c.b16 %v5524, %v5520
        %v5633 = vpack.c.b16 %v5525, %v5521
        %v5634 = vpack.c.b16 %v5526, %v5522
        %v5635 = vpack.c.b16 %v5527, %v5523
        %v5636 = vpack.c.b16 %v5532, %v5528
        %v5637 = vpack.c.b16 %v5533, %v5529
        %v5638 = vpack.c.b16 %v5534, %v5530
        %v5639 = vpack.c.b16 %v5535, %v5531
        %v5640 = vpack.c.b16 %v5540, %v5536
        %v5641 = vpack.c.b16 %v5541, %v5537
        %v5642 = vpack.c.b16 %v5542, %v5538
        %v5643 = vpack.c.b16 %v5543, %v5539
        %v5644 = vpack.c.b16 %v5548, %v5544
        %v5645 = vpack.c.b16 %v5549, %v5545
        %v5646 = vpack.c.b16 %v5550, %v5546
        %v5647 = vpack.c.b16 %v5551, %v5547
        %v5648 = vpack.c.b16 %v5556, %v5552
        %v5649 = vpack.c.b16 %v5557, %v5553
        %v5650 = vpack.c.b16 %v5558, %v5554
        %v5651 = vpack.c.b16 %v5559, %v5555
        %v5652 = vpack.c.b16 %v5564, %v5560
        %v5653 = vpack.c.b16 %v5565, %v5561
        %v5654 = vpack.c.b16 %v5566, %v5562
        %v5655 = vpack.c.b16 %v5567, %v5563
        %v5656 = vpack.c.b16 %v5572, %v5568
        %v5657 = vpack.c.b16 %v5573, %v5569
        %v5658 = vpack.c.b16 %v5574, %v5570
        %v5659 = vpack.c.b16 %v5575, %v5571
        %v5660 = vpack.c.b16 %v5580, %v5576
        %v5661 = vpack.c.b16 %v5581, %v5577
        %v5662 = vpack.c.b16 %v5582, %v5578
        %v5663 = vpack.c.b16 %v5583, %v5579
        %v5664 = vpack.c.b16 %v5588, %v5584
        %v5665 = vpack.c.b16 %v5589, %v5585
        %v5666 = vpack.c.b16 %v5590, %v5586
        %v5667 = vpack.c.b16 %v5591, %v5587
        %v5668 = vpack.c.b16 %v5596, %v5592
        %v5669 = vpack.c.b16 %v5597, %v5593
        %v5670 = vpack.c.b16 %v5598, %v5594
        %v5671 = vpack.c.b16 %v5599, %v5595
        %v5672 = vpack.c.b16 %v5604, %v5600
        %v5673 = vpack.c.b16 %v5605, %v5601
        %v5674 = vpack.c.b16 %v5606, %v5602
        %v5675 = vpack.c.b16 %v5607, %v5603
        %v5676 = vpack.c.b16 %v5612, %v5608
        %v5677 = vpack.c.b16 %v5613, %v5609
        %v5678 = vpack.c.b16 %v5614, %v5610
        %v5679 = vpack.c.b16 %v5615, %v5611
        %5744 = vmatprep.subr.bf16.mxu0 %v5645
        %5745 = vmatpush1.bf16.msra.mxu0 %v5644
        %5746 = vmatprep.subr.bf16.mxu0 %v5641
        %5747 = vmatpush1.bf16.msra.mxu0 %v5640
        %5748 = vmatprep.subr.bf16.mxu0 %v5637
        %5749 = vmatpush1.bf16.msra.mxu0 %v5636
        %5750 = vmatprep.subr.bf16.mxu0 %v5633
        %5751 = vmatpush1.bf16.msra.mxu0 %v5632
        %5752 = vmatprep.subr.bf16.mxu0 %v5629
        %5753 = vmatpush1.bf16.msra.mxu0 %v5628
        %5754 = vmatprep.subr.bf16.mxu0 %v5625
        %5755 = vmatpush1.bf16.msra.mxu0 %v5624
        %5756 = vmatprep.subr.bf16.mxu0 %v5621
        %5757 = vmatpush1.bf16.msra.mxu0 %v5620
        %5758 = vmatprep.subr.bf16.mxu0 %v5617
        %5759 = vmatpush1.bf16.msra.mxu0 %v5616
        %5760 = vmatprep.subr.bf16.mxu0 %v5677
        %5761 = vmatpush2.bf16.msra.mxu0 %v5676
        %5762 = vmatprep.subr.bf16.mxu0 %v5673
        %5763 = vmatpush2.bf16.msra.mxu0 %v5672
        %5764 = vmatprep.subr.bf16.mxu0 %v5669
        %5765 = vmatpush2.bf16.msra.mxu0 %v5668
        %5766 = vmatprep.subr.bf16.mxu0 %v5665
        %5767 = vmatpush2.bf16.msra.mxu0 %v5664
        %5768 = vmatprep.subr.bf16.mxu0 %v5661
        %5769 = vmatpush2.bf16.msra.mxu0 %v5660
        %5770 = vmatprep.subr.bf16.mxu0 %v5657
        %5771 = vmatpush2.bf16.msra.mxu0 %v5656
        %5772 = vmatprep.subr.bf16.mxu0 %v5653
        %5773 = vmatpush2.bf16.msra.mxu0 %v5652
        %5774 = vmatprep.subr.bf16.mxu0 %v5649
        %5775 = vmatpush2.bf16.msra.mxu0 %v5648
        %5776 = vmatprep.mubr.bf16.mxu0 %v5413
        %5777 = vmatmul.mubr.bf16.gmra.mxu0 %v5401
        %v5778 = vpop.f32.mrf.mxu0
        %v5779 = vadd.f32 0.0, %v5778
        %v5780 = vpop.f32.mrf.mxu0
        %v5781 = vadd.f32 0.0, %v5780
        %v5782 = vpop.f32.mrf.mxu0
        %v5783 = vadd.f32 0.0, %v5782
        %v5784 = vpop.f32.mrf.mxu0
        %v5785 = vadd.f32 0.0, %v5784
        %5786 = vmatprep.mubr.bf16.mxu0 %v5419
        %5787 = vmatmul.mubr.bf16.gmra.mxu0 %v5416
        %v5788 = vpop.f32.mrf.mxu0
        %v5789 = vadd.f32 0.0, %v5788
        %v5790 = vpop.f32.mrf.mxu0
        %v5791 = vadd.f32 0.0, %v5790
        %v5792 = vpop.f32.mrf.mxu0
        %v5793 = vpop.f32.mrf.mxu0
        %5794 = vdwg.mxu0
        %5795 = vmatprep.subr.bf16.mxu0 %v5647
        %5796 = vmatpush1.bf16.msra.mxu0 %v5646
        %5797 = vmatprep.subr.bf16.mxu0 %v5643
        %5798 = vmatpush1.bf16.msra.mxu0 %v5642
        %5799 = vmatprep.subr.bf16.mxu0 %v5639
        %5800 = vmatpush1.bf16.msra.mxu0 %v5638
        %5801 = vmatprep.subr.bf16.mxu0 %v5635
        %5802 = vmatpush1.bf16.msra.mxu0 %v5634
        %5803 = vmatprep.subr.bf16.mxu0 %v5631
        %5804 = vmatpush1.bf16.msra.mxu0 %v5630
        %5805 = vmatprep.subr.bf16.mxu0 %v5627
        %5806 = vmatpush1.bf16.msra.mxu0 %v5626
        %5807 = vmatprep.subr.bf16.mxu0 %v5623
        %5808 = vmatpush1.bf16.msra.mxu0 %v5622
        %5809 = vmatprep.subr.bf16.mxu0 %v5619
        %5810 = vmatpush1.bf16.msra.mxu0 %v5618
        %5811 = vmatprep.subr.bf16.mxu0 %v5679
        %5812 = vmatpush2.bf16.msra.mxu0 %v5678
        %5813 = vmatprep.subr.bf16.mxu0 %v5675
        %5814 = vmatpush2.bf16.msra.mxu0 %v5674
        %5815 = vmatprep.subr.bf16.mxu0 %v5671
        %5816 = vmatpush2.bf16.msra.mxu0 %v5670
        %5817 = vmatprep.subr.bf16.mxu0 %v5667
        %5818 = vmatpush2.bf16.msra.mxu0 %v5666
        %5819 = vmatprep.subr.bf16.mxu0 %v5663
        %5820 = vmatpush2.bf16.msra.mxu0 %v5662
        %5821 = vmatprep.subr.bf16.mxu0 %v5659
        %5822 = vmatpush2.bf16.msra.mxu0 %v5658
        %5823 = vmatprep.subr.bf16.mxu0 %v5655
        %5824 = vmatpush2.bf16.msra.mxu0 %v5654
        %5825 = vmatprep.subr.bf16.mxu0 %v5651
        %5826 = vmatpush2.bf16.msra.mxu0 %v5650
        %5827 = vmatprep.mubr.bf16.mxu0 %v5413
        %5828 = vmatmul.mubr.bf16.gmra.mxu0 %v5401
        %v5829 = vpop.f32.mrf.mxu0
        %v5830 = vadd.f32 0.0, %v5829
        %v5831 = vpop.f32.mrf.mxu0
        %v5832 = vadd.f32 0.0, %v5831
        %v5833 = vpop.f32.mrf.mxu0
        %v5834 = vadd.f32 0.0, %v5833
        %v5835 = vpop.f32.mrf.mxu0
        %v5836 = vadd.f32 0.0, %v5835
        %5837 = vmatprep.mubr.bf16.mxu0 %v5419
        %5838 = vmatmul.mubr.bf16.gmra.mxu0 %v5416
        %v5839 = vpop.f32.mrf.mxu0
        %v5840 = vadd.f32 0.0, %v5839
        %v5841 = vpop.f32.mrf.mxu0
        %v5842 = vadd.f32 0.0, %v5841
        %v5843 = vpop.f32.mrf.mxu0
        %v5844 = vpop.f32.mrf.mxu0
        %5845 = vdwg.mxu0
        %v5910 = vunpack.c.l.b16 %v5261
        %v5911 = vunpack.c.h.b16 %v5261
        %v5912 = vunpack.c.l.b16 %v5262
        %v5913 = vunpack.c.h.b16 %v5262
        %v5914 = vunpack.c.l.b16 %v5263
        %v5915 = vunpack.c.h.b16 %v5263
        %v5916 = vunpack.c.l.b16 %v5264
        %v5917 = vunpack.c.h.b16 %v5264
        %v5918 = vunpack.c.l.b16 %v5265
        %v5919 = vunpack.c.h.b16 %v5265
        %v5920 = vunpack.c.l.b16 %v5266
        %v5921 = vunpack.c.h.b16 %v5266
        %v5922 = vunpack.c.l.b16 %v5267
        %v5923 = vunpack.c.h.b16 %v5267
        %v5924 = vunpack.c.l.b16 %v5268
        %v5925 = vunpack.c.h.b16 %v5268
        %v5926 = vunpack.c.l.b16 %v5269
        %v5927 = vunpack.c.h.b16 %v5269
        %v5928 = vunpack.c.l.b16 %v5270
        %v5929 = vunpack.c.h.b16 %v5270
        %v5930 = vunpack.c.l.b16 %v5271
        %v5931 = vunpack.c.h.b16 %v5271
        %v5932 = vunpack.c.l.b16 %v5272
        %v5933 = vunpack.c.h.b16 %v5272
        %v5934 = vunpack.c.l.b16 %v5273
        %v5935 = vunpack.c.h.b16 %v5273
        %v5936 = vunpack.c.l.b16 %v5274
        %v5937 = vunpack.c.h.b16 %v5274
        %v5938 = vunpack.c.l.b16 %v5275
        %v5939 = vunpack.c.h.b16 %v5275
        %v5940 = vunpack.c.l.b16 %v5276
        %v5941 = vunpack.c.h.b16 %v5276
        %v5942 = vunpack.c.l.b16 %v5277
        %v5943 = vunpack.c.h.b16 %v5277
        %v5944 = vunpack.c.l.b16 %v5278
        %v5945 = vunpack.c.h.b16 %v5278
        %v5946 = vunpack.c.l.b16 %v5279
        %v5947 = vunpack.c.h.b16 %v5279
        %v5948 = vunpack.c.l.b16 %v5280
        %v5949 = vunpack.c.h.b16 %v5280
        %v5950 = vunpack.c.l.b16 %v5281
        %v5951 = vunpack.c.h.b16 %v5281
        %v5952 = vunpack.c.l.b16 %v5282
        %v5953 = vunpack.c.h.b16 %v5282
        %v5954 = vunpack.c.l.b16 %v5283
        %v5955 = vunpack.c.h.b16 %v5283
        %v5956 = vunpack.c.l.b16 %v5284
        %v5957 = vunpack.c.h.b16 %v5284
        %v5958 = vunpack.c.l.b16 %v5285
        %v5959 = vunpack.c.h.b16 %v5285
        %v5960 = vunpack.c.l.b16 %v5286
        %v5961 = vunpack.c.h.b16 %v5286
        %v5962 = vunpack.c.l.b16 %v5287
        %v5963 = vunpack.c.h.b16 %v5287
        %v5964 = vunpack.c.l.b16 %v5288
        %v5965 = vunpack.c.h.b16 %v5288
        %v5966 = vunpack.c.l.b16 %v5289
        %v5967 = vunpack.c.h.b16 %v5289
        %v5968 = vunpack.c.l.b16 %v5290
        %v5969 = vunpack.c.h.b16 %v5290
        %v5970 = vunpack.c.l.b16 %v5291
        %v5971 = vunpack.c.h.b16 %v5291
        %v5972 = vunpack.c.l.b16 %v5292
        %v5973 = vunpack.c.h.b16 %v5292
        %v5974 = vunpack.c.l.b16 %v5293
        %v5975 = vunpack.c.h.b16 %v5293
        %v5976 = vunpack.c.l.b16 %v5294
        %v5977 = vunpack.c.h.b16 %v5294
        %v5978 = vunpack.c.l.b16 %v5295
        %v5979 = vunpack.c.h.b16 %v5295
        %v5980 = vunpack.c.l.b16 %v5296
        %v5981 = vunpack.c.h.b16 %v5296
        %v5982 = vunpack.c.l.b16 %v5297
        %v5983 = vunpack.c.h.b16 %v5297
        %v5984 = vunpack.c.l.b16 %v5298
        %v5985 = vunpack.c.h.b16 %v5298
        %v5986 = vunpack.c.l.b16 %v5299
        %v5987 = vunpack.c.h.b16 %v5299
        %v5988 = vunpack.c.l.b16 %v5300
        %v5989 = vunpack.c.h.b16 %v5300
        %v5990 = vunpack.c.l.b16 %v5301
        %v5991 = vunpack.c.h.b16 %v5301
        %v5992 = vunpack.c.l.b16 %v5302
        %v5993 = vunpack.c.h.b16 %v5302
        %v5994 = vunpack.c.l.b16 %v5303
        %v5995 = vunpack.c.h.b16 %v5303
        %v5996 = vunpack.c.l.b16 %v5304
        %v5997 = vunpack.c.h.b16 %v5304
        %v5998 = vunpack.c.l.b16 %v5305
        %v5999 = vunpack.c.h.b16 %v5305
        %v6000 = vunpack.c.l.b16 %v5306
        %v6001 = vunpack.c.h.b16 %v5306
        %v6002 = vunpack.c.l.b16 %v5307
        %v6003 = vunpack.c.h.b16 %v5307
        %v6004 = vunpack.c.l.b16 %v5308
        %v6005 = vunpack.c.h.b16 %v5308
        %v6006 = vunpack.c.l.b16 %v5309
        %v6007 = vunpack.c.h.b16 %v5309
        %v6008 = vunpack.c.l.b16 %v5310
        %v6009 = vunpack.c.h.b16 %v5310
        %v6010 = vunpack.c.l.b16 %v5311
        %v6011 = vunpack.c.h.b16 %v5311
        %v6012 = vunpack.c.l.b16 %v5312
        %v6013 = vunpack.c.h.b16 %v5312
        %v6014 = vunpack.c.l.b16 %v5313
        %v6015 = vunpack.c.h.b16 %v5313
        %v6016 = vunpack.c.l.b16 %v5314
        %v6017 = vunpack.c.h.b16 %v5314
        %v6018 = vunpack.c.l.b16 %v5315
        %v6019 = vunpack.c.h.b16 %v5315
        %v6020 = vunpack.c.l.b16 %v5316
        %v6021 = vunpack.c.h.b16 %v5316
        %v6022 = vunpack.c.l.b16 %v5317
        %v6023 = vunpack.c.h.b16 %v5317
        %v6024 = vunpack.c.l.b16 %v5318
        %v6025 = vunpack.c.h.b16 %v5318
        %v6026 = vunpack.c.l.b16 %v5319
        %v6027 = vunpack.c.h.b16 %v5319
        %v6028 = vunpack.c.l.b16 %v5320
        %v6029 = vunpack.c.h.b16 %v5320
        %v6030 = vunpack.c.l.b16 %v5321
        %v6031 = vunpack.c.h.b16 %v5321
        %v6032 = vunpack.c.l.b16 %v5322
        %v6033 = vunpack.c.h.b16 %v5322
        %v6034 = vunpack.c.l.b16 %v5323
        %v6035 = vunpack.c.h.b16 %v5323
        %v6036 = vunpack.c.l.b16 %v5324
        %v6037 = vunpack.c.h.b16 %v5324
        %v6038 = vpack.c.b16 %v5914, %v5910
        %v6039 = vpack.c.b16 %v5915, %v5911
        %v6040 = vpack.c.b16 %v5916, %v5912
        %v6041 = vpack.c.b16 %v5917, %v5913
        %v6042 = vpack.c.b16 %v5922, %v5918
        %v6043 = vpack.c.b16 %v5923, %v5919
        %v6044 = vpack.c.b16 %v5924, %v5920
        %v6045 = vpack.c.b16 %v5925, %v5921
        %v6046 = vpack.c.b16 %v5930, %v5926
        %v6047 = vpack.c.b16 %v5931, %v5927
        %v6048 = vpack.c.b16 %v5932, %v5928
        %v6049 = vpack.c.b16 %v5933, %v5929
        %v6050 = vpack.c.b16 %v5938, %v5934
        %v6051 = vpack.c.b16 %v5939, %v5935
        %v6052 = vpack.c.b16 %v5940, %v5936
        %v6053 = vpack.c.b16 %v5941, %v5937
        %v6054 = vpack.c.b16 %v5946, %v5942
        %v6055 = vpack.c.b16 %v5947, %v5943
        %v6056 = vpack.c.b16 %v5948, %v5944
        %v6057 = vpack.c.b16 %v5949, %v5945
        %v6058 = vpack.c.b16 %v5954, %v5950
        %v6059 = vpack.c.b16 %v5955, %v5951
        %v6060 = vpack.c.b16 %v5956, %v5952
        %v6061 = vpack.c.b16 %v5957, %v5953
        %v6062 = vpack.c.b16 %v5962, %v5958
        %v6063 = vpack.c.b16 %v5963, %v5959
        %v6064 = vpack.c.b16 %v5964, %v5960
        %v6065 = vpack.c.b16 %v5965, %v5961
        %v6066 = vpack.c.b16 %v5970, %v5966
        %v6067 = vpack.c.b16 %v5971, %v5967
        %v6068 = vpack.c.b16 %v5972, %v5968
        %v6069 = vpack.c.b16 %v5973, %v5969
        %v6070 = vpack.c.b16 %v5978, %v5974
        %v6071 = vpack.c.b16 %v5979, %v5975
        %v6072 = vpack.c.b16 %v5980, %v5976
        %v6073 = vpack.c.b16 %v5981, %v5977
        %v6074 = vpack.c.b16 %v5986, %v5982
        %v6075 = vpack.c.b16 %v5987, %v5983
        %v6076 = vpack.c.b16 %v5988, %v5984
        %v6077 = vpack.c.b16 %v5989, %v5985
        %v6078 = vpack.c.b16 %v5994, %v5990
        %v6079 = vpack.c.b16 %v5995, %v5991
        %v6080 = vpack.c.b16 %v5996, %v5992
        %v6081 = vpack.c.b16 %v5997, %v5993
        %v6082 = vpack.c.b16 %v6002, %v5998
        %v6083 = vpack.c.b16 %v6003, %v5999
        %v6084 = vpack.c.b16 %v6004, %v6000
        %v6085 = vpack.c.b16 %v6005, %v6001
        %v6086 = vpack.c.b16 %v6010, %v6006
        %v6087 = vpack.c.b16 %v6011, %v6007
        %v6088 = vpack.c.b16 %v6012, %v6008
        %v6089 = vpack.c.b16 %v6013, %v6009
        %v6090 = vpack.c.b16 %v6018, %v6014
        %v6091 = vpack.c.b16 %v6019, %v6015
        %v6092 = vpack.c.b16 %v6020, %v6016
        %v6093 = vpack.c.b16 %v6021, %v6017
        %v6094 = vpack.c.b16 %v6026, %v6022
        %v6095 = vpack.c.b16 %v6027, %v6023
        %v6096 = vpack.c.b16 %v6028, %v6024
        %v6097 = vpack.c.b16 %v6029, %v6025
        %v6098 = vpack.c.b16 %v6034, %v6030
        %v6099 = vpack.c.b16 %v6035, %v6031
        %v6100 = vpack.c.b16 %v6036, %v6032
        %v6101 = vpack.c.b16 %v6037, %v6033
        %6166 = vmatprep.subr.bf16.mxu0 %v6067
        %6167 = vmatpush1.bf16.msra.mxu0 %v6066
        %6168 = vmatprep.subr.bf16.mxu0 %v6063
        %6169 = vmatpush1.bf16.msra.mxu0 %v6062
        %6170 = vmatprep.subr.bf16.mxu0 %v6059
        %6171 = vmatpush1.bf16.msra.mxu0 %v6058
        %6172 = vmatprep.subr.bf16.mxu0 %v6055
        %6173 = vmatpush1.bf16.msra.mxu0 %v6054
        %6174 = vmatprep.subr.bf16.mxu0 %v6051
        %6175 = vmatpush1.bf16.msra.mxu0 %v6050
        %6176 = vmatprep.subr.bf16.mxu0 %v6047
        %6177 = vmatpush1.bf16.msra.mxu0 %v6046
        %6178 = vmatprep.subr.bf16.mxu0 %v6043
        %6179 = vmatpush1.bf16.msra.mxu0 %v6042
        %6180 = vmatprep.subr.bf16.mxu0 %v6039
        %6181 = vmatpush1.bf16.msra.mxu0 %v6038
        %6182 = vmatprep.subr.bf16.mxu0 %v6099
        %6183 = vmatpush2.bf16.msra.mxu0 %v6098
        %6184 = vmatprep.subr.bf16.mxu0 %v6095
        %6185 = vmatpush2.bf16.msra.mxu0 %v6094
        %6186 = vmatprep.subr.bf16.mxu0 %v6091
        %6187 = vmatpush2.bf16.msra.mxu0 %v6090
        %6188 = vmatprep.subr.bf16.mxu0 %v6087
        %6189 = vmatpush2.bf16.msra.mxu0 %v6086
        %6190 = vmatprep.subr.bf16.mxu0 %v6083
        %6191 = vmatpush2.bf16.msra.mxu0 %v6082
        %6192 = vmatprep.subr.bf16.mxu0 %v6079
        %6193 = vmatpush2.bf16.msra.mxu0 %v6078
        %6194 = vmatprep.subr.bf16.mxu0 %v6075
        %6195 = vmatpush2.bf16.msra.mxu0 %v6074
        %6196 = vmatprep.subr.bf16.mxu0 %v6071
        %6197 = vmatpush2.bf16.msra.mxu0 %v6070
        %6198 = vmatprep.mubr.bf16.mxu0 %v3738
        %6199 = vmatmul.mubr.bf16.gmra.mxu0 %v3737
        %v6200 = vpop.f32.mrf.mxu0
        %v6201 = vadd.f32 %v5779, %v6200
        %v6202 = vpop.f32.mrf.mxu0
        %v6203 = vadd.f32 %v5781, %v6202
        %v6204 = vpop.f32.mrf.mxu0
        %v6205 = vadd.f32 %v5783, %v6204
        %v6206 = vpop.f32.mrf.mxu0
        %v6207 = vadd.f32 %v5785, %v6206
        %6208 = vmatprep.mubr.bf16.mxu0 %v3740
        %6209 = vmatmul.mubr.bf16.gmra.mxu0 %v3739
        %v6210 = vpop.f32.mrf.mxu0
        %v6211 = vadd.f32 %v5789, %v6210
        %v6212 = vpop.f32.mrf.mxu0
        %v6213 = vadd.f32 %v5791, %v6212
        %v6214 = vpop.f32.mrf.mxu0
        %v6215 = vpop.f32.mrf.mxu0
        %6216 = vdwg.mxu0
        %6217 = vmatprep.subr.bf16.mxu0 %v6069
        %6218 = vmatpush1.bf16.msra.mxu0 %v6068
        %6219 = vmatprep.subr.bf16.mxu0 %v6065
        %6220 = vmatpush1.bf16.msra.mxu0 %v6064
        %6221 = vmatprep.subr.bf16.mxu0 %v6061
        %6222 = vmatpush1.bf16.msra.mxu0 %v6060
        %6223 = vmatprep.subr.bf16.mxu0 %v6057
        %6224 = vmatpush1.bf16.msra.mxu0 %v6056
        %6225 = vmatprep.subr.bf16.mxu0 %v6053
        %6226 = vmatpush1.bf16.msra.mxu0 %v6052
        %6227 = vmatprep.subr.bf16.mxu0 %v6049
        %6228 = vmatpush1.bf16.msra.mxu0 %v6048
        %6229 = vmatprep.subr.bf16.mxu0 %v6045
        %6230 = vmatpush1.bf16.msra.mxu0 %v6044
        %6231 = vmatprep.subr.bf16.mxu0 %v6041
        %6232 = vmatpush1.bf16.msra.mxu0 %v6040
        %6233 = vmatprep.subr.bf16.mxu0 %v6101
        %6234 = vmatpush2.bf16.msra.mxu0 %v6100
        %6235 = vmatprep.subr.bf16.mxu0 %v6097
        %6236 = vmatpush2.bf16.msra.mxu0 %v6096
        %6237 = vmatprep.subr.bf16.mxu0 %v6093
        %6238 = vmatpush2.bf16.msra.mxu0 %v6092
        %6239 = vmatprep.subr.bf16.mxu0 %v6089
        %6240 = vmatpush2.bf16.msra.mxu0 %v6088
        %6241 = vmatprep.subr.bf16.mxu0 %v6085
        %6242 = vmatpush2.bf16.msra.mxu0 %v6084
        %6243 = vmatprep.subr.bf16.mxu0 %v6081
        %6244 = vmatpush2.bf16.msra.mxu0 %v6080
        %6245 = vmatprep.subr.bf16.mxu0 %v6077
        %6246 = vmatpush2.bf16.msra.mxu0 %v6076
        %6247 = vmatprep.subr.bf16.mxu0 %v6073
        %6248 = vmatpush2.bf16.msra.mxu0 %v6072
        %6249 = vmatprep.mubr.bf16.mxu0 %v3738
        %6250 = vmatmul.mubr.bf16.gmra.mxu0 %v3737
        %v6251 = vpop.f32.mrf.mxu0
        %v6252 = vadd.f32 %v5830, %v6251
        %v6253 = vpop.f32.mrf.mxu0
        %v6254 = vadd.f32 %v5832, %v6253
        %v6255 = vpop.f32.mrf.mxu0
        %v6256 = vadd.f32 %v5834, %v6255
        %v6257 = vpop.f32.mrf.mxu0
        %v6258 = vadd.f32 %v5836, %v6257
        %6259 = vmatprep.mubr.bf16.mxu0 %v3740
        %6260 = vmatmul.mubr.bf16.gmra.mxu0 %v3739
        %v6261 = vpop.f32.mrf.mxu0
        %v6262 = vadd.f32 %v5840, %v6261
        %v6263 = vpop.f32.mrf.mxu0
        %v6264 = vadd.f32 %v5842, %v6263
        %v6265 = vpop.f32.mrf.mxu0
        %v6266 = vpop.f32.mrf.mxu0
        %6267 = vdwg.mxu0
        %s6268 = scalar_lea.vmem [#allocation12], 1024
        %v6269 = vld [vmem:[%s6268] sm:$0xff]
        %v6270 = vld [vmem:[%s6268 + $0x8] sm:$0xff]
        %v6271 = vld [vmem:[%s6268 + $0x10] sm:$0xff]
        %v6272 = vld [vmem:[%s6268 + $0x18] sm:$0xff]
        %v6273 = vld [vmem:[%s6268 + $0x20] sm:$0xff]
        %v6274 = vld [vmem:[%s6268 + $0x28] sm:$0xff]
        %v6275 = vld [vmem:[%s6268 + $0x30] sm:$0xff]
        %v6276 = vld [vmem:[%s6268 + $0x38] sm:$0xff]
        %v6277 = vld [vmem:[%s6268 + $0x40] sm:$0xff]
        %v6278 = vld [vmem:[%s6268 + $0x48] sm:$0xff]
        %v6279 = vld [vmem:[%s6268 + $0x50] sm:$0xff]
        %v6280 = vld [vmem:[%s6268 + $0x58] sm:$0xff]
        %v6281 = vld [vmem:[%s6268 + $0x60] sm:$0xff]
        %v6282 = vld [vmem:[%s6268 + $0x68] sm:$0xff]
        %v6283 = vld [vmem:[%s6268 + $0x70] sm:$0xff]
        %v6284 = vld [vmem:[%s6268 + $0x78] sm:$0xff]
        %v6285 = vld [vmem:[%s6268 + $0x80] sm:$0xff]
        %v6286 = vld [vmem:[%s6268 + $0x88] sm:$0xff]
        %v6287 = vld [vmem:[%s6268 + $0x90] sm:$0xff]
        %v6288 = vld [vmem:[%s6268 + $0x98] sm:$0xff]
        %v6289 = vld [vmem:[%s6268 + $0xa0] sm:$0xff]
        %v6290 = vld [vmem:[%s6268 + $0xa8] sm:$0xff]
        %v6291 = vld [vmem:[%s6268 + $0xb0] sm:$0xff]
        %v6292 = vld [vmem:[%s6268 + $0xb8] sm:$0xff]
        %v6293 = vld [vmem:[%s6268 + $0xc0] sm:$0xff]
        %v6294 = vld [vmem:[%s6268 + $0xc8] sm:$0xff]
        %v6295 = vld [vmem:[%s6268 + $0xd0] sm:$0xff]
        %v6296 = vld [vmem:[%s6268 + $0xd8] sm:$0xff]
        %v6297 = vld [vmem:[%s6268 + $0xe0] sm:$0xff]
        %v6298 = vld [vmem:[%s6268 + $0xe8] sm:$0xff]
        %v6299 = vld [vmem:[%s6268 + $0xf0] sm:$0xff]
        %v6300 = vld [vmem:[%s6268 + $0xf8] sm:$0xff]
        %v6301 = vld [vmem:[%s6268 + $0x100] sm:$0xff]
        %v6302 = vld [vmem:[%s6268 + $0x108] sm:$0xff]
        %v6303 = vld [vmem:[%s6268 + $0x110] sm:$0xff]
        %v6304 = vld [vmem:[%s6268 + $0x118] sm:$0xff]
        %v6305 = vld [vmem:[%s6268 + $0x120] sm:$0xff]
        %v6306 = vld [vmem:[%s6268 + $0x128] sm:$0xff]
        %v6307 = vld [vmem:[%s6268 + $0x130] sm:$0xff]
        %v6308 = vld [vmem:[%s6268 + $0x138] sm:$0xff]
        %v6309 = vld [vmem:[%s6268 + $0x140] sm:$0xff]
        %v6310 = vld [vmem:[%s6268 + $0x148] sm:$0xff]
        %v6311 = vld [vmem:[%s6268 + $0x150] sm:$0xff]
        %v6312 = vld [vmem:[%s6268 + $0x158] sm:$0xff]
        %v6313 = vld [vmem:[%s6268 + $0x160] sm:$0xff]
        %v6314 = vld [vmem:[%s6268 + $0x168] sm:$0xff]
        %v6315 = vld [vmem:[%s6268 + $0x170] sm:$0xff]
        %v6316 = vld [vmem:[%s6268 + $0x178] sm:$0xff]
        %v6317 = vld [vmem:[%s6268 + $0x180] sm:$0xff]
        %v6318 = vld [vmem:[%s6268 + $0x188] sm:$0xff]
        %v6319 = vld [vmem:[%s6268 + $0x190] sm:$0xff]
        %v6320 = vld [vmem:[%s6268 + $0x198] sm:$0xff]
        %v6321 = vld [vmem:[%s6268 + $0x1a0] sm:$0xff]
        %v6322 = vld [vmem:[%s6268 + $0x1a8] sm:$0xff]
        %v6323 = vld [vmem:[%s6268 + $0x1b0] sm:$0xff]
        %v6324 = vld [vmem:[%s6268 + $0x1b8] sm:$0xff]
        %v6325 = vld [vmem:[%s6268 + $0x1c0] sm:$0xff]
        %v6326 = vld [vmem:[%s6268 + $0x1c8] sm:$0xff]
        %v6327 = vld [vmem:[%s6268 + $0x1d0] sm:$0xff]
        %v6328 = vld [vmem:[%s6268 + $0x1d8] sm:$0xff]
        %v6329 = vld [vmem:[%s6268 + $0x1e0] sm:$0xff]
        %v6330 = vld [vmem:[%s6268 + $0x1e8] sm:$0xff]
        %v6331 = vld [vmem:[%s6268 + $0x1f0] sm:$0xff]
        %v6332 = vld [vmem:[%s6268 + $0x1f8] sm:$0xff]
        %v6337 = vrot.slane %v3737, 1
        %v6338 = vrot.slane %v3739, 1
        %v6339 = vsel %vm1137, %v6337, %v6338
        %v6340 = vrot.slane %v3738, 1
        %v6341 = vrot.slane %v3740, 1
        %v6342 = vsel %vm1137, %v6340, %v6341
        %v6411 = vunpack.c.l.b16 %v6269
        %v6412 = vunpack.c.h.b16 %v6269
        %v6413 = vunpack.c.l.b16 %v6270
        %v6414 = vunpack.c.h.b16 %v6270
        %v6415 = vunpack.c.l.b16 %v6271
        %v6416 = vunpack.c.h.b16 %v6271
        %v6417 = vunpack.c.l.b16 %v6272
        %v6418 = vunpack.c.h.b16 %v6272
        %v6419 = vunpack.c.l.b16 %v6273
        %v6420 = vunpack.c.h.b16 %v6273
        %v6421 = vunpack.c.l.b16 %v6274
        %v6422 = vunpack.c.h.b16 %v6274
        %v6423 = vunpack.c.l.b16 %v6275
        %v6424 = vunpack.c.h.b16 %v6275
        %v6425 = vunpack.c.l.b16 %v6276
        %v6426 = vunpack.c.h.b16 %v6276
        %v6427 = vunpack.c.l.b16 %v6277
        %v6428 = vunpack.c.h.b16 %v6277
        %v6429 = vunpack.c.l.b16 %v6278
        %v6430 = vunpack.c.h.b16 %v6278
        %v6431 = vunpack.c.l.b16 %v6279
        %v6432 = vunpack.c.h.b16 %v6279
        %v6433 = vunpack.c.l.b16 %v6280
        %v6434 = vunpack.c.h.b16 %v6280
        %v6435 = vunpack.c.l.b16 %v6281
        %v6436 = vunpack.c.h.b16 %v6281
        %v6437 = vunpack.c.l.b16 %v6282
        %v6438 = vunpack.c.h.b16 %v6282
        %v6439 = vunpack.c.l.b16 %v6283
        %v6440 = vunpack.c.h.b16 %v6283
        %v6441 = vunpack.c.l.b16 %v6284
        %v6442 = vunpack.c.h.b16 %v6284
        %v6443 = vunpack.c.l.b16 %v6285
        %v6444 = vunpack.c.h.b16 %v6285
        %v6445 = vunpack.c.l.b16 %v6286
        %v6446 = vunpack.c.h.b16 %v6286
        %v6447 = vunpack.c.l.b16 %v6287
        %v6448 = vunpack.c.h.b16 %v6287
        %v6449 = vunpack.c.l.b16 %v6288
        %v6450 = vunpack.c.h.b16 %v6288
        %v6451 = vunpack.c.l.b16 %v6289
        %v6452 = vunpack.c.h.b16 %v6289
        %v6453 = vunpack.c.l.b16 %v6290
        %v6454 = vunpack.c.h.b16 %v6290
        %v6455 = vunpack.c.l.b16 %v6291
        %v6456 = vunpack.c.h.b16 %v6291
        %v6457 = vunpack.c.l.b16 %v6292
        %v6458 = vunpack.c.h.b16 %v6292
        %v6459 = vunpack.c.l.b16 %v6293
        %v6460 = vunpack.c.h.b16 %v6293
        %v6461 = vunpack.c.l.b16 %v6294
        %v6462 = vunpack.c.h.b16 %v6294
        %v6463 = vunpack.c.l.b16 %v6295
        %v6464 = vunpack.c.h.b16 %v6295
        %v6465 = vunpack.c.l.b16 %v6296
        %v6466 = vunpack.c.h.b16 %v6296
        %v6467 = vunpack.c.l.b16 %v6297
        %v6468 = vunpack.c.h.b16 %v6297
        %v6469 = vunpack.c.l.b16 %v6298
        %v6470 = vunpack.c.h.b16 %v6298
        %v6471 = vunpack.c.l.b16 %v6299
        %v6472 = vunpack.c.h.b16 %v6299
        %v6473 = vunpack.c.l.b16 %v6300
        %v6474 = vunpack.c.h.b16 %v6300
        %v6475 = vunpack.c.l.b16 %v6301
        %v6476 = vunpack.c.h.b16 %v6301
        %v6477 = vunpack.c.l.b16 %v6302
        %v6478 = vunpack.c.h.b16 %v6302
        %v6479 = vunpack.c.l.b16 %v6303
        %v6480 = vunpack.c.h.b16 %v6303
        %v6481 = vunpack.c.l.b16 %v6304
        %v6482 = vunpack.c.h.b16 %v6304
        %v6483 = vunpack.c.l.b16 %v6305
        %v6484 = vunpack.c.h.b16 %v6305
        %v6485 = vunpack.c.l.b16 %v6306
        %v6486 = vunpack.c.h.b16 %v6306
        %v6487 = vunpack.c.l.b16 %v6307
        %v6488 = vunpack.c.h.b16 %v6307
        %v6489 = vunpack.c.l.b16 %v6308
        %v6490 = vunpack.c.h.b16 %v6308
        %v6491 = vunpack.c.l.b16 %v6309
        %v6492 = vunpack.c.h.b16 %v6309
        %v6493 = vunpack.c.l.b16 %v6310
        %v6494 = vunpack.c.h.b16 %v6310
        %v6495 = vunpack.c.l.b16 %v6311
        %v6496 = vunpack.c.h.b16 %v6311
        %v6497 = vunpack.c.l.b16 %v6312
        %v6498 = vunpack.c.h.b16 %v6312
        %v6499 = vunpack.c.l.b16 %v6313
        %v6500 = vunpack.c.h.b16 %v6313
        %v6501 = vunpack.c.l.b16 %v6314
        %v6502 = vunpack.c.h.b16 %v6314
        %v6503 = vunpack.c.l.b16 %v6315
        %v6504 = vunpack.c.h.b16 %v6315
        %v6505 = vunpack.c.l.b16 %v6316
        %v6506 = vunpack.c.h.b16 %v6316
        %v6507 = vunpack.c.l.b16 %v6317
        %v6508 = vunpack.c.h.b16 %v6317
        %v6509 = vunpack.c.l.b16 %v6318
        %v6510 = vunpack.c.h.b16 %v6318
        %v6511 = vunpack.c.l.b16 %v6319
        %v6512 = vunpack.c.h.b16 %v6319
        %v6513 = vunpack.c.l.b16 %v6320
        %v6514 = vunpack.c.h.b16 %v6320
        %v6515 = vunpack.c.l.b16 %v6321
        %v6516 = vunpack.c.h.b16 %v6321
        %v6517 = vunpack.c.l.b16 %v6322
        %v6518 = vunpack.c.h.b16 %v6322
        %v6519 = vunpack.c.l.b16 %v6323
        %v6520 = vunpack.c.h.b16 %v6323
        %v6521 = vunpack.c.l.b16 %v6324
        %v6522 = vunpack.c.h.b16 %v6324
        %v6523 = vunpack.c.l.b16 %v6325
        %v6524 = vunpack.c.h.b16 %v6325
        %v6525 = vunpack.c.l.b16 %v6326
        %v6526 = vunpack.c.h.b16 %v6326
        %v6527 = vunpack.c.l.b16 %v6327
        %v6528 = vunpack.c.h.b16 %v6327
        %v6529 = vunpack.c.l.b16 %v6328
        %v6530 = vunpack.c.h.b16 %v6328
        %v6531 = vunpack.c.l.b16 %v6329
        %v6532 = vunpack.c.h.b16 %v6329
        %v6533 = vunpack.c.l.b16 %v6330
        %v6534 = vunpack.c.h.b16 %v6330
        %v6535 = vunpack.c.l.b16 %v6331
        %v6536 = vunpack.c.h.b16 %v6331
        %v6537 = vunpack.c.l.b16 %v6332
        %v6538 = vunpack.c.h.b16 %v6332
        %v6539 = vpack.c.b16 %v6415, %v6411
        %v6540 = vpack.c.b16 %v6416, %v6412
        %v6541 = vpack.c.b16 %v6417, %v6413
        %v6542 = vpack.c.b16 %v6418, %v6414
        %v6543 = vpack.c.b16 %v6423, %v6419
        %v6544 = vpack.c.b16 %v6424, %v6420
        %v6545 = vpack.c.b16 %v6425, %v6421
        %v6546 = vpack.c.b16 %v6426, %v6422
        %v6547 = vpack.c.b16 %v6431, %v6427
        %v6548 = vpack.c.b16 %v6432, %v6428
        %v6549 = vpack.c.b16 %v6433, %v6429
        %v6550 = vpack.c.b16 %v6434, %v6430
        %v6551 = vpack.c.b16 %v6439, %v6435
        %v6552 = vpack.c.b16 %v6440, %v6436
        %v6553 = vpack.c.b16 %v6441, %v6437
        %v6554 = vpack.c.b16 %v6442, %v6438
        %v6555 = vpack.c.b16 %v6447, %v6443
        %v6556 = vpack.c.b16 %v6448, %v6444
        %v6557 = vpack.c.b16 %v6449, %v6445
        %v6558 = vpack.c.b16 %v6450, %v6446
        %v6559 = vpack.c.b16 %v6455, %v6451
        %v6560 = vpack.c.b16 %v6456, %v6452
        %v6561 = vpack.c.b16 %v6457, %v6453
        %v6562 = vpack.c.b16 %v6458, %v6454
        %v6563 = vpack.c.b16 %v6463, %v6459
        %v6564 = vpack.c.b16 %v6464, %v6460
        %v6565 = vpack.c.b16 %v6465, %v6461
        %v6566 = vpack.c.b16 %v6466, %v6462
        %v6567 = vpack.c.b16 %v6471, %v6467
        %v6568 = vpack.c.b16 %v6472, %v6468
        %v6569 = vpack.c.b16 %v6473, %v6469
        %v6570 = vpack.c.b16 %v6474, %v6470
        %v6571 = vpack.c.b16 %v6479, %v6475
        %v6572 = vpack.c.b16 %v6480, %v6476
        %v6573 = vpack.c.b16 %v6481, %v6477
        %v6574 = vpack.c.b16 %v6482, %v6478
        %v6575 = vpack.c.b16 %v6487, %v6483
        %v6576 = vpack.c.b16 %v6488, %v6484
        %v6577 = vpack.c.b16 %v6489, %v6485
        %v6578 = vpack.c.b16 %v6490, %v6486
        %v6579 = vpack.c.b16 %v6495, %v6491
        %v6580 = vpack.c.b16 %v6496, %v6492
        %v6581 = vpack.c.b16 %v6497, %v6493
        %v6582 = vpack.c.b16 %v6498, %v6494
        %v6583 = vpack.c.b16 %v6503, %v6499
        %v6584 = vpack.c.b16 %v6504, %v6500
        %v6585 = vpack.c.b16 %v6505, %v6501
        %v6586 = vpack.c.b16 %v6506, %v6502
        %v6587 = vpack.c.b16 %v6511, %v6507
        %v6588 = vpack.c.b16 %v6512, %v6508
        %v6589 = vpack.c.b16 %v6513, %v6509
        %v6590 = vpack.c.b16 %v6514, %v6510
        %v6591 = vpack.c.b16 %v6519, %v6515
        %v6592 = vpack.c.b16 %v6520, %v6516
        %v6593 = vpack.c.b16 %v6521, %v6517
        %v6594 = vpack.c.b16 %v6522, %v6518
        %v6595 = vpack.c.b16 %v6527, %v6523
        %v6596 = vpack.c.b16 %v6528, %v6524
        %v6597 = vpack.c.b16 %v6529, %v6525
        %v6598 = vpack.c.b16 %v6530, %v6526
        %v6599 = vpack.c.b16 %v6535, %v6531
        %v6600 = vpack.c.b16 %v6536, %v6532
        %v6601 = vpack.c.b16 %v6537, %v6533
        %v6602 = vpack.c.b16 %v6538, %v6534
        %6667 = vmatprep.subr.bf16.mxu0 %v6568
        %6668 = vmatpush1.bf16.msra.mxu0 %v6567
        %6669 = vmatprep.subr.bf16.mxu0 %v6564
        %6670 = vmatpush1.bf16.msra.mxu0 %v6563
        %6671 = vmatprep.subr.bf16.mxu0 %v6560
        %6672 = vmatpush1.bf16.msra.mxu0 %v6559
        %6673 = vmatprep.subr.bf16.mxu0 %v6556
        %6674 = vmatpush1.bf16.msra.mxu0 %v6555
        %6675 = vmatprep.subr.bf16.mxu0 %v6552
        %6676 = vmatpush1.bf16.msra.mxu0 %v6551
        %6677 = vmatprep.subr.bf16.mxu0 %v6548
        %6678 = vmatpush1.bf16.msra.mxu0 %v6547
        %6679 = vmatprep.subr.bf16.mxu0 %v6544
        %6680 = vmatpush1.bf16.msra.mxu0 %v6543
        %6681 = vmatprep.subr.bf16.mxu0 %v6540
        %6682 = vmatpush1.bf16.msra.mxu0 %v6539
        %6683 = vmatprep.subr.bf16.mxu0 %v6600
        %6684 = vmatpush2.bf16.msra.mxu0 %v6599
        %6685 = vmatprep.subr.bf16.mxu0 %v6596
        %6686 = vmatpush2.bf16.msra.mxu0 %v6595
        %6687 = vmatprep.subr.bf16.mxu0 %v6592
        %6688 = vmatpush2.bf16.msra.mxu0 %v6591
        %6689 = vmatprep.subr.bf16.mxu0 %v6588
        %6690 = vmatpush2.bf16.msra.mxu0 %v6587
        %6691 = vmatprep.subr.bf16.mxu0 %v6584
        %6692 = vmatpush2.bf16.msra.mxu0 %v6583
        %6693 = vmatprep.subr.bf16.mxu0 %v6580
        %6694 = vmatpush2.bf16.msra.mxu0 %v6579
        %6695 = vmatprep.subr.bf16.mxu0 %v6576
        %6696 = vmatpush2.bf16.msra.mxu0 %v6575
        %6697 = vmatprep.subr.bf16.mxu0 %v6572
        %6698 = vmatpush2.bf16.msra.mxu0 %v6571
        %6699 = vmatprep.mubr.bf16.mxu0 %v6342
        %6700 = vmatmul.mubr.bf16.gmra.mxu0 %v6339
        %v6701 = vpop.f32.mrf.mxu0
        %v6702 = vadd.f32 0.0, %v6701
        %v6703 = vpop.f32.mrf.mxu0
        %v6704 = vadd.f32 0.0, %v6703
        %v6705 = vpop.f32.mrf.mxu0
        %v6706 = vadd.f32 0.0, %v6705
        %v6707 = vpop.f32.mrf.mxu0
        %v6708 = vadd.f32 0.0, %v6707
        %6709 = vmatprep.mubr.bf16.mxu0 %v6341
        %6710 = vmatmul.mubr.bf16.gmra.mxu0 %v6338
        %v6711 = vpop.f32.mrf.mxu0
        %v6712 = vadd.f32 0.0, %v6711
        %v6713 = vpop.f32.mrf.mxu0
        %v6714 = vadd.f32 0.0, %v6713
        %v6715 = vpop.f32.mrf.mxu0
        %v6716 = vpop.f32.mrf.mxu0
        %6717 = vdwg.mxu0
        %6718 = vmatprep.subr.bf16.mxu0 %v6570
        %6719 = vmatpush1.bf16.msra.mxu0 %v6569
        %6720 = vmatprep.subr.bf16.mxu0 %v6566
        %6721 = vmatpush1.bf16.msra.mxu0 %v6565
        %6722 = vmatprep.subr.bf16.mxu0 %v6562
        %6723 = vmatpush1.bf16.msra.mxu0 %v6561
        %6724 = vmatprep.subr.bf16.mxu0 %v6558
        %6725 = vmatpush1.bf16.msra.mxu0 %v6557
        %6726 = vmatprep.subr.bf16.mxu0 %v6554
        %6727 = vmatpush1.bf16.msra.mxu0 %v6553
        %6728 = vmatprep.subr.bf16.mxu0 %v6550
        %6729 = vmatpush1.bf16.msra.mxu0 %v6549
        %6730 = vmatprep.subr.bf16.mxu0 %v6546
        %6731 = vmatpush1.bf16.msra.mxu0 %v6545
        %6732 = vmatprep.subr.bf16.mxu0 %v6542
        %6733 = vmatpush1.bf16.msra.mxu0 %v6541
        %6734 = vmatprep.subr.bf16.mxu0 %v6602
        %6735 = vmatpush2.bf16.msra.mxu0 %v6601
        %6736 = vmatprep.subr.bf16.mxu0 %v6598
        %6737 = vmatpush2.bf16.msra.mxu0 %v6597
        %6738 = vmatprep.subr.bf16.mxu0 %v6594
        %6739 = vmatpush2.bf16.msra.mxu0 %v6593
        %6740 = vmatprep.subr.bf16.mxu0 %v6590
        %6741 = vmatpush2.bf16.msra.mxu0 %v6589
        %6742 = vmatprep.subr.bf16.mxu0 %v6586
        %6743 = vmatpush2.bf16.msra.mxu0 %v6585
        %6744 = vmatprep.subr.bf16.mxu0 %v6582
        %6745 = vmatpush2.bf16.msra.mxu0 %v6581
        %6746 = vmatprep.subr.bf16.mxu0 %v6578
        %6747 = vmatpush2.bf16.msra.mxu0 %v6577
        %6748 = vmatprep.subr.bf16.mxu0 %v6574
        %6749 = vmatpush2.bf16.msra.mxu0 %v6573
        %6750 = vmatprep.mubr.bf16.mxu0 %v6342
        %6751 = vmatmul.mubr.bf16.gmra.mxu0 %v6339
        %v6752 = vpop.f32.mrf.mxu0
        %v6753 = vadd.f32 0.0, %v6752
        %v6754 = vpop.f32.mrf.mxu0
        %v6755 = vadd.f32 0.0, %v6754
        %v6756 = vpop.f32.mrf.mxu0
        %v6757 = vadd.f32 0.0, %v6756
        %v6758 = vpop.f32.mrf.mxu0
        %v6759 = vadd.f32 0.0, %v6758
        %6760 = vmatprep.mubr.bf16.mxu0 %v6341
        %6761 = vmatmul.mubr.bf16.gmra.mxu0 %v6338
        %v6762 = vpop.f32.mrf.mxu0
        %v6763 = vadd.f32 0.0, %v6762
        %v6764 = vpop.f32.mrf.mxu0
        %v6765 = vadd.f32 0.0, %v6764
        %v6766 = vpop.f32.mrf.mxu0
        %v6767 = vpop.f32.mrf.mxu0
        %6768 = vdwg.mxu0
        %v6769 = vadd.f32 %v6201, %v6702
        %v6770 = vadd.f32 %v6203, %v6704
        %v6771 = vadd.f32 %v6252, %v6753
        %v6772 = vadd.f32 %v6254, %v6755
        %v6773 = vadd.f32 %v6205, %v6706
        %v6774 = vadd.f32 %v6207, %v6708
        %v6775 = vadd.f32 %v6256, %v6757
        %v6776 = vadd.f32 %v6258, %v6759
        %v6777 = vadd.f32 %v6211, %v6712
        %v6778 = vadd.f32 %v6213, %v6714
        %v6779 = vadd.f32 %v6262, %v6763
        %v6780 = vadd.f32 %v6264, %v6765
        %v6781 = vadd.f32 %v5249, %v6769
        %v6782 = vadd.f32 %v5250, %v6770
        %v6783 = vadd.f32 %v5251, %v6771
        %v6784 = vadd.f32 %v5252, %v6772
        %v6785 = vadd.f32 %v5253, %v6773
        %v6786 = vadd.f32 %v5254, %v6774
        %v6787 = vadd.f32 %v5255, %v6775
        %v6788 = vadd.f32 %v5256, %v6776
        %v6789 = vadd.f32 %v5257, %v6777
        %v6790 = vadd.f32 %v5258, %v6778
        %v6791 = vadd.f32 %v5259, %v6779
        %v6792 = vadd.f32 %v5260, %v6780
        %v6793 = vld [vmem:[%s16] sm:$0xf]
        %v6795 = vlaneseq
        %v6796 = vshrl.u32 %v6795, 7
        %v6797 = vsub.s32 0, %v6796
        %v6798 = vrot.slane %v6793, %v6797
        %v6799 = vlaneseq
        %v6800 = vshrl.u32 %v6799, 7
        %v6801 = vsub.s32 1, %v6800
        %v6802 = vrot.slane %v6793, %v6801
        %v6803 = vlaneseq
        %v6804 = vshrl.u32 %v6803, 7
        %v6805 = vsub.s32 2, %v6804
        %v6806 = vrot.slane %v6793, %v6805
        %v6807 = vlaneseq
        %v6808 = vshrl.u32 %v6807, 7
        %v6809 = vsub.s32 3, %v6808
        %v6810 = vrot.slane %v6793, %v6809
        %v6815 = vadd.f32 %v6781, %v6798
        %v6816 = vadd.f32 %v6782, %v6802
        %v6817 = vadd.f32 %v6783, %v6806
        %v6818 = vadd.f32 %v6784, %v6810
        %v6819 = vadd.f32 %v6785, %v6798
        %v6820 = vadd.f32 %v6786, %v6802
        %v6821 = vadd.f32 %v6787, %v6806
        %v6822 = vadd.f32 %v6788, %v6810
        %v6823 = vadd.f32 %v6789, %v6798
        %v6824 = vadd.f32 %v6790, %v6802
        %v6825 = vadd.f32 %v6791, %v6806
        %v6826 = vadd.f32 %v6792, %v6810
        %vm6827 = vcmp.ge.f32.partialorder %v6815, 0.0
        %vm6828 = vcmp.ge.f32.partialorder %v6816, 0.0
        %vm6829 = vcmp.ge.f32.partialorder %v6817, 0.0
        %vm6830 = vcmp.ge.f32.partialorder %v6818, 0.0
        %vm6831 = vcmp.ge.f32.partialorder %v6819, 0.0
        %vm6832 = vcmp.ge.f32.partialorder %v6820, 0.0
        %vm6833 = vcmp.ge.f32.partialorder %v6821, 0.0
        %vm6834 = vcmp.ge.f32.partialorder %v6822, 0.0
        %vm6835 = vcmp.ge.f32.partialorder %v6823, 0.0
        %vm6836 = vcmp.ge.f32.partialorder %v6824, 0.0
        %vm6837 = vcmp.ge.f32.partialorder %v6825, 0.0
        %vm6838 = vcmp.ge.f32.partialorder %v6826, 0.0
        %v6839 = vmul.f32 %v6815, 0.2
        %v6840 = vmul.f32 %v6816, 0.2
        %v6841 = vmul.f32 %v6817, 0.2
        %v6842 = vmul.f32 %v6818, 0.2
        %v6843 = vmul.f32 %v6819, 0.2
        %v6844 = vmul.f32 %v6820, 0.2
        %v6845 = vmul.f32 %v6821, 0.2
        %v6846 = vmul.f32 %v6822, 0.2
        %v6847 = vmul.f32 %v6823, 0.2
        %v6848 = vmul.f32 %v6824, 0.2
        %v6849 = vmul.f32 %v6825, 0.2
        %v6850 = vmul.f32 %v6826, 0.2
        %v6851 = vsel %vm6827, %v6815, %v6839
        %v6852 = vsel %vm6828, %v6816, %v6840
        %v6853 = vsel %vm6829, %v6817, %v6841
        %v6854 = vsel %vm6830, %v6818, %v6842
        %v6855 = vsel %vm6831, %v6819, %v6843
        %v6856 = vsel %vm6832, %v6820, %v6844
        %v6857 = vsel %vm6833, %v6821, %v6845
        %v6858 = vsel %vm6834, %v6822, %v6846
        %v6859 = vsel %vm6835, %v6823, %v6847
        %v6860 = vsel %vm6836, %v6824, %v6848
        %v6861 = vsel %vm6837, %v6825, %v6849
        %v6862 = vsel %vm6838, %v6826, %v6850
        %v6863 = vsub.f32 0.0, %v6851
        %v6864 = vsub.f32 0.0, %v6852
        %v6865 = vsub.f32 0.0, %v6853
        %v6866 = vsub.f32 0.0, %v6854
        %v6867 = vsub.f32 0.0, %v6855
        %v6868 = vsub.f32 0.0, %v6856
        %v6869 = vsub.f32 0.0, %v6857
        %v6870 = vsub.f32 0.0, %v6858
        %v6871 = vsub.f32 0.0, %v6859
        %v6872 = vsub.f32 0.0, %v6860
        %v6873 = vsub.f32 0.0, %v6861
        %v6874 = vsub.f32 0.0, %v6862
        %v6875 = vmul.f32 %v6863, 1.442695
        %v6876 = vpow.pop %v6875
        %v6877 = vmul.f32 %v6864, 1.442695
        %v6878 = vpow.pop %v6877
        %v6879 = vmul.f32 %v6865, 1.442695
        %v6880 = vpow.pop %v6879
        %v6881 = vmul.f32 %v6866, 1.442695
        %v6882 = vpow.pop %v6881
        %v6883 = vmul.f32 %v6867, 1.442695
        %v6884 = vpow.pop %v6883
        %v6885 = vmul.f32 %v6868, 1.442695
        %v6886 = vpow.pop %v6885
        %v6887 = vmul.f32 %v6869, 1.442695
        %v6888 = vpow.pop %v6887
        %v6889 = vmul.f32 %v6870, 1.442695
        %v6890 = vpow.pop %v6889
        %v6891 = vmul.f32 %v6871, 1.442695
        %v6892 = vpow.pop %v6891
        %v6893 = vmul.f32 %v6872, 1.442695
        %v6894 = vpow.pop %v6893
        %v6895 = vmul.f32 %v6873, 1.442695
        %v6896 = vpow.pop %v6895
        %v6897 = vmul.f32 %v6874, 1.442695
        %v6898 = vpow.pop %v6897
        %v6899 = vadd.f32 %v6876, 1.0
        %v6900 = vadd.f32 %v6878, 1.0
        %v6901 = vadd.f32 %v6880, 1.0
        %v6902 = vadd.f32 %v6882, 1.0
        %v6903 = vadd.f32 %v6884, 1.0
        %v6904 = vadd.f32 %v6886, 1.0
        %v6905 = vadd.f32 %v6888, 1.0
        %v6906 = vadd.f32 %v6890, 1.0
        %v6907 = vadd.f32 %v6892, 1.0
        %v6908 = vadd.f32 %v6894, 1.0
        %v6909 = vadd.f32 %v6896, 1.0
        %v6910 = vadd.f32 %v6898, 1.0
        %v6911 = vrcp.pop %v6899
        %v6912 = vrcp.pop %v6900
        %v6913 = vrcp.pop %v6901
        %v6914 = vrcp.pop %v6902
        %v6915 = vrcp.pop %v6903
        %v6916 = vrcp.pop %v6904
        %v6917 = vrcp.pop %v6905
        %v6918 = vrcp.pop %v6906
        %v6919 = vrcp.pop %v6907
        %v6920 = vrcp.pop %v6908
        %v6921 = vrcp.pop %v6909
        %v6922 = vrcp.pop %v6910
        %v6923 = vmul.f32 %v3651, %v6913
        %v6924 = vmul.f32 %v3652, %v6914
        %v6925 = vmul.f32 %v3653, %v6917
        %v6926 = vmul.f32 %v3654, %v6918
        %v6927 = vmul.f32 %v3655, %v6921
        %v6928 = vmul.f32 %v3656, %v6922
        %v6929 = vpack.c.bf16 %v6925, %v6923
        %v6930 = vpack.c.bf16 %v6926, %v6924
        %v6931 = vpack.c.bf16 %v6927, %v6927
        %v6932 = vpack.c.bf16 %v6928, %v6928
        %v6934 = vshrl.u32 %v6929, 16
        %v6936 = vrot.slane %v6934, 7
        %v6937 = vshll.u32 %v6929, 16
        %v6939 = vor.u32 %v6936, %v6937
        %v6941 = vshrl.u32 %v6930, 16
        %v6943 = vrot.slane %v6941, 7
        %v6944 = vshll.u32 %v6930, 16
        %v6946 = vor.u32 %v6943, %v6944
        %v6948 = vshrl.u32 %v6931, 16
        %v6950 = vrot.slane %v6948, 7
        %v6951 = vshll.u32 %v6931, 16
        %v6953 = vor.u32 %v6950, %v6951
        %v6954 = vsel %vm850, %v6936, %v6953
        %v6956 = vshrl.u32 %v6932, 16
        %v6958 = vrot.slane %v6956, 7
        %v6959 = vshll.u32 %v6932, 16
        %v6961 = vor.u32 %v6958, %v6959
        %v6962 = vsel %vm850, %v6943, %v6961
        %v6967 = vsel %vm869, 0, %v6939
        %v6968 = vsel %vm869, 0, %v6946
        %v6969 = vsel %vm873, %v6954, 0
        %v6970 = vsel %vm873, %v6962, 0
        %v6971 = vld [vmem:[#allocation13] sm:$0xff]
        %v6972 = vld [vmem:[#allocation13 + $0x8] sm:$0xff]
        %v6973 = vld [vmem:[#allocation13 + $0x10] sm:$0xff]
        %v6974 = vld [vmem:[#allocation13 + $0x18] sm:$0xff]
        %v6975 = vld [vmem:[#allocation13 + $0x20] sm:$0xff]
        %v6976 = vld [vmem:[#allocation13 + $0x28] sm:$0xff]
        %v6977 = vld [vmem:[#allocation13 + $0x30] sm:$0xff]
        %v6978 = vld [vmem:[#allocation13 + $0x38] sm:$0xff]
        %v6979 = vld [vmem:[#allocation13 + $0x40] sm:$0xff]
        %v6980 = vld [vmem:[#allocation13 + $0x48] sm:$0xff]
        %v6981 = vld [vmem:[#allocation13 + $0x50] sm:$0xff]
        %v6982 = vld [vmem:[#allocation13 + $0x58] sm:$0xff]
        %v6983 = vld [vmem:[#allocation13 + $0x60] sm:$0xff]
        %v6984 = vld [vmem:[#allocation13 + $0x68] sm:$0xff]
        %v6985 = vld [vmem:[#allocation13 + $0x70] sm:$0xff]
        %v6986 = vld [vmem:[#allocation13 + $0x78] sm:$0xff]
        %v6987 = vld [vmem:[#allocation13 + $0x80] sm:$0xff]
        %v6988 = vld [vmem:[#allocation13 + $0x88] sm:$0xff]
        %v6989 = vld [vmem:[#allocation13 + $0x90] sm:$0xff]
        %v6990 = vld [vmem:[#allocation13 + $0x98] sm:$0xff]
        %v6991 = vld [vmem:[#allocation13 + $0xa0] sm:$0xff]
        %v6992 = vld [vmem:[#allocation13 + $0xa8] sm:$0xff]
        %v6993 = vld [vmem:[#allocation13 + $0xb0] sm:$0xff]
        %v6994 = vld [vmem:[#allocation13 + $0xb8] sm:$0xff]
        %v6995 = vld [vmem:[#allocation13 + $0xc0] sm:$0xff]
        %v6996 = vld [vmem:[#allocation13 + $0xc8] sm:$0xff]
        %v6997 = vld [vmem:[#allocation13 + $0xd0] sm:$0xff]
        %v6998 = vld [vmem:[#allocation13 + $0xd8] sm:$0xff]
        %v6999 = vld [vmem:[#allocation13 + $0xe0] sm:$0xff]
        %v7000 = vld [vmem:[#allocation13 + $0xe8] sm:$0xff]
        %v7001 = vld [vmem:[#allocation13 + $0xf0] sm:$0xff]
        %v7002 = vld [vmem:[#allocation13 + $0xf8] sm:$0xff]
        %s7003 = scalar_lea.vmem [#allocation13], 256
        %v7004 = vld [vmem:[%s7003] sm:$0xff]
        %v7005 = vld [vmem:[%s7003 + $0x8] sm:$0xff]
        %v7006 = vld [vmem:[%s7003 + $0x10] sm:$0xff]
        %v7007 = vld [vmem:[%s7003 + $0x18] sm:$0xff]
        %v7008 = vld [vmem:[%s7003 + $0x20] sm:$0xff]
        %v7009 = vld [vmem:[%s7003 + $0x28] sm:$0xff]
        %v7010 = vld [vmem:[%s7003 + $0x30] sm:$0xff]
        %v7011 = vld [vmem:[%s7003 + $0x38] sm:$0xff]
        %v7012 = vld [vmem:[%s7003 + $0x40] sm:$0xff]
        %v7013 = vld [vmem:[%s7003 + $0x48] sm:$0xff]
        %v7014 = vld [vmem:[%s7003 + $0x50] sm:$0xff]
        %v7015 = vld [vmem:[%s7003 + $0x58] sm:$0xff]
        %v7016 = vld [vmem:[%s7003 + $0x60] sm:$0xff]
        %v7017 = vld [vmem:[%s7003 + $0x68] sm:$0xff]
        %v7018 = vld [vmem:[%s7003 + $0x70] sm:$0xff]
        %v7019 = vld [vmem:[%s7003 + $0x78] sm:$0xff]
        %v7020 = vld [vmem:[%s7003 + $0x80] sm:$0xff]
        %v7021 = vld [vmem:[%s7003 + $0x88] sm:$0xff]
        %v7022 = vld [vmem:[%s7003 + $0x90] sm:$0xff]
        %v7023 = vld [vmem:[%s7003 + $0x98] sm:$0xff]
        %v7024 = vld [vmem:[%s7003 + $0xa0] sm:$0xff]
        %v7025 = vld [vmem:[%s7003 + $0xa8] sm:$0xff]
        %v7026 = vld [vmem:[%s7003 + $0xb0] sm:$0xff]
        %v7027 = vld [vmem:[%s7003 + $0xb8] sm:$0xff]
        %v7028 = vld [vmem:[%s7003 + $0xc0] sm:$0xff]
        %v7029 = vld [vmem:[%s7003 + $0xc8] sm:$0xff]
        %v7030 = vld [vmem:[%s7003 + $0xd0] sm:$0xff]
        %v7031 = vld [vmem:[%s7003 + $0xd8] sm:$0xff]
        %v7032 = vld [vmem:[%s7003 + $0xe0] sm:$0xff]
        %v7033 = vld [vmem:[%s7003 + $0xe8] sm:$0xff]
        %v7034 = vld [vmem:[%s7003 + $0xf0] sm:$0xff]
        %v7035 = vld [vmem:[%s7003 + $0xf8] sm:$0xff]
        %v7068 = vunpack.c.l.b16 %v7004
        %v7069 = vunpack.c.h.b16 %v7004
        %v7070 = vunpack.c.l.b16 %v7005
        %v7071 = vunpack.c.h.b16 %v7005
        %v7072 = vunpack.c.l.b16 %v7006
        %v7073 = vunpack.c.h.b16 %v7006
        %v7074 = vunpack.c.l.b16 %v7007
        %v7075 = vunpack.c.h.b16 %v7007
        %v7076 = vunpack.c.l.b16 %v7008
        %v7077 = vunpack.c.h.b16 %v7008
        %v7078 = vunpack.c.l.b16 %v7009
        %v7079 = vunpack.c.h.b16 %v7009
        %v7080 = vunpack.c.l.b16 %v7010
        %v7081 = vunpack.c.h.b16 %v7010
        %v7082 = vunpack.c.l.b16 %v7011
        %v7083 = vunpack.c.h.b16 %v7011
        %v7084 = vunpack.c.l.b16 %v7012
        %v7085 = vunpack.c.h.b16 %v7012
        %v7086 = vunpack.c.l.b16 %v7013
        %v7087 = vunpack.c.h.b16 %v7013
        %v7088 = vunpack.c.l.b16 %v7014
        %v7089 = vunpack.c.h.b16 %v7014
        %v7090 = vunpack.c.l.b16 %v7015
        %v7091 = vunpack.c.h.b16 %v7015
        %v7092 = vunpack.c.l.b16 %v7016
        %v7093 = vunpack.c.h.b16 %v7016
        %v7094 = vunpack.c.l.b16 %v7017
        %v7095 = vunpack.c.h.b16 %v7017
        %v7096 = vunpack.c.l.b16 %v7018
        %v7097 = vunpack.c.h.b16 %v7018
        %v7098 = vunpack.c.l.b16 %v7019
        %v7099 = vunpack.c.h.b16 %v7019
        %v7100 = vunpack.c.l.b16 %v7020
        %v7101 = vunpack.c.h.b16 %v7020
        %v7102 = vunpack.c.l.b16 %v7021
        %v7103 = vunpack.c.h.b16 %v7021
        %v7104 = vunpack.c.l.b16 %v7022
        %v7105 = vunpack.c.h.b16 %v7022
        %v7106 = vunpack.c.l.b16 %v7023
        %v7107 = vunpack.c.h.b16 %v7023
        %v7108 = vunpack.c.l.b16 %v7024
        %v7109 = vunpack.c.h.b16 %v7024
        %v7110 = vunpack.c.l.b16 %v7025
        %v7111 = vunpack.c.h.b16 %v7025
        %v7112 = vunpack.c.l.b16 %v7026
        %v7113 = vunpack.c.h.b16 %v7026
        %v7114 = vunpack.c.l.b16 %v7027
        %v7115 = vunpack.c.h.b16 %v7027
        %v7116 = vunpack.c.l.b16 %v7028
        %v7117 = vunpack.c.h.b16 %v7028
        %v7118 = vunpack.c.l.b16 %v7029
        %v7119 = vunpack.c.h.b16 %v7029
        %v7120 = vunpack.c.l.b16 %v7030
        %v7121 = vunpack.c.h.b16 %v7030
        %v7122 = vunpack.c.l.b16 %v7031
        %v7123 = vunpack.c.h.b16 %v7031
        %v7124 = vunpack.c.l.b16 %v7032
        %v7125 = vunpack.c.h.b16 %v7032
        %v7126 = vunpack.c.l.b16 %v7033
        %v7127 = vunpack.c.h.b16 %v7033
        %v7128 = vunpack.c.l.b16 %v7034
        %v7129 = vunpack.c.h.b16 %v7034
        %v7130 = vunpack.c.l.b16 %v7035
        %v7131 = vunpack.c.h.b16 %v7035
        %v7132 = vpack.c.b16 %v7070, %v7068
        %v7133 = vpack.c.b16 %v7071, %v7069
        %v7134 = vpack.c.b16 %v7074, %v7072
        %v7135 = vpack.c.b16 %v7075, %v7073
        %v7136 = vpack.c.b16 %v7078, %v7076
        %v7137 = vpack.c.b16 %v7079, %v7077
        %v7138 = vpack.c.b16 %v7082, %v7080
        %v7139 = vpack.c.b16 %v7083, %v7081
        %v7140 = vpack.c.b16 %v7086, %v7084
        %v7141 = vpack.c.b16 %v7087, %v7085
        %v7142 = vpack.c.b16 %v7090, %v7088
        %v7143 = vpack.c.b16 %v7091, %v7089
        %v7144 = vpack.c.b16 %v7094, %v7092
        %v7145 = vpack.c.b16 %v7095, %v7093
        %v7146 = vpack.c.b16 %v7098, %v7096
        %v7147 = vpack.c.b16 %v7099, %v7097
        %v7148 = vpack.c.b16 %v7102, %v7100
        %v7149 = vpack.c.b16 %v7103, %v7101
        %v7150 = vpack.c.b16 %v7106, %v7104
        %v7151 = vpack.c.b16 %v7107, %v7105
        %v7152 = vpack.c.b16 %v7110, %v7108
        %v7153 = vpack.c.b16 %v7111, %v7109
        %v7154 = vpack.c.b16 %v7114, %v7112
        %v7155 = vpack.c.b16 %v7115, %v7113
        %v7156 = vpack.c.b16 %v7118, %v7116
        %v7157 = vpack.c.b16 %v7119, %v7117
        %v7158 = vpack.c.b16 %v7122, %v7120
        %v7159 = vpack.c.b16 %v7123, %v7121
        %v7160 = vpack.c.b16 %v7126, %v7124
        %v7161 = vpack.c.b16 %v7127, %v7125
        %v7162 = vpack.c.b16 %v7130, %v7128
        %v7163 = vpack.c.b16 %v7131, %v7129
        %7196 = vmatprep.subr.bf16.mxu0 %v7147
        %7197 = vmatpush1.bf16.msra.mxu0 %v7146
        %7198 = vmatprep.subr.bf16.mxu0 %v7145
        %7199 = vmatpush1.bf16.msra.mxu0 %v7144
        %7200 = vmatprep.subr.bf16.mxu0 %v7143
        %7201 = vmatpush1.bf16.msra.mxu0 %v7142
        %7202 = vmatprep.subr.bf16.mxu0 %v7141
        %7203 = vmatpush1.bf16.msra.mxu0 %v7140
        %7204 = vmatprep.subr.bf16.mxu0 %v7139
        %7205 = vmatpush1.bf16.msra.mxu0 %v7138
        %7206 = vmatprep.subr.bf16.mxu0 %v7137
        %7207 = vmatpush1.bf16.msra.mxu0 %v7136
        %7208 = vmatprep.subr.bf16.mxu0 %v7135
        %7209 = vmatpush1.bf16.msra.mxu0 %v7134
        %7210 = vmatprep.subr.bf16.mxu0 %v7133
        %7211 = vmatpush1.bf16.msra.mxu0 %v7132
        %7212 = vmatprep.subr.bf16.mxu0 %v7163
        %7213 = vmatpush2.bf16.msra.mxu0 %v7162
        %7214 = vmatprep.subr.bf16.mxu0 %v7161
        %7215 = vmatpush2.bf16.msra.mxu0 %v7160
        %7216 = vmatprep.subr.bf16.mxu0 %v7159
        %7217 = vmatpush2.bf16.msra.mxu0 %v7158
        %7218 = vmatprep.subr.bf16.mxu0 %v7157
        %7219 = vmatpush2.bf16.msra.mxu0 %v7156
        %7220 = vmatprep.subr.bf16.mxu0 %v7155
        %7221 = vmatpush2.bf16.msra.mxu0 %v7154
        %7222 = vmatprep.subr.bf16.mxu0 %v7153
        %7223 = vmatpush2.bf16.msra.mxu0 %v7152
        %7224 = vmatprep.subr.bf16.mxu0 %v7151
        %7225 = vmatpush2.bf16.msra.mxu0 %v7150
        %7226 = vmatprep.subr.bf16.mxu0 %v7149
        %7227 = vmatpush2.bf16.msra.mxu0 %v7148
        %7228 = vmatprep.mubr.bf16.mxu0 %v3893
        %7229 = vmatmul.mubr.bf16.gmra.mxu0 %v3881
        %v7230 = vpop.f32.mrf.mxu0
        %v7231 = vadd.f32 0.0, %v7230
        %v7232 = vpop.f32.mrf.mxu0
        %v7233 = vadd.f32 0.0, %v7232
        %v7234 = vpop.f32.mrf.mxu0
        %v7235 = vadd.f32 0.0, %v7234
        %v7236 = vpop.f32.mrf.mxu0
        %v7237 = vadd.f32 0.0, %v7236
        %7238 = vmatprep.mubr.bf16.mxu0 %v3899
        %7239 = vmatmul.mubr.bf16.gmra.mxu0 %v3896
        %v7240 = vpop.f32.mrf.mxu0
        %v7241 = vadd.f32 0.0, %v7240
        %v7242 = vpop.f32.mrf.mxu0
        %v7243 = vadd.f32 0.0, %v7242
        %v7244 = vpop.f32.mrf.mxu0
        %v7245 = vpop.f32.mrf.mxu0
        %7246 = vdwg.mxu0
        %v7279 = vunpack.c.l.b16 %v6971
        %v7280 = vunpack.c.h.b16 %v6971
        %v7281 = vunpack.c.l.b16 %v6972
        %v7282 = vunpack.c.h.b16 %v6972
        %v7283 = vunpack.c.l.b16 %v6973
        %v7284 = vunpack.c.h.b16 %v6973
        %v7285 = vunpack.c.l.b16 %v6974
        %v7286 = vunpack.c.h.b16 %v6974
        %v7287 = vunpack.c.l.b16 %v6975
        %v7288 = vunpack.c.h.b16 %v6975
        %v7289 = vunpack.c.l.b16 %v6976
        %v7290 = vunpack.c.h.b16 %v6976
        %v7291 = vunpack.c.l.b16 %v6977
        %v7292 = vunpack.c.h.b16 %v6977
        %v7293 = vunpack.c.l.b16 %v6978
        %v7294 = vunpack.c.h.b16 %v6978
        %v7295 = vunpack.c.l.b16 %v6979
        %v7296 = vunpack.c.h.b16 %v6979
        %v7297 = vunpack.c.l.b16 %v6980
        %v7298 = vunpack.c.h.b16 %v6980
        %v7299 = vunpack.c.l.b16 %v6981
        %v7300 = vunpack.c.h.b16 %v6981
        %v7301 = vunpack.c.l.b16 %v6982
        %v7302 = vunpack.c.h.b16 %v6982
        %v7303 = vunpack.c.l.b16 %v6983
        %v7304 = vunpack.c.h.b16 %v6983
        %v7305 = vunpack.c.l.b16 %v6984
        %v7306 = vunpack.c.h.b16 %v6984
        %v7307 = vunpack.c.l.b16 %v6985
        %v7308 = vunpack.c.h.b16 %v6985
        %v7309 = vunpack.c.l.b16 %v6986
        %v7310 = vunpack.c.h.b16 %v6986
        %v7311 = vunpack.c.l.b16 %v6987
        %v7312 = vunpack.c.h.b16 %v6987
        %v7313 = vunpack.c.l.b16 %v6988
        %v7314 = vunpack.c.h.b16 %v6988
        %v7315 = vunpack.c.l.b16 %v6989
        %v7316 = vunpack.c.h.b16 %v6989
        %v7317 = vunpack.c.l.b16 %v6990
        %v7318 = vunpack.c.h.b16 %v6990
        %v7319 = vunpack.c.l.b16 %v6991
        %v7320 = vunpack.c.h.b16 %v6991
        %v7321 = vunpack.c.l.b16 %v6992
        %v7322 = vunpack.c.h.b16 %v6992
        %v7323 = vunpack.c.l.b16 %v6993
        %v7324 = vunpack.c.h.b16 %v6993
        %v7325 = vunpack.c.l.b16 %v6994
        %v7326 = vunpack.c.h.b16 %v6994
        %v7327 = vunpack.c.l.b16 %v6995
        %v7328 = vunpack.c.h.b16 %v6995
        %v7329 = vunpack.c.l.b16 %v6996
        %v7330 = vunpack.c.h.b16 %v6996
        %v7331 = vunpack.c.l.b16 %v6997
        %v7332 = vunpack.c.h.b16 %v6997
        %v7333 = vunpack.c.l.b16 %v6998
        %v7334 = vunpack.c.h.b16 %v6998
        %v7335 = vunpack.c.l.b16 %v6999
        %v7336 = vunpack.c.h.b16 %v6999
        %v7337 = vunpack.c.l.b16 %v7000
        %v7338 = vunpack.c.h.b16 %v7000
        %v7339 = vunpack.c.l.b16 %v7001
        %v7340 = vunpack.c.h.b16 %v7001
        %v7341 = vunpack.c.l.b16 %v7002
        %v7342 = vunpack.c.h.b16 %v7002
        %v7343 = vpack.c.b16 %v7281, %v7279
        %v7344 = vpack.c.b16 %v7282, %v7280
        %v7345 = vpack.c.b16 %v7285, %v7283
        %v7346 = vpack.c.b16 %v7286, %v7284
        %v7347 = vpack.c.b16 %v7289, %v7287
        %v7348 = vpack.c.b16 %v7290, %v7288
        %v7349 = vpack.c.b16 %v7293, %v7291
        %v7350 = vpack.c.b16 %v7294, %v7292
        %v7351 = vpack.c.b16 %v7297, %v7295
        %v7352 = vpack.c.b16 %v7298, %v7296
        %v7353 = vpack.c.b16 %v7301, %v7299
        %v7354 = vpack.c.b16 %v7302, %v7300
        %v7355 = vpack.c.b16 %v7305, %v7303
        %v7356 = vpack.c.b16 %v7306, %v7304
        %v7357 = vpack.c.b16 %v7309, %v7307
        %v7358 = vpack.c.b16 %v7310, %v7308
        %v7359 = vpack.c.b16 %v7313, %v7311
        %v7360 = vpack.c.b16 %v7314, %v7312
        %v7361 = vpack.c.b16 %v7317, %v7315
        %v7362 = vpack.c.b16 %v7318, %v7316
        %v7363 = vpack.c.b16 %v7321, %v7319
        %v7364 = vpack.c.b16 %v7322, %v7320
        %v7365 = vpack.c.b16 %v7325, %v7323
        %v7366 = vpack.c.b16 %v7326, %v7324
        %v7367 = vpack.c.b16 %v7329, %v7327
        %v7368 = vpack.c.b16 %v7330, %v7328
        %v7369 = vpack.c.b16 %v7333, %v7331
        %v7370 = vpack.c.b16 %v7334, %v7332
        %v7371 = vpack.c.b16 %v7337, %v7335
        %v7372 = vpack.c.b16 %v7338, %v7336
        %v7373 = vpack.c.b16 %v7341, %v7339
        %v7374 = vpack.c.b16 %v7342, %v7340
        %7407 = vmatprep.subr.bf16.mxu0 %v7358
        %7408 = vmatpush1.bf16.msra.mxu0 %v7357
        %7409 = vmatprep.subr.bf16.mxu0 %v7356
        %7410 = vmatpush1.bf16.msra.mxu0 %v7355
        %7411 = vmatprep.subr.bf16.mxu0 %v7354
        %7412 = vmatpush1.bf16.msra.mxu0 %v7353
        %7413 = vmatprep.subr.bf16.mxu0 %v7352
        %7414 = vmatpush1.bf16.msra.mxu0 %v7351
        %7415 = vmatprep.subr.bf16.mxu0 %v7350
        %7416 = vmatpush1.bf16.msra.mxu0 %v7349
        %7417 = vmatprep.subr.bf16.mxu0 %v7348
        %7418 = vmatpush1.bf16.msra.mxu0 %v7347
        %7419 = vmatprep.subr.bf16.mxu0 %v7346
        %7420 = vmatpush1.bf16.msra.mxu0 %v7345
        %7421 = vmatprep.subr.bf16.mxu0 %v7344
        %7422 = vmatpush1.bf16.msra.mxu0 %v7343
        %7423 = vmatprep.subr.bf16.mxu0 %v7374
        %7424 = vmatpush2.bf16.msra.mxu0 %v7373
        %7425 = vmatprep.subr.bf16.mxu0 %v7372
        %7426 = vmatpush2.bf16.msra.mxu0 %v7371
        %7427 = vmatprep.subr.bf16.mxu0 %v7370
        %7428 = vmatpush2.bf16.msra.mxu0 %v7369
        %7429 = vmatprep.subr.bf16.mxu0 %v7368
        %7430 = vmatpush2.bf16.msra.mxu0 %v7367
        %7431 = vmatprep.subr.bf16.mxu0 %v7366
        %7432 = vmatpush2.bf16.msra.mxu0 %v7365
        %7433 = vmatprep.subr.bf16.mxu0 %v7364
        %7434 = vmatpush2.bf16.msra.mxu0 %v7363
        %7435 = vmatprep.subr.bf16.mxu0 %v7362
        %7436 = vmatpush2.bf16.msra.mxu0 %v7361
        %7437 = vmatprep.subr.bf16.mxu0 %v7360
        %7438 = vmatpush2.bf16.msra.mxu0 %v7359
        %7439 = vmatprep.mubr.bf16.mxu0 %v3696
        %7440 = vmatmul.mubr.bf16.gmra.mxu0 %v3695
        %v7441 = vpop.f32.mrf.mxu0
        %v7442 = vadd.f32 %v7231, %v7441
        %v7443 = vpop.f32.mrf.mxu0
        %v7444 = vadd.f32 %v7233, %v7443
        %v7445 = vpop.f32.mrf.mxu0
        %v7446 = vadd.f32 %v7235, %v7445
        %v7447 = vpop.f32.mrf.mxu0
        %v7448 = vadd.f32 %v7237, %v7447
        %7449 = vmatprep.mubr.bf16.mxu0 %v3698
        %7450 = vmatmul.mubr.bf16.gmra.mxu0 %v3697
        %v7451 = vpop.f32.mrf.mxu0
        %v7452 = vadd.f32 %v7241, %v7451
        %v7453 = vpop.f32.mrf.mxu0
        %v7454 = vadd.f32 %v7243, %v7453
        %v7455 = vpop.f32.mrf.mxu0
        %v7456 = vpop.f32.mrf.mxu0
        %7457 = vdwg.mxu0
        %s7458 = scalar_lea.vmem [#allocation13], 512
        %v7459 = vld [vmem:[%s7458] sm:$0xff]
        %v7460 = vld [vmem:[%s7458 + $0x8] sm:$0xff]
        %v7461 = vld [vmem:[%s7458 + $0x10] sm:$0xff]
        %v7462 = vld [vmem:[%s7458 + $0x18] sm:$0xff]
        %v7463 = vld [vmem:[%s7458 + $0x20] sm:$0xff]
        %v7464 = vld [vmem:[%s7458 + $0x28] sm:$0xff]
        %v7465 = vld [vmem:[%s7458 + $0x30] sm:$0xff]
        %v7466 = vld [vmem:[%s7458 + $0x38] sm:$0xff]
        %v7467 = vld [vmem:[%s7458 + $0x40] sm:$0xff]
        %v7468 = vld [vmem:[%s7458 + $0x48] sm:$0xff]
        %v7469 = vld [vmem:[%s7458 + $0x50] sm:$0xff]
        %v7470 = vld [vmem:[%s7458 + $0x58] sm:$0xff]
        %v7471 = vld [vmem:[%s7458 + $0x60] sm:$0xff]
        %v7472 = vld [vmem:[%s7458 + $0x68] sm:$0xff]
        %v7473 = vld [vmem:[%s7458 + $0x70] sm:$0xff]
        %v7474 = vld [vmem:[%s7458 + $0x78] sm:$0xff]
        %v7475 = vld [vmem:[%s7458 + $0x80] sm:$0xff]
        %v7476 = vld [vmem:[%s7458 + $0x88] sm:$0xff]
        %v7477 = vld [vmem:[%s7458 + $0x90] sm:$0xff]
        %v7478 = vld [vmem:[%s7458 + $0x98] sm:$0xff]
        %v7479 = vld [vmem:[%s7458 + $0xa0] sm:$0xff]
        %v7480 = vld [vmem:[%s7458 + $0xa8] sm:$0xff]
        %v7481 = vld [vmem:[%s7458 + $0xb0] sm:$0xff]
        %v7482 = vld [vmem:[%s7458 + $0xb8] sm:$0xff]
        %v7483 = vld [vmem:[%s7458 + $0xc0] sm:$0xff]
        %v7484 = vld [vmem:[%s7458 + $0xc8] sm:$0xff]
        %v7485 = vld [vmem:[%s7458 + $0xd0] sm:$0xff]
        %v7486 = vld [vmem:[%s7458 + $0xd8] sm:$0xff]
        %v7487 = vld [vmem:[%s7458 + $0xe0] sm:$0xff]
        %v7488 = vld [vmem:[%s7458 + $0xe8] sm:$0xff]
        %v7489 = vld [vmem:[%s7458 + $0xf0] sm:$0xff]
        %v7490 = vld [vmem:[%s7458 + $0xf8] sm:$0xff]
        %v7523 = vunpack.c.l.b16 %v7459
        %v7524 = vunpack.c.h.b16 %v7459
        %v7525 = vunpack.c.l.b16 %v7460
        %v7526 = vunpack.c.h.b16 %v7460
        %v7527 = vunpack.c.l.b16 %v7461
        %v7528 = vunpack.c.h.b16 %v7461
        %v7529 = vunpack.c.l.b16 %v7462
        %v7530 = vunpack.c.h.b16 %v7462
        %v7531 = vunpack.c.l.b16 %v7463
        %v7532 = vunpack.c.h.b16 %v7463
        %v7533 = vunpack.c.l.b16 %v7464
        %v7534 = vunpack.c.h.b16 %v7464
        %v7535 = vunpack.c.l.b16 %v7465
        %v7536 = vunpack.c.h.b16 %v7465
        %v7537 = vunpack.c.l.b16 %v7466
        %v7538 = vunpack.c.h.b16 %v7466
        %v7539 = vunpack.c.l.b16 %v7467
        %v7540 = vunpack.c.h.b16 %v7467
        %v7541 = vunpack.c.l.b16 %v7468
        %v7542 = vunpack.c.h.b16 %v7468
        %v7543 = vunpack.c.l.b16 %v7469
        %v7544 = vunpack.c.h.b16 %v7469
        %v7545 = vunpack.c.l.b16 %v7470
        %v7546 = vunpack.c.h.b16 %v7470
        %v7547 = vunpack.c.l.b16 %v7471
        %v7548 = vunpack.c.h.b16 %v7471
        %v7549 = vunpack.c.l.b16 %v7472
        %v7550 = vunpack.c.h.b16 %v7472
        %v7551 = vunpack.c.l.b16 %v7473
        %v7552 = vunpack.c.h.b16 %v7473
        %v7553 = vunpack.c.l.b16 %v7474
        %v7554 = vunpack.c.h.b16 %v7474
        %v7555 = vunpack.c.l.b16 %v7475
        %v7556 = vunpack.c.h.b16 %v7475
        %v7557 = vunpack.c.l.b16 %v7476
        %v7558 = vunpack.c.h.b16 %v7476
        %v7559 = vunpack.c.l.b16 %v7477
        %v7560 = vunpack.c.h.b16 %v7477
        %v7561 = vunpack.c.l.b16 %v7478
        %v7562 = vunpack.c.h.b16 %v7478
        %v7563 = vunpack.c.l.b16 %v7479
        %v7564 = vunpack.c.h.b16 %v7479
        %v7565 = vunpack.c.l.b16 %v7480
        %v7566 = vunpack.c.h.b16 %v7480
        %v7567 = vunpack.c.l.b16 %v7481
        %v7568 = vunpack.c.h.b16 %v7481
        %v7569 = vunpack.c.l.b16 %v7482
        %v7570 = vunpack.c.h.b16 %v7482
        %v7571 = vunpack.c.l.b16 %v7483
        %v7572 = vunpack.c.h.b16 %v7483
        %v7573 = vunpack.c.l.b16 %v7484
        %v7574 = vunpack.c.h.b16 %v7484
        %v7575 = vunpack.c.l.b16 %v7485
        %v7576 = vunpack.c.h.b16 %v7485
        %v7577 = vunpack.c.l.b16 %v7486
        %v7578 = vunpack.c.h.b16 %v7486
        %v7579 = vunpack.c.l.b16 %v7487
        %v7580 = vunpack.c.h.b16 %v7487
        %v7581 = vunpack.c.l.b16 %v7488
        %v7582 = vunpack.c.h.b16 %v7488
        %v7583 = vunpack.c.l.b16 %v7489
        %v7584 = vunpack.c.h.b16 %v7489
        %v7585 = vunpack.c.l.b16 %v7490
        %v7586 = vunpack.c.h.b16 %v7490
        %v7587 = vpack.c.b16 %v7525, %v7523
        %v7588 = vpack.c.b16 %v7526, %v7524
        %v7589 = vpack.c.b16 %v7529, %v7527
        %v7590 = vpack.c.b16 %v7530, %v7528
        %v7591 = vpack.c.b16 %v7533, %v7531
        %v7592 = vpack.c.b16 %v7534, %v7532
        %v7593 = vpack.c.b16 %v7537, %v7535
        %v7594 = vpack.c.b16 %v7538, %v7536
        %v7595 = vpack.c.b16 %v7541, %v7539
        %v7596 = vpack.c.b16 %v7542, %v7540
        %v7597 = vpack.c.b16 %v7545, %v7543
        %v7598 = vpack.c.b16 %v7546, %v7544
        %v7599 = vpack.c.b16 %v7549, %v7547
        %v7600 = vpack.c.b16 %v7550, %v7548
        %v7601 = vpack.c.b16 %v7553, %v7551
        %v7602 = vpack.c.b16 %v7554, %v7552
        %v7603 = vpack.c.b16 %v7557, %v7555
        %v7604 = vpack.c.b16 %v7558, %v7556
        %v7605 = vpack.c.b16 %v7561, %v7559
        %v7606 = vpack.c.b16 %v7562, %v7560
        %v7607 = vpack.c.b16 %v7565, %v7563
        %v7608 = vpack.c.b16 %v7566, %v7564
        %v7609 = vpack.c.b16 %v7569, %v7567
        %v7610 = vpack.c.b16 %v7570, %v7568
        %v7611 = vpack.c.b16 %v7573, %v7571
        %v7612 = vpack.c.b16 %v7574, %v7572
        %v7613 = vpack.c.b16 %v7577, %v7575
        %v7614 = vpack.c.b16 %v7578, %v7576
        %v7615 = vpack.c.b16 %v7581, %v7579
        %v7616 = vpack.c.b16 %v7582, %v7580
        %v7617 = vpack.c.b16 %v7585, %v7583
        %v7618 = vpack.c.b16 %v7586, %v7584
        %7651 = vmatprep.subr.bf16.mxu0 %v7602
        %7652 = vmatpush1.bf16.msra.mxu0 %v7601
        %7653 = vmatprep.subr.bf16.mxu0 %v7600
        %7654 = vmatpush1.bf16.msra.mxu0 %v7599
        %7655 = vmatprep.subr.bf16.mxu0 %v7598
        %7656 = vmatpush1.bf16.msra.mxu0 %v7597
        %7657 = vmatprep.subr.bf16.mxu0 %v7596
        %7658 = vmatpush1.bf16.msra.mxu0 %v7595
        %7659 = vmatprep.subr.bf16.mxu0 %v7594
        %7660 = vmatpush1.bf16.msra.mxu0 %v7593
        %7661 = vmatprep.subr.bf16.mxu0 %v7592
        %7662 = vmatpush1.bf16.msra.mxu0 %v7591
        %7663 = vmatprep.subr.bf16.mxu0 %v7590
        %7664 = vmatpush1.bf16.msra.mxu0 %v7589
        %7665 = vmatprep.subr.bf16.mxu0 %v7588
        %7666 = vmatpush1.bf16.msra.mxu0 %v7587
        %7667 = vmatprep.subr.bf16.mxu0 %v7618
        %7668 = vmatpush2.bf16.msra.mxu0 %v7617
        %7669 = vmatprep.subr.bf16.mxu0 %v7616
        %7670 = vmatpush2.bf16.msra.mxu0 %v7615
        %7671 = vmatprep.subr.bf16.mxu0 %v7614
        %7672 = vmatpush2.bf16.msra.mxu0 %v7613
        %7673 = vmatprep.subr.bf16.mxu0 %v7612
        %7674 = vmatpush2.bf16.msra.mxu0 %v7611
        %7675 = vmatprep.subr.bf16.mxu0 %v7610
        %7676 = vmatpush2.bf16.msra.mxu0 %v7609
        %7677 = vmatprep.subr.bf16.mxu0 %v7608
        %7678 = vmatpush2.bf16.msra.mxu0 %v7607
        %7679 = vmatprep.subr.bf16.mxu0 %v7606
        %7680 = vmatpush2.bf16.msra.mxu0 %v7605
        %7681 = vmatprep.subr.bf16.mxu0 %v7604
        %7682 = vmatpush2.bf16.msra.mxu0 %v7603
        %7683 = vmatprep.mubr.bf16.mxu0 %v4822
        %7684 = vmatmul.mubr.bf16.gmra.mxu0 %v4819
        %v7685 = vpop.f32.mrf.mxu0
        %v7686 = vadd.f32 0.0, %v7685
        %v7687 = vpop.f32.mrf.mxu0
        %v7688 = vadd.f32 0.0, %v7687
        %v7689 = vpop.f32.mrf.mxu0
        %v7690 = vadd.f32 0.0, %v7689
        %v7691 = vpop.f32.mrf.mxu0
        %v7692 = vadd.f32 0.0, %v7691
        %7693 = vmatprep.mubr.bf16.mxu0 %v4821
        %7694 = vmatmul.mubr.bf16.gmra.mxu0 %v4818
        %v7695 = vpop.f32.mrf.mxu0
        %v7696 = vadd.f32 0.0, %v7695
        %v7697 = vpop.f32.mrf.mxu0
        %v7698 = vadd.f32 0.0, %v7697
        %v7699 = vpop.f32.mrf.mxu0
        %v7700 = vpop.f32.mrf.mxu0
        %7701 = vdwg.mxu0
        %v7702 = vadd.f32 %v7442, %v7686
        %v7703 = vadd.f32 %v7444, %v7688
        %v7704 = vadd.f32 %v7446, %v7690
        %v7705 = vadd.f32 %v7448, %v7692
        %v7706 = vadd.f32 %v7452, %v7696
        %v7707 = vadd.f32 %v7454, %v7698
        %v7708 = vld [vmem:[#allocation15] sm:$0xff]
        %v7709 = vld [vmem:[#allocation15 + $0x8] sm:$0xff]
        %v7710 = vld [vmem:[#allocation15 + $0x10] sm:$0xff]
        %v7711 = vld [vmem:[#allocation15 + $0x18] sm:$0xff]
        %v7712 = vld [vmem:[#allocation15 + $0x20] sm:$0xff]
        %v7713 = vld [vmem:[#allocation15 + $0x28] sm:$0xff]
        %v7714 = vld [vmem:[#allocation15 + $0x30] sm:$0xff]
        %v7715 = vld [vmem:[#allocation15 + $0x38] sm:$0xff]
        %v7716 = vld [vmem:[#allocation15 + $0x40] sm:$0xff]
        %v7717 = vld [vmem:[#allocation15 + $0x48] sm:$0xff]
        %v7718 = vld [vmem:[#allocation15 + $0x50] sm:$0xff]
        %v7719 = vld [vmem:[#allocation15 + $0x58] sm:$0xff]
        %v7720 = vld [vmem:[#allocation15 + $0x60] sm:$0xff]
        %v7721 = vld [vmem:[#allocation15 + $0x68] sm:$0xff]
        %v7722 = vld [vmem:[#allocation15 + $0x70] sm:$0xff]
        %v7723 = vld [vmem:[#allocation15 + $0x78] sm:$0xff]
        %v7724 = vld [vmem:[#allocation15 + $0x80] sm:$0xff]
        %v7725 = vld [vmem:[#allocation15 + $0x88] sm:$0xff]
        %v7726 = vld [vmem:[#allocation15 + $0x90] sm:$0xff]
        %v7727 = vld [vmem:[#allocation15 + $0x98] sm:$0xff]
        %v7728 = vld [vmem:[#allocation15 + $0xa0] sm:$0xff]
        %v7729 = vld [vmem:[#allocation15 + $0xa8] sm:$0xff]
        %v7730 = vld [vmem:[#allocation15 + $0xb0] sm:$0xff]
        %v7731 = vld [vmem:[#allocation15 + $0xb8] sm:$0xff]
        %v7732 = vld [vmem:[#allocation15 + $0xc0] sm:$0xff]
        %v7733 = vld [vmem:[#allocation15 + $0xc8] sm:$0xff]
        %v7734 = vld [vmem:[#allocation15 + $0xd0] sm:$0xff]
        %v7735 = vld [vmem:[#allocation15 + $0xd8] sm:$0xff]
        %v7736 = vld [vmem:[#allocation15 + $0xe0] sm:$0xff]
        %v7737 = vld [vmem:[#allocation15 + $0xe8] sm:$0xff]
        %v7738 = vld [vmem:[#allocation15 + $0xf0] sm:$0xff]
        %v7739 = vld [vmem:[#allocation15 + $0xf8] sm:$0xff]
        %s7740 = scalar_lea.vmem [#allocation15], 256
        %v7741 = vld [vmem:[%s7740] sm:$0xff]
        %v7742 = vld [vmem:[%s7740 + $0x8] sm:$0xff]
        %v7743 = vld [vmem:[%s7740 + $0x10] sm:$0xff]
        %v7744 = vld [vmem:[%s7740 + $0x18] sm:$0xff]
        %v7745 = vld [vmem:[%s7740 + $0x20] sm:$0xff]
        %v7746 = vld [vmem:[%s7740 + $0x28] sm:$0xff]
        %v7747 = vld [vmem:[%s7740 + $0x30] sm:$0xff]
        %v7748 = vld [vmem:[%s7740 + $0x38] sm:$0xff]
        %v7749 = vld [vmem:[%s7740 + $0x40] sm:$0xff]
        %v7750 = vld [vmem:[%s7740 + $0x48] sm:$0xff]
        %v7751 = vld [vmem:[%s7740 + $0x50] sm:$0xff]
        %v7752 = vld [vmem:[%s7740 + $0x58] sm:$0xff]
        %v7753 = vld [vmem:[%s7740 + $0x60] sm:$0xff]
        %v7754 = vld [vmem:[%s7740 + $0x68] sm:$0xff]
        %v7755 = vld [vmem:[%s7740 + $0x70] sm:$0xff]
        %v7756 = vld [vmem:[%s7740 + $0x78] sm:$0xff]
        %v7757 = vld [vmem:[%s7740 + $0x80] sm:$0xff]
        %v7758 = vld [vmem:[%s7740 + $0x88] sm:$0xff]
        %v7759 = vld [vmem:[%s7740 + $0x90] sm:$0xff]
        %v7760 = vld [vmem:[%s7740 + $0x98] sm:$0xff]
        %v7761 = vld [vmem:[%s7740 + $0xa0] sm:$0xff]
        %v7762 = vld [vmem:[%s7740 + $0xa8] sm:$0xff]
        %v7763 = vld [vmem:[%s7740 + $0xb0] sm:$0xff]
        %v7764 = vld [vmem:[%s7740 + $0xb8] sm:$0xff]
        %v7765 = vld [vmem:[%s7740 + $0xc0] sm:$0xff]
        %v7766 = vld [vmem:[%s7740 + $0xc8] sm:$0xff]
        %v7767 = vld [vmem:[%s7740 + $0xd0] sm:$0xff]
        %v7768 = vld [vmem:[%s7740 + $0xd8] sm:$0xff]
        %v7769 = vld [vmem:[%s7740 + $0xe0] sm:$0xff]
        %v7770 = vld [vmem:[%s7740 + $0xe8] sm:$0xff]
        %v7771 = vld [vmem:[%s7740 + $0xf0] sm:$0xff]
        %v7772 = vld [vmem:[%s7740 + $0xf8] sm:$0xff]
        %v7774 = vshrl.u32 %v6967, 16
        %v7776 = vshll.u32 %v6967, 16
        %v7778 = vrot.slane %v7776, 1
        %v7779 = vor.u32 %v7774, %v7778
        %v7781 = vshll.u32 %v6969, 16
        %v7783 = vrot.slane %v7781, 1
        %v7784 = vsel %vm908, %v7779, %v7783
        %v7786 = vshrl.u32 %v6968, 16
        %v7788 = vshll.u32 %v6968, 16
        %v7790 = vrot.slane %v7788, 1
        %v7791 = vor.u32 %v7786, %v7790
        %v7793 = vshll.u32 %v6970, 16
        %v7795 = vrot.slane %v7793, 1
        %v7796 = vsel %vm908, %v7791, %v7795
        %v7797 = vshrl.u32 %v6969, 16
        %v7799 = vor.u32 %v7797, %v7783
        %v7800 = vshrl.u32 %v6970, 16
        %v7802 = vor.u32 %v7800, %v7795
        %v7839 = vunpack.c.l.b16 %v7741
        %v7840 = vunpack.c.h.b16 %v7741
        %v7841 = vunpack.c.l.b16 %v7742
        %v7842 = vunpack.c.h.b16 %v7742
        %v7843 = vunpack.c.l.b16 %v7743
        %v7844 = vunpack.c.h.b16 %v7743
        %v7845 = vunpack.c.l.b16 %v7744
        %v7846 = vunpack.c.h.b16 %v7744
        %v7847 = vunpack.c.l.b16 %v7745
        %v7848 = vunpack.c.h.b16 %v7745
        %v7849 = vunpack.c.l.b16 %v7746
        %v7850 = vunpack.c.h.b16 %v7746
        %v7851 = vunpack.c.l.b16 %v7747
        %v7852 = vunpack.c.h.b16 %v7747
        %v7853 = vunpack.c.l.b16 %v7748
        %v7854 = vunpack.c.h.b16 %v7748
        %v7855 = vunpack.c.l.b16 %v7749
        %v7856 = vunpack.c.h.b16 %v7749
        %v7857 = vunpack.c.l.b16 %v7750
        %v7858 = vunpack.c.h.b16 %v7750
        %v7859 = vunpack.c.l.b16 %v7751
        %v7860 = vunpack.c.h.b16 %v7751
        %v7861 = vunpack.c.l.b16 %v7752
        %v7862 = vunpack.c.h.b16 %v7752
        %v7863 = vunpack.c.l.b16 %v7753
        %v7864 = vunpack.c.h.b16 %v7753
        %v7865 = vunpack.c.l.b16 %v7754
        %v7866 = vunpack.c.h.b16 %v7754
        %v7867 = vunpack.c.l.b16 %v7755
        %v7868 = vunpack.c.h.b16 %v7755
        %v7869 = vunpack.c.l.b16 %v7756
        %v7870 = vunpack.c.h.b16 %v7756
        %v7871 = vunpack.c.l.b16 %v7757
        %v7872 = vunpack.c.h.b16 %v7757
        %v7873 = vunpack.c.l.b16 %v7758
        %v7874 = vunpack.c.h.b16 %v7758
        %v7875 = vunpack.c.l.b16 %v7759
        %v7876 = vunpack.c.h.b16 %v7759
        %v7877 = vunpack.c.l.b16 %v7760
        %v7878 = vunpack.c.h.b16 %v7760
        %v7879 = vunpack.c.l.b16 %v7761
        %v7880 = vunpack.c.h.b16 %v7761
        %v7881 = vunpack.c.l.b16 %v7762
        %v7882 = vunpack.c.h.b16 %v7762
        %v7883 = vunpack.c.l.b16 %v7763
        %v7884 = vunpack.c.h.b16 %v7763
        %v7885 = vunpack.c.l.b16 %v7764
        %v7886 = vunpack.c.h.b16 %v7764
        %v7887 = vunpack.c.l.b16 %v7765
        %v7888 = vunpack.c.h.b16 %v7765
        %v7889 = vunpack.c.l.b16 %v7766
        %v7890 = vunpack.c.h.b16 %v7766
        %v7891 = vunpack.c.l.b16 %v7767
        %v7892 = vunpack.c.h.b16 %v7767
        %v7893 = vunpack.c.l.b16 %v7768
        %v7894 = vunpack.c.h.b16 %v7768
        %v7895 = vunpack.c.l.b16 %v7769
        %v7896 = vunpack.c.h.b16 %v7769
        %v7897 = vunpack.c.l.b16 %v7770
        %v7898 = vunpack.c.h.b16 %v7770
        %v7899 = vunpack.c.l.b16 %v7771
        %v7900 = vunpack.c.h.b16 %v7771
        %v7901 = vunpack.c.l.b16 %v7772
        %v7902 = vunpack.c.h.b16 %v7772
        %v7903 = vpack.c.b16 %v7841, %v7839
        %v7904 = vpack.c.b16 %v7842, %v7840
        %v7905 = vpack.c.b16 %v7845, %v7843
        %v7906 = vpack.c.b16 %v7846, %v7844
        %v7907 = vpack.c.b16 %v7849, %v7847
        %v7908 = vpack.c.b16 %v7850, %v7848
        %v7909 = vpack.c.b16 %v7853, %v7851
        %v7910 = vpack.c.b16 %v7854, %v7852
        %v7911 = vpack.c.b16 %v7857, %v7855
        %v7912 = vpack.c.b16 %v7858, %v7856
        %v7913 = vpack.c.b16 %v7861, %v7859
        %v7914 = vpack.c.b16 %v7862, %v7860
        %v7915 = vpack.c.b16 %v7865, %v7863
        %v7916 = vpack.c.b16 %v7866, %v7864
        %v7917 = vpack.c.b16 %v7869, %v7867
        %v7918 = vpack.c.b16 %v7870, %v7868
        %v7919 = vpack.c.b16 %v7873, %v7871
        %v7920 = vpack.c.b16 %v7874, %v7872
        %v7921 = vpack.c.b16 %v7877, %v7875
        %v7922 = vpack.c.b16 %v7878, %v7876
        %v7923 = vpack.c.b16 %v7881, %v7879
        %v7924 = vpack.c.b16 %v7882, %v7880
        %v7925 = vpack.c.b16 %v7885, %v7883
        %v7926 = vpack.c.b16 %v7886, %v7884
        %v7927 = vpack.c.b16 %v7889, %v7887
        %v7928 = vpack.c.b16 %v7890, %v7888
        %v7929 = vpack.c.b16 %v7893, %v7891
        %v7930 = vpack.c.b16 %v7894, %v7892
        %v7931 = vpack.c.b16 %v7897, %v7895
        %v7932 = vpack.c.b16 %v7898, %v7896
        %v7933 = vpack.c.b16 %v7901, %v7899
        %v7934 = vpack.c.b16 %v7902, %v7900
        %7967 = vmatprep.subr.bf16.mxu0 %v7918
        %7968 = vmatpush1.bf16.msra.mxu0 %v7917
        %7969 = vmatprep.subr.bf16.mxu0 %v7916
        %7970 = vmatpush1.bf16.msra.mxu0 %v7915
        %7971 = vmatprep.subr.bf16.mxu0 %v7914
        %7972 = vmatpush1.bf16.msra.mxu0 %v7913
        %7973 = vmatprep.subr.bf16.mxu0 %v7912
        %7974 = vmatpush1.bf16.msra.mxu0 %v7911
        %7975 = vmatprep.subr.bf16.mxu0 %v7910
        %7976 = vmatpush1.bf16.msra.mxu0 %v7909
        %7977 = vmatprep.subr.bf16.mxu0 %v7908
        %7978 = vmatpush1.bf16.msra.mxu0 %v7907
        %7979 = vmatprep.subr.bf16.mxu0 %v7906
        %7980 = vmatpush1.bf16.msra.mxu0 %v7905
        %7981 = vmatprep.subr.bf16.mxu0 %v7904
        %7982 = vmatpush1.bf16.msra.mxu0 %v7903
        %7983 = vmatprep.subr.bf16.mxu0 %v7934
        %7984 = vmatpush2.bf16.msra.mxu0 %v7933
        %7985 = vmatprep.subr.bf16.mxu0 %v7932
        %7986 = vmatpush2.bf16.msra.mxu0 %v7931
        %7987 = vmatprep.subr.bf16.mxu0 %v7930
        %7988 = vmatpush2.bf16.msra.mxu0 %v7929
        %7989 = vmatprep.subr.bf16.mxu0 %v7928
        %7990 = vmatpush2.bf16.msra.mxu0 %v7927
        %7991 = vmatprep.subr.bf16.mxu0 %v7926
        %7992 = vmatpush2.bf16.msra.mxu0 %v7925
        %7993 = vmatprep.subr.bf16.mxu0 %v7924
        %7994 = vmatpush2.bf16.msra.mxu0 %v7923
        %7995 = vmatprep.subr.bf16.mxu0 %v7922
        %7996 = vmatpush2.bf16.msra.mxu0 %v7921
        %7997 = vmatprep.subr.bf16.mxu0 %v7920
        %7998 = vmatpush2.bf16.msra.mxu0 %v7919
        %7999 = vmatprep.mubr.bf16.mxu0 %v7796
        %8000 = vmatmul.mubr.bf16.gmra.mxu0 %v7784
        %v8001 = vpop.f32.mrf.mxu0
        %v8002 = vadd.f32 0.0, %v8001
        %v8003 = vpop.f32.mrf.mxu0
        %v8004 = vadd.f32 0.0, %v8003
        %v8005 = vpop.f32.mrf.mxu0
        %v8006 = vadd.f32 0.0, %v8005
        %v8007 = vpop.f32.mrf.mxu0
        %v8008 = vadd.f32 0.0, %v8007
        %8009 = vmatprep.mubr.bf16.mxu0 %v7802
        %8010 = vmatmul.mubr.bf16.gmra.mxu0 %v7799
        %v8011 = vpop.f32.mrf.mxu0
        %v8012 = vadd.f32 0.0, %v8011
        %v8013 = vpop.f32.mrf.mxu0
        %v8014 = vadd.f32 0.0, %v8013
        %v8015 = vpop.f32.mrf.mxu0
        %v8016 = vpop.f32.mrf.mxu0
        %8017 = vdwg.mxu0
        %v8050 = vunpack.c.l.b16 %v7708
        %v8051 = vunpack.c.h.b16 %v7708
        %v8052 = vunpack.c.l.b16 %v7709
        %v8053 = vunpack.c.h.b16 %v7709
        %v8054 = vunpack.c.l.b16 %v7710
        %v8055 = vunpack.c.h.b16 %v7710
        %v8056 = vunpack.c.l.b16 %v7711
        %v8057 = vunpack.c.h.b16 %v7711
        %v8058 = vunpack.c.l.b16 %v7712
        %v8059 = vunpack.c.h.b16 %v7712
        %v8060 = vunpack.c.l.b16 %v7713
        %v8061 = vunpack.c.h.b16 %v7713
        %v8062 = vunpack.c.l.b16 %v7714
        %v8063 = vunpack.c.h.b16 %v7714
        %v8064 = vunpack.c.l.b16 %v7715
        %v8065 = vunpack.c.h.b16 %v7715
        %v8066 = vunpack.c.l.b16 %v7716
        %v8067 = vunpack.c.h.b16 %v7716
        %v8068 = vunpack.c.l.b16 %v7717
        %v8069 = vunpack.c.h.b16 %v7717
        %v8070 = vunpack.c.l.b16 %v7718
        %v8071 = vunpack.c.h.b16 %v7718
        %v8072 = vunpack.c.l.b16 %v7719
        %v8073 = vunpack.c.h.b16 %v7719
        %v8074 = vunpack.c.l.b16 %v7720
        %v8075 = vunpack.c.h.b16 %v7720
        %v8076 = vunpack.c.l.b16 %v7721
        %v8077 = vunpack.c.h.b16 %v7721
        %v8078 = vunpack.c.l.b16 %v7722
        %v8079 = vunpack.c.h.b16 %v7722
        %v8080 = vunpack.c.l.b16 %v7723
        %v8081 = vunpack.c.h.b16 %v7723
        %v8082 = vunpack.c.l.b16 %v7724
        %v8083 = vunpack.c.h.b16 %v7724
        %v8084 = vunpack.c.l.b16 %v7725
        %v8085 = vunpack.c.h.b16 %v7725
        %v8086 = vunpack.c.l.b16 %v7726
        %v8087 = vunpack.c.h.b16 %v7726
        %v8088 = vunpack.c.l.b16 %v7727
        %v8089 = vunpack.c.h.b16 %v7727
        %v8090 = vunpack.c.l.b16 %v7728
        %v8091 = vunpack.c.h.b16 %v7728
        %v8092 = vunpack.c.l.b16 %v7729
        %v8093 = vunpack.c.h.b16 %v7729
        %v8094 = vunpack.c.l.b16 %v7730
        %v8095 = vunpack.c.h.b16 %v7730
        %v8096 = vunpack.c.l.b16 %v7731
        %v8097 = vunpack.c.h.b16 %v7731
        %v8098 = vunpack.c.l.b16 %v7732
        %v8099 = vunpack.c.h.b16 %v7732
        %v8100 = vunpack.c.l.b16 %v7733
        %v8101 = vunpack.c.h.b16 %v7733
        %v8102 = vunpack.c.l.b16 %v7734
        %v8103 = vunpack.c.h.b16 %v7734
        %v8104 = vunpack.c.l.b16 %v7735
        %v8105 = vunpack.c.h.b16 %v7735
        %v8106 = vunpack.c.l.b16 %v7736
        %v8107 = vunpack.c.h.b16 %v7736
        %v8108 = vunpack.c.l.b16 %v7737
        %v8109 = vunpack.c.h.b16 %v7737
        %v8110 = vunpack.c.l.b16 %v7738
        %v8111 = vunpack.c.h.b16 %v7738
        %v8112 = vunpack.c.l.b16 %v7739
        %v8113 = vunpack.c.h.b16 %v7739
        %v8114 = vpack.c.b16 %v8052, %v8050
        %v8115 = vpack.c.b16 %v8053, %v8051
        %v8116 = vpack.c.b16 %v8056, %v8054
        %v8117 = vpack.c.b16 %v8057, %v8055
        %v8118 = vpack.c.b16 %v8060, %v8058
        %v8119 = vpack.c.b16 %v8061, %v8059
        %v8120 = vpack.c.b16 %v8064, %v8062
        %v8121 = vpack.c.b16 %v8065, %v8063
        %v8122 = vpack.c.b16 %v8068, %v8066
        %v8123 = vpack.c.b16 %v8069, %v8067
        %v8124 = vpack.c.b16 %v8072, %v8070
        %v8125 = vpack.c.b16 %v8073, %v8071
        %v8126 = vpack.c.b16 %v8076, %v8074
        %v8127 = vpack.c.b16 %v8077, %v8075
        %v8128 = vpack.c.b16 %v8080, %v8078
        %v8129 = vpack.c.b16 %v8081, %v8079
        %v8130 = vpack.c.b16 %v8084, %v8082
        %v8131 = vpack.c.b16 %v8085, %v8083
        %v8132 = vpack.c.b16 %v8088, %v8086
        %v8133 = vpack.c.b16 %v8089, %v8087
        %v8134 = vpack.c.b16 %v8092, %v8090
        %v8135 = vpack.c.b16 %v8093, %v8091
        %v8136 = vpack.c.b16 %v8096, %v8094
        %v8137 = vpack.c.b16 %v8097, %v8095
        %v8138 = vpack.c.b16 %v8100, %v8098
        %v8139 = vpack.c.b16 %v8101, %v8099
        %v8140 = vpack.c.b16 %v8104, %v8102
        %v8141 = vpack.c.b16 %v8105, %v8103
        %v8142 = vpack.c.b16 %v8108, %v8106
        %v8143 = vpack.c.b16 %v8109, %v8107
        %v8144 = vpack.c.b16 %v8112, %v8110
        %v8145 = vpack.c.b16 %v8113, %v8111
        %8178 = vmatprep.subr.bf16.mxu0 %v8129
        %8179 = vmatpush1.bf16.msra.mxu0 %v8128
        %8180 = vmatprep.subr.bf16.mxu0 %v8127
        %8181 = vmatpush1.bf16.msra.mxu0 %v8126
        %8182 = vmatprep.subr.bf16.mxu0 %v8125
        %8183 = vmatpush1.bf16.msra.mxu0 %v8124
        %8184 = vmatprep.subr.bf16.mxu0 %v8123
        %8185 = vmatpush1.bf16.msra.mxu0 %v8122
        %8186 = vmatprep.subr.bf16.mxu0 %v8121
        %8187 = vmatpush1.bf16.msra.mxu0 %v8120
        %8188 = vmatprep.subr.bf16.mxu0 %v8119
        %8189 = vmatpush1.bf16.msra.mxu0 %v8118
        %8190 = vmatprep.subr.bf16.mxu0 %v8117
        %8191 = vmatpush1.bf16.msra.mxu0 %v8116
        %8192 = vmatprep.subr.bf16.mxu0 %v8115
        %8193 = vmatpush1.bf16.msra.mxu0 %v8114
        %8194 = vmatprep.subr.bf16.mxu0 %v8145
        %8195 = vmatpush2.bf16.msra.mxu0 %v8144
        %8196 = vmatprep.subr.bf16.mxu0 %v8143
        %8197 = vmatpush2.bf16.msra.mxu0 %v8142
        %8198 = vmatprep.subr.bf16.mxu0 %v8141
        %8199 = vmatpush2.bf16.msra.mxu0 %v8140
        %8200 = vmatprep.subr.bf16.mxu0 %v8139
        %8201 = vmatpush2.bf16.msra.mxu0 %v8138
        %8202 = vmatprep.subr.bf16.mxu0 %v8137
        %8203 = vmatpush2.bf16.msra.mxu0 %v8136
        %8204 = vmatprep.subr.bf16.mxu0 %v8135
        %8205 = vmatpush2.bf16.msra.mxu0 %v8134
        %8206 = vmatprep.subr.bf16.mxu0 %v8133
        %8207 = vmatpush2.bf16.msra.mxu0 %v8132
        %8208 = vmatprep.subr.bf16.mxu0 %v8131
        %8209 = vmatpush2.bf16.msra.mxu0 %v8130
        %8210 = vmatprep.mubr.bf16.mxu0 %v6968
        %8211 = vmatmul.mubr.bf16.gmra.mxu0 %v6967
        %v8212 = vpop.f32.mrf.mxu0
        %v8213 = vadd.f32 %v8002, %v8212
        %v8214 = vpop.f32.mrf.mxu0
        %v8215 = vadd.f32 %v8004, %v8214
        %v8216 = vpop.f32.mrf.mxu0
        %v8217 = vadd.f32 %v8006, %v8216
        %v8218 = vpop.f32.mrf.mxu0
        %v8219 = vadd.f32 %v8008, %v8218
        %8220 = vmatprep.mubr.bf16.mxu0 %v6970
        %8221 = vmatmul.mubr.bf16.gmra.mxu0 %v6969
        %v8222 = vpop.f32.mrf.mxu0
        %v8223 = vadd.f32 %v8012, %v8222
        %v8224 = vpop.f32.mrf.mxu0
        %v8225 = vadd.f32 %v8014, %v8224
        %v8226 = vpop.f32.mrf.mxu0
        %v8227 = vpop.f32.mrf.mxu0
        %8228 = vdwg.mxu0
        %s8229 = scalar_lea.vmem [#allocation15], 512
        %v8230 = vld [vmem:[%s8229] sm:$0xff]
        %v8231 = vld [vmem:[%s8229 + $0x8] sm:$0xff]
        %v8232 = vld [vmem:[%s8229 + $0x10] sm:$0xff]
        %v8233 = vld [vmem:[%s8229 + $0x18] sm:$0xff]
        %v8234 = vld [vmem:[%s8229 + $0x20] sm:$0xff]
        %v8235 = vld [vmem:[%s8229 + $0x28] sm:$0xff]
        %v8236 = vld [vmem:[%s8229 + $0x30] sm:$0xff]
        %v8237 = vld [vmem:[%s8229 + $0x38] sm:$0xff]
        %v8238 = vld [vmem:[%s8229 + $0x40] sm:$0xff]
        %v8239 = vld [vmem:[%s8229 + $0x48] sm:$0xff]
        %v8240 = vld [vmem:[%s8229 + $0x50] sm:$0xff]
        %v8241 = vld [vmem:[%s8229 + $0x58] sm:$0xff]
        %v8242 = vld [vmem:[%s8229 + $0x60] sm:$0xff]
        %v8243 = vld [vmem:[%s8229 + $0x68] sm:$0xff]
        %v8244 = vld [vmem:[%s8229 + $0x70] sm:$0xff]
        %v8245 = vld [vmem:[%s8229 + $0x78] sm:$0xff]
        %v8246 = vld [vmem:[%s8229 + $0x80] sm:$0xff]
        %v8247 = vld [vmem:[%s8229 + $0x88] sm:$0xff]
        %v8248 = vld [vmem:[%s8229 + $0x90] sm:$0xff]
        %v8249 = vld [vmem:[%s8229 + $0x98] sm:$0xff]
        %v8250 = vld [vmem:[%s8229 + $0xa0] sm:$0xff]
        %v8251 = vld [vmem:[%s8229 + $0xa8] sm:$0xff]
        %v8252 = vld [vmem:[%s8229 + $0xb0] sm:$0xff]
        %v8253 = vld [vmem:[%s8229 + $0xb8] sm:$0xff]
        %v8254 = vld [vmem:[%s8229 + $0xc0] sm:$0xff]
        %v8255 = vld [vmem:[%s8229 + $0xc8] sm:$0xff]
        %v8256 = vld [vmem:[%s8229 + $0xd0] sm:$0xff]
        %v8257 = vld [vmem:[%s8229 + $0xd8] sm:$0xff]
        %v8258 = vld [vmem:[%s8229 + $0xe0] sm:$0xff]
        %v8259 = vld [vmem:[%s8229 + $0xe8] sm:$0xff]
        %v8260 = vld [vmem:[%s8229 + $0xf0] sm:$0xff]
        %v8261 = vld [vmem:[%s8229 + $0xf8] sm:$0xff]
        %v8266 = vrot.slane %v6967, 1
        %v8267 = vrot.slane %v6969, 1
        %v8268 = vsel %vm1137, %v8266, %v8267
        %v8269 = vrot.slane %v6968, 1
        %v8270 = vrot.slane %v6970, 1
        %v8271 = vsel %vm1137, %v8269, %v8270
        %v8308 = vunpack.c.l.b16 %v8230
        %v8309 = vunpack.c.h.b16 %v8230
        %v8310 = vunpack.c.l.b16 %v8231
        %v8311 = vunpack.c.h.b16 %v8231
        %v8312 = vunpack.c.l.b16 %v8232
        %v8313 = vunpack.c.h.b16 %v8232
        %v8314 = vunpack.c.l.b16 %v8233
        %v8315 = vunpack.c.h.b16 %v8233
        %v8316 = vunpack.c.l.b16 %v8234
        %v8317 = vunpack.c.h.b16 %v8234
        %v8318 = vunpack.c.l.b16 %v8235
        %v8319 = vunpack.c.h.b16 %v8235
        %v8320 = vunpack.c.l.b16 %v8236
        %v8321 = vunpack.c.h.b16 %v8236
        %v8322 = vunpack.c.l.b16 %v8237
        %v8323 = vunpack.c.h.b16 %v8237
        %v8324 = vunpack.c.l.b16 %v8238
        %v8325 = vunpack.c.h.b16 %v8238
        %v8326 = vunpack.c.l.b16 %v8239
        %v8327 = vunpack.c.h.b16 %v8239
        %v8328 = vunpack.c.l.b16 %v8240
        %v8329 = vunpack.c.h.b16 %v8240
        %v8330 = vunpack.c.l.b16 %v8241
        %v8331 = vunpack.c.h.b16 %v8241
        %v8332 = vunpack.c.l.b16 %v8242
        %v8333 = vunpack.c.h.b16 %v8242
        %v8334 = vunpack.c.l.b16 %v8243
        %v8335 = vunpack.c.h.b16 %v8243
        %v8336 = vunpack.c.l.b16 %v8244
        %v8337 = vunpack.c.h.b16 %v8244
        %v8338 = vunpack.c.l.b16 %v8245
        %v8339 = vunpack.c.h.b16 %v8245
        %v8340 = vunpack.c.l.b16 %v8246
        %v8341 = vunpack.c.h.b16 %v8246
        %v8342 = vunpack.c.l.b16 %v8247
        %v8343 = vunpack.c.h.b16 %v8247
        %v8344 = vunpack.c.l.b16 %v8248
        %v8345 = vunpack.c.h.b16 %v8248
        %v8346 = vunpack.c.l.b16 %v8249
        %v8347 = vunpack.c.h.b16 %v8249
        %v8348 = vunpack.c.l.b16 %v8250
        %v8349 = vunpack.c.h.b16 %v8250
        %v8350 = vunpack.c.l.b16 %v8251
        %v8351 = vunpack.c.h.b16 %v8251
        %v8352 = vunpack.c.l.b16 %v8252
        %v8353 = vunpack.c.h.b16 %v8252
        %v8354 = vunpack.c.l.b16 %v8253
        %v8355 = vunpack.c.h.b16 %v8253
        %v8356 = vunpack.c.l.b16 %v8254
        %v8357 = vunpack.c.h.b16 %v8254
        %v8358 = vunpack.c.l.b16 %v8255
        %v8359 = vunpack.c.h.b16 %v8255
        %v8360 = vunpack.c.l.b16 %v8256
        %v8361 = vunpack.c.h.b16 %v8256
        %v8362 = vunpack.c.l.b16 %v8257
        %v8363 = vunpack.c.h.b16 %v8257
        %v8364 = vunpack.c.l.b16 %v8258
        %v8365 = vunpack.c.h.b16 %v8258
        %v8366 = vunpack.c.l.b16 %v8259
        %v8367 = vunpack.c.h.b16 %v8259
        %v8368 = vunpack.c.l.b16 %v8260
        %v8369 = vunpack.c.h.b16 %v8260
        %v8370 = vunpack.c.l.b16 %v8261
        %v8371 = vunpack.c.h.b16 %v8261
        %v8372 = vpack.c.b16 %v8310, %v8308
        %v8373 = vpack.c.b16 %v8311, %v8309
        %v8374 = vpack.c.b16 %v8314, %v8312
        %v8375 = vpack.c.b16 %v8315, %v8313
        %v8376 = vpack.c.b16 %v8318, %v8316
        %v8377 = vpack.c.b16 %v8319, %v8317
        %v8378 = vpack.c.b16 %v8322, %v8320
        %v8379 = vpack.c.b16 %v8323, %v8321
        %v8380 = vpack.c.b16 %v8326, %v8324
        %v8381 = vpack.c.b16 %v8327, %v8325
        %v8382 = vpack.c.b16 %v8330, %v8328
        %v8383 = vpack.c.b16 %v8331, %v8329
        %v8384 = vpack.c.b16 %v8334, %v8332
        %v8385 = vpack.c.b16 %v8335, %v8333
        %v8386 = vpack.c.b16 %v8338, %v8336
        %v8387 = vpack.c.b16 %v8339, %v8337
        %v8388 = vpack.c.b16 %v8342, %v8340
        %v8389 = vpack.c.b16 %v8343, %v8341
        %v8390 = vpack.c.b16 %v8346, %v8344
        %v8391 = vpack.c.b16 %v8347, %v8345
        %v8392 = vpack.c.b16 %v8350, %v8348
        %v8393 = vpack.c.b16 %v8351, %v8349
        %v8394 = vpack.c.b16 %v8354, %v8352
        %v8395 = vpack.c.b16 %v8355, %v8353
        %v8396 = vpack.c.b16 %v8358, %v8356
        %v8397 = vpack.c.b16 %v8359, %v8357
        %v8398 = vpack.c.b16 %v8362, %v8360
        %v8399 = vpack.c.b16 %v8363, %v8361
        %v8400 = vpack.c.b16 %v8366, %v8364
        %v8401 = vpack.c.b16 %v8367, %v8365
        %v8402 = vpack.c.b16 %v8370, %v8368
        %v8403 = vpack.c.b16 %v8371, %v8369
        %8436 = vmatprep.subr.bf16.mxu0 %v8387
        %8437 = vmatpush1.bf16.msra.mxu0 %v8386
        %8438 = vmatprep.subr.bf16.mxu0 %v8385
        %8439 = vmatpush1.bf16.msra.mxu0 %v8384
        %8440 = vmatprep.subr.bf16.mxu0 %v8383
        %8441 = vmatpush1.bf16.msra.mxu0 %v8382
        %8442 = vmatprep.subr.bf16.mxu0 %v8381
        %8443 = vmatpush1.bf16.msra.mxu0 %v8380
        %8444 = vmatprep.subr.bf16.mxu0 %v8379
        %8445 = vmatpush1.bf16.msra.mxu0 %v8378
        %8446 = vmatprep.subr.bf16.mxu0 %v8377
        %8447 = vmatpush1.bf16.msra.mxu0 %v8376
        %8448 = vmatprep.subr.bf16.mxu0 %v8375
        %8449 = vmatpush1.bf16.msra.mxu0 %v8374
        %8450 = vmatprep.subr.bf16.mxu0 %v8373
        %8451 = vmatpush1.bf16.msra.mxu0 %v8372
        %8452 = vmatprep.subr.bf16.mxu0 %v8403
        %8453 = vmatpush2.bf16.msra.mxu0 %v8402
        %8454 = vmatprep.subr.bf16.mxu0 %v8401
        %8455 = vmatpush2.bf16.msra.mxu0 %v8400
        %8456 = vmatprep.subr.bf16.mxu0 %v8399
        %8457 = vmatpush2.bf16.msra.mxu0 %v8398
        %8458 = vmatprep.subr.bf16.mxu0 %v8397
        %8459 = vmatpush2.bf16.msra.mxu0 %v8396
        %8460 = vmatprep.subr.bf16.mxu0 %v8395
        %8461 = vmatpush2.bf16.msra.mxu0 %v8394
        %8462 = vmatprep.subr.bf16.mxu0 %v8393
        %8463 = vmatpush2.bf16.msra.mxu0 %v8392
        %8464 = vmatprep.subr.bf16.mxu0 %v8391
        %8465 = vmatpush2.bf16.msra.mxu0 %v8390
        %8466 = vmatprep.subr.bf16.mxu0 %v8389
        %8467 = vmatpush2.bf16.msra.mxu0 %v8388
        %8468 = vmatprep.mubr.bf16.mxu0 %v8271
        %8469 = vmatmul.mubr.bf16.gmra.mxu0 %v8268
        %v8470 = vpop.f32.mrf.mxu0
        %v8471 = vadd.f32 0.0, %v8470
        %v8472 = vpop.f32.mrf.mxu0
        %v8473 = vadd.f32 0.0, %v8472
        %v8474 = vpop.f32.mrf.mxu0
        %v8475 = vadd.f32 0.0, %v8474
        %v8476 = vpop.f32.mrf.mxu0
        %v8477 = vadd.f32 0.0, %v8476
        %8478 = vmatprep.mubr.bf16.mxu0 %v8270
        %8479 = vmatmul.mubr.bf16.gmra.mxu0 %v8267
        %v8480 = vpop.f32.mrf.mxu0
        %v8481 = vadd.f32 0.0, %v8480
        %v8482 = vpop.f32.mrf.mxu0
        %v8483 = vadd.f32 0.0, %v8482
        %v8484 = vpop.f32.mrf.mxu0
        %v8485 = vpop.f32.mrf.mxu0
        %8486 = vdwg.mxu0
        %v8487 = vadd.f32 %v8213, %v8471
        %v8488 = vadd.f32 %v8215, %v8473
        %v8489 = vadd.f32 %v8217, %v8475
        %v8490 = vadd.f32 %v8219, %v8477
        %v8491 = vadd.f32 %v8223, %v8481
        %v8492 = vadd.f32 %v8225, %v8483
        %v8493 = vadd.f32 %v7702, %v8487
        %v8494 = vadd.f32 %v7703, %v8488
        %v8495 = vadd.f32 %v7704, %v8489
        %v8496 = vadd.f32 %v7705, %v8490
        %v8497 = vadd.f32 %v7706, %v8491
        %v8498 = vadd.f32 %v7707, %v8492
        %v8499 = vld [vmem:[%s19] sm:$0x3]
        %v8501 = vlaneseq
        %v8502 = vshrl.u32 %v8501, 7
        %v8503 = vsub.s32 0, %v8502
        %v8504 = vrot.slane %v8499, %v8503
        %v8505 = vlaneseq
        %v8506 = vshrl.u32 %v8505, 7
        %v8507 = vsub.s32 1, %v8506
        %v8508 = vrot.slane %v8499, %v8507
        %v8511 = vadd.f32 %v8493, %v8504
        %v8512 = vadd.f32 %v8494, %v8508
        %v8513 = vadd.f32 %v8495, %v8504
        %v8514 = vadd.f32 %v8496, %v8508
        %v8515 = vadd.f32 %v8497, %v8504
        %v8516 = vadd.f32 %v8498, %v8508
        %vm8517 = vcmp.ge.f32.partialorder %v8511, 0.0
        %vm8518 = vcmp.ge.f32.partialorder %v8512, 0.0
        %vm8519 = vcmp.ge.f32.partialorder %v8513, 0.0
        %vm8520 = vcmp.ge.f32.partialorder %v8514, 0.0
        %vm8521 = vcmp.ge.f32.partialorder %v8515, 0.0
        %vm8522 = vcmp.ge.f32.partialorder %v8516, 0.0
        %v8523 = vmul.f32 %v8511, 0.04
        %v8524 = vmul.f32 %v8512, 0.04
        %v8525 = vmul.f32 %v8513, 0.04
        %v8526 = vmul.f32 %v8514, 0.04
        %v8527 = vmul.f32 %v8515, 0.04
        %v8528 = vmul.f32 %v8516, 0.04
        %v8529 = vsel %vm8517, %v8511, %v8523
        %v8530 = vsel %vm8518, %v8512, %v8524
        %v8531 = vsel %vm8519, %v8513, %v8525
        %v8532 = vsel %vm8520, %v8514, %v8526
        %v8533 = vsel %vm8521, %v8515, %v8527
        %v8534 = vsel %vm8522, %v8516, %v8528
        %v8535 = vmul.f32 %v3651, %v6911
        %v8536 = vmul.f32 %v3652, %v6912
        %v8537 = vmul.f32 %v3653, %v6915
        %v8538 = vmul.f32 %v3654, %v6916
        %v8539 = vmul.f32 %v3655, %v6919
        %v8540 = vmul.f32 %v3656, %v6920
        %v8541 = vsub.f32 1.0, %v6911
        %v8542 = vsub.f32 1.0, %v6912
        %v8543 = vsub.f32 1.0, %v6915
        %v8544 = vsub.f32 1.0, %v6916
        %v8545 = vsub.f32 1.0, %v6919
        %v8546 = vsub.f32 1.0, %v6920
        %v8547 = vmul.f32 %v8529, %v8541
        %v8548 = vmul.f32 %v8530, %v8542
        %v8549 = vmul.f32 %v8531, %v8543
        %v8550 = vmul.f32 %v8532, %v8544
        %v8551 = vmul.f32 %v8533, %v8545
        %v8552 = vmul.f32 %v8534, %v8546
        %v8553 = vadd.f32 %v8535, %v8547
        %v8554 = vadd.f32 %v8536, %v8548
        %v8555 = vadd.f32 %v8537, %v8549
        %v8556 = vadd.f32 %v8538, %v8550
        %v8557 = vadd.f32 %v8539, %v8551
        %v8558 = vadd.f32 %v8540, %v8552
        %v8559 = vmul.f32 %v8553, %v1264
        %v8560 = vmul.f32 %v8554, %v1264
        %v8561 = vmul.f32 %v8555, %v1269
        %v8562 = vmul.f32 %v8556, %v1269
        %v8563 = vmul.f32 %v8557, %v1274
        %v8564 = vmul.f32 %v8558, %v1274
        %8565 = vst [vmem:[%s840] sm:$0xff] %v8559
        %8566 = vst [vmem:[%s840 + $0x8] sm:$0xff] %v8560
        %8567 = vst [vmem:[%s840 + $0x10] sm:$0xff] %v8561
        %8568 = vst [vmem:[%s840 + $0x18] sm:$0xff] %v8562
        %8569 = vst [vmem:[%s840 + $0x20] sm:$0x3] %v8563
        %8570 = vst [vmem:[%s840 + $0x28] sm:$0x3] %v8564
        %p8571 = scmp.lt.s32.totalorder %s38, 1
        %s8572 = scalar_select %p8571, %s38, 1
        %s8573 = smul.addr %s8572, 3
        %s8574 = smul.addr %s8573, 8
        %s8575 = scalar_lea.vmem %s20, %s8574
        %p8576 = scmp.lt.s32.totalorder %s38, 1
        %s8577 = scalar_select %p8576, %s38, 1
        %s8578 = smul.addr %s8577, 6
        %s8579 = smul.addr %s8578, 8
        %s8580 = scalar_lea.vmem %s21, %s8579
        // Predicated region
        $region137: #{tpu_custom_call.1} parent=99 // pred_check
          %p8581 = pneg %p491
        $region138: #{tpu_custom_call.1} parent=99 // pred_check_branch
          %8583 = sbr.rel (%p8581) target = $region140
        $region139: #{tpu_custom_call.1} parent=99 // pred_region
          _
        $region140: #{tpu_custom_call.1} parent=99 // pred_fallthru
          _
        // Predicated region
        $region141: #{tpu_custom_call.1} parent=99 // pred_check
          %p8584 = pneg %p517
        $region142: #{tpu_custom_call.1} parent=99 // pred_check_branch
          %8586 = sbr.rel (%p8584) target = $region144
        $region143: #{tpu_custom_call.1} parent=99 // pred_region
          _
        $region144: #{tpu_custom_call.1} parent=99 // pred_fallthru
          _
      $region100: #{tpu_custom_call.1} parent=5 // pred_fallthru
        _
      %p8587 = scmp.le.s32.totalorder 2, %s33
      // Predicated region
      $region145: #{tpu_custom_call.1} parent=5 // pred_check
        %p8588 = pneg %p8587
      $region146: #{tpu_custom_call.1} parent=5 // pred_check_branch
        %8590 = sbr.rel (%p8588) target = $region148
      $region147: #{tpu_custom_call.1} parent=5 // pred_region
        %s8591 = ssub.s32 %s33, 2
        // Predicated region
        $region149: #{tpu_custom_call.1} parent=147 // pred_check
          %p8592 = pneg %p497
        $region150: #{tpu_custom_call.1} parent=147 // pred_check_branch
          %8594 = sbr.rel (%p8592) target = $region152
        $region151: #{tpu_custom_call.1} parent=147 // pred_region
          %p8595 = scmp.lt.s32.totalorder %s39, 1
          %s8596 = scalar_select %p8595, %s39, 1
          %s8597 = smul.addr %s8596, 3
          %s8598 = smul.addr %s8597, 8
          %s8599 = scalar_lea.vmem %s20, %s8598
        $region152: #{tpu_custom_call.1} parent=147 // pred_fallthru
          _
        // Predicated region
        $region153: #{tpu_custom_call.1} parent=147 // pred_check
          %p8600 = pneg %p523
        $region154: #{tpu_custom_call.1} parent=147 // pred_check_branch
          %8602 = sbr.rel (%p8600) target = $region156
        $region155: #{tpu_custom_call.1} parent=147 // pred_region
          %p8603 = scmp.lt.s32.totalorder %s39, 1
          %s8604 = scalar_select %p8603, %s39, 1
          %s8605 = smul.addr %s8604, 6
          %s8606 = smul.addr %s8605, 8
          %s8607 = scalar_lea.vmem %s21, %s8606
        $region156: #{tpu_custom_call.1} parent=147 // pred_fallthru
          _
      $region148: #{tpu_custom_call.1} parent=5 // pred_fallthru
        _
    $region6: #{tpu_custom_call.1} parent=1 // loop_footer
      %s37 = sadd.s32 1, %s33
    $region7: #{tpu_custom_call.1} parent=1 // loop_footer_branch
      %32 = sbr.rel target = $region3
    $region8: #{tpu_custom_call.1} parent=1 // loop_exit
      _
    %8608 = vsyncpa [#allocation3], 1
    %s8609 = scalar_lea.sflag [#allocation3], 1
    %8610 = vsyncpa %s8609, 1
    %8611 = vsyncpa [#allocation5], 1
    %8612 = vsyncpa [#allocation8], 1
    %8613 = vsyncpa [#allocation11], 1
    %8614 = vsyncpa [#allocation14], 1

</llo_original>
